<compile_context>
chip_gen: v5e
topology: v5e:2x2
jax: 0.10.0
libtpu: 0.0.40
codegen_flags: <defaults>
</compile_context>

<pallas_src>
import functools
import math

import jax
import jax.numpy as jnp
from jax.experimental import pallas as pl
from jax.experimental.pallas import tpu as pltpu


COMPUTE_DTYPE = jnp.bfloat16          # MXU input dtype; accumulation is f32.
IMG_TILE = 8                          # images per grid step in the conv kernels
FC_TILE = 512                         # batch rows per grid step in the FC head
VMEM_LIMIT_BYTES = 32 * 1024 * 1024


def _compiler_params():
    return pltpu.CompilerParams(
        dimension_semantics=("parallel",),
        vmem_limit_bytes=VMEM_LIMIT_BYTES,
    )


def _batch_tile(n, target):
    # Full batch when small (block == full dim is always legal); otherwise a
    # multiple-of-8 tile with a cdiv grid (partial last block is masked).
    return n if n <= target else target


# ----------------------------------------------------------------------------
# Kernel 1: conv1 (5x5, Cin=1, Cout=64) + bias + 2x2 max-pool + ReLU, fused.
# ----------------------------------------------------------------------------
def _conv1_kernel(x_ref, w_ref, b_ref, o_ref, *, t):
    """x:[t,28,28] f32, w:[5,28,1536] banded, b:[1,1536] f32 -> o:[t,12,768] bf16.

    w[i, wj, wo*64+c] = conv1_w[c, 0, i, wj-wo]  (zero outside the 5-tap band),
    so the W-axis window is absorbed into the matmul and only the 5 H-axis
    shifts remain as accumulated matmuls.
    """
    x = x_ref[...]
    acc = jnp.zeros((t * 24, 24 * 64), jnp.float32)
    for i in range(5):                                        # 5 kernel rows
        lhs = x[:, i:i + 24, :].reshape(t * 24, 28).astype(COMPUTE_DTYPE)
        acc = acc + jnp.dot(lhs, w_ref[i], preferred_element_type=jnp.float32)
    acc = acc + b_ref[...]                                    # cols = (wo, c)
    # 2x2 max-pool.  Pool W pairs via 64-lane slices, H pairs via row regroup.
    mw = jnp.concatenate(
        [jnp.maximum(acc[:, 128 * k:128 * k + 64],
                     acc[:, 128 * k + 64:128 * (k + 1)]) for k in range(12)],
        axis=1)                                               # [t*24, 768]
    mw = mw.reshape(t * 12, 2, 12 * 64)                       # 24 rows/img -> pairs
    mh = jnp.maximum(mw[:, 0, :], mw[:, 1, :])                # [t*12, 768]
    out = jnp.maximum(mh, 0.0).reshape(t, 12, 12 * 64)        # ReLU
    o_ref[...] = out.astype(o_ref.dtype)


def conv1_pool_relu(x, wb, bias):
    n = x.shape[0]
    t = _batch_tile(n, IMG_TILE)
    kernel = functools.partial(_conv1_kernel, t=t)
    cost = pl.CostEstimate(
        flops=2 * n * 5 * 24 * 28 * 24 * 64,
        transcendentals=0,
        bytes_accessed=x.size * x.dtype.itemsize + wb.size * wb.dtype.itemsize
        + n * 12 * 768 * 2)
    return pl.pallas_call(
        kernel,
        out_shape=jax.ShapeDtypeStruct((n, 12, 768), COMPUTE_DTYPE),
        grid=(pl.cdiv(n, t),),
        in_specs=[
            pl.BlockSpec((t, 28, 28), lambda i: (i, 0, 0)),
            pl.BlockSpec((5, 28, 1536), lambda i: (0, 0, 0)),   # resident weights
            pl.BlockSpec((1, 1536), lambda i: (0, 0)),          # resident bias
        ],
        out_specs=pl.BlockSpec((t, 12, 768), lambda i: (i, 0, 0)),
        compiler_params=_compiler_params(),
        cost_estimate=cost,
    )(x, wb, bias)


# ----------------------------------------------------------------------------
# Kernel 2: conv2 (5x5, 64->64) + bias + 2x2 max-pool + ReLU + (H,W,C) flatten.
# ----------------------------------------------------------------------------
def _conv2_kernel(a_ref, w_ref, b_ref, o_ref, *, t):
    """a:[t,12,768] bf16 (a[img,h,w*64+ci]), w:[5,768,512] banded, b:[1,512]
    -> o:[t,1024] bf16 flattened (hp, wp, co); 1024 lanes => unmasked stores.

    w[i, wj*64+ci, wo*64+co] = conv2_w[co, ci, i, wj-wo] (zero outside band).
    """
    a = a_ref[...]
    acc = jnp.zeros((t * 8, 8 * 64), jnp.float32)
    for i in range(5):
        lhs = a[:, i:i + 8, :].reshape(t * 8, 768)
        acc = acc + jnp.dot(lhs, w_ref[i], preferred_element_type=jnp.float32)
    acc = acc + b_ref[...]
    mw = jnp.concatenate(
        [jnp.maximum(acc[:, 128 * k:128 * k + 64],
                     acc[:, 128 * k + 64:128 * (k + 1)]) for k in range(4)],
        axis=1)                                               # [t*8, 256]
    mw = mw.reshape(t * 4, 2, 256)                            # 8 rows/img -> pairs
    mh = jnp.maximum(mw[:, 0, :], mw[:, 1, :])                # [t*4, 256]
    mh = jnp.maximum(mh, 0.0).reshape(t, 4, 256)              # ReLU, rows=(img,hp)
    o_ref[...] = jnp.concatenate([mh[:, h, :] for h in range(4)],
                                 axis=1).astype(o_ref.dtype)  # (hp, wp, co) flat


def conv2_pool_relu(a1, wb, bias):
    n = a1.shape[0]
    t = _batch_tile(n, IMG_TILE)
    kernel = functools.partial(_conv2_kernel, t=t)
    cost = pl.CostEstimate(
        flops=2 * n * 5 * 8 * 768 * 512,
        transcendentals=0,
        bytes_accessed=a1.size * a1.dtype.itemsize + wb.size * wb.dtype.itemsize
        + n * 1024 * 2)
    return pl.pallas_call(
        kernel,
        out_shape=jax.ShapeDtypeStruct((n, 1024), COMPUTE_DTYPE),
        grid=(pl.cdiv(n, t),),
        in_specs=[
            pl.BlockSpec((t, 12, 768), lambda i: (i, 0, 0)),
            pl.BlockSpec((5, 768, 512), lambda i: (0, 0, 0)),   # resident weights
            pl.BlockSpec((1, 512), lambda i: (0, 0)),           # resident bias
        ],
        out_specs=pl.BlockSpec((t, 1024), lambda i: (i, 0)),
        compiler_params=_compiler_params(),
        cost_estimate=cost,
    )(a1, wb, bias)


# ----------------------------------------------------------------------------
# Kernel 3: fused FC tail -- fc1+relu, fc2+relu, fc, log_softmax.
# ----------------------------------------------------------------------------
def _fc_head_kernel(x_ref, w1_ref, b1_ref, w2_ref, b2_ref, w3_ref, b3_ref, o_ref):
    h = jnp.dot(x_ref[...], w1_ref[...], preferred_element_type=jnp.float32)
    h = jnp.maximum(h + b1_ref[...], 0.0)
    h = jnp.dot(h.astype(COMPUTE_DTYPE), w2_ref[...],
                preferred_element_type=jnp.float32)
    h = jnp.maximum(h + b2_ref[...], 0.0)
    z = jnp.dot(h.astype(COMPUTE_DTYPE), w3_ref[...],
                preferred_element_type=jnp.float32) + b3_ref[...]
    # Row-wise log_softmax (padded tail rows, if any, are masked on store).
    z = z - jnp.max(z, axis=-1, keepdims=True)
    lse = jnp.log(jnp.sum(jnp.exp(z), axis=-1, keepdims=True))
    o_ref[...] = (z - lse).astype(o_ref.dtype)


def fc_head(x, w1, b1, w2, b2, w3, b3):
    n, k1 = x.shape
    h1, h2, dim_out = w1.shape[1], w2.shape[1], w3.shape[1]
    tm = _batch_tile(n, FC_TILE)
    cost = pl.CostEstimate(
        flops=2 * n * (k1 * h1 + h1 * h2 + h2 * dim_out),
        transcendentals=n * (dim_out + 1),
        bytes_accessed=x.size * x.dtype.itemsize
        + 2 * (w1.size + w2.size + w3.size) + n * dim_out * 4)
    return pl.pallas_call(
        _fc_head_kernel,
        out_shape=jax.ShapeDtypeStruct((n, dim_out), jnp.float32),
        grid=(pl.cdiv(n, tm),),
        in_specs=[
            pl.BlockSpec((tm, k1), lambda i: (i, 0)),
            pl.BlockSpec((k1, h1), lambda i: (0, 0)),
            pl.BlockSpec((1, h1), lambda i: (0, 0)),
            pl.BlockSpec((h1, h2), lambda i: (0, 0)),
            pl.BlockSpec((1, h2), lambda i: (0, 0)),
            pl.BlockSpec((h2, dim_out), lambda i: (0, 0)),
            pl.BlockSpec((1, dim_out), lambda i: (0, 0)),
        ],
        out_specs=pl.BlockSpec((tm, dim_out), lambda i: (i, 0)),
        compiler_params=_compiler_params(),
        cost_estimate=cost,
    )(x, w1, b1, w2, b2, w3, b3)


# ----------------------------------------------------------------------------
# Parameters (PyTorch-shaped) + one-time packing into banded matmul layout.
# ----------------------------------------------------------------------------
def init_params(key, dim_out):
    ks = jax.random.split(key, 10)

    def u(k, shape, fan_in):
        bound = 1.0 / math.sqrt(fan_in)
        return jax.random.uniform(k, shape, jnp.float32, -bound, bound)

    return {
        "conv1_w": u(ks[0], (64, 1, 5, 5), 1 * 5 * 5),
        "conv1_b": u(ks[1], (64,), 1 * 5 * 5),
        "conv2_w": u(ks[2], (64, 64, 5, 5), 64 * 5 * 5),
        "conv2_b": u(ks[3], (64,), 64 * 5 * 5),
        "fc1_w": u(ks[4], (128, 1024), 1024),
        "fc1_b": u(ks[5], (128,), 1024),
        "fc2_w": u(ks[6], (64, 128), 128),
        "fc2_b": u(ks[7], (64,), 128),
        "fc_w": u(ks[8], (dim_out, 64), 64),
        "fc_b": u(ks[9], (dim_out,), 64),
    }


def pack_params(params):
    """One-time packing: banded conv weights, tiled biases, permuted FC weights."""
    cd = COMPUTE_DTYPE

    # conv1 banded: Wb1[i, wj, wo*64+c] = conv1_w[c, 0, i, wj - wo] (0<=wj-wo<5)
    w1_hwc = jnp.transpose(params["conv1_w"][:, 0], (1, 2, 0))   # [i, j, c]
    wo1 = jnp.arange(24)
    b1m = []
    for i in range(5):
        m = jnp.zeros((28, 24, 64), jnp.float32)
        for j in range(5):
            m = m.at[wo1 + j, wo1, :].add(w1_hwc[i, j][None, :])
        b1m.append(m.reshape(28, 24 * 64))
    conv1_wb = jnp.stack(b1m, axis=0)                            # [5, 28, 1536]

    # conv2 banded: Wb2[i, wj*64+ci, wo*64+co] = conv2_w[co, ci, i, wj - wo]
    w2 = params["conv2_w"]
    wo2 = jnp.arange(8)
    b2m = []
    for i in range(5):
        m = jnp.zeros((12, 64, 8, 64), jnp.float32)              # [wj, ci, wo, co]
        for j in range(5):
            blk = jnp.transpose(w2[:, :, i, j])                  # [ci, co]
            m = m.at[wo2 + j, :, wo2, :].add(blk[None, :, :])
        b2m.append(m.reshape(12 * 64, 8 * 64))
    conv2_wb = jnp.stack(b2m, axis=0)                            # [5, 768, 512]

    # fc1 consumes the (hp, wp, co)-flattened conv2 features; permute rows so it
    # matches PyTorch's NCHW x.view(-1, 1024) exactly.
    fc1_wp = jnp.transpose(params["fc1_w"].reshape(128, 64, 4, 4),
                           (2, 3, 1, 0)).reshape(1024, 128)
    dim_out = params["fc_b"].shape[0]
    return {
        "conv1_wb": conv1_wb.astype(cd),
        "conv1_b": jnp.tile(params["conv1_b"].reshape(1, 64), (1, 24)).astype(jnp.float32),
        "conv2_wb": conv2_wb.astype(cd),
        "conv2_b": jnp.tile(params["conv2_b"].reshape(1, 64), (1, 8)).astype(jnp.float32),
        "fc1_w": fc1_wp.astype(cd),
        "fc1_b": params["fc1_b"].reshape(1, 128).astype(jnp.float32),
        "fc2_w": params["fc2_w"].T.astype(cd),
        "fc2_b": params["fc2_b"].reshape(1, 64).astype(jnp.float32),
        "fc_w": params["fc_w"].T.astype(cd),
        "fc_b": params["fc_b"].reshape(1, dim_out).astype(jnp.float32),
    }


# ----------------------------------------------------------------------------
# Forward pass (mirrors CNNMnist.forward); expects NCHW [N, 1, 28, 28].
# ----------------------------------------------------------------------------
def cnn_mnist_forward(packed, x_nchw):
    n = x_nchw.shape[0]
    x = x_nchw.reshape(n, 28, 28).astype(jnp.float32)            # Cin == 1
    a1 = conv1_pool_relu(x, packed["conv1_wb"], packed["conv1_b"])     # [N,12,768]
    # TODO(synk): F.dropout2d defaults to training=True in the reference forward;
    # PyTorch RNG cannot be reproduced here, dropout applied as identity (eval).
    feat = conv2_pool_relu(a1, packed["conv2_wb"], packed["conv2_b"])  # [N,1024]
    return fc_head(feat,
                   packed["fc1_w"], packed["fc1_b"],
                   packed["fc2_w"], packed["fc2_b"],
                   packed["fc_w"], packed["fc_b"])


# ----------------------------------------------------------------------------
# Pure-JAX reference (f32) for correctness checking.
# ----------------------------------------------------------------------------
def reference_forward(params, x_nchw):
    dn = ("NCHW", "OIHW", "NCHW")
    y = jax.lax.conv_general_dilated(x_nchw.astype(jnp.float32), params["conv1_w"],
                                     (1, 1), "VALID", dimension_numbers=dn)
    y = y + params["conv1_b"][None, :, None, None]
    y = jax.lax.reduce_window(y, -jnp.inf, jax.lax.max, (1, 1, 2, 2), (1, 1, 2, 2), "VALID")
    y = jnp.maximum(y, 0.0)
    y = jax.lax.conv_general_dilated(y, params["conv2_w"], (1, 1), "VALID",
                                     dimension_numbers=dn)
    y = y + params["conv2_b"][None, :, None, None]
    y = jax.lax.reduce_window(y, -jnp.inf, jax.lax.max, (1, 1, 2, 2), (1, 1, 2, 2), "VALID")
    y = jnp.maximum(y, 0.0)
    y = y.reshape(y.shape[0], -1)                                # NCHW flatten
    y = jnp.maximum(y @ params["fc1_w"].T + params["fc1_b"], 0.0)
    y = jnp.maximum(y @ params["fc2_w"].T + params["fc2_b"], 0.0)
    z = y @ params["fc_w"].T + params["fc_b"]
    return jax.nn.log_softmax(z, axis=1)


if __name__ == "__main__":
    dim_out = 10
    key = jax.random.PRNGKey(0)
    kx, kp = jax.random.split(key)

    # batch=2; spatial must be 28x28 so the flattened conv features are 1024.
    x = jax.random.normal(kx, (2, 1, 28, 28), dtype=jnp.float32)
    params = init_params(kp, dim_out)
    packed = pack_params(params)

    fwd = jax.jit(cnn_mnist_forward)
    out = jax.block_until_ready(fwd(packed, x))

    assert out.shape == (2, dim_out)
    # log_softmax rows must exponentiate-sum to 1
    assert bool(jnp.allclose(jnp.exp(out).sum(axis=1), 1.0, atol=1e-4))
    # match the f32 reference up to bf16 MXU-input rounding
    ref = reference_forward(params, x)
    assert bool(jnp.allclose(out, ref, atol=5e-2)), float(jnp.max(jnp.abs(out - ref)))
    print("KERNEL_OK")
</pallas_src>

<mosaic_0001>
module attributes {stable_mosaic.version = 11 : i64} {
  func.func @_conv2_kernel(%arg0: i32, %arg1: memref<2x12x768xbf16, #tpu.memory_space<vmem>>, %arg2: memref<5x768x512xbf16, #tpu.memory_space<vmem>>, %arg3: memref<1x512xf32, #tpu.memory_space<vmem>>, %arg4: memref<2x1024xbf16, #tpu.memory_space<vmem>>) attributes {dimension_semantics = [#tpu.dimension_semantics<parallel>], iteration_bounds = array<i64: 1>, scalar_prefetch = 0 : i64, scratch_operands = 0 : i64, tpu.core_type = #tpu.core_type<tc>, window_params = [{transform_indices = @transform_0, window_bounds = array<i64: 2, 12, 768>}, {pipeline_mode = #tpu.pipeline_mode<synchronous>, transform_indices = @transform_1, window_bounds = array<i64: 5, 768, 512>}, {pipeline_mode = #tpu.pipeline_mode<synchronous>, transform_indices = @transform_2, window_bounds = array<i64: 1, 512>}, {transform_indices = @transform_3, window_bounds = array<i64: 2, 1024>}]} {
    %c0 = arith.constant 0 : index
    %c0_0 = arith.constant 0 : index
    %c0_1 = arith.constant 0 : index
    %0 = vector.load %arg1[%c0, %c0_0, %c0_1] : memref<2x12x768xbf16, #tpu.memory_space<vmem>>, vector<2x12x768xbf16>
    %cst = arith.constant 0.000000e+00 : f32
    %1 = vector.broadcast %cst : f32 to vector<16x512xf32>
    %2 = vector.extract_strided_slice %0 {offsets = [0, 0, 0], sizes = [2, 8, 768], strides = [1, 1, 1]} : vector<2x12x768xbf16> to vector<2x8x768xbf16>
    %3 = vector.shape_cast %2 : vector<2x8x768xbf16> to vector<16x768xbf16>
    %c0_2 = arith.constant 0 : index
    %c0_3 = arith.constant 0 : index
    %c0_4 = arith.constant 0 : index
    %4 = vector.load %arg2[%c0_2, %c0_3, %c0_4] : memref<5x768x512xbf16, #tpu.memory_space<vmem>>, vector<1x768x512xbf16>
    %5 = vector.shape_cast %4 : vector<1x768x512xbf16> to vector<768x512xbf16>
    %cst_5 = arith.constant dense<0.000000e+00> : vector<16x512xf32>
    %6 = tpu.matmul %3, %5, %cst_5 {dimension_numbers = #tpu.dot_dimension_numbers<[1], [0], [0], [1], [0, 0, 1, 1], [], []>} : vector<16x768xbf16>, vector<768x512xbf16>, vector<16x512xf32> -> vector<16x512xf32>
    %7 = arith.addf %1, %6 : vector<16x512xf32>
    %8 = vector.extract_strided_slice %0 {offsets = [0, 1, 0], sizes = [2, 8, 768], strides = [1, 1, 1]} : vector<2x12x768xbf16> to vector<2x8x768xbf16>
    %9 = vector.shape_cast %8 : vector<2x8x768xbf16> to vector<16x768xbf16>
    %c1 = arith.constant 1 : index
    %c0_6 = arith.constant 0 : index
    %c0_7 = arith.constant 0 : index
    %10 = vector.load %arg2[%c1, %c0_6, %c0_7] : memref<5x768x512xbf16, #tpu.memory_space<vmem>>, vector<1x768x512xbf16>
    %11 = vector.shape_cast %10 : vector<1x768x512xbf16> to vector<768x512xbf16>
    %cst_8 = arith.constant dense<0.000000e+00> : vector<16x512xf32>
    %12 = tpu.matmul %9, %11, %cst_8 {dimension_numbers = #tpu.dot_dimension_numbers<[1], [0], [0], [1], [0, 0, 1, 1], [], []>} : vector<16x768xbf16>, vector<768x512xbf16>, vector<16x512xf32> -> vector<16x512xf32>
    %13 = arith.addf %7, %12 : vector<16x512xf32>
    %14 = vector.extract_strided_slice %0 {offsets = [0, 2, 0], sizes = [2, 8, 768], strides = [1, 1, 1]} : vector<2x12x768xbf16> to vector<2x8x768xbf16>
    %15 = vector.shape_cast %14 : vector<2x8x768xbf16> to vector<16x768xbf16>
    %c2 = arith.constant 2 : index
    %c0_9 = arith.constant 0 : index
    %c0_10 = arith.constant 0 : index
    %16 = vector.load %arg2[%c2, %c0_9, %c0_10] : memref<5x768x512xbf16, #tpu.memory_space<vmem>>, vector<1x768x512xbf16>
    %17 = vector.shape_cast %16 : vector<1x768x512xbf16> to vector<768x512xbf16>
    %cst_11 = arith.constant dense<0.000000e+00> : vector<16x512xf32>
    %18 = tpu.matmul %15, %17, %cst_11 {dimension_numbers = #tpu.dot_dimension_numbers<[1], [0], [0], [1], [0, 0, 1, 1], [], []>} : vector<16x768xbf16>, vector<768x512xbf16>, vector<16x512xf32> -> vector<16x512xf32>
    %19 = arith.addf %13, %18 : vector<16x512xf32>
    %20 = vector.extract_strided_slice %0 {offsets = [0, 3, 0], sizes = [2, 8, 768], strides = [1, 1, 1]} : vector<2x12x768xbf16> to vector<2x8x768xbf16>
    %21 = vector.shape_cast %20 : vector<2x8x768xbf16> to vector<16x768xbf16>
    %c3 = arith.constant 3 : index
    %c0_12 = arith.constant 0 : index
    %c0_13 = arith.constant 0 : index
    %22 = vector.load %arg2[%c3, %c0_12, %c0_13] : memref<5x768x512xbf16, #tpu.memory_space<vmem>>, vector<1x768x512xbf16>
    %23 = vector.shape_cast %22 : vector<1x768x512xbf16> to vector<768x512xbf16>
    %cst_14 = arith.constant dense<0.000000e+00> : vector<16x512xf32>
    %24 = tpu.matmul %21, %23, %cst_14 {dimension_numbers = #tpu.dot_dimension_numbers<[1], [0], [0], [1], [0, 0, 1, 1], [], []>} : vector<16x768xbf16>, vector<768x512xbf16>, vector<16x512xf32> -> vector<16x512xf32>
    %25 = arith.addf %19, %24 : vector<16x512xf32>
    %26 = vector.extract_strided_slice %0 {offsets = [0, 4, 0], sizes = [2, 8, 768], strides = [1, 1, 1]} : vector<2x12x768xbf16> to vector<2x8x768xbf16>
    %27 = vector.shape_cast %26 : vector<2x8x768xbf16> to vector<16x768xbf16>
    %c4 = arith.constant 4 : index
    %c0_15 = arith.constant 0 : index
    %c0_16 = arith.constant 0 : index
    %28 = vector.load %arg2[%c4, %c0_15, %c0_16] : memref<5x768x512xbf16, #tpu.memory_space<vmem>>, vector<1x768x512xbf16>
    %29 = vector.shape_cast %28 : vector<1x768x512xbf16> to vector<768x512xbf16>
    %cst_17 = arith.constant dense<0.000000e+00> : vector<16x512xf32>
    %30 = tpu.matmul %27, %29, %cst_17 {dimension_numbers = #tpu.dot_dimension_numbers<[1], [0], [0], [1], [0, 0, 1, 1], [], []>} : vector<16x768xbf16>, vector<768x512xbf16>, vector<16x512xf32> -> vector<16x512xf32>
    %31 = arith.addf %25, %30 : vector<16x512xf32>
    %c0_18 = arith.constant 0 : index
    %c0_19 = arith.constant 0 : index
    %32 = vector.load %arg3[%c0_18, %c0_19] : memref<1x512xf32, #tpu.memory_space<vmem>>, vector<1x512xf32>
    %33 = vector.broadcast %32 : vector<1x512xf32> to vector<16x512xf32>
    %34 = arith.addf %31, %33 : vector<16x512xf32>
    %35 = vector.extract_strided_slice %34 {offsets = [0, 0], sizes = [16, 64], strides = [1, 1]} : vector<16x512xf32> to vector<16x64xf32>
    %36 = vector.extract_strided_slice %34 {offsets = [0, 64], sizes = [16, 64], strides = [1, 1]} : vector<16x512xf32> to vector<16x64xf32>
    %37 = arith.maximumf %35, %36 : vector<16x64xf32>
    %38 = vector.extract_strided_slice %34 {offsets = [0, 128], sizes = [16, 64], strides = [1, 1]} : vector<16x512xf32> to vector<16x64xf32>
    %39 = vector.extract_strided_slice %34 {offsets = [0, 192], sizes = [16, 64], strides = [1, 1]} : vector<16x512xf32> to vector<16x64xf32>
    %40 = arith.maximumf %38, %39 : vector<16x64xf32>
    %41 = vector.extract_strided_slice %34 {offsets = [0, 256], sizes = [16, 64], strides = [1, 1]} : vector<16x512xf32> to vector<16x64xf32>
    %42 = vector.extract_strided_slice %34 {offsets = [0, 320], sizes = [16, 64], strides = [1, 1]} : vector<16x512xf32> to vector<16x64xf32>
    %43 = arith.maximumf %41, %42 : vector<16x64xf32>
    %44 = vector.extract_strided_slice %34 {offsets = [0, 384], sizes = [16, 64], strides = [1, 1]} : vector<16x512xf32> to vector<16x64xf32>
    %45 = vector.extract_strided_slice %34 {offsets = [0, 448], sizes = [16, 64], strides = [1, 1]} : vector<16x512xf32> to vector<16x64xf32>
    %46 = arith.maximumf %44, %45 : vector<16x64xf32>
    %47 = tpu.concatenate %37, %40, %43, %46 in 1 : vector<16x64xf32>, vector<16x64xf32>, vector<16x64xf32>, vector<16x64xf32> -> vector<16x256xf32>
    %48 = vector.shape_cast %47 : vector<16x256xf32> to vector<8x2x256xf32>
    %49 = vector.extract_strided_slice %48 {offsets = [0, 0, 0], sizes = [8, 1, 256], strides = [1, 1, 1]} : vector<8x2x256xf32> to vector<8x1x256xf32>
    %50 = vector.shape_cast %49 : vector<8x1x256xf32> to vector<8x256xf32>
    %51 = vector.extract_strided_slice %48 {offsets = [0, 1, 0], sizes = [8, 1, 256], strides = [1, 1, 1]} : vector<8x2x256xf32> to vector<8x1x256xf32>
    %52 = vector.shape_cast %51 : vector<8x1x256xf32> to vector<8x256xf32>
    %53 = arith.maximumf %50, %52 : vector<8x256xf32>
    %cst_20 = arith.constant 0.000000e+00 : f32
    %54 = vector.broadcast %cst_20 : f32 to vector<8x256xf32>
    %55 = arith.maximumf %53, %54 : vector<8x256xf32>
    %56 = vector.shape_cast %55 : vector<8x256xf32> to vector<2x4x256xf32>
    %57 = vector.extract_strided_slice %56 {offsets = [0, 0, 0], sizes = [2, 1, 256], strides = [1, 1, 1]} : vector<2x4x256xf32> to vector<2x1x256xf32>
    %58 = vector.shape_cast %57 : vector<2x1x256xf32> to vector<2x256xf32>
    %59 = vector.extract_strided_slice %56 {offsets = [0, 1, 0], sizes = [2, 1, 256], strides = [1, 1, 1]} : vector<2x4x256xf32> to vector<2x1x256xf32>
    %60 = vector.shape_cast %59 : vector<2x1x256xf32> to vector<2x256xf32>
    %61 = vector.extract_strided_slice %56 {offsets = [0, 2, 0], sizes = [2, 1, 256], strides = [1, 1, 1]} : vector<2x4x256xf32> to vector<2x1x256xf32>
    %62 = vector.shape_cast %61 : vector<2x1x256xf32> to vector<2x256xf32>
    %63 = vector.extract_strided_slice %56 {offsets = [0, 3, 0], sizes = [2, 1, 256], strides = [1, 1, 1]} : vector<2x4x256xf32> to vector<2x1x256xf32>
    %64 = vector.shape_cast %63 : vector<2x1x256xf32> to vector<2x256xf32>
    %65 = tpu.concatenate %58, %60, %62, %64 in 1 : vector<2x256xf32>, vector<2x256xf32>, vector<2x256xf32>, vector<2x256xf32> -> vector<2x1024xf32>
    %66 = arith.truncf %65 : vector<2x1024xf32> to vector<2x1024xbf16>
    %c0_21 = arith.constant 0 : index
    %c0_22 = arith.constant 0 : index
    %67 = vector.load %arg4[%c0_21, %c0_22] : memref<2x1024xbf16, #tpu.memory_space<vmem>>, vector<2x1024xbf16>
    tpu.vector_store %arg4[%c0_21, %c0_22], %66 {strides = array<i32>} : memref<2x1024xbf16, #tpu.memory_space<vmem>>, vector<2x1024xbf16>,
    return
  }
  func.func @transform_0(%arg0: i32) -> (i32, i32, i32) {
    %c0_i32 = arith.constant 0 : i32
    %c0_i32_0 = arith.constant 0 : i32
    %c0_i32_1 = arith.constant 0 : i32
    return %arg0, %c0_i32, %c0_i32_0 : i32, i32, i32
  }
  func.func @transform_1(%arg0: i32) -> (i32, i32, i32) {
    %c0_i32 = arith.constant 0 : i32
    %c0_i32_0 = arith.constant 0 : i32
    %c0_i32_1 = arith.constant 0 : i32
    %c0_i32_2 = arith.constant 0 : i32
    return %c0_i32, %c0_i32_0, %c0_i32_1 : i32, i32, i32
  }
  func.func @transform_2(%arg0: i32) -> (i32, i32) {
    %c0_i32 = arith.constant 0 : i32
    %c0_i32_0 = arith.constant 0 : i32
    %c0_i32_1 = arith.constant 0 : i32
    return %c0_i32, %c0_i32_0 : i32, i32
  }
  func.func @transform_3(%arg0: i32) -> (i32, i32) {
    %c0_i32 = arith.constant 0 : i32
    %c0_i32_0 = arith.constant 0 : i32
    return %arg0, %c0_i32 : i32, i32
  }
}

module attributes {stable_mosaic.version = 11 : i64} {
  func.func @_conv1_kernel(%arg0: i32, %arg1: memref<2x28x28xf32, #tpu.memory_space<vmem>>, %arg2: memref<5x28x1536xbf16, #tpu.memory_space<vmem>>, %arg3: memref<1x1536xf32, #tpu.memory_space<vmem>>, %arg4: memref<2x12x768xbf16, #tpu.memory_space<vmem>>) attributes {dimension_semantics = [#tpu.dimension_semantics<parallel>], iteration_bounds = array<i64: 1>, scalar_prefetch = 0 : i64, scratch_operands = 0 : i64, tpu.core_type = #tpu.core_type<tc>, window_params = [{transform_indices = @transform_0, window_bounds = array<i64: 2, 28, 28>}, {pipeline_mode = #tpu.pipeline_mode<synchronous>, transform_indices = @transform_1, window_bounds = array<i64: 5, 28, 1536>}, {pipeline_mode = #tpu.pipeline_mode<synchronous>, transform_indices = @transform_2, window_bounds = array<i64: 1, 1536>}, {transform_indices = @transform_3, window_bounds = array<i64: 2, 12, 768>}]} {
    %c0 = arith.constant 0 : index
    %c0_0 = arith.constant 0 : index
    %c0_1 = arith.constant 0 : index
    %0 = vector.load %arg1[%c0, %c0_0, %c0_1] : memref<2x28x28xf32, #tpu.memory_space<vmem>>, vector<2x28x28xf32>
    %cst = arith.constant 0.000000e+00 : f32
    %1 = vector.broadcast %cst : f32 to vector<48x1536xf32>
    %2 = vector.extract_strided_slice %0 {offsets = [0, 0, 0], sizes = [2, 24, 28], strides = [1, 1, 1]} : vector<2x28x28xf32> to vector<2x24x28xf32>
    %3 = vector.shape_cast %2 : vector<2x24x28xf32> to vector<48x28xf32>
    %4 = arith.truncf %3 : vector<48x28xf32> to vector<48x28xbf16>
    %c0_2 = arith.constant 0 : index
    %c0_3 = arith.constant 0 : index
    %c0_4 = arith.constant 0 : index
    %5 = vector.load %arg2[%c0_2, %c0_3, %c0_4] : memref<5x28x1536xbf16, #tpu.memory_space<vmem>>, vector<1x28x1536xbf16>
    %6 = vector.shape_cast %5 : vector<1x28x1536xbf16> to vector<28x1536xbf16>
    %cst_5 = arith.constant dense<0.000000e+00> : vector<48x1536xf32>
    %7 = tpu.matmul %4, %6, %cst_5 {dimension_numbers = #tpu.dot_dimension_numbers<[1], [0], [0], [1], [0, 0, 1, 1], [], []>} : vector<48x28xbf16>, vector<28x1536xbf16>, vector<48x1536xf32> -> vector<48x1536xf32>
    %8 = arith.addf %1, %7 : vector<48x1536xf32>
    %9 = vector.extract_strided_slice %0 {offsets = [0, 1, 0], sizes = [2, 24, 28], strides = [1, 1, 1]} : vector<2x28x28xf32> to vector<2x24x28xf32>
    %10 = vector.shape_cast %9 : vector<2x24x28xf32> to vector<48x28xf32>
    %11 = arith.truncf %10 : vector<48x28xf32> to vector<48x28xbf16>
    %c1 = arith.constant 1 : index
    %c0_6 = arith.constant 0 : index
    %c0_7 = arith.constant 0 : index
    %12 = vector.load %arg2[%c1, %c0_6, %c0_7] : memref<5x28x1536xbf16, #tpu.memory_space<vmem>>, vector<1x28x1536xbf16>
    %13 = vector.shape_cast %12 : vector<1x28x1536xbf16> to vector<28x1536xbf16>
    %cst_8 = arith.constant dense<0.000000e+00> : vector<48x1536xf32>
    %14 = tpu.matmul %11, %13, %cst_8 {dimension_numbers = #tpu.dot_dimension_numbers<[1], [0], [0], [1], [0, 0, 1, 1], [], []>} : vector<48x28xbf16>, vector<28x1536xbf16>, vector<48x1536xf32> -> vector<48x1536xf32>
    %15 = arith.addf %8, %14 : vector<48x1536xf32>
    %16 = vector.extract_strided_slice %0 {offsets = [0, 2, 0], sizes = [2, 24, 28], strides = [1, 1, 1]} : vector<2x28x28xf32> to vector<2x24x28xf32>
    %17 = vector.shape_cast %16 : vector<2x24x28xf32> to vector<48x28xf32>
    %18 = arith.truncf %17 : vector<48x28xf32> to vector<48x28xbf16>
    %c2 = arith.constant 2 : index
    %c0_9 = arith.constant 0 : index
    %c0_10 = arith.constant 0 : index
    %19 = vector.load %arg2[%c2, %c0_9, %c0_10] : memref<5x28x1536xbf16, #tpu.memory_space<vmem>>, vector<1x28x1536xbf16>
    %20 = vector.shape_cast %19 : vector<1x28x1536xbf16> to vector<28x1536xbf16>
    %cst_11 = arith.constant dense<0.000000e+00> : vector<48x1536xf32>
    %21 = tpu.matmul %18, %20, %cst_11 {dimension_numbers = #tpu.dot_dimension_numbers<[1], [0], [0], [1], [0, 0, 1, 1], [], []>} : vector<48x28xbf16>, vector<28x1536xbf16>, vector<48x1536xf32> -> vector<48x1536xf32>
    %22 = arith.addf %15, %21 : vector<48x1536xf32>
    %23 = vector.extract_strided_slice %0 {offsets = [0, 3, 0], sizes = [2, 24, 28], strides = [1, 1, 1]} : vector<2x28x28xf32> to vector<2x24x28xf32>
    %24 = vector.shape_cast %23 : vector<2x24x28xf32> to vector<48x28xf32>
    %25 = arith.truncf %24 : vector<48x28xf32> to vector<48x28xbf16>
    %c3 = arith.constant 3 : index
    %c0_12 = arith.constant 0 : index
    %c0_13 = arith.constant 0 : index
    %26 = vector.load %arg2[%c3, %c0_12, %c0_13] : memref<5x28x1536xbf16, #tpu.memory_space<vmem>>, vector<1x28x1536xbf16>
    %27 = vector.shape_cast %26 : vector<1x28x1536xbf16> to vector<28x1536xbf16>
    %cst_14 = arith.constant dense<0.000000e+00> : vector<48x1536xf32>
    %28 = tpu.matmul %25, %27, %cst_14 {dimension_numbers = #tpu.dot_dimension_numbers<[1], [0], [0], [1], [0, 0, 1, 1], [], []>} : vector<48x28xbf16>, vector<28x1536xbf16>, vector<48x1536xf32> -> vector<48x1536xf32>
    %29 = arith.addf %22, %28 : vector<48x1536xf32>
    %30 = vector.extract_strided_slice %0 {offsets = [0, 4, 0], sizes = [2, 24, 28], strides = [1, 1, 1]} : vector<2x28x28xf32> to vector<2x24x28xf32>
    %31 = vector.shape_cast %30 : vector<2x24x28xf32> to vector<48x28xf32>
    %32 = arith.truncf %31 : vector<48x28xf32> to vector<48x28xbf16>
    %c4 = arith.constant 4 : index
    %c0_15 = arith.constant 0 : index
    %c0_16 = arith.constant 0 : index
    %33 = vector.load %arg2[%c4, %c0_15, %c0_16] : memref<5x28x1536xbf16, #tpu.memory_space<vmem>>, vector<1x28x1536xbf16>
    %34 = vector.shape_cast %33 : vector<1x28x1536xbf16> to vector<28x1536xbf16>
    %cst_17 = arith.constant dense<0.000000e+00> : vector<48x1536xf32>
    %35 = tpu.matmul %32, %34, %cst_17 {dimension_numbers = #tpu.dot_dimension_numbers<[1], [0], [0], [1], [0, 0, 1, 1], [], []>} : vector<48x28xbf16>, vector<28x1536xbf16>, vector<48x1536xf32> -> vector<48x1536xf32>
    %36 = arith.addf %29, %35 : vector<48x1536xf32>
    %c0_18 = arith.constant 0 : index
    %c0_19 = arith.constant 0 : index
    %37 = vector.load %arg3[%c0_18, %c0_19] : memref<1x1536xf32, #tpu.memory_space<vmem>>, vector<1x1536xf32>
    %38 = vector.broadcast %37 : vector<1x1536xf32> to vector<48x1536xf32>
    %39 = arith.addf %36, %38 : vector<48x1536xf32>
    %40 = vector.extract_strided_slice %39 {offsets = [0, 0], sizes = [48, 64], strides = [1, 1]} : vector<48x1536xf32> to vector<48x64xf32>
    %41 = vector.extract_strided_slice %39 {offsets = [0, 64], sizes = [48, 64], strides = [1, 1]} : vector<48x1536xf32> to vector<48x64xf32>
    %42 = arith.maximumf %40, %41 : vector<48x64xf32>
    %43 = vector.extract_strided_slice %39 {offsets = [0, 128], sizes = [48, 64], strides = [1, 1]} : vector<48x1536xf32> to vector<48x64xf32>
    %44 = vector.extract_strided_slice %39 {offsets = [0, 192], sizes = [48, 64], strides = [1, 1]} : vector<48x1536xf32> to vector<48x64xf32>
    %45 = arith.maximumf %43, %44 : vector<48x64xf32>
    %46 = vector.extract_strided_slice %39 {offsets = [0, 256], sizes = [48, 64], strides = [1, 1]} : vector<48x1536xf32> to vector<48x64xf32>
    %47 = vector.extract_strided_slice %39 {offsets = [0, 320], sizes = [48, 64], strides = [1, 1]} : vector<48x1536xf32> to vector<48x64xf32>
    %48 = arith.maximumf %46, %47 : vector<48x64xf32>
    %49 = vector.extract_strided_slice %39 {offsets = [0, 384], sizes = [48, 64], strides = [1, 1]} : vector<48x1536xf32> to vector<48x64xf32>
    %50 = vector.extract_strided_slice %39 {offsets = [0, 448], sizes = [48, 64], strides = [1, 1]} : vector<48x1536xf32> to vector<48x64xf32>
    %51 = arith.maximumf %49, %50 : vector<48x64xf32>
    %52 = vector.extract_strided_slice %39 {offsets = [0, 512], sizes = [48, 64], strides = [1, 1]} : vector<48x1536xf32> to vector<48x64xf32>
    %53 = vector.extract_strided_slice %39 {offsets = [0, 576], sizes = [48, 64], strides = [1, 1]} : vector<48x1536xf32> to vector<48x64xf32>
    %54 = arith.maximumf %52, %53 : vector<48x64xf32>
    %55 = vector.extract_strided_slice %39 {offsets = [0, 640], sizes = [48, 64], strides = [1, 1]} : vector<48x1536xf32> to vector<48x64xf32>
    %56 = vector.extract_strided_slice %39 {offsets = [0, 704], sizes = [48, 64], strides = [1, 1]} : vector<48x1536xf32> to vector<48x64xf32>
    %57 = arith.maximumf %55, %56 : vector<48x64xf32>
    %58 = vector.extract_strided_slice %39 {offsets = [0, 768], sizes = [48, 64], strides = [1, 1]} : vector<48x1536xf32> to vector<48x64xf32>
    %59 = vector.extract_strided_slice %39 {offsets = [0, 832], sizes = [48, 64], strides = [1, 1]} : vector<48x1536xf32> to vector<48x64xf32>
    %60 = arith.maximumf %58, %59 : vector<48x64xf32>
    %61 = vector.extract_strided_slice %39 {offsets = [0, 896], sizes = [48, 64], strides = [1, 1]} : vector<48x1536xf32> to vector<48x64xf32>
    %62 = vector.extract_strided_slice %39 {offsets = [0, 960], sizes = [48, 64], strides = [1, 1]} : vector<48x1536xf32> to vector<48x64xf32>
    %63 = arith.maximumf %61, %62 : vector<48x64xf32>
    %64 = vector.extract_strided_slice %39 {offsets = [0, 1024], sizes = [48, 64], strides = [1, 1]} : vector<48x1536xf32> to vector<48x64xf32>
    %65 = vector.extract_strided_slice %39 {offsets = [0, 1088], sizes = [48, 64], strides = [1, 1]} : vector<48x1536xf32> to vector<48x64xf32>
    %66 = arith.maximumf %64, %65 : vector<48x64xf32>
    %67 = vector.extract_strided_slice %39 {offsets = [0, 1152], sizes = [48, 64], strides = [1, 1]} : vector<48x1536xf32> to vector<48x64xf32>
    %68 = vector.extract_strided_slice %39 {offsets = [0, 1216], sizes = [48, 64], strides = [1, 1]} : vector<48x1536xf32> to vector<48x64xf32>
    %69 = arith.maximumf %67, %68 : vector<48x64xf32>
    %70 = vector.extract_strided_slice %39 {offsets = [0, 1280], sizes = [48, 64], strides = [1, 1]} : vector<48x1536xf32> to vector<48x64xf32>
    %71 = vector.extract_strided_slice %39 {offsets = [0, 1344], sizes = [48, 64], strides = [1, 1]} : vector<48x1536xf32> to vector<48x64xf32>
    %72 = arith.maximumf %70, %71 : vector<48x64xf32>
    %73 = vector.extract_strided_slice %39 {offsets = [0, 1408], sizes = [48, 64], strides = [1, 1]} : vector<48x1536xf32> to vector<48x64xf32>
    %74 = vector.extract_strided_slice %39 {offsets = [0, 1472], sizes = [48, 64], strides = [1, 1]} : vector<48x1536xf32> to vector<48x64xf32>
    %75 = arith.maximumf %73, %74 : vector<48x64xf32>
    %76 = tpu.concatenate %42, %45, %48, %51, %54, %57, %60, %63, %66, %69, %72, %75 in 1 : vector<48x64xf32>, vector<48x64xf32>, vector<48x64xf32>, vector<48x64xf32>, vector<48x64xf32>, vector<48x64xf32>, vector<48x64xf32>, vector<48x64xf32>, vector<48x64xf32>, vector<48x64xf32>, vector<48x64xf32>, vector<48x64xf32> -> vector<48x768xf32>
    %77 = vector.shape_cast %76 : vector<48x768xf32> to vector<24x2x768xf32>
    %78 = vector.extract_strided_slice %77 {offsets = [0, 0, 0], sizes = [24, 1, 768], strides = [1, 1, 1]} : vector<24x2x768xf32> to vector<24x1x768xf32>
    %79 = vector.shape_cast %78 : vector<24x1x768xf32> to vector<24x768xf32>
    %80 = vector.extract_strided_slice %77 {offsets = [0, 1, 0], sizes = [24, 1, 768], strides = [1, 1, 1]} : vector<24x2x768xf32> to vector<24x1x768xf32>
    %81 = vector.shape_cast %80 : vector<24x1x768xf32> to vector<24x768xf32>
    %82 = arith.maximumf %79, %81 : vector<24x768xf32>
    %cst_20 = arith.constant 0.000000e+00 : f32
    %83 = vector.broadcast %cst_20 : f32 to vector<24x768xf32>
    %84 = arith.maximumf %82, %83 : vector<24x768xf32>
    %85 = vector.shape_cast %84 : vector<24x768xf32> to vector<2x12x768xf32>
    %86 = arith.truncf %85 : vector<2x12x768xf32> to vector<2x12x768xbf16>
    %c0_21 = arith.constant 0 : index
    %c0_22 = arith.constant 0 : index
    %c0_23 = arith.constant 0 : index
    %87 = vector.load %arg4[%c0_21, %c0_22, %c0_23] : memref<2x12x768xbf16, #tpu.memory_space<vmem>>, vector<2x12x768xbf16>
    tpu.vector_store %arg4[%c0_21, %c0_22, %c0_23], %86 {strides = array<i32>} : memref<2x12x768xbf16, #tpu.memory_space<vmem>>, vector<2x12x768xbf16>,
    return
  }
  func.func @transform_0(%arg0: i32) -> (i32, i32, i32) {
    %c0_i32 = arith.constant 0 : i32
    %c0_i32_0 = arith.constant 0 : i32
    %c0_i32_1 = arith.constant 0 : i32
    return %arg0, %c0_i32, %c0_i32_0 : i32, i32, i32
  }
  func.func @transform_1(%arg0: i32) -> (i32, i32, i32) {
    %c0_i32 = arith.constant 0 : i32
    %c0_i32_0 = arith.constant 0 : i32
    %c0_i32_1 = arith.constant 0 : i32
    %c0_i32_2 = arith.constant 0 : i32
    return %c0_i32, %c0_i32_0, %c0_i32_1 : i32, i32, i32
  }
  func.func @transform_2(%arg0: i32) -> (i32, i32) {
    %c0_i32 = arith.constant 0 : i32
    %c0_i32_0 = arith.constant 0 : i32
    %c0_i32_1 = arith.constant 0 : i32
    return %c0_i32, %c0_i32_0 : i32, i32
  }
  func.func @transform_3(%arg0: i32) -> (i32, i32, i32) {
    %c0_i32 = arith.constant 0 : i32
    %c0_i32_0 = arith.constant 0 : i32
    %c0_i32_1 = arith.constant 0 : i32
    return %arg0, %c0_i32, %c0_i32_0 : i32, i32, i32
  }
}

module attributes {stable_mosaic.version = 11 : i64} {
  func.func @_fc_head_kernel(%arg0: i32, %arg1: memref<2x1024xbf16, #tpu.memory_space<vmem>>, %arg2: memref<1024x128xbf16, #tpu.memory_space<vmem>>, %arg3: memref<1x128xf32, #tpu.memory_space<vmem>>, %arg4: memref<128x64xbf16, #tpu.memory_space<vmem>>, %arg5: memref<1x64xf32, #tpu.memory_space<vmem>>, %arg6: memref<64x10xbf16, #tpu.memory_space<vmem>>, %arg7: memref<1x10xf32, #tpu.memory_space<vmem>>, %arg8: memref<2x10xf32, #tpu.memory_space<vmem>>) attributes {dimension_semantics = [#tpu.dimension_semantics<parallel>], iteration_bounds = array<i64: 1>, scalar_prefetch = 0 : i64, scratch_operands = 0 : i64, tpu.core_type = #tpu.core_type<tc>, window_params = [{transform_indices = @transform_0, window_bounds = array<i64: 2, 1024>}, {pipeline_mode = #tpu.pipeline_mode<synchronous>, transform_indices = @transform_1, window_bounds = array<i64: 1024, 128>}, {pipeline_mode = #tpu.pipeline_mode<synchronous>, transform_indices = @transform_2, window_bounds = array<i64: 1, 128>}, {pipeline_mode = #tpu.pipeline_mode<synchronous>, transform_indices = @transform_3, window_bounds = array<i64: 128, 64>}, {pipeline_mode = #tpu.pipeline_mode<synchronous>, transform_indices = @transform_4, window_bounds = array<i64: 1, 64>}, {pipeline_mode = #tpu.pipeline_mode<synchronous>, transform_indices = @transform_5, window_bounds = array<i64: 64, 10>}, {pipeline_mode = #tpu.pipeline_mode<synchronous>, transform_indices = @transform_6, window_bounds = array<i64: 1, 10>}, {transform_indices = @transform_7, window_bounds = array<i64: 2, 10>}]} {
    %c0 = arith.constant 0 : index
    %c0_0 = arith.constant 0 : index
    %0 = vector.load %arg1[%c0, %c0_0] : memref<2x1024xbf16, #tpu.memory_space<vmem>>, vector<2x1024xbf16>
    %c0_1 = arith.constant 0 : index
    %c0_2 = arith.constant 0 : index
    %1 = vector.load %arg2[%c0_1, %c0_2] : memref<1024x128xbf16, #tpu.memory_space<vmem>>, vector<1024x128xbf16>
    %cst = arith.constant dense<0.000000e+00> : vector<2x128xf32>
    %2 = tpu.matmul %0, %1, %cst {dimension_numbers = #tpu.dot_dimension_numbers<[1], [0], [0], [1], [0, 0, 1, 1], [], []>} : vector<2x1024xbf16>, vector<1024x128xbf16>, vector<2x128xf32> -> vector<2x128xf32>
    %c0_3 = arith.constant 0 : index
    %c0_4 = arith.constant 0 : index
    %3 = vector.load %arg3[%c0_3, %c0_4] : memref<1x128xf32, #tpu.memory_space<vmem>>, vector<1x128xf32>
    %4 = vector.broadcast %3 : vector<1x128xf32> to vector<2x128xf32>
    %5 = arith.addf %2, %4 : vector<2x128xf32>
    %cst_5 = arith.constant 0.000000e+00 : f32
    %6 = vector.broadcast %cst_5 : f32 to vector<2x128xf32>
    %7 = arith.maximumf %5, %6 : vector<2x128xf32>
    %8 = arith.truncf %7 : vector<2x128xf32> to vector<2x128xbf16>
    %c0_6 = arith.constant 0 : index
    %c0_7 = arith.constant 0 : index
    %9 = vector.load %arg4[%c0_6, %c0_7] : memref<128x64xbf16, #tpu.memory_space<vmem>>, vector<128x64xbf16>
    %cst_8 = arith.constant dense<0.000000e+00> : vector<2x64xf32>
    %10 = tpu.matmul %8, %9, %cst_8 {dimension_numbers = #tpu.dot_dimension_numbers<[1], [0], [0], [1], [0, 0, 1, 1], [], []>} : vector<2x128xbf16>, vector<128x64xbf16>, vector<2x64xf32> -> vector<2x64xf32>
    %c0_9 = arith.constant 0 : index
    %c0_10 = arith.constant 0 : index
    %11 = vector.load %arg5[%c0_9, %c0_10] : memref<1x64xf32, #tpu.memory_space<vmem>>, vector<1x64xf32>
    %12 = vector.broadcast %11 : vector<1x64xf32> to vector<2x64xf32>
    %13 = arith.addf %10, %12 : vector<2x64xf32>
    %cst_11 = arith.constant 0.000000e+00 : f32
    %14 = vector.broadcast %cst_11 : f32 to vector<2x64xf32>
    %15 = arith.maximumf %13, %14 : vector<2x64xf32>
    %16 = arith.truncf %15 : vector<2x64xf32> to vector<2x64xbf16>
    %c0_12 = arith.constant 0 : index
    %c0_13 = arith.constant 0 : index
    %17 = vector.load %arg6[%c0_12, %c0_13] : memref<64x10xbf16, #tpu.memory_space<vmem>>, vector<64x10xbf16>
    %cst_14 = arith.constant dense<0.000000e+00> : vector<2x10xf32>
    %18 = tpu.matmul %16, %17, %cst_14 {dimension_numbers = #tpu.dot_dimension_numbers<[1], [0], [0], [1], [0, 0, 1, 1], [], []>} : vector<2x64xbf16>, vector<64x10xbf16>, vector<2x10xf32> -> vector<2x10xf32>
    %c0_15 = arith.constant 0 : index
    %c0_16 = arith.constant 0 : index
    %19 = vector.load %arg7[%c0_15, %c0_16] : memref<1x10xf32, #tpu.memory_space<vmem>>, vector<1x10xf32>
    %20 = vector.broadcast %19 : vector<1x10xf32> to vector<2x10xf32>
    %21 = arith.addf %18, %20 : vector<2x10xf32>
    %cst_17 = arith.constant dense<0xFF800000> : vector<2xf32>
    %22 = vector.multi_reduction <maximumf>, %21, %cst_17 [1] : vector<2x10xf32> to vector<2xf32>
    %23 = vector.shape_cast %22 : vector<2xf32> to vector<2x1xf32>
    %24 = vector.broadcast %23 : vector<2x1xf32> to vector<2x10xf32>
    %25 = arith.subf %21, %24 : vector<2x10xf32>
    %26 = math.exp %25 : vector<2x10xf32>
    %cst_18 = arith.constant dense<0.000000e+00> : vector<2xf32>
    %27 = vector.multi_reduction <add>, %26, %cst_18 [1] : vector<2x10xf32> to vector<2xf32>
    %28 = vector.shape_cast %27 : vector<2xf32> to vector<2x1xf32>
    %29 = math.log %28 : vector<2x1xf32>
    %30 = vector.broadcast %29 : vector<2x1xf32> to vector<2x10xf32>
    %31 = arith.subf %25, %30 : vector<2x10xf32>
    %c0_19 = arith.constant 0 : index
    %c0_20 = arith.constant 0 : index
    %32 = vector.load %arg8[%c0_19, %c0_20] : memref<2x10xf32, #tpu.memory_space<vmem>>, vector<2x10xf32>
    tpu.vector_store %arg8[%c0_19, %c0_20], %31 {strides = array<i32>} : memref<2x10xf32, #tpu.memory_space<vmem>>, vector<2x10xf32>,
    return
  }
  func.func @transform_0(%arg0: i32) -> (i32, i32) {
    %c0_i32 = arith.constant 0 : i32
    %c0_i32_0 = arith.constant 0 : i32
    return %arg0, %c0_i32 : i32, i32
  }
  func.func @transform_1(%arg0: i32) -> (i32, i32) {
    %c0_i32 = arith.constant 0 : i32
    %c0_i32_0 = arith.constant 0 : i32
    %c0_i32_1 = arith.constant 0 : i32
    return %c0_i32, %c0_i32_0 : i32, i32
  }
  func.func @transform_2(%arg0: i32) -> (i32, i32) {
    %c0_i32 = arith.constant 0 : i32
    %c0_i32_0 = arith.constant 0 : i32
    %c0_i32_1 = arith.constant 0 : i32
    return %c0_i32, %c0_i32_0 : i32, i32
  }
  func.func @transform_3(%arg0: i32) -> (i32, i32) {
    %c0_i32 = arith.constant 0 : i32
    %c0_i32_0 = arith.constant 0 : i32
    %c0_i32_1 = arith.constant 0 : i32
    return %c0_i32, %c0_i32_0 : i32, i32
  }
  func.func @transform_4(%arg0: i32) -> (i32, i32) {
    %c0_i32 = arith.constant 0 : i32
    %c0_i32_0 = arith.constant 0 : i32
    %c0_i32_1 = arith.constant 0 : i32
    return %c0_i32, %c0_i32_0 : i32, i32
  }
  func.func @transform_5(%arg0: i32) -> (i32, i32) {
    %c0_i32 = arith.constant 0 : i32
    %c0_i32_0 = arith.constant 0 : i32
    %c0_i32_1 = arith.constant 0 : i32
    return %c0_i32, %c0_i32_0 : i32, i32
  }
  func.func @transform_6(%arg0: i32) -> (i32, i32) {
    %c0_i32 = arith.constant 0 : i32
    %c0_i32_0 = arith.constant 0 : i32
    %c0_i32_1 = arith.constant 0 : i32
    return %c0_i32, %c0_i32_0 : i32, i32
  }
  func.func @transform_7(%arg0: i32) -> (i32, i32) {
    %c0_i32 = arith.constant 0 : i32
    %c0_i32_0 = arith.constant 0 : i32
    return %arg0, %c0_i32 : i32, i32
  }
}

</mosaic_0001>

<llo_original>
// kernel: cnn_mnist_forward.5
$region0: #{cnn_mnist_forward.5}
  #allocation0 [shape = 'u32[]', space=smem, size = 0x4, offset = 0x4, fixed_abs, tag = 'smem constant byte address 0x4 - core index']
  #allocation1 [shape = 'u32[72,128]{1,0:T(1,128)}', space=vmem, size = 0x9000, scoped, tag = 'internal scratch']
  %s0 = inlined_call_operand.vmem [shape: bf16[2,1024], index: 0, kind: input, shape index: {}]
  %s1 = inlined_call_operand.vmem [shape: bf16[1024,128], index: 1, kind: input, shape index: {}]
  %s2 = inlined_call_operand.vmem [shape: f32[1,128], index: 2, kind: input, shape index: {}]
  %s3 = inlined_call_operand.vmem [shape: bf16[128,64], index: 3, kind: input, shape index: {}]
  %s4 = inlined_call_operand.vmem [shape: f32[1,64], index: 4, kind: input, shape index: {}]
  %s5 = inlined_call_operand.vmem [shape: bf16[64,10], index: 5, kind: input, shape index: {}]
  %s6 = inlined_call_operand.vmem [shape: f32[1,10], index: 6, kind: input, shape index: {}]
  %s7 = inlined_call_operand.hbm [shape: f32[2,10], index: 7, kind: output, shape index: {}]
  %s8 = sld [smem:[#allocation0]]
  $region38: #{cnn_mnist_forward.5} parent=0
    _
  %s10 = ssub.s32 1, %s8
  %s11 = scalar_select 0, %s10, %s8
  $region1: #{cnn_mnist_forward.5} parent=0
    #allocation2 [shape = 'u8[1024]{0}', space=vmem, size = 0x400, scoped, tag = 'output window, operand 0, single buffered']
    #allocation3 [shape = 's32[1]{0}', space=sflag, size = 0x4, scoped, tag = 'scoped memory for cnn_mnist_forward.5']
    %12 = vsyncpa [#allocation3], 0
    // Predicated region
    $region2: #{cnn_mnist_forward.5} parent=1 // pred_check
      _
    $region3: #{cnn_mnist_forward.5} parent=1 // pred_check_branch
      %14 = sbr.rel (0) target = $region5
    $region4: #{cnn_mnist_forward.5} parent=1 // pred_region
      _
    $region5: #{cnn_mnist_forward.5} parent=1 // pred_fallthru
      _
    // Predicated region
    $region6: #{cnn_mnist_forward.5} parent=1 // pred_check
      _
    $region7: #{cnn_mnist_forward.5} parent=1 // pred_check_branch
      %16 = sbr.rel (0) target = $region9
    $region8: #{cnn_mnist_forward.5} parent=1 // pred_region
      _
    $region9: #{cnn_mnist_forward.5} parent=1 // pred_fallthru
      _
    // Predicated region
    $region10: #{cnn_mnist_forward.5} parent=1 // pred_check
      _
    $region11: #{cnn_mnist_forward.5} parent=1 // pred_check_branch
      %18 = sbr.rel (0) target = $region13
    $region12: #{cnn_mnist_forward.5} parent=1 // pred_region
      _
    $region13: #{cnn_mnist_forward.5} parent=1 // pred_fallthru
      _
    // Predicated region
    $region14: #{cnn_mnist_forward.5} parent=1 // pred_check
      _
    $region15: #{cnn_mnist_forward.5} parent=1 // pred_check_branch
      %20 = sbr.rel (0) target = $region17
    $region16: #{cnn_mnist_forward.5} parent=1 // pred_region
      _
    $region17: #{cnn_mnist_forward.5} parent=1 // pred_fallthru
      _
    // Predicated region
    $region18: #{cnn_mnist_forward.5} parent=1 // pred_check
      _
    $region19: #{cnn_mnist_forward.5} parent=1 // pred_check_branch
      %22 = sbr.rel (0) target = $region21
    $region20: #{cnn_mnist_forward.5} parent=1 // pred_region
      _
    $region21: #{cnn_mnist_forward.5} parent=1 // pred_fallthru
      _
    // Predicated region
    $region22: #{cnn_mnist_forward.5} parent=1 // pred_check
      _
    $region23: #{cnn_mnist_forward.5} parent=1 // pred_check_branch
      %24 = sbr.rel (0) target = $region25
    $region24: #{cnn_mnist_forward.5} parent=1 // pred_region
      _
    $region25: #{cnn_mnist_forward.5} parent=1 // pred_fallthru
      _
    // Predicated region
    $region26: #{cnn_mnist_forward.5} parent=1 // pred_check
      _
    $region27: #{cnn_mnist_forward.5} parent=1 // pred_check_branch
      %26 = sbr.rel (0) target = $region29
    $region28: #{cnn_mnist_forward.5} parent=1 // pred_region
      _
    $region29: #{cnn_mnist_forward.5} parent=1 // pred_fallthru
      _
    %v28 = vld [vmem:[%s0] sm:$0xff]
    %v29 = vld [vmem:[%s1] sm:$0xf]
    %v30 = vld [vmem:[%s1 + $0x4] sm:$0xf]
    %v31 = vld [vmem:[%s1 + $0x8] sm:$0xf]
    %v32 = vld [vmem:[%s1 + $0xc] sm:$0xf]
    %v33 = vld [vmem:[%s1 + $0x10] sm:$0xf]
    %v34 = vld [vmem:[%s1 + $0x14] sm:$0xf]
    %v35 = vld [vmem:[%s1 + $0x18] sm:$0xf]
    %v36 = vld [vmem:[%s1 + $0x1c] sm:$0xf]
    %v37 = vld [vmem:[%s1 + $0x20] sm:$0xf]
    %v38 = vld [vmem:[%s1 + $0x24] sm:$0xf]
    %v39 = vld [vmem:[%s1 + $0x28] sm:$0xf]
    %v40 = vld [vmem:[%s1 + $0x2c] sm:$0xf]
    %v41 = vld [vmem:[%s1 + $0x30] sm:$0xf]
    %v42 = vld [vmem:[%s1 + $0x34] sm:$0xf]
    %v43 = vld [vmem:[%s1 + $0x38] sm:$0xf]
    %v44 = vld [vmem:[%s1 + $0x3c] sm:$0xf]
    %v45 = vld [vmem:[%s1 + $0x40] sm:$0xf]
    %v46 = vld [vmem:[%s1 + $0x44] sm:$0xf]
    %v47 = vld [vmem:[%s1 + $0x48] sm:$0xf]
    %v48 = vld [vmem:[%s1 + $0x4c] sm:$0xf]
    %v49 = vld [vmem:[%s1 + $0x50] sm:$0xf]
    %v50 = vld [vmem:[%s1 + $0x54] sm:$0xf]
    %v51 = vld [vmem:[%s1 + $0x58] sm:$0xf]
    %v52 = vld [vmem:[%s1 + $0x5c] sm:$0xf]
    %v53 = vld [vmem:[%s1 + $0x60] sm:$0xf]
    %v54 = vld [vmem:[%s1 + $0x64] sm:$0xf]
    %v55 = vld [vmem:[%s1 + $0x68] sm:$0xf]
    %v56 = vld [vmem:[%s1 + $0x6c] sm:$0xf]
    %v57 = vld [vmem:[%s1 + $0x70] sm:$0xf]
    %v58 = vld [vmem:[%s1 + $0x74] sm:$0xf]
    %v59 = vld [vmem:[%s1 + $0x78] sm:$0xf]
    %v60 = vld [vmem:[%s1 + $0x7c] sm:$0xf]
    %v61 = vld [vmem:[%s1 + $0x80] sm:$0xf]
    %v62 = vld [vmem:[%s1 + $0x84] sm:$0xf]
    %v63 = vld [vmem:[%s1 + $0x88] sm:$0xf]
    %v64 = vld [vmem:[%s1 + $0x8c] sm:$0xf]
    %v65 = vld [vmem:[%s1 + $0x90] sm:$0xf]
    %v66 = vld [vmem:[%s1 + $0x94] sm:$0xf]
    %v67 = vld [vmem:[%s1 + $0x98] sm:$0xf]
    %v68 = vld [vmem:[%s1 + $0x9c] sm:$0xf]
    %v69 = vld [vmem:[%s1 + $0xa0] sm:$0xf]
    %v70 = vld [vmem:[%s1 + $0xa4] sm:$0xf]
    %v71 = vld [vmem:[%s1 + $0xa8] sm:$0xf]
    %v72 = vld [vmem:[%s1 + $0xac] sm:$0xf]
    %v73 = vld [vmem:[%s1 + $0xb0] sm:$0xf]
    %v74 = vld [vmem:[%s1 + $0xb4] sm:$0xf]
    %v75 = vld [vmem:[%s1 + $0xb8] sm:$0xf]
    %v76 = vld [vmem:[%s1 + $0xbc] sm:$0xf]
    %v77 = vld [vmem:[%s1 + $0xc0] sm:$0xf]
    %v78 = vld [vmem:[%s1 + $0xc4] sm:$0xf]
    %v79 = vld [vmem:[%s1 + $0xc8] sm:$0xf]
    %v80 = vld [vmem:[%s1 + $0xcc] sm:$0xf]
    %v81 = vld [vmem:[%s1 + $0xd0] sm:$0xf]
    %v82 = vld [vmem:[%s1 + $0xd4] sm:$0xf]
    %v83 = vld [vmem:[%s1 + $0xd8] sm:$0xf]
    %v84 = vld [vmem:[%s1 + $0xdc] sm:$0xf]
    %v85 = vld [vmem:[%s1 + $0xe0] sm:$0xf]
    %v86 = vld [vmem:[%s1 + $0xe4] sm:$0xf]
    %v87 = vld [vmem:[%s1 + $0xe8] sm:$0xf]
    %v88 = vld [vmem:[%s1 + $0xec] sm:$0xf]
    %v89 = vld [vmem:[%s1 + $0xf0] sm:$0xf]
    %v90 = vld [vmem:[%s1 + $0xf4] sm:$0xf]
    %v91 = vld [vmem:[%s1 + $0xf8] sm:$0xf]
    %v92 = vld [vmem:[%s1 + $0xfc] sm:$0xf]
    %v93 = vld [vmem:[%s1 + $0x100] sm:$0xf]
    %v94 = vld [vmem:[%s1 + $0x104] sm:$0xf]
    %v95 = vld [vmem:[%s1 + $0x108] sm:$0xf]
    %v96 = vld [vmem:[%s1 + $0x10c] sm:$0xf]
    %v97 = vld [vmem:[%s1 + $0x110] sm:$0xf]
    %v98 = vld [vmem:[%s1 + $0x114] sm:$0xf]
    %v99 = vld [vmem:[%s1 + $0x118] sm:$0xf]
    %v100 = vld [vmem:[%s1 + $0x11c] sm:$0xf]
    %v101 = vld [vmem:[%s1 + $0x120] sm:$0xf]
    %v102 = vld [vmem:[%s1 + $0x124] sm:$0xf]
    %v103 = vld [vmem:[%s1 + $0x128] sm:$0xf]
    %v104 = vld [vmem:[%s1 + $0x12c] sm:$0xf]
    %v105 = vld [vmem:[%s1 + $0x130] sm:$0xf]
    %v106 = vld [vmem:[%s1 + $0x134] sm:$0xf]
    %v107 = vld [vmem:[%s1 + $0x138] sm:$0xf]
    %v108 = vld [vmem:[%s1 + $0x13c] sm:$0xf]
    %v109 = vld [vmem:[%s1 + $0x140] sm:$0xf]
    %v110 = vld [vmem:[%s1 + $0x144] sm:$0xf]
    %v111 = vld [vmem:[%s1 + $0x148] sm:$0xf]
    %v112 = vld [vmem:[%s1 + $0x14c] sm:$0xf]
    %v113 = vld [vmem:[%s1 + $0x150] sm:$0xf]
    %v114 = vld [vmem:[%s1 + $0x154] sm:$0xf]
    %v115 = vld [vmem:[%s1 + $0x158] sm:$0xf]
    %v116 = vld [vmem:[%s1 + $0x15c] sm:$0xf]
    %v117 = vld [vmem:[%s1 + $0x160] sm:$0xf]
    %v118 = vld [vmem:[%s1 + $0x164] sm:$0xf]
    %v119 = vld [vmem:[%s1 + $0x168] sm:$0xf]
    %v120 = vld [vmem:[%s1 + $0x16c] sm:$0xf]
    %v121 = vld [vmem:[%s1 + $0x170] sm:$0xf]
    %v122 = vld [vmem:[%s1 + $0x174] sm:$0xf]
    %v123 = vld [vmem:[%s1 + $0x178] sm:$0xf]
    %v124 = vld [vmem:[%s1 + $0x17c] sm:$0xf]
    %v125 = vld [vmem:[%s1 + $0x180] sm:$0xf]
    %v126 = vld [vmem:[%s1 + $0x184] sm:$0xf]
    %v127 = vld [vmem:[%s1 + $0x188] sm:$0xf]
    %v128 = vld [vmem:[%s1 + $0x18c] sm:$0xf]
    %v129 = vld [vmem:[%s1 + $0x190] sm:$0xf]
    %v130 = vld [vmem:[%s1 + $0x194] sm:$0xf]
    %v131 = vld [vmem:[%s1 + $0x198] sm:$0xf]
    %v132 = vld [vmem:[%s1 + $0x19c] sm:$0xf]
    %v133 = vld [vmem:[%s1 + $0x1a0] sm:$0xf]
    %v134 = vld [vmem:[%s1 + $0x1a4] sm:$0xf]
    %v135 = vld [vmem:[%s1 + $0x1a8] sm:$0xf]
    %v136 = vld [vmem:[%s1 + $0x1ac] sm:$0xf]
    %v137 = vld [vmem:[%s1 + $0x1b0] sm:$0xf]
    %v138 = vld [vmem:[%s1 + $0x1b4] sm:$0xf]
    %v139 = vld [vmem:[%s1 + $0x1b8] sm:$0xf]
    %v140 = vld [vmem:[%s1 + $0x1bc] sm:$0xf]
    %v141 = vld [vmem:[%s1 + $0x1c0] sm:$0xf]
    %v142 = vld [vmem:[%s1 + $0x1c4] sm:$0xf]
    %v143 = vld [vmem:[%s1 + $0x1c8] sm:$0xf]
    %v144 = vld [vmem:[%s1 + $0x1cc] sm:$0xf]
    %v145 = vld [vmem:[%s1 + $0x1d0] sm:$0xf]
    %v146 = vld [vmem:[%s1 + $0x1d4] sm:$0xf]
    %v147 = vld [vmem:[%s1 + $0x1d8] sm:$0xf]
    %v148 = vld [vmem:[%s1 + $0x1dc] sm:$0xf]
    %v149 = vld [vmem:[%s1 + $0x1e0] sm:$0xf]
    %v150 = vld [vmem:[%s1 + $0x1e4] sm:$0xf]
    %v151 = vld [vmem:[%s1 + $0x1e8] sm:$0xf]
    %v152 = vld [vmem:[%s1 + $0x1ec] sm:$0xf]
    %v153 = vld [vmem:[%s1 + $0x1f0] sm:$0xf]
    %v154 = vld [vmem:[%s1 + $0x1f4] sm:$0xf]
    %v155 = vld [vmem:[%s1 + $0x1f8] sm:$0xf]
    %v156 = vld [vmem:[%s1 + $0x1fc] sm:$0xf]
    %v157 = vld [vmem:[%s2] sm:$0x1]
    %v159 = vperm.slane %v157, 0
    %162 = vst [vmem:[#allocation1] ss:$9 sm:$0xff] %v28
    %v163 = vld [vmem:[#allocation1] sm:$0xff]
    %v164 = vld [vmem:[#allocation1 + $0x9] sm:$0xff]
    %v165 = vld [vmem:[#allocation1 + $0x12] sm:$0xff]
    %v166 = vld [vmem:[#allocation1 + $0x1b] sm:$0xff]
    %v167 = vld [vmem:[#allocation1 + $0x24] sm:$0xff]
    %v168 = vld [vmem:[#allocation1 + $0x2d] sm:$0xff]
    %v169 = vld [vmem:[#allocation1 + $0x36] sm:$0xff]
    %v170 = vld [vmem:[#allocation1 + $0x3f] sm:$0xff]
    %v307 = vunpack.c.l.b16 %v29
    %v308 = vunpack.c.l.b16 %v30
    %v309 = vunpack.c.l.b16 %v31
    %v310 = vunpack.c.l.b16 %v32
    %v311 = vunpack.c.l.b16 %v33
    %v312 = vunpack.c.l.b16 %v34
    %v313 = vunpack.c.l.b16 %v35
    %v314 = vunpack.c.l.b16 %v36
    %v315 = vunpack.c.l.b16 %v37
    %v316 = vunpack.c.l.b16 %v38
    %v317 = vunpack.c.l.b16 %v39
    %v318 = vunpack.c.l.b16 %v40
    %v319 = vunpack.c.l.b16 %v41
    %v320 = vunpack.c.l.b16 %v42
    %v321 = vunpack.c.l.b16 %v43
    %v322 = vunpack.c.l.b16 %v44
    %v323 = vunpack.c.l.b16 %v45
    %v324 = vunpack.c.l.b16 %v46
    %v325 = vunpack.c.l.b16 %v47
    %v326 = vunpack.c.l.b16 %v48
    %v327 = vunpack.c.l.b16 %v49
    %v328 = vunpack.c.l.b16 %v50
    %v329 = vunpack.c.l.b16 %v51
    %v330 = vunpack.c.l.b16 %v52
    %v331 = vunpack.c.l.b16 %v53
    %v332 = vunpack.c.l.b16 %v54
    %v333 = vunpack.c.l.b16 %v55
    %v334 = vunpack.c.l.b16 %v56
    %v335 = vunpack.c.l.b16 %v57
    %v336 = vunpack.c.l.b16 %v58
    %v337 = vunpack.c.l.b16 %v59
    %v338 = vunpack.c.l.b16 %v60
    %v339 = vunpack.c.l.b16 %v61
    %v340 = vunpack.c.l.b16 %v62
    %v341 = vunpack.c.l.b16 %v63
    %v342 = vunpack.c.l.b16 %v64
    %v343 = vunpack.c.l.b16 %v65
    %v344 = vunpack.c.l.b16 %v66
    %v345 = vunpack.c.l.b16 %v67
    %v346 = vunpack.c.l.b16 %v68
    %v347 = vunpack.c.l.b16 %v69
    %v348 = vunpack.c.l.b16 %v70
    %v349 = vunpack.c.l.b16 %v71
    %v350 = vunpack.c.l.b16 %v72
    %v351 = vunpack.c.l.b16 %v73
    %v352 = vunpack.c.l.b16 %v74
    %v353 = vunpack.c.l.b16 %v75
    %v354 = vunpack.c.l.b16 %v76
    %v355 = vunpack.c.l.b16 %v77
    %v356 = vunpack.c.l.b16 %v78
    %v357 = vunpack.c.l.b16 %v79
    %v358 = vunpack.c.l.b16 %v80
    %v359 = vunpack.c.l.b16 %v81
    %v360 = vunpack.c.l.b16 %v82
    %v361 = vunpack.c.l.b16 %v83
    %v362 = vunpack.c.l.b16 %v84
    %v363 = vunpack.c.l.b16 %v85
    %v364 = vunpack.c.l.b16 %v86
    %v365 = vunpack.c.l.b16 %v87
    %v366 = vunpack.c.l.b16 %v88
    %v367 = vunpack.c.l.b16 %v89
    %v368 = vunpack.c.l.b16 %v90
    %v369 = vunpack.c.l.b16 %v91
    %v370 = vunpack.c.l.b16 %v92
    %v371 = vunpack.c.l.b16 %v93
    %v372 = vunpack.c.l.b16 %v94
    %v373 = vunpack.c.l.b16 %v95
    %v374 = vunpack.c.l.b16 %v96
    %v375 = vunpack.c.l.b16 %v97
    %v376 = vunpack.c.l.b16 %v98
    %v377 = vunpack.c.l.b16 %v99
    %v378 = vunpack.c.l.b16 %v100
    %v379 = vunpack.c.l.b16 %v101
    %v380 = vunpack.c.l.b16 %v102
    %v381 = vunpack.c.l.b16 %v103
    %v382 = vunpack.c.l.b16 %v104
    %v383 = vunpack.c.l.b16 %v105
    %v384 = vunpack.c.l.b16 %v106
    %v385 = vunpack.c.l.b16 %v107
    %v386 = vunpack.c.l.b16 %v108
    %v387 = vunpack.c.l.b16 %v109
    %v388 = vunpack.c.l.b16 %v110
    %v389 = vunpack.c.l.b16 %v111
    %v390 = vunpack.c.l.b16 %v112
    %v391 = vunpack.c.l.b16 %v113
    %v392 = vunpack.c.l.b16 %v114
    %v393 = vunpack.c.l.b16 %v115
    %v394 = vunpack.c.l.b16 %v116
    %v395 = vunpack.c.l.b16 %v117
    %v396 = vunpack.c.l.b16 %v118
    %v397 = vunpack.c.l.b16 %v119
    %v398 = vunpack.c.l.b16 %v120
    %v399 = vunpack.c.l.b16 %v121
    %v400 = vunpack.c.l.b16 %v122
    %v401 = vunpack.c.l.b16 %v123
    %v402 = vunpack.c.l.b16 %v124
    %v403 = vunpack.c.l.b16 %v125
    %v404 = vunpack.c.l.b16 %v126
    %v405 = vunpack.c.l.b16 %v127
    %v406 = vunpack.c.l.b16 %v128
    %v407 = vunpack.c.l.b16 %v129
    %v408 = vunpack.c.l.b16 %v130
    %v409 = vunpack.c.l.b16 %v131
    %v410 = vunpack.c.l.b16 %v132
    %v411 = vunpack.c.l.b16 %v133
    %v412 = vunpack.c.l.b16 %v134
    %v413 = vunpack.c.l.b16 %v135
    %v414 = vunpack.c.l.b16 %v136
    %v415 = vunpack.c.l.b16 %v137
    %v416 = vunpack.c.l.b16 %v138
    %v417 = vunpack.c.l.b16 %v139
    %v418 = vunpack.c.l.b16 %v140
    %v419 = vunpack.c.l.b16 %v141
    %v420 = vunpack.c.l.b16 %v142
    %v421 = vunpack.c.l.b16 %v143
    %v422 = vunpack.c.l.b16 %v144
    %v423 = vunpack.c.l.b16 %v145
    %v424 = vunpack.c.l.b16 %v146
    %v425 = vunpack.c.l.b16 %v147
    %v426 = vunpack.c.l.b16 %v148
    %v427 = vunpack.c.l.b16 %v149
    %v428 = vunpack.c.l.b16 %v150
    %v429 = vunpack.c.l.b16 %v151
    %v430 = vunpack.c.l.b16 %v152
    %v431 = vunpack.c.l.b16 %v153
    %v432 = vunpack.c.l.b16 %v154
    %v433 = vunpack.c.l.b16 %v155
    %v434 = vunpack.c.l.b16 %v156
    %v435 = vpack.c.b16 %v308, %v307
    %v436 = vpack.c.b16 %v310, %v309
    %v437 = vpack.c.b16 %v312, %v311
    %v438 = vpack.c.b16 %v314, %v313
    %v439 = vpack.c.b16 %v316, %v315
    %v440 = vpack.c.b16 %v318, %v317
    %v441 = vpack.c.b16 %v320, %v319
    %v442 = vpack.c.b16 %v322, %v321
    %v443 = vpack.c.b16 %v324, %v323
    %v444 = vpack.c.b16 %v326, %v325
    %v445 = vpack.c.b16 %v328, %v327
    %v446 = vpack.c.b16 %v330, %v329
    %v447 = vpack.c.b16 %v332, %v331
    %v448 = vpack.c.b16 %v334, %v333
    %v449 = vpack.c.b16 %v336, %v335
    %v450 = vpack.c.b16 %v338, %v337
    %v451 = vpack.c.b16 %v340, %v339
    %v452 = vpack.c.b16 %v342, %v341
    %v453 = vpack.c.b16 %v344, %v343
    %v454 = vpack.c.b16 %v346, %v345
    %v455 = vpack.c.b16 %v348, %v347
    %v456 = vpack.c.b16 %v350, %v349
    %v457 = vpack.c.b16 %v352, %v351
    %v458 = vpack.c.b16 %v354, %v353
    %v459 = vpack.c.b16 %v356, %v355
    %v460 = vpack.c.b16 %v358, %v357
    %v461 = vpack.c.b16 %v360, %v359
    %v462 = vpack.c.b16 %v362, %v361
    %v463 = vpack.c.b16 %v364, %v363
    %v464 = vpack.c.b16 %v366, %v365
    %v465 = vpack.c.b16 %v368, %v367
    %v466 = vpack.c.b16 %v370, %v369
    %v467 = vpack.c.b16 %v372, %v371
    %v468 = vpack.c.b16 %v374, %v373
    %v469 = vpack.c.b16 %v376, %v375
    %v470 = vpack.c.b16 %v378, %v377
    %v471 = vpack.c.b16 %v380, %v379
    %v472 = vpack.c.b16 %v382, %v381
    %v473 = vpack.c.b16 %v384, %v383
    %v474 = vpack.c.b16 %v386, %v385
    %v475 = vpack.c.b16 %v388, %v387
    %v476 = vpack.c.b16 %v390, %v389
    %v477 = vpack.c.b16 %v392, %v391
    %v478 = vpack.c.b16 %v394, %v393
    %v479 = vpack.c.b16 %v396, %v395
    %v480 = vpack.c.b16 %v398, %v397
    %v481 = vpack.c.b16 %v400, %v399
    %v482 = vpack.c.b16 %v402, %v401
    %v483 = vpack.c.b16 %v404, %v403
    %v484 = vpack.c.b16 %v406, %v405
    %v485 = vpack.c.b16 %v408, %v407
    %v486 = vpack.c.b16 %v410, %v409
    %v487 = vpack.c.b16 %v412, %v411
    %v488 = vpack.c.b16 %v414, %v413
    %v489 = vpack.c.b16 %v416, %v415
    %v490 = vpack.c.b16 %v418, %v417
    %v491 = vpack.c.b16 %v420, %v419
    %v492 = vpack.c.b16 %v422, %v421
    %v493 = vpack.c.b16 %v424, %v423
    %v494 = vpack.c.b16 %v426, %v425
    %v495 = vpack.c.b16 %v428, %v427
    %v496 = vpack.c.b16 %v430, %v429
    %v497 = vpack.c.b16 %v432, %v431
    %v498 = vpack.c.b16 %v434, %v433
    %563 = vmatpush.bf16.msra.mxu0 %v442
    %564 = vmatpush.bf16.msra.mxu0 %v441
    %565 = vmatpush.bf16.msra.mxu0 %v440
    %566 = vmatpush.bf16.msra.mxu0 %v439
    %567 = vmatpush.bf16.msra.mxu0 %v438
    %568 = vmatpush.bf16.msra.mxu0 %v437
    %569 = vmatpush.bf16.msra.mxu0 %v436
    %570 = vmatpush.bf16.msra.mxu0 %v435
    %571 = vmatmul.bf16.gmra.mxu0 %v163
    %v572 = vpop.f32.mrf.mxu0
    %v573 = vadd.f32 %v159, %v572
    %v574 = vpop.f32.mrf.mxu0
    %575 = vdwg.mxu0
    %576 = vmatpush.bf16.msra.mxu0 %v450
    %577 = vmatpush.bf16.msra.mxu0 %v449
    %578 = vmatpush.bf16.msra.mxu0 %v448
    %579 = vmatpush.bf16.msra.mxu0 %v447
    %580 = vmatpush.bf16.msra.mxu0 %v446
    %581 = vmatpush.bf16.msra.mxu0 %v445
    %582 = vmatpush.bf16.msra.mxu0 %v444
    %583 = vmatpush.bf16.msra.mxu0 %v443
    %584 = vmatmul.bf16.gmra.mxu0 %v164
    %v585 = vpop.f32.mrf.mxu0
    %v586 = vadd.f32 %v573, %v585
    %v587 = vpop.f32.mrf.mxu0
    %588 = vdwg.mxu0
    %589 = vmatpush.bf16.msra.mxu0 %v458
    %590 = vmatpush.bf16.msra.mxu0 %v457
    %591 = vmatpush.bf16.msra.mxu0 %v456
    %592 = vmatpush.bf16.msra.mxu0 %v455
    %593 = vmatpush.bf16.msra.mxu0 %v454
    %594 = vmatpush.bf16.msra.mxu0 %v453
    %595 = vmatpush.bf16.msra.mxu0 %v452
    %596 = vmatpush.bf16.msra.mxu0 %v451
    %597 = vmatmul.bf16.gmra.mxu0 %v165
    %v598 = vpop.f32.mrf.mxu0
    %v599 = vadd.f32 %v586, %v598
    %v600 = vpop.f32.mrf.mxu0
    %601 = vdwg.mxu0
    %602 = vmatpush.bf16.msra.mxu0 %v466
    %603 = vmatpush.bf16.msra.mxu0 %v465
    %604 = vmatpush.bf16.msra.mxu0 %v464
    %605 = vmatpush.bf16.msra.mxu0 %v463
    %606 = vmatpush.bf16.msra.mxu0 %v462
    %607 = vmatpush.bf16.msra.mxu0 %v461
    %608 = vmatpush.bf16.msra.mxu0 %v460
    %609 = vmatpush.bf16.msra.mxu0 %v459
    %610 = vmatmul.bf16.gmra.mxu0 %v166
    %v611 = vpop.f32.mrf.mxu0
    %v612 = vadd.f32 %v599, %v611
    %v613 = vpop.f32.mrf.mxu0
    %614 = vdwg.mxu0
    %615 = vmatpush.bf16.msra.mxu0 %v474
    %616 = vmatpush.bf16.msra.mxu0 %v473
    %617 = vmatpush.bf16.msra.mxu0 %v472
    %618 = vmatpush.bf16.msra.mxu0 %v471
    %619 = vmatpush.bf16.msra.mxu0 %v470
    %620 = vmatpush.bf16.msra.mxu0 %v469
    %621 = vmatpush.bf16.msra.mxu0 %v468
    %622 = vmatpush.bf16.msra.mxu0 %v467
    %623 = vmatmul.bf16.gmra.mxu0 %v167
    %v624 = vpop.f32.mrf.mxu0
    %v625 = vadd.f32 %v612, %v624
    %v626 = vpop.f32.mrf.mxu0
    %627 = vdwg.mxu0
    %628 = vmatpush.bf16.msra.mxu0 %v482
    %629 = vmatpush.bf16.msra.mxu0 %v481
    %630 = vmatpush.bf16.msra.mxu0 %v480
    %631 = vmatpush.bf16.msra.mxu0 %v479
    %632 = vmatpush.bf16.msra.mxu0 %v478
    %633 = vmatpush.bf16.msra.mxu0 %v477
    %634 = vmatpush.bf16.msra.mxu0 %v476
    %635 = vmatpush.bf16.msra.mxu0 %v475
    %636 = vmatmul.bf16.gmra.mxu0 %v168
    %v637 = vpop.f32.mrf.mxu0
    %v638 = vadd.f32 %v625, %v637
    %v639 = vpop.f32.mrf.mxu0
    %640 = vdwg.mxu0
    %641 = vmatpush.bf16.msra.mxu0 %v490
    %642 = vmatpush.bf16.msra.mxu0 %v489
    %643 = vmatpush.bf16.msra.mxu0 %v488
    %644 = vmatpush.bf16.msra.mxu0 %v487
    %645 = vmatpush.bf16.msra.mxu0 %v486
    %646 = vmatpush.bf16.msra.mxu0 %v485
    %647 = vmatpush.bf16.msra.mxu0 %v484
    %648 = vmatpush.bf16.msra.mxu0 %v483
    %649 = vmatmul.bf16.gmra.mxu0 %v169
    %v650 = vpop.f32.mrf.mxu0
    %v651 = vadd.f32 %v638, %v650
    %v652 = vpop.f32.mrf.mxu0
    %653 = vdwg.mxu0
    %654 = vmatpush.bf16.msra.mxu0 %v498
    %655 = vmatpush.bf16.msra.mxu0 %v497
    %656 = vmatpush.bf16.msra.mxu0 %v496
    %657 = vmatpush.bf16.msra.mxu0 %v495
    %658 = vmatpush.bf16.msra.mxu0 %v494
    %659 = vmatpush.bf16.msra.mxu0 %v493
    %660 = vmatpush.bf16.msra.mxu0 %v492
    %661 = vmatpush.bf16.msra.mxu0 %v491
    %662 = vmatmul.bf16.gmra.mxu0 %v170
    %v663 = vpop.f32.mrf.mxu0
    %v664 = vadd.f32 %v651, %v663
    %v665 = vpop.f32.mrf.mxu0
    %666 = vdwg.mxu0
    %v667 = vmax.f32 %v664, 0.0
    %v668 = vpack.c.bf16 %v667, %v667
    %v669 = vld [vmem:[%s3] sm:$0xf]
    %v670 = vld [vmem:[%s3 + $0x4] sm:$0xf]
    %v671 = vld [vmem:[%s3 + $0x8] sm:$0xf]
    %v672 = vld [vmem:[%s3 + $0xc] sm:$0xf]
    %v673 = vld [vmem:[%s3 + $0x10] sm:$0xf]
    %v674 = vld [vmem:[%s3 + $0x14] sm:$0xf]
    %v675 = vld [vmem:[%s3 + $0x18] sm:$0xf]
    %v676 = vld [vmem:[%s3 + $0x1c] sm:$0xf]
    %v677 = vld [vmem:[%s3 + $0x20] sm:$0xf]
    %v678 = vld [vmem:[%s3 + $0x24] sm:$0xf]
    %v679 = vld [vmem:[%s3 + $0x28] sm:$0xf]
    %v680 = vld [vmem:[%s3 + $0x2c] sm:$0xf]
    %v681 = vld [vmem:[%s3 + $0x30] sm:$0xf]
    %v682 = vld [vmem:[%s3 + $0x34] sm:$0xf]
    %v683 = vld [vmem:[%s3 + $0x38] sm:$0xf]
    %v684 = vld [vmem:[%s3 + $0x3c] sm:$0xf]
    %v685 = vld [vmem:[%s4] sm:$0x1]
    %v687 = vperm.slane %v685, 0
    %v705 = vunpack.c.l.b16 %v669
    %v706 = vunpack.c.l.b16 %v670
    %v707 = vunpack.c.l.b16 %v671
    %v708 = vunpack.c.l.b16 %v672
    %v709 = vunpack.c.l.b16 %v673
    %v710 = vunpack.c.l.b16 %v674
    %v711 = vunpack.c.l.b16 %v675
    %v712 = vunpack.c.l.b16 %v676
    %v713 = vunpack.c.l.b16 %v677
    %v714 = vunpack.c.l.b16 %v678
    %v715 = vunpack.c.l.b16 %v679
    %v716 = vunpack.c.l.b16 %v680
    %v717 = vunpack.c.l.b16 %v681
    %v718 = vunpack.c.l.b16 %v682
    %v719 = vunpack.c.l.b16 %v683
    %v720 = vunpack.c.l.b16 %v684
    %v721 = vpack.c.b16 %v706, %v705
    %v722 = vpack.c.b16 %v708, %v707
    %v723 = vpack.c.b16 %v710, %v709
    %v724 = vpack.c.b16 %v712, %v711
    %v725 = vpack.c.b16 %v714, %v713
    %v726 = vpack.c.b16 %v716, %v715
    %v727 = vpack.c.b16 %v718, %v717
    %v728 = vpack.c.b16 %v720, %v719
    %737 = vmatpush.bf16.msra.mxu0 %v728
    %738 = vmatpush.bf16.msra.mxu0 %v727
    %739 = vmatpush.bf16.msra.mxu0 %v726
    %740 = vmatpush.bf16.msra.mxu0 %v725
    %741 = vmatpush.bf16.msra.mxu0 %v724
    %742 = vmatpush.bf16.msra.mxu0 %v723
    %743 = vmatpush.bf16.msra.mxu0 %v722
    %744 = vmatpush.bf16.msra.mxu0 %v721
    %745 = vmatmul.bf16.gmra.mxu0 %v668
    %v746 = vpop.f32.mrf.mxu0
    %v747 = vadd.f32 %v687, %v746
    %v748 = vpop.f32.mrf.mxu0
    %749 = vdwg.mxu0
    %v750 = vmax.f32 %v747, 0.0
    %v751 = vpack.c.bf16 %v750, %v750
    %v752 = vld [vmem:[%s5] sm:$0xf]
    %v753 = vld [vmem:[%s5 + $0x4] sm:$0xf]
    %v754 = vld [vmem:[%s5 + $0x8] sm:$0xf]
    %v755 = vld [vmem:[%s5 + $0xc] sm:$0xf]
    %v756 = vld [vmem:[%s5 + $0x10] sm:$0xf]
    %v757 = vld [vmem:[%s5 + $0x14] sm:$0xf]
    %v758 = vld [vmem:[%s5 + $0x18] sm:$0xf]
    %v759 = vld [vmem:[%s5 + $0x1c] sm:$0xf]
    %v760 = vld [vmem:[%s6] sm:$0x1]
    %v762 = vperm.slane %v760, 0
    %v772 = vunpack.c.l.b16 %v752
    %v773 = vunpack.c.l.b16 %v753
    %v774 = vunpack.c.l.b16 %v754
    %v775 = vunpack.c.l.b16 %v755
    %v776 = vunpack.c.l.b16 %v756
    %v777 = vunpack.c.l.b16 %v757
    %v778 = vunpack.c.l.b16 %v758
    %v779 = vunpack.c.l.b16 %v759
    %v780 = vpack.c.b16 %v773, %v772
    %v781 = vpack.c.b16 %v775, %v774
    %v782 = vpack.c.b16 %v777, %v776
    %v783 = vpack.c.b16 %v779, %v778
    %vm788 = vcmask 523264
    %v790 = vsel %vm788, %v751, 0
    %792 = vmatpush.bf16.msra.mxu0 0
    %793 = vmatpush.bf16.msra.mxu0 0
    %794 = vmatpush.bf16.msra.mxu0 0
    %795 = vmatpush.bf16.msra.mxu0 0
    %796 = vmatpush.bf16.msra.mxu0 %v783
    %797 = vmatpush.bf16.msra.mxu0 %v782
    %798 = vmatpush.bf16.msra.mxu0 %v781
    %799 = vmatpush.bf16.msra.mxu0 %v780
    %800 = vmatmul.bf16.gmra.mxu0 %v790
    %v801 = vpop.f32.mrf.mxu0
    %v802 = vadd.f32 %v762, %v801
    %v803 = vpop.f32.mrf.mxu0
    %804 = vdwg.mxu0
    %vm805 = vcmask 74752
    %v806 = vsel %vm805, %v802, -inf
    %807 = vmax.xlane.f32.xlu0 %v806
    %v808 = vpop.xlane.xlu0 %807
    %v809 = vsub.f32 %v802, %v808
    %v810 = vmul.f32 %v809, 1.442695
    %v811 = vpow.pop %v810
    %v812 = vsel %vm805, %v811, 0.0
    %813 = vadd.xlane.f32.xlu0 %v812
    %v814 = vpop.xlane.xlu0 %813
    %v815 = vlog2.pop %v814
    %v816 = vmul.f32 %v815, 0.6931472
    %v817 = vsub.f32 %v809, %v816
    %818 = vst.msk [vmem:[#allocation2] sm:$0x3] %vm805, %v817
    // Predicated region
    $region30: #{cnn_mnist_forward.5} parent=1 // pred_check
      _
    $region31: #{cnn_mnist_forward.5} parent=1 // pred_check_branch
      %820 = sbr.rel (0) target = $region33
    $region32: #{cnn_mnist_forward.5} parent=1 // pred_region
      %822 = vsyncadd [#allocation3], 0
      %s824 = sshll.u32 [#allocation2], 4
      %s825 = int_to_ptr.vmem [resolvable:$true] %s824
      %s826 = sshll.u32 %s7, 4
      %s827 = int_to_ptr.hbm [resolvable:$true] %s826
      %829 = dma.vmem_to_hbm [thread:$0]  %s825, 32, %s827, [#allocation3]
    $region33: #{cnn_mnist_forward.5} parent=1 // pred_fallthru
      _
    // Predicated region
    $region34: #{cnn_mnist_forward.5} parent=1 // pred_check
      _
    $region35: #{cnn_mnist_forward.5} parent=1 // pred_check_branch
      %831 = sbr.rel (0) target = $region37
    $region36: #{cnn_mnist_forward.5} parent=1 // pred_region
      %833 = dma.done [#allocation3], 32
    $region37: #{cnn_mnist_forward.5} parent=1 // pred_fallthru
      _
    %834 = vsyncpa [#allocation3], 1

// kernel: cnn_mnist_forward.3
$region0: #{cnn_mnist_forward.3}
  #allocation0 [shape = 'u32[]', space=smem, size = 0x4, offset = 0x4, fixed_abs, tag = 'smem constant byte address 0x4 - core index']
  #allocation1 [shape = 'u32[72,128]{1,0:T(1,128)}', space=vmem, size = 0x9000, scoped, tag = 'internal scratch']
  %s0 = inlined_call_operand.vmem [shape: f32[2,28,28], index: 0, kind: input, shape index: {}]
  %s1 = inlined_call_operand.hbm [shape: bf16[5,28,1536], index: 1, kind: input, shape index: {}]
  %s2 = inlined_call_operand.hbm [shape: f32[1,1536], index: 2, kind: input, shape index: {}]
  %s3 = inlined_call_operand.vmem [shape: bf16[2,12,768], index: 3, kind: output, shape index: {}]
  %s4 = sld [smem:[#allocation0]]
  $region30: #{cnn_mnist_forward.3} parent=0
    _
  %s6 = ssub.s32 1, %s4
  %s7 = scalar_select 0, %s6, %s4
  $region1: #{cnn_mnist_forward.3} parent=0
    #allocation2 [shape = 'u8[491520]{0}', space=vmem, size = 0x78000, scoped, tag = 'input window, operand 1, single buffered']
    #allocation3 [shape = 's32[1]{0}', space=sflag, size = 0x4, scoped, tag = 'scoped memory for cnn_mnist_forward.3']
    #allocation4 [shape = 'u8[6144]{0}', space=vmem, size = 0x1800, scoped, tag = 'input window, operand 2, single buffered']
    #allocation5 [shape = 's32[1]{0}', space=sflag, size = 0x4, scoped, tag = 'scoped memory for cnn_mnist_forward.3']
    %8 = vsyncpa [#allocation3], 0
    %9 = vsyncpa [#allocation5], 0
    // Predicated region
    $region2: #{cnn_mnist_forward.3} parent=1 // pred_check
      _
    $region3: #{cnn_mnist_forward.3} parent=1 // pred_check_branch
      %11 = sbr.rel (0) target = $region5
    $region4: #{cnn_mnist_forward.3} parent=1 // pred_region
      _
    $region5: #{cnn_mnist_forward.3} parent=1 // pred_fallthru
      _
    // Predicated region
    $region6: #{cnn_mnist_forward.3} parent=1 // pred_check
      _
    $region7: #{cnn_mnist_forward.3} parent=1 // pred_check_branch
      %13 = sbr.rel (0) target = $region9
    $region8: #{cnn_mnist_forward.3} parent=1 // pred_region
      %15 = vsyncadd [#allocation3], 0
      %s16 = sshll.u32 %s1, 4
      %s17 = int_to_ptr.hbm [resolvable:$true] %s16
      %s18 = sshll.u32 [#allocation2], 4
      %s19 = int_to_ptr.vmem [resolvable:$true] %s18
      %24 = dma.hbm_to_vmem [thread:$0]  %s17, 15360, %s19, [#allocation3], 768, 768, 48
    $region9: #{cnn_mnist_forward.3} parent=1 // pred_fallthru
      _
    // Predicated region
    $region10: #{cnn_mnist_forward.3} parent=1 // pred_check
      _
    $region11: #{cnn_mnist_forward.3} parent=1 // pred_check_branch
      %26 = sbr.rel (0) target = $region13
    $region12: #{cnn_mnist_forward.3} parent=1 // pred_region
      %28 = vsyncadd [#allocation5], 0
      %s30 = sshll.u32 %s2, 4
      %s31 = int_to_ptr.hbm [resolvable:$true] %s30
      %s32 = sshll.u32 [#allocation4], 4
      %s33 = int_to_ptr.vmem [resolvable:$true] %s32
      %35 = dma.hbm_to_vmem [thread:$0]  %s31, 192, %s33, [#allocation5]
    $region13: #{cnn_mnist_forward.3} parent=1 // pred_fallthru
      _
    // Predicated region
    $region14: #{cnn_mnist_forward.3} parent=1 // pred_check
      _
    $region15: #{cnn_mnist_forward.3} parent=1 // pred_check_branch
      %37 = sbr.rel (0) target = $region17
    $region16: #{cnn_mnist_forward.3} parent=1 // pred_region
      %39 = dma.done [#allocation3], 15360
    $region17: #{cnn_mnist_forward.3} parent=1 // pred_fallthru
      _
    // Predicated region
    $region18: #{cnn_mnist_forward.3} parent=1 // pred_check
      _
    $region19: #{cnn_mnist_forward.3} parent=1 // pred_check_branch
      %41 = sbr.rel (0) target = $region21
    $region20: #{cnn_mnist_forward.3} parent=1 // pred_region
      %43 = dma.done [#allocation5], 192
    $region21: #{cnn_mnist_forward.3} parent=1 // pred_fallthru
      _
    %v45 = vld [vmem:[%s0] sm:$0xff]
    %v46 = vld [vmem:[%s0 + $0x8] sm:$0xff]
    %v47 = vld [vmem:[%s0 + $0x10] sm:$0xff]
    %v48 = vld [vmem:[%s0 + $0x18] sm:$0xf]
    %v49 = vld [vmem:[%s0 + $0x20] sm:$0xff]
    %v50 = vld [vmem:[%s0 + $0x28] sm:$0xff]
    %v51 = vld [vmem:[%s0 + $0x30] sm:$0xff]
    %v52 = vld [vmem:[%s0 + $0x38] sm:$0xf]
    %v53 = vpack.c.bf16 %v46, %v45
    %v54 = vpack.c.bf16 %v49, %v47
    %v55 = vpack.c.bf16 %v51, %v50
    %v56 = vld [vmem:[#allocation2] sm:$0xff]
    %v57 = vld [vmem:[#allocation2 + $0x8] sm:$0xff]
    %v58 = vld [vmem:[#allocation2 + $0x10] sm:$0xff]
    %v59 = vld [vmem:[#allocation2 + $0x18] sm:$0xff]
    %v60 = vld [vmem:[#allocation2 + $0x20] sm:$0xff]
    %v61 = vld [vmem:[#allocation2 + $0x28] sm:$0xff]
    %v62 = vld [vmem:[#allocation2 + $0x30] sm:$0xff]
    %v63 = vld [vmem:[#allocation2 + $0x38] sm:$0xff]
    %v64 = vld [vmem:[#allocation2 + $0x40] sm:$0xff]
    %v65 = vld [vmem:[#allocation2 + $0x48] sm:$0xff]
    %v66 = vld [vmem:[#allocation2 + $0x50] sm:$0xff]
    %v67 = vld [vmem:[#allocation2 + $0x58] sm:$0xff]
    %v68 = vld [vmem:[#allocation2 + $0x60] sm:$0xff]
    %v69 = vld [vmem:[#allocation2 + $0x68] sm:$0xff]
    %v70 = vld [vmem:[#allocation2 + $0x70] sm:$0xff]
    %v71 = vld [vmem:[#allocation2 + $0x78] sm:$0xff]
    %v72 = vld [vmem:[#allocation2 + $0x80] sm:$0xff]
    %v73 = vld [vmem:[#allocation2 + $0x88] sm:$0xff]
    %v74 = vld [vmem:[#allocation2 + $0x90] sm:$0x33]
    %v75 = vld [vmem:[#allocation2 + $0x98] sm:$0x33]
    %v76 = vld [vmem:[#allocation2 + $0xa0] sm:$0x33]
    %v77 = vld [vmem:[#allocation2 + $0xa8] sm:$0x33]
    %v78 = vld [vmem:[#allocation2 + $0xb0] sm:$0x33]
    %v79 = vld [vmem:[#allocation2 + $0xb8] sm:$0x33]
    %vm88 = vcmask 1046528
    %v89 = vrot.slane %v45, 1
    %v90 = vrot.slane %v46, 1
    %v91 = vsel %vm88, %v89, %v90
    %v92 = vrot.slane %v47, 1
    %v93 = vsel %vm88, %v90, %v92
    %v94 = vrot.slane %v48, 1
    %v95 = vsel %vm88, %v92, %v94
    %v96 = vrot.slane %v49, 1
    %v97 = vrot.slane %v50, 1
    %v98 = vsel %vm88, %v96, %v97
    %v99 = vrot.slane %v51, 1
    %v100 = vsel %vm88, %v97, %v99
    %v101 = vrot.slane %v52, 1
    %v102 = vsel %vm88, %v99, %v101
    %v109 = vpack.c.bf16 %v93, %v91
    %v110 = vpack.c.bf16 %v98, %v95
    %v111 = vpack.c.bf16 %v102, %v100
    %s112 = scalar_lea.vmem [#allocation2], 192
    %v113 = vld [vmem:[%s112] sm:$0xff]
    %v114 = vld [vmem:[%s112 + $0x8] sm:$0xff]
    %v115 = vld [vmem:[%s112 + $0x10] sm:$0xff]
    %v116 = vld [vmem:[%s112 + $0x18] sm:$0xff]
    %v117 = vld [vmem:[%s112 + $0x20] sm:$0xff]
    %v118 = vld [vmem:[%s112 + $0x28] sm:$0xff]
    %v119 = vld [vmem:[%s112 + $0x30] sm:$0xff]
    %v120 = vld [vmem:[%s112 + $0x38] sm:$0xff]
    %v121 = vld [vmem:[%s112 + $0x40] sm:$0xff]
    %v122 = vld [vmem:[%s112 + $0x48] sm:$0xff]
    %v123 = vld [vmem:[%s112 + $0x50] sm:$0xff]
    %v124 = vld [vmem:[%s112 + $0x58] sm:$0xff]
    %v125 = vld [vmem:[%s112 + $0x60] sm:$0xff]
    %v126 = vld [vmem:[%s112 + $0x68] sm:$0xff]
    %v127 = vld [vmem:[%s112 + $0x70] sm:$0xff]
    %v128 = vld [vmem:[%s112 + $0x78] sm:$0xff]
    %v129 = vld [vmem:[%s112 + $0x80] sm:$0xff]
    %v130 = vld [vmem:[%s112 + $0x88] sm:$0xff]
    %v131 = vld [vmem:[%s112 + $0x90] sm:$0x33]
    %v132 = vld [vmem:[%s112 + $0x98] sm:$0x33]
    %v133 = vld [vmem:[%s112 + $0xa0] sm:$0x33]
    %v134 = vld [vmem:[%s112 + $0xa8] sm:$0x33]
    %v135 = vld [vmem:[%s112 + $0xb0] sm:$0x33]
    %v136 = vld [vmem:[%s112 + $0xb8] sm:$0x33]
    %v161 = vunpack.c.l.b16 %v113
    %v162 = vunpack.c.h.b16 %v113
    %v163 = vunpack.c.l.b16 %v114
    %v164 = vunpack.c.h.b16 %v114
    %v165 = vunpack.c.l.b16 %v115
    %v166 = vunpack.c.h.b16 %v115
    %v167 = vunpack.c.l.b16 %v116
    %v168 = vunpack.c.h.b16 %v116
    %v169 = vunpack.c.l.b16 %v117
    %v170 = vunpack.c.h.b16 %v117
    %v171 = vunpack.c.l.b16 %v118
    %v172 = vunpack.c.h.b16 %v118
    %v173 = vunpack.c.l.b16 %v119
    %v174 = vunpack.c.h.b16 %v119
    %v175 = vunpack.c.l.b16 %v120
    %v176 = vunpack.c.h.b16 %v120
    %v177 = vunpack.c.l.b16 %v121
    %v178 = vunpack.c.h.b16 %v121
    %v179 = vunpack.c.l.b16 %v122
    %v180 = vunpack.c.h.b16 %v122
    %v181 = vunpack.c.l.b16 %v123
    %v182 = vunpack.c.h.b16 %v123
    %v183 = vunpack.c.l.b16 %v124
    %v184 = vunpack.c.h.b16 %v124
    %v185 = vunpack.c.l.b16 %v125
    %v186 = vunpack.c.h.b16 %v125
    %v187 = vunpack.c.l.b16 %v126
    %v188 = vunpack.c.h.b16 %v126
    %v189 = vunpack.c.l.b16 %v127
    %v190 = vunpack.c.h.b16 %v127
    %v191 = vunpack.c.l.b16 %v128
    %v192 = vunpack.c.h.b16 %v128
    %v193 = vunpack.c.l.b16 %v129
    %v194 = vunpack.c.h.b16 %v129
    %v195 = vunpack.c.l.b16 %v130
    %v196 = vunpack.c.h.b16 %v130
    %v197 = vunpack.c.l.b16 %v131
    %v198 = vunpack.c.h.b16 %v131
    %v199 = vunpack.c.l.b16 %v132
    %v200 = vunpack.c.h.b16 %v132
    %v201 = vunpack.c.l.b16 %v133
    %v202 = vunpack.c.h.b16 %v133
    %v203 = vunpack.c.l.b16 %v134
    %v204 = vunpack.c.h.b16 %v134
    %v205 = vunpack.c.l.b16 %v135
    %v206 = vunpack.c.h.b16 %v135
    %v207 = vunpack.c.l.b16 %v136
    %v208 = vunpack.c.h.b16 %v136
    %v209 = vpack.c.b16 %v173, %v161
    %v210 = vpack.c.b16 %v174, %v162
    %v211 = vpack.c.b16 %v175, %v163
    %v212 = vpack.c.b16 %v176, %v164
    %v213 = vpack.c.b16 %v177, %v165
    %v214 = vpack.c.b16 %v178, %v166
    %v215 = vpack.c.b16 %v179, %v167
    %v216 = vpack.c.b16 %v180, %v168
    %v217 = vpack.c.b16 %v181, %v169
    %v218 = vpack.c.b16 %v182, %v170
    %v219 = vpack.c.b16 %v183, %v171
    %v220 = vpack.c.b16 %v184, %v172
    %v221 = vpack.c.b16 %v197, %v185
    %v222 = vpack.c.b16 %v198, %v186
    %v223 = vpack.c.b16 %v199, %v187
    %v224 = vpack.c.b16 %v200, %v188
    %v225 = vpack.c.b16 %v201, %v189
    %v226 = vpack.c.b16 %v202, %v190
    %v227 = vpack.c.b16 %v203, %v191
    %v228 = vpack.c.b16 %v204, %v192
    %v229 = vpack.c.b16 %v205, %v193
    %v230 = vpack.c.b16 %v206, %v194
    %v231 = vpack.c.b16 %v207, %v195
    %v232 = vpack.c.b16 %v208, %v196
    %vm245 = vcmask 228352
    %v247 = vsel %vm245, %v109, 0
    %v250 = vsel %vm245, %v110, 0
    %v253 = vsel %vm245, %v111, 0
    %vm255 = vcmask 1045504
    %v257 = vsel %vm255, %v221, 0
    %v260 = vsel %vm255, %v222, 0
    %v263 = vsel %vm255, %v223, 0
    %v266 = vsel %vm255, %v224, 0
    %v269 = vsel %vm255, %v225, 0
    %v272 = vsel %vm255, %v226, 0
    %v275 = vsel %vm255, %v227, 0
    %v278 = vsel %vm255, %v228, 0
    %v281 = vsel %vm255, %v229, 0
    %v284 = vsel %vm255, %v230, 0
    %v287 = vsel %vm255, %v231, 0
    %v290 = vsel %vm255, %v232, 0
    %292 = vmatpush.bf16.msra.mxu0 0
    %293 = vmatpush.bf16.msra.mxu0 0
    %294 = vmatpush.bf16.msra.mxu0 0
    %295 = vmatpush.bf16.msra.mxu0 0
    %296 = vmatpush.bf16.msra.mxu0 0
    %297 = vmatpush.bf16.msra.mxu0 0
    %298 = vmatpush.bf16.msra.mxu0 %v257
    %299 = vmatpush.bf16.msra.mxu0 %v209
    %300 = vmatmul.bf16.gmra.mxu0 %v247
    %v301 = vpop.f32.mrf.mxu0
    %v302 = vadd.f32 0.0, %v301
    %v303 = vpop.f32.mrf.mxu0
    %v304 = vadd.f32 0.0, %v303
    %305 = vmatmul.bf16.gmra.mxu0 %v250
    %v306 = vpop.f32.mrf.mxu0
    %v307 = vadd.f32 0.0, %v306
    %v308 = vpop.f32.mrf.mxu0
    %v309 = vadd.f32 0.0, %v308
    %310 = vmatmul.bf16.gmra.mxu0 %v253
    %v311 = vpop.f32.mrf.mxu0
    %v312 = vadd.f32 0.0, %v311
    %v313 = vpop.f32.mrf.mxu0
    %v314 = vadd.f32 0.0, %v313
    %315 = vdwg.mxu0
    %316 = vmatpush.bf16.msra.mxu0 0
    %317 = vmatpush.bf16.msra.mxu0 0
    %318 = vmatpush.bf16.msra.mxu0 0
    %319 = vmatpush.bf16.msra.mxu0 0
    %320 = vmatpush.bf16.msra.mxu0 0
    %321 = vmatpush.bf16.msra.mxu0 0
    %322 = vmatpush.bf16.msra.mxu0 %v260
    %323 = vmatpush.bf16.msra.mxu0 %v210
    %324 = vmatmul.bf16.gmra.mxu0 %v247
    %v325 = vpop.f32.mrf.mxu0
    %v326 = vadd.f32 0.0, %v325
    %v327 = vpop.f32.mrf.mxu0
    %v328 = vadd.f32 0.0, %v327
    %329 = vmatmul.bf16.gmra.mxu0 %v250
    %v330 = vpop.f32.mrf.mxu0
    %v331 = vadd.f32 0.0, %v330
    %v332 = vpop.f32.mrf.mxu0
    %v333 = vadd.f32 0.0, %v332
    %334 = vmatmul.bf16.gmra.mxu0 %v253
    %v335 = vpop.f32.mrf.mxu0
    %v336 = vadd.f32 0.0, %v335
    %v337 = vpop.f32.mrf.mxu0
    %v338 = vadd.f32 0.0, %v337
    %339 = vdwg.mxu0
    %340 = vmatpush.bf16.msra.mxu0 0
    %341 = vmatpush.bf16.msra.mxu0 0
    %342 = vmatpush.bf16.msra.mxu0 0
    %343 = vmatpush.bf16.msra.mxu0 0
    %344 = vmatpush.bf16.msra.mxu0 0
    %345 = vmatpush.bf16.msra.mxu0 0
    %346 = vmatpush.bf16.msra.mxu0 %v263
    %347 = vmatpush.bf16.msra.mxu0 %v211
    %348 = vmatmul.bf16.gmra.mxu0 %v247
    %v349 = vpop.f32.mrf.mxu0
    %v350 = vadd.f32 0.0, %v349
    %v351 = vpop.f32.mrf.mxu0
    %v352 = vadd.f32 0.0, %v351
    %353 = vmatmul.bf16.gmra.mxu0 %v250
    %v354 = vpop.f32.mrf.mxu0
    %v355 = vadd.f32 0.0, %v354
    %v356 = vpop.f32.mrf.mxu0
    %v357 = vadd.f32 0.0, %v356
    %358 = vmatmul.bf16.gmra.mxu0 %v253
    %v359 = vpop.f32.mrf.mxu0
    %v360 = vadd.f32 0.0, %v359
    %v361 = vpop.f32.mrf.mxu0
    %v362 = vadd.f32 0.0, %v361
    %363 = vdwg.mxu0
    %364 = vmatpush.bf16.msra.mxu0 0
    %365 = vmatpush.bf16.msra.mxu0 0
    %366 = vmatpush.bf16.msra.mxu0 0
    %367 = vmatpush.bf16.msra.mxu0 0
    %368 = vmatpush.bf16.msra.mxu0 0
    %369 = vmatpush.bf16.msra.mxu0 0
    %370 = vmatpush.bf16.msra.mxu0 %v266
    %371 = vmatpush.bf16.msra.mxu0 %v212
    %372 = vmatmul.bf16.gmra.mxu0 %v247
    %v373 = vpop.f32.mrf.mxu0
    %v374 = vadd.f32 0.0, %v373
    %v375 = vpop.f32.mrf.mxu0
    %v376 = vadd.f32 0.0, %v375
    %377 = vmatmul.bf16.gmra.mxu0 %v250
    %v378 = vpop.f32.mrf.mxu0
    %v379 = vadd.f32 0.0, %v378
    %v380 = vpop.f32.mrf.mxu0
    %v381 = vadd.f32 0.0, %v380
    %382 = vmatmul.bf16.gmra.mxu0 %v253
    %v383 = vpop.f32.mrf.mxu0
    %v384 = vadd.f32 0.0, %v383
    %v385 = vpop.f32.mrf.mxu0
    %v386 = vadd.f32 0.0, %v385
    %387 = vdwg.mxu0
    %388 = vmatpush.bf16.msra.mxu0 0
    %389 = vmatpush.bf16.msra.mxu0 0
    %390 = vmatpush.bf16.msra.mxu0 0
    %391 = vmatpush.bf16.msra.mxu0 0
    %392 = vmatpush.bf16.msra.mxu0 0
    %393 = vmatpush.bf16.msra.mxu0 0
    %394 = vmatpush.bf16.msra.mxu0 %v269
    %395 = vmatpush.bf16.msra.mxu0 %v213
    %396 = vmatmul.bf16.gmra.mxu0 %v247
    %v397 = vpop.f32.mrf.mxu0
    %v398 = vadd.f32 0.0, %v397
    %v399 = vpop.f32.mrf.mxu0
    %v400 = vadd.f32 0.0, %v399
    %401 = vmatmul.bf16.gmra.mxu0 %v250
    %v402 = vpop.f32.mrf.mxu0
    %v403 = vadd.f32 0.0, %v402
    %v404 = vpop.f32.mrf.mxu0
    %v405 = vadd.f32 0.0, %v404
    %406 = vmatmul.bf16.gmra.mxu0 %v253
    %v407 = vpop.f32.mrf.mxu0
    %v408 = vadd.f32 0.0, %v407
    %v409 = vpop.f32.mrf.mxu0
    %v410 = vadd.f32 0.0, %v409
    %411 = vdwg.mxu0
    %412 = vmatpush.bf16.msra.mxu0 0
    %413 = vmatpush.bf16.msra.mxu0 0
    %414 = vmatpush.bf16.msra.mxu0 0
    %415 = vmatpush.bf16.msra.mxu0 0
    %416 = vmatpush.bf16.msra.mxu0 0
    %417 = vmatpush.bf16.msra.mxu0 0
    %418 = vmatpush.bf16.msra.mxu0 %v272
    %419 = vmatpush.bf16.msra.mxu0 %v214
    %420 = vmatmul.bf16.gmra.mxu0 %v247
    %v421 = vpop.f32.mrf.mxu0
    %v422 = vadd.f32 0.0, %v421
    %v423 = vpop.f32.mrf.mxu0
    %v424 = vadd.f32 0.0, %v423
    %425 = vmatmul.bf16.gmra.mxu0 %v250
    %v426 = vpop.f32.mrf.mxu0
    %v427 = vadd.f32 0.0, %v426
    %v428 = vpop.f32.mrf.mxu0
    %v429 = vadd.f32 0.0, %v428
    %430 = vmatmul.bf16.gmra.mxu0 %v253
    %v431 = vpop.f32.mrf.mxu0
    %v432 = vadd.f32 0.0, %v431
    %v433 = vpop.f32.mrf.mxu0
    %v434 = vadd.f32 0.0, %v433
    %435 = vdwg.mxu0
    %436 = vmatpush.bf16.msra.mxu0 0
    %437 = vmatpush.bf16.msra.mxu0 0
    %438 = vmatpush.bf16.msra.mxu0 0
    %439 = vmatpush.bf16.msra.mxu0 0
    %440 = vmatpush.bf16.msra.mxu0 0
    %441 = vmatpush.bf16.msra.mxu0 0
    %442 = vmatpush.bf16.msra.mxu0 %v275
    %443 = vmatpush.bf16.msra.mxu0 %v215
    %444 = vmatmul.bf16.gmra.mxu0 %v247
    %v445 = vpop.f32.mrf.mxu0
    %v446 = vadd.f32 0.0, %v445
    %v447 = vpop.f32.mrf.mxu0
    %v448 = vadd.f32 0.0, %v447
    %449 = vmatmul.bf16.gmra.mxu0 %v250
    %v450 = vpop.f32.mrf.mxu0
    %v451 = vadd.f32 0.0, %v450
    %v452 = vpop.f32.mrf.mxu0
    %v453 = vadd.f32 0.0, %v452
    %454 = vmatmul.bf16.gmra.mxu0 %v253
    %v455 = vpop.f32.mrf.mxu0
    %v456 = vadd.f32 0.0, %v455
    %v457 = vpop.f32.mrf.mxu0
    %v458 = vadd.f32 0.0, %v457
    %459 = vdwg.mxu0
    %460 = vmatpush.bf16.msra.mxu0 0
    %461 = vmatpush.bf16.msra.mxu0 0
    %462 = vmatpush.bf16.msra.mxu0 0
    %463 = vmatpush.bf16.msra.mxu0 0
    %464 = vmatpush.bf16.msra.mxu0 0
    %465 = vmatpush.bf16.msra.mxu0 0
    %466 = vmatpush.bf16.msra.mxu0 %v278
    %467 = vmatpush.bf16.msra.mxu0 %v216
    %468 = vmatmul.bf16.gmra.mxu0 %v247
    %v469 = vpop.f32.mrf.mxu0
    %v470 = vadd.f32 0.0, %v469
    %v471 = vpop.f32.mrf.mxu0
    %v472 = vadd.f32 0.0, %v471
    %473 = vmatmul.bf16.gmra.mxu0 %v250
    %v474 = vpop.f32.mrf.mxu0
    %v475 = vadd.f32 0.0, %v474
    %v476 = vpop.f32.mrf.mxu0
    %v477 = vadd.f32 0.0, %v476
    %478 = vmatmul.bf16.gmra.mxu0 %v253
    %v479 = vpop.f32.mrf.mxu0
    %v480 = vadd.f32 0.0, %v479
    %v481 = vpop.f32.mrf.mxu0
    %v482 = vadd.f32 0.0, %v481
    %483 = vdwg.mxu0
    %484 = vmatpush.bf16.msra.mxu0 0
    %485 = vmatpush.bf16.msra.mxu0 0
    %486 = vmatpush.bf16.msra.mxu0 0
    %487 = vmatpush.bf16.msra.mxu0 0
    %488 = vmatpush.bf16.msra.mxu0 0
    %489 = vmatpush.bf16.msra.mxu0 0
    %490 = vmatpush.bf16.msra.mxu0 %v281
    %491 = vmatpush.bf16.msra.mxu0 %v217
    %492 = vmatmul.bf16.gmra.mxu0 %v247
    %v493 = vpop.f32.mrf.mxu0
    %v494 = vadd.f32 0.0, %v493
    %v495 = vpop.f32.mrf.mxu0
    %v496 = vadd.f32 0.0, %v495
    %497 = vmatmul.bf16.gmra.mxu0 %v250
    %v498 = vpop.f32.mrf.mxu0
    %v499 = vadd.f32 0.0, %v498
    %v500 = vpop.f32.mrf.mxu0
    %v501 = vadd.f32 0.0, %v500
    %502 = vmatmul.bf16.gmra.mxu0 %v253
    %v503 = vpop.f32.mrf.mxu0
    %v504 = vadd.f32 0.0, %v503
    %v505 = vpop.f32.mrf.mxu0
    %v506 = vadd.f32 0.0, %v505
    %507 = vdwg.mxu0
    %508 = vmatpush.bf16.msra.mxu0 0
    %509 = vmatpush.bf16.msra.mxu0 0
    %510 = vmatpush.bf16.msra.mxu0 0
    %511 = vmatpush.bf16.msra.mxu0 0
    %512 = vmatpush.bf16.msra.mxu0 0
    %513 = vmatpush.bf16.msra.mxu0 0
    %514 = vmatpush.bf16.msra.mxu0 %v284
    %515 = vmatpush.bf16.msra.mxu0 %v218
    %516 = vmatmul.bf16.gmra.mxu0 %v247
    %v517 = vpop.f32.mrf.mxu0
    %v518 = vadd.f32 0.0, %v517
    %v519 = vpop.f32.mrf.mxu0
    %v520 = vadd.f32 0.0, %v519
    %521 = vmatmul.bf16.gmra.mxu0 %v250
    %v522 = vpop.f32.mrf.mxu0
    %v523 = vadd.f32 0.0, %v522
    %v524 = vpop.f32.mrf.mxu0
    %v525 = vadd.f32 0.0, %v524
    %526 = vmatmul.bf16.gmra.mxu0 %v253
    %v527 = vpop.f32.mrf.mxu0
    %v528 = vadd.f32 0.0, %v527
    %v529 = vpop.f32.mrf.mxu0
    %v530 = vadd.f32 0.0, %v529
    %531 = vdwg.mxu0
    %532 = vmatpush.bf16.msra.mxu0 0
    %533 = vmatpush.bf16.msra.mxu0 0
    %534 = vmatpush.bf16.msra.mxu0 0
    %535 = vmatpush.bf16.msra.mxu0 0
    %536 = vmatpush.bf16.msra.mxu0 0
    %537 = vmatpush.bf16.msra.mxu0 0
    %538 = vmatpush.bf16.msra.mxu0 %v287
    %539 = vmatpush.bf16.msra.mxu0 %v219
    %540 = vmatmul.bf16.gmra.mxu0 %v247
    %v541 = vpop.f32.mrf.mxu0
    %v542 = vadd.f32 0.0, %v541
    %v543 = vpop.f32.mrf.mxu0
    %v544 = vadd.f32 0.0, %v543
    %545 = vmatmul.bf16.gmra.mxu0 %v250
    %v546 = vpop.f32.mrf.mxu0
    %v547 = vadd.f32 0.0, %v546
    %v548 = vpop.f32.mrf.mxu0
    %v549 = vadd.f32 0.0, %v548
    %550 = vmatmul.bf16.gmra.mxu0 %v253
    %v551 = vpop.f32.mrf.mxu0
    %v552 = vadd.f32 0.0, %v551
    %v553 = vpop.f32.mrf.mxu0
    %v554 = vadd.f32 0.0, %v553
    %555 = vdwg.mxu0
    %556 = vmatpush.bf16.msra.mxu0 0
    %557 = vmatpush.bf16.msra.mxu0 0
    %558 = vmatpush.bf16.msra.mxu0 0
    %559 = vmatpush.bf16.msra.mxu0 0
    %560 = vmatpush.bf16.msra.mxu0 0
    %561 = vmatpush.bf16.msra.mxu0 0
    %562 = vmatpush.bf16.msra.mxu0 %v290
    %563 = vmatpush.bf16.msra.mxu0 %v220
    %564 = vmatmul.bf16.gmra.mxu0 %v247
    %v565 = vpop.f32.mrf.mxu0
    %v566 = vadd.f32 0.0, %v565
    %v567 = vpop.f32.mrf.mxu0
    %v568 = vadd.f32 0.0, %v567
    %569 = vmatmul.bf16.gmra.mxu0 %v250
    %v570 = vpop.f32.mrf.mxu0
    %v571 = vadd.f32 0.0, %v570
    %v572 = vpop.f32.mrf.mxu0
    %v573 = vadd.f32 0.0, %v572
    %574 = vmatmul.bf16.gmra.mxu0 %v253
    %v575 = vpop.f32.mrf.mxu0
    %v576 = vadd.f32 0.0, %v575
    %v577 = vpop.f32.mrf.mxu0
    %v578 = vadd.f32 0.0, %v577
    %579 = vdwg.mxu0
    %v604 = vunpack.c.l.b16 %v56
    %v605 = vunpack.c.h.b16 %v56
    %v606 = vunpack.c.l.b16 %v57
    %v607 = vunpack.c.h.b16 %v57
    %v608 = vunpack.c.l.b16 %v58
    %v609 = vunpack.c.h.b16 %v58
    %v610 = vunpack.c.l.b16 %v59
    %v611 = vunpack.c.h.b16 %v59
    %v612 = vunpack.c.l.b16 %v60
    %v613 = vunpack.c.h.b16 %v60
    %v614 = vunpack.c.l.b16 %v61
    %v615 = vunpack.c.h.b16 %v61
    %v616 = vunpack.c.l.b16 %v62
    %v617 = vunpack.c.h.b16 %v62
    %v618 = vunpack.c.l.b16 %v63
    %v619 = vunpack.c.h.b16 %v63
    %v620 = vunpack.c.l.b16 %v64
    %v621 = vunpack.c.h.b16 %v64
    %v622 = vunpack.c.l.b16 %v65
    %v623 = vunpack.c.h.b16 %v65
    %v624 = vunpack.c.l.b16 %v66
    %v625 = vunpack.c.h.b16 %v66
    %v626 = vunpack.c.l.b16 %v67
    %v627 = vunpack.c.h.b16 %v67
    %v628 = vunpack.c.l.b16 %v68
    %v629 = vunpack.c.h.b16 %v68
    %v630 = vunpack.c.l.b16 %v69
    %v631 = vunpack.c.h.b16 %v69
    %v632 = vunpack.c.l.b16 %v70
    %v633 = vunpack.c.h.b16 %v70
    %v634 = vunpack.c.l.b16 %v71
    %v635 = vunpack.c.h.b16 %v71
    %v636 = vunpack.c.l.b16 %v72
    %v637 = vunpack.c.h.b16 %v72
    %v638 = vunpack.c.l.b16 %v73
    %v639 = vunpack.c.h.b16 %v73
    %v640 = vunpack.c.l.b16 %v74
    %v641 = vunpack.c.h.b16 %v74
    %v642 = vunpack.c.l.b16 %v75
    %v643 = vunpack.c.h.b16 %v75
    %v644 = vunpack.c.l.b16 %v76
    %v645 = vunpack.c.h.b16 %v76
    %v646 = vunpack.c.l.b16 %v77
    %v647 = vunpack.c.h.b16 %v77
    %v648 = vunpack.c.l.b16 %v78
    %v649 = vunpack.c.h.b16 %v78
    %v650 = vunpack.c.l.b16 %v79
    %v651 = vunpack.c.h.b16 %v79
    %v652 = vpack.c.b16 %v616, %v604
    %v653 = vpack.c.b16 %v617, %v605
    %v654 = vpack.c.b16 %v618, %v606
    %v655 = vpack.c.b16 %v619, %v607
    %v656 = vpack.c.b16 %v620, %v608
    %v657 = vpack.c.b16 %v621, %v609
    %v658 = vpack.c.b16 %v622, %v610
    %v659 = vpack.c.b16 %v623, %v611
    %v660 = vpack.c.b16 %v624, %v612
    %v661 = vpack.c.b16 %v625, %v613
    %v662 = vpack.c.b16 %v626, %v614
    %v663 = vpack.c.b16 %v627, %v615
    %v664 = vpack.c.b16 %v640, %v628
    %v665 = vpack.c.b16 %v641, %v629
    %v666 = vpack.c.b16 %v642, %v630
    %v667 = vpack.c.b16 %v643, %v631
    %v668 = vpack.c.b16 %v644, %v632
    %v669 = vpack.c.b16 %v645, %v633
    %v670 = vpack.c.b16 %v646, %v634
    %v671 = vpack.c.b16 %v647, %v635
    %v672 = vpack.c.b16 %v648, %v636
    %v673 = vpack.c.b16 %v649, %v637
    %v674 = vpack.c.b16 %v650, %v638
    %v675 = vpack.c.b16 %v651, %v639
    %v689 = vsel %vm245, %v53, 0
    %v692 = vsel %vm245, %v54, 0
    %v695 = vsel %vm245, %v55, 0
    %v698 = vsel %vm255, %v664, 0
    %v701 = vsel %vm255, %v665, 0
    %v704 = vsel %vm255, %v666, 0
    %v707 = vsel %vm255, %v667, 0
    %v710 = vsel %vm255, %v668, 0
    %v713 = vsel %vm255, %v669, 0
    %v716 = vsel %vm255, %v670, 0
    %v719 = vsel %vm255, %v671, 0
    %v722 = vsel %vm255, %v672, 0
    %v725 = vsel %vm255, %v673, 0
    %v728 = vsel %vm255, %v674, 0
    %v731 = vsel %vm255, %v675, 0
    %733 = vmatpush.bf16.msra.mxu0 0
    %734 = vmatpush.bf16.msra.mxu0 0
    %735 = vmatpush.bf16.msra.mxu0 0
    %736 = vmatpush.bf16.msra.mxu0 0
    %737 = vmatpush.bf16.msra.mxu0 0
    %738 = vmatpush.bf16.msra.mxu0 0
    %739 = vmatpush.bf16.msra.mxu0 %v698
    %740 = vmatpush.bf16.msra.mxu0 %v652
    %741 = vmatmul.bf16.gmra.mxu0 %v689
    %v742 = vpop.f32.mrf.mxu0
    %v743 = vadd.f32 %v302, %v742
    %v744 = vpop.f32.mrf.mxu0
    %v745 = vadd.f32 %v304, %v744
    %746 = vmatmul.bf16.gmra.mxu0 %v692
    %v747 = vpop.f32.mrf.mxu0
    %v748 = vadd.f32 %v307, %v747
    %v749 = vpop.f32.mrf.mxu0
    %v750 = vadd.f32 %v309, %v749
    %751 = vmatmul.bf16.gmra.mxu0 %v695
    %v752 = vpop.f32.mrf.mxu0
    %v753 = vadd.f32 %v312, %v752
    %v754 = vpop.f32.mrf.mxu0
    %v755 = vadd.f32 %v314, %v754
    %756 = vdwg.mxu0
    %757 = vmatpush.bf16.msra.mxu0 0
    %758 = vmatpush.bf16.msra.mxu0 0
    %759 = vmatpush.bf16.msra.mxu0 0
    %760 = vmatpush.bf16.msra.mxu0 0
    %761 = vmatpush.bf16.msra.mxu0 0
    %762 = vmatpush.bf16.msra.mxu0 0
    %763 = vmatpush.bf16.msra.mxu0 %v701
    %764 = vmatpush.bf16.msra.mxu0 %v653
    %765 = vmatmul.bf16.gmra.mxu0 %v689
    %v766 = vpop.f32.mrf.mxu0
    %v767 = vadd.f32 %v326, %v766
    %v768 = vpop.f32.mrf.mxu0
    %v769 = vadd.f32 %v328, %v768
    %770 = vmatmul.bf16.gmra.mxu0 %v692
    %v771 = vpop.f32.mrf.mxu0
    %v772 = vadd.f32 %v331, %v771
    %v773 = vpop.f32.mrf.mxu0
    %v774 = vadd.f32 %v333, %v773
    %775 = vmatmul.bf16.gmra.mxu0 %v695
    %v776 = vpop.f32.mrf.mxu0
    %v777 = vadd.f32 %v336, %v776
    %v778 = vpop.f32.mrf.mxu0
    %v779 = vadd.f32 %v338, %v778
    %780 = vdwg.mxu0
    %781 = vmatpush.bf16.msra.mxu0 0
    %782 = vmatpush.bf16.msra.mxu0 0
    %783 = vmatpush.bf16.msra.mxu0 0
    %784 = vmatpush.bf16.msra.mxu0 0
    %785 = vmatpush.bf16.msra.mxu0 0
    %786 = vmatpush.bf16.msra.mxu0 0
    %787 = vmatpush.bf16.msra.mxu0 %v704
    %788 = vmatpush.bf16.msra.mxu0 %v654
    %789 = vmatmul.bf16.gmra.mxu0 %v689
    %v790 = vpop.f32.mrf.mxu0
    %v791 = vadd.f32 %v350, %v790
    %v792 = vpop.f32.mrf.mxu0
    %v793 = vadd.f32 %v352, %v792
    %794 = vmatmul.bf16.gmra.mxu0 %v692
    %v795 = vpop.f32.mrf.mxu0
    %v796 = vadd.f32 %v355, %v795
    %v797 = vpop.f32.mrf.mxu0
    %v798 = vadd.f32 %v357, %v797
    %799 = vmatmul.bf16.gmra.mxu0 %v695
    %v800 = vpop.f32.mrf.mxu0
    %v801 = vadd.f32 %v360, %v800
    %v802 = vpop.f32.mrf.mxu0
    %v803 = vadd.f32 %v362, %v802
    %804 = vdwg.mxu0
    %805 = vmatpush.bf16.msra.mxu0 0
    %806 = vmatpush.bf16.msra.mxu0 0
    %807 = vmatpush.bf16.msra.mxu0 0
    %808 = vmatpush.bf16.msra.mxu0 0
    %809 = vmatpush.bf16.msra.mxu0 0
    %810 = vmatpush.bf16.msra.mxu0 0
    %811 = vmatpush.bf16.msra.mxu0 %v707
    %812 = vmatpush.bf16.msra.mxu0 %v655
    %813 = vmatmul.bf16.gmra.mxu0 %v689
    %v814 = vpop.f32.mrf.mxu0
    %v815 = vadd.f32 %v374, %v814
    %v816 = vpop.f32.mrf.mxu0
    %v817 = vadd.f32 %v376, %v816
    %818 = vmatmul.bf16.gmra.mxu0 %v692
    %v819 = vpop.f32.mrf.mxu0
    %v820 = vadd.f32 %v379, %v819
    %v821 = vpop.f32.mrf.mxu0
    %v822 = vadd.f32 %v381, %v821
    %823 = vmatmul.bf16.gmra.mxu0 %v695
    %v824 = vpop.f32.mrf.mxu0
    %v825 = vadd.f32 %v384, %v824
    %v826 = vpop.f32.mrf.mxu0
    %v827 = vadd.f32 %v386, %v826
    %828 = vdwg.mxu0
    %829 = vmatpush.bf16.msra.mxu0 0
    %830 = vmatpush.bf16.msra.mxu0 0
    %831 = vmatpush.bf16.msra.mxu0 0
    %832 = vmatpush.bf16.msra.mxu0 0
    %833 = vmatpush.bf16.msra.mxu0 0
    %834 = vmatpush.bf16.msra.mxu0 0
    %835 = vmatpush.bf16.msra.mxu0 %v710
    %836 = vmatpush.bf16.msra.mxu0 %v656
    %837 = vmatmul.bf16.gmra.mxu0 %v689
    %v838 = vpop.f32.mrf.mxu0
    %v839 = vadd.f32 %v398, %v838
    %v840 = vpop.f32.mrf.mxu0
    %v841 = vadd.f32 %v400, %v840
    %842 = vmatmul.bf16.gmra.mxu0 %v692
    %v843 = vpop.f32.mrf.mxu0
    %v844 = vadd.f32 %v403, %v843
    %v845 = vpop.f32.mrf.mxu0
    %v846 = vadd.f32 %v405, %v845
    %847 = vmatmul.bf16.gmra.mxu0 %v695
    %v848 = vpop.f32.mrf.mxu0
    %v849 = vadd.f32 %v408, %v848
    %v850 = vpop.f32.mrf.mxu0
    %v851 = vadd.f32 %v410, %v850
    %852 = vdwg.mxu0
    %853 = vmatpush.bf16.msra.mxu0 0
    %854 = vmatpush.bf16.msra.mxu0 0
    %855 = vmatpush.bf16.msra.mxu0 0
    %856 = vmatpush.bf16.msra.mxu0 0
    %857 = vmatpush.bf16.msra.mxu0 0
    %858 = vmatpush.bf16.msra.mxu0 0
    %859 = vmatpush.bf16.msra.mxu0 %v713
    %860 = vmatpush.bf16.msra.mxu0 %v657
    %861 = vmatmul.bf16.gmra.mxu0 %v689
    %v862 = vpop.f32.mrf.mxu0
    %v863 = vadd.f32 %v422, %v862
    %v864 = vpop.f32.mrf.mxu0
    %v865 = vadd.f32 %v424, %v864
    %866 = vmatmul.bf16.gmra.mxu0 %v692
    %v867 = vpop.f32.mrf.mxu0
    %v868 = vadd.f32 %v427, %v867
    %v869 = vpop.f32.mrf.mxu0
    %v870 = vadd.f32 %v429, %v869
    %871 = vmatmul.bf16.gmra.mxu0 %v695
    %v872 = vpop.f32.mrf.mxu0
    %v873 = vadd.f32 %v432, %v872
    %v874 = vpop.f32.mrf.mxu0
    %v875 = vadd.f32 %v434, %v874
    %876 = vdwg.mxu0
    %877 = vmatpush.bf16.msra.mxu0 0
    %878 = vmatpush.bf16.msra.mxu0 0
    %879 = vmatpush.bf16.msra.mxu0 0
    %880 = vmatpush.bf16.msra.mxu0 0
    %881 = vmatpush.bf16.msra.mxu0 0
    %882 = vmatpush.bf16.msra.mxu0 0
    %883 = vmatpush.bf16.msra.mxu0 %v716
    %884 = vmatpush.bf16.msra.mxu0 %v658
    %885 = vmatmul.bf16.gmra.mxu0 %v689
    %v886 = vpop.f32.mrf.mxu0
    %v887 = vadd.f32 %v446, %v886
    %v888 = vpop.f32.mrf.mxu0
    %v889 = vadd.f32 %v448, %v888
    %890 = vmatmul.bf16.gmra.mxu0 %v692
    %v891 = vpop.f32.mrf.mxu0
    %v892 = vadd.f32 %v451, %v891
    %v893 = vpop.f32.mrf.mxu0
    %v894 = vadd.f32 %v453, %v893
    %895 = vmatmul.bf16.gmra.mxu0 %v695
    %v896 = vpop.f32.mrf.mxu0
    %v897 = vadd.f32 %v456, %v896
    %v898 = vpop.f32.mrf.mxu0
    %v899 = vadd.f32 %v458, %v898
    %900 = vdwg.mxu0
    %901 = vmatpush.bf16.msra.mxu0 0
    %902 = vmatpush.bf16.msra.mxu0 0
    %903 = vmatpush.bf16.msra.mxu0 0
    %904 = vmatpush.bf16.msra.mxu0 0
    %905 = vmatpush.bf16.msra.mxu0 0
    %906 = vmatpush.bf16.msra.mxu0 0
    %907 = vmatpush.bf16.msra.mxu0 %v719
    %908 = vmatpush.bf16.msra.mxu0 %v659
    %909 = vmatmul.bf16.gmra.mxu0 %v689
    %v910 = vpop.f32.mrf.mxu0
    %v911 = vadd.f32 %v470, %v910
    %v912 = vpop.f32.mrf.mxu0
    %v913 = vadd.f32 %v472, %v912
    %914 = vmatmul.bf16.gmra.mxu0 %v692
    %v915 = vpop.f32.mrf.mxu0
    %v916 = vadd.f32 %v475, %v915
    %v917 = vpop.f32.mrf.mxu0
    %v918 = vadd.f32 %v477, %v917
    %919 = vmatmul.bf16.gmra.mxu0 %v695
    %v920 = vpop.f32.mrf.mxu0
    %v921 = vadd.f32 %v480, %v920
    %v922 = vpop.f32.mrf.mxu0
    %v923 = vadd.f32 %v482, %v922
    %924 = vdwg.mxu0
    %925 = vmatpush.bf16.msra.mxu0 0
    %926 = vmatpush.bf16.msra.mxu0 0
    %927 = vmatpush.bf16.msra.mxu0 0
    %928 = vmatpush.bf16.msra.mxu0 0
    %929 = vmatpush.bf16.msra.mxu0 0
    %930 = vmatpush.bf16.msra.mxu0 0
    %931 = vmatpush.bf16.msra.mxu0 %v722
    %932 = vmatpush.bf16.msra.mxu0 %v660
    %933 = vmatmul.bf16.gmra.mxu0 %v689
    %v934 = vpop.f32.mrf.mxu0
    %v935 = vadd.f32 %v494, %v934
    %v936 = vpop.f32.mrf.mxu0
    %v937 = vadd.f32 %v496, %v936
    %938 = vmatmul.bf16.gmra.mxu0 %v692
    %v939 = vpop.f32.mrf.mxu0
    %v940 = vadd.f32 %v499, %v939
    %v941 = vpop.f32.mrf.mxu0
    %v942 = vadd.f32 %v501, %v941
    %943 = vmatmul.bf16.gmra.mxu0 %v695
    %v944 = vpop.f32.mrf.mxu0
    %v945 = vadd.f32 %v504, %v944
    %v946 = vpop.f32.mrf.mxu0
    %v947 = vadd.f32 %v506, %v946
    %948 = vdwg.mxu0
    %949 = vmatpush.bf16.msra.mxu0 0
    %950 = vmatpush.bf16.msra.mxu0 0
    %951 = vmatpush.bf16.msra.mxu0 0
    %952 = vmatpush.bf16.msra.mxu0 0
    %953 = vmatpush.bf16.msra.mxu0 0
    %954 = vmatpush.bf16.msra.mxu0 0
    %955 = vmatpush.bf16.msra.mxu0 %v725
    %956 = vmatpush.bf16.msra.mxu0 %v661
    %957 = vmatmul.bf16.gmra.mxu0 %v689
    %v958 = vpop.f32.mrf.mxu0
    %v959 = vadd.f32 %v518, %v958
    %v960 = vpop.f32.mrf.mxu0
    %v961 = vadd.f32 %v520, %v960
    %962 = vmatmul.bf16.gmra.mxu0 %v692
    %v963 = vpop.f32.mrf.mxu0
    %v964 = vadd.f32 %v523, %v963
    %v965 = vpop.f32.mrf.mxu0
    %v966 = vadd.f32 %v525, %v965
    %967 = vmatmul.bf16.gmra.mxu0 %v695
    %v968 = vpop.f32.mrf.mxu0
    %v969 = vadd.f32 %v528, %v968
    %v970 = vpop.f32.mrf.mxu0
    %v971 = vadd.f32 %v530, %v970
    %972 = vdwg.mxu0
    %973 = vmatpush.bf16.msra.mxu0 0
    %974 = vmatpush.bf16.msra.mxu0 0
    %975 = vmatpush.bf16.msra.mxu0 0
    %976 = vmatpush.bf16.msra.mxu0 0
    %977 = vmatpush.bf16.msra.mxu0 0
    %978 = vmatpush.bf16.msra.mxu0 0
    %979 = vmatpush.bf16.msra.mxu0 %v728
    %980 = vmatpush.bf16.msra.mxu0 %v662
    %981 = vmatmul.bf16.gmra.mxu0 %v689
    %v982 = vpop.f32.mrf.mxu0
    %v983 = vadd.f32 %v542, %v982
    %v984 = vpop.f32.mrf.mxu0
    %v985 = vadd.f32 %v544, %v984
    %986 = vmatmul.bf16.gmra.mxu0 %v692
    %v987 = vpop.f32.mrf.mxu0
    %v988 = vadd.f32 %v547, %v987
    %v989 = vpop.f32.mrf.mxu0
    %v990 = vadd.f32 %v549, %v989
    %991 = vmatmul.bf16.gmra.mxu0 %v695
    %v992 = vpop.f32.mrf.mxu0
    %v993 = vadd.f32 %v552, %v992
    %v994 = vpop.f32.mrf.mxu0
    %v995 = vadd.f32 %v554, %v994
    %996 = vdwg.mxu0
    %997 = vmatpush.bf16.msra.mxu0 0
    %998 = vmatpush.bf16.msra.mxu0 0
    %999 = vmatpush.bf16.msra.mxu0 0
    %1000 = vmatpush.bf16.msra.mxu0 0
    %1001 = vmatpush.bf16.msra.mxu0 0
    %1002 = vmatpush.bf16.msra.mxu0 0
    %1003 = vmatpush.bf16.msra.mxu0 %v731
    %1004 = vmatpush.bf16.msra.mxu0 %v663
    %1005 = vmatmul.bf16.gmra.mxu0 %v689
    %v1006 = vpop.f32.mrf.mxu0
    %v1007 = vadd.f32 %v566, %v1006
    %v1008 = vpop.f32.mrf.mxu0
    %v1009 = vadd.f32 %v568, %v1008
    %1010 = vmatmul.bf16.gmra.mxu0 %v692
    %v1011 = vpop.f32.mrf.mxu0
    %v1012 = vadd.f32 %v571, %v1011
    %v1013 = vpop.f32.mrf.mxu0
    %v1014 = vadd.f32 %v573, %v1013
    %1015 = vmatmul.bf16.gmra.mxu0 %v695
    %v1016 = vpop.f32.mrf.mxu0
    %v1017 = vadd.f32 %v576, %v1016
    %v1018 = vpop.f32.mrf.mxu0
    %v1019 = vadd.f32 %v578, %v1018
    %1020 = vdwg.mxu0
    %v1021 = vrot.slane %v45, 2
    %v1022 = vrot.slane %v46, 2
    %v1023 = vsel %vm255, %v1021, %v1022
    %v1024 = vrot.slane %v47, 2
    %v1025 = vsel %vm255, %v1022, %v1024
    %v1026 = vrot.slane %v48, 2
    %v1027 = vsel %vm255, %v1024, %v1026
    %v1028 = vrot.slane %v49, 2
    %v1029 = vrot.slane %v50, 2
    %v1030 = vsel %vm255, %v1028, %v1029
    %v1031 = vrot.slane %v51, 2
    %v1032 = vsel %vm255, %v1029, %v1031
    %v1033 = vrot.slane %v52, 2
    %v1034 = vsel %vm255, %v1031, %v1033
    %v1041 = vpack.c.bf16 %v1025, %v1023
    %v1042 = vpack.c.bf16 %v1030, %v1027
    %v1043 = vpack.c.bf16 %v1034, %v1032
    %s1044 = scalar_lea.vmem [#allocation2], 384
    %v1045 = vld [vmem:[%s1044] sm:$0xff]
    %v1046 = vld [vmem:[%s1044 + $0x8] sm:$0xff]
    %v1047 = vld [vmem:[%s1044 + $0x10] sm:$0xff]
    %v1048 = vld [vmem:[%s1044 + $0x18] sm:$0xff]
    %v1049 = vld [vmem:[%s1044 + $0x20] sm:$0xff]
    %v1050 = vld [vmem:[%s1044 + $0x28] sm:$0xff]
    %v1051 = vld [vmem:[%s1044 + $0x30] sm:$0xff]
    %v1052 = vld [vmem:[%s1044 + $0x38] sm:$0xff]
    %v1053 = vld [vmem:[%s1044 + $0x40] sm:$0xff]
    %v1054 = vld [vmem:[%s1044 + $0x48] sm:$0xff]
    %v1055 = vld [vmem:[%s1044 + $0x50] sm:$0xff]
    %v1056 = vld [vmem:[%s1044 + $0x58] sm:$0xff]
    %v1057 = vld [vmem:[%s1044 + $0x60] sm:$0xff]
    %v1058 = vld [vmem:[%s1044 + $0x68] sm:$0xff]
    %v1059 = vld [vmem:[%s1044 + $0x70] sm:$0xff]
    %v1060 = vld [vmem:[%s1044 + $0x78] sm:$0xff]
    %v1061 = vld [vmem:[%s1044 + $0x80] sm:$0xff]
    %v1062 = vld [vmem:[%s1044 + $0x88] sm:$0xff]
    %v1063 = vld [vmem:[%s1044 + $0x90] sm:$0x33]
    %v1064 = vld [vmem:[%s1044 + $0x98] sm:$0x33]
    %v1065 = vld [vmem:[%s1044 + $0xa0] sm:$0x33]
    %v1066 = vld [vmem:[%s1044 + $0xa8] sm:$0x33]
    %v1067 = vld [vmem:[%s1044 + $0xb0] sm:$0x33]
    %v1068 = vld [vmem:[%s1044 + $0xb8] sm:$0x33]
    %v1093 = vunpack.c.l.b16 %v1045
    %v1094 = vunpack.c.h.b16 %v1045
    %v1095 = vunpack.c.l.b16 %v1046
    %v1096 = vunpack.c.h.b16 %v1046
    %v1097 = vunpack.c.l.b16 %v1047
    %v1098 = vunpack.c.h.b16 %v1047
    %v1099 = vunpack.c.l.b16 %v1048
    %v1100 = vunpack.c.h.b16 %v1048
    %v1101 = vunpack.c.l.b16 %v1049
    %v1102 = vunpack.c.h.b16 %v1049
    %v1103 = vunpack.c.l.b16 %v1050
    %v1104 = vunpack.c.h.b16 %v1050
    %v1105 = vunpack.c.l.b16 %v1051
    %v1106 = vunpack.c.h.b16 %v1051
    %v1107 = vunpack.c.l.b16 %v1052
    %v1108 = vunpack.c.h.b16 %v1052
    %v1109 = vunpack.c.l.b16 %v1053
    %v1110 = vunpack.c.h.b16 %v1053
    %v1111 = vunpack.c.l.b16 %v1054
    %v1112 = vunpack.c.h.b16 %v1054
    %v1113 = vunpack.c.l.b16 %v1055
    %v1114 = vunpack.c.h.b16 %v1055
    %v1115 = vunpack.c.l.b16 %v1056
    %v1116 = vunpack.c.h.b16 %v1056
    %v1117 = vunpack.c.l.b16 %v1057
    %v1118 = vunpack.c.h.b16 %v1057
    %v1119 = vunpack.c.l.b16 %v1058
    %v1120 = vunpack.c.h.b16 %v1058
    %v1121 = vunpack.c.l.b16 %v1059
    %v1122 = vunpack.c.h.b16 %v1059
    %v1123 = vunpack.c.l.b16 %v1060
    %v1124 = vunpack.c.h.b16 %v1060
    %v1125 = vunpack.c.l.b16 %v1061
    %v1126 = vunpack.c.h.b16 %v1061
    %v1127 = vunpack.c.l.b16 %v1062
    %v1128 = vunpack.c.h.b16 %v1062
    %v1129 = vunpack.c.l.b16 %v1063
    %v1130 = vunpack.c.h.b16 %v1063
    %v1131 = vunpack.c.l.b16 %v1064
    %v1132 = vunpack.c.h.b16 %v1064
    %v1133 = vunpack.c.l.b16 %v1065
    %v1134 = vunpack.c.h.b16 %v1065
    %v1135 = vunpack.c.l.b16 %v1066
    %v1136 = vunpack.c.h.b16 %v1066
    %v1137 = vunpack.c.l.b16 %v1067
    %v1138 = vunpack.c.h.b16 %v1067
    %v1139 = vunpack.c.l.b16 %v1068
    %v1140 = vunpack.c.h.b16 %v1068
    %v1141 = vpack.c.b16 %v1105, %v1093
    %v1142 = vpack.c.b16 %v1106, %v1094
    %v1143 = vpack.c.b16 %v1107, %v1095
    %v1144 = vpack.c.b16 %v1108, %v1096
    %v1145 = vpack.c.b16 %v1109, %v1097
    %v1146 = vpack.c.b16 %v1110, %v1098
    %v1147 = vpack.c.b16 %v1111, %v1099
    %v1148 = vpack.c.b16 %v1112, %v1100
    %v1149 = vpack.c.b16 %v1113, %v1101
    %v1150 = vpack.c.b16 %v1114, %v1102
    %v1151 = vpack.c.b16 %v1115, %v1103
    %v1152 = vpack.c.b16 %v1116, %v1104
    %v1153 = vpack.c.b16 %v1129, %v1117
    %v1154 = vpack.c.b16 %v1130, %v1118
    %v1155 = vpack.c.b16 %v1131, %v1119
    %v1156 = vpack.c.b16 %v1132, %v1120
    %v1157 = vpack.c.b16 %v1133, %v1121
    %v1158 = vpack.c.b16 %v1134, %v1122
    %v1159 = vpack.c.b16 %v1135, %v1123
    %v1160 = vpack.c.b16 %v1136, %v1124
    %v1161 = vpack.c.b16 %v1137, %v1125
    %v1162 = vpack.c.b16 %v1138, %v1126
    %v1163 = vpack.c.b16 %v1139, %v1127
    %v1164 = vpack.c.b16 %v1140, %v1128
    %v1178 = vsel %vm245, %v1041, 0
    %v1181 = vsel %vm245, %v1042, 0
    %v1184 = vsel %vm245, %v1043, 0
    %v1187 = vsel %vm255, %v1153, 0
    %v1190 = vsel %vm255, %v1154, 0
    %v1193 = vsel %vm255, %v1155, 0
    %v1196 = vsel %vm255, %v1156, 0
    %v1199 = vsel %vm255, %v1157, 0
    %v1202 = vsel %vm255, %v1158, 0
    %v1205 = vsel %vm255, %v1159, 0
    %v1208 = vsel %vm255, %v1160, 0
    %v1211 = vsel %vm255, %v1161, 0
    %v1214 = vsel %vm255, %v1162, 0
    %v1217 = vsel %vm255, %v1163, 0
    %v1220 = vsel %vm255, %v1164, 0
    %1222 = vmatpush.bf16.msra.mxu0 0
    %1223 = vmatpush.bf16.msra.mxu0 0
    %1224 = vmatpush.bf16.msra.mxu0 0
    %1225 = vmatpush.bf16.msra.mxu0 0
    %1226 = vmatpush.bf16.msra.mxu0 0
    %1227 = vmatpush.bf16.msra.mxu0 0
    %1228 = vmatpush.bf16.msra.mxu0 %v1187
    %1229 = vmatpush.bf16.msra.mxu0 %v1141
    %1230 = vmatmul.bf16.gmra.mxu0 %v1178
    %v1231 = vpop.f32.mrf.mxu0
    %v1232 = vadd.f32 0.0, %v1231
    %v1233 = vpop.f32.mrf.mxu0
    %v1234 = vadd.f32 0.0, %v1233
    %1235 = vmatmul.bf16.gmra.mxu0 %v1181
    %v1236 = vpop.f32.mrf.mxu0
    %v1237 = vadd.f32 0.0, %v1236
    %v1238 = vpop.f32.mrf.mxu0
    %v1239 = vadd.f32 0.0, %v1238
    %1240 = vmatmul.bf16.gmra.mxu0 %v1184
    %v1241 = vpop.f32.mrf.mxu0
    %v1242 = vadd.f32 0.0, %v1241
    %v1243 = vpop.f32.mrf.mxu0
    %v1244 = vadd.f32 0.0, %v1243
    %1245 = vdwg.mxu0
    %1246 = vmatpush.bf16.msra.mxu0 0
    %1247 = vmatpush.bf16.msra.mxu0 0
    %1248 = vmatpush.bf16.msra.mxu0 0
    %1249 = vmatpush.bf16.msra.mxu0 0
    %1250 = vmatpush.bf16.msra.mxu0 0
    %1251 = vmatpush.bf16.msra.mxu0 0
    %1252 = vmatpush.bf16.msra.mxu0 %v1190
    %1253 = vmatpush.bf16.msra.mxu0 %v1142
    %1254 = vmatmul.bf16.gmra.mxu0 %v1178
    %v1255 = vpop.f32.mrf.mxu0
    %v1256 = vadd.f32 0.0, %v1255
    %v1257 = vpop.f32.mrf.mxu0
    %v1258 = vadd.f32 0.0, %v1257
    %1259 = vmatmul.bf16.gmra.mxu0 %v1181
    %v1260 = vpop.f32.mrf.mxu0
    %v1261 = vadd.f32 0.0, %v1260
    %v1262 = vpop.f32.mrf.mxu0
    %v1263 = vadd.f32 0.0, %v1262
    %1264 = vmatmul.bf16.gmra.mxu0 %v1184
    %v1265 = vpop.f32.mrf.mxu0
    %v1266 = vadd.f32 0.0, %v1265
    %v1267 = vpop.f32.mrf.mxu0
    %v1268 = vadd.f32 0.0, %v1267
    %1269 = vdwg.mxu0
    %1270 = vmatpush.bf16.msra.mxu0 0
    %1271 = vmatpush.bf16.msra.mxu0 0
    %1272 = vmatpush.bf16.msra.mxu0 0
    %1273 = vmatpush.bf16.msra.mxu0 0
    %1274 = vmatpush.bf16.msra.mxu0 0
    %1275 = vmatpush.bf16.msra.mxu0 0
    %1276 = vmatpush.bf16.msra.mxu0 %v1193
    %1277 = vmatpush.bf16.msra.mxu0 %v1143
    %1278 = vmatmul.bf16.gmra.mxu0 %v1178
    %v1279 = vpop.f32.mrf.mxu0
    %v1280 = vadd.f32 0.0, %v1279
    %v1281 = vpop.f32.mrf.mxu0
    %v1282 = vadd.f32 0.0, %v1281
    %1283 = vmatmul.bf16.gmra.mxu0 %v1181
    %v1284 = vpop.f32.mrf.mxu0
    %v1285 = vadd.f32 0.0, %v1284
    %v1286 = vpop.f32.mrf.mxu0
    %v1287 = vadd.f32 0.0, %v1286
    %1288 = vmatmul.bf16.gmra.mxu0 %v1184
    %v1289 = vpop.f32.mrf.mxu0
    %v1290 = vadd.f32 0.0, %v1289
    %v1291 = vpop.f32.mrf.mxu0
    %v1292 = vadd.f32 0.0, %v1291
    %1293 = vdwg.mxu0
    %1294 = vmatpush.bf16.msra.mxu0 0
    %1295 = vmatpush.bf16.msra.mxu0 0
    %1296 = vmatpush.bf16.msra.mxu0 0
    %1297 = vmatpush.bf16.msra.mxu0 0
    %1298 = vmatpush.bf16.msra.mxu0 0
    %1299 = vmatpush.bf16.msra.mxu0 0
    %1300 = vmatpush.bf16.msra.mxu0 %v1196
    %1301 = vmatpush.bf16.msra.mxu0 %v1144
    %1302 = vmatmul.bf16.gmra.mxu0 %v1178
    %v1303 = vpop.f32.mrf.mxu0
    %v1304 = vadd.f32 0.0, %v1303
    %v1305 = vpop.f32.mrf.mxu0
    %v1306 = vadd.f32 0.0, %v1305
    %1307 = vmatmul.bf16.gmra.mxu0 %v1181
    %v1308 = vpop.f32.mrf.mxu0
    %v1309 = vadd.f32 0.0, %v1308
    %v1310 = vpop.f32.mrf.mxu0
    %v1311 = vadd.f32 0.0, %v1310
    %1312 = vmatmul.bf16.gmra.mxu0 %v1184
    %v1313 = vpop.f32.mrf.mxu0
    %v1314 = vadd.f32 0.0, %v1313
    %v1315 = vpop.f32.mrf.mxu0
    %v1316 = vadd.f32 0.0, %v1315
    %1317 = vdwg.mxu0
    %1318 = vmatpush.bf16.msra.mxu0 0
    %1319 = vmatpush.bf16.msra.mxu0 0
    %1320 = vmatpush.bf16.msra.mxu0 0
    %1321 = vmatpush.bf16.msra.mxu0 0
    %1322 = vmatpush.bf16.msra.mxu0 0
    %1323 = vmatpush.bf16.msra.mxu0 0
    %1324 = vmatpush.bf16.msra.mxu0 %v1199
    %1325 = vmatpush.bf16.msra.mxu0 %v1145
    %1326 = vmatmul.bf16.gmra.mxu0 %v1178
    %v1327 = vpop.f32.mrf.mxu0
    %v1328 = vadd.f32 0.0, %v1327
    %v1329 = vpop.f32.mrf.mxu0
    %v1330 = vadd.f32 0.0, %v1329
    %1331 = vmatmul.bf16.gmra.mxu0 %v1181
    %v1332 = vpop.f32.mrf.mxu0
    %v1333 = vadd.f32 0.0, %v1332
    %v1334 = vpop.f32.mrf.mxu0
    %v1335 = vadd.f32 0.0, %v1334
    %1336 = vmatmul.bf16.gmra.mxu0 %v1184
    %v1337 = vpop.f32.mrf.mxu0
    %v1338 = vadd.f32 0.0, %v1337
    %v1339 = vpop.f32.mrf.mxu0
    %v1340 = vadd.f32 0.0, %v1339
    %1341 = vdwg.mxu0
    %1342 = vmatpush.bf16.msra.mxu0 0
    %1343 = vmatpush.bf16.msra.mxu0 0
    %1344 = vmatpush.bf16.msra.mxu0 0
    %1345 = vmatpush.bf16.msra.mxu0 0
    %1346 = vmatpush.bf16.msra.mxu0 0
    %1347 = vmatpush.bf16.msra.mxu0 0
    %1348 = vmatpush.bf16.msra.mxu0 %v1202
    %1349 = vmatpush.bf16.msra.mxu0 %v1146
    %1350 = vmatmul.bf16.gmra.mxu0 %v1178
    %v1351 = vpop.f32.mrf.mxu0
    %v1352 = vadd.f32 0.0, %v1351
    %v1353 = vpop.f32.mrf.mxu0
    %v1354 = vadd.f32 0.0, %v1353
    %1355 = vmatmul.bf16.gmra.mxu0 %v1181
    %v1356 = vpop.f32.mrf.mxu0
    %v1357 = vadd.f32 0.0, %v1356
    %v1358 = vpop.f32.mrf.mxu0
    %v1359 = vadd.f32 0.0, %v1358
    %1360 = vmatmul.bf16.gmra.mxu0 %v1184
    %v1361 = vpop.f32.mrf.mxu0
    %v1362 = vadd.f32 0.0, %v1361
    %v1363 = vpop.f32.mrf.mxu0
    %v1364 = vadd.f32 0.0, %v1363
    %1365 = vdwg.mxu0
    %1366 = vmatpush.bf16.msra.mxu0 0
    %1367 = vmatpush.bf16.msra.mxu0 0
    %1368 = vmatpush.bf16.msra.mxu0 0
    %1369 = vmatpush.bf16.msra.mxu0 0
    %1370 = vmatpush.bf16.msra.mxu0 0
    %1371 = vmatpush.bf16.msra.mxu0 0
    %1372 = vmatpush.bf16.msra.mxu0 %v1205
    %1373 = vmatpush.bf16.msra.mxu0 %v1147
    %1374 = vmatmul.bf16.gmra.mxu0 %v1178
    %v1375 = vpop.f32.mrf.mxu0
    %v1376 = vadd.f32 0.0, %v1375
    %v1377 = vpop.f32.mrf.mxu0
    %v1378 = vadd.f32 0.0, %v1377
    %1379 = vmatmul.bf16.gmra.mxu0 %v1181
    %v1380 = vpop.f32.mrf.mxu0
    %v1381 = vadd.f32 0.0, %v1380
    %v1382 = vpop.f32.mrf.mxu0
    %v1383 = vadd.f32 0.0, %v1382
    %1384 = vmatmul.bf16.gmra.mxu0 %v1184
    %v1385 = vpop.f32.mrf.mxu0
    %v1386 = vadd.f32 0.0, %v1385
    %v1387 = vpop.f32.mrf.mxu0
    %v1388 = vadd.f32 0.0, %v1387
    %1389 = vdwg.mxu0
    %1390 = vmatpush.bf16.msra.mxu0 0
    %1391 = vmatpush.bf16.msra.mxu0 0
    %1392 = vmatpush.bf16.msra.mxu0 0
    %1393 = vmatpush.bf16.msra.mxu0 0
    %1394 = vmatpush.bf16.msra.mxu0 0
    %1395 = vmatpush.bf16.msra.mxu0 0
    %1396 = vmatpush.bf16.msra.mxu0 %v1208
    %1397 = vmatpush.bf16.msra.mxu0 %v1148
    %1398 = vmatmul.bf16.gmra.mxu0 %v1178
    %v1399 = vpop.f32.mrf.mxu0
    %v1400 = vadd.f32 0.0, %v1399
    %v1401 = vpop.f32.mrf.mxu0
    %v1402 = vadd.f32 0.0, %v1401
    %1403 = vmatmul.bf16.gmra.mxu0 %v1181
    %v1404 = vpop.f32.mrf.mxu0
    %v1405 = vadd.f32 0.0, %v1404
    %v1406 = vpop.f32.mrf.mxu0
    %v1407 = vadd.f32 0.0, %v1406
    %1408 = vmatmul.bf16.gmra.mxu0 %v1184
    %v1409 = vpop.f32.mrf.mxu0
    %v1410 = vadd.f32 0.0, %v1409
    %v1411 = vpop.f32.mrf.mxu0
    %v1412 = vadd.f32 0.0, %v1411
    %1413 = vdwg.mxu0
    %1414 = vmatpush.bf16.msra.mxu0 0
    %1415 = vmatpush.bf16.msra.mxu0 0
    %1416 = vmatpush.bf16.msra.mxu0 0
    %1417 = vmatpush.bf16.msra.mxu0 0
    %1418 = vmatpush.bf16.msra.mxu0 0
    %1419 = vmatpush.bf16.msra.mxu0 0
    %1420 = vmatpush.bf16.msra.mxu0 %v1211
    %1421 = vmatpush.bf16.msra.mxu0 %v1149
    %1422 = vmatmul.bf16.gmra.mxu0 %v1178
    %v1423 = vpop.f32.mrf.mxu0
    %v1424 = vadd.f32 0.0, %v1423
    %v1425 = vpop.f32.mrf.mxu0
    %v1426 = vadd.f32 0.0, %v1425
    %1427 = vmatmul.bf16.gmra.mxu0 %v1181
    %v1428 = vpop.f32.mrf.mxu0
    %v1429 = vadd.f32 0.0, %v1428
    %v1430 = vpop.f32.mrf.mxu0
    %v1431 = vadd.f32 0.0, %v1430
    %1432 = vmatmul.bf16.gmra.mxu0 %v1184
    %v1433 = vpop.f32.mrf.mxu0
    %v1434 = vadd.f32 0.0, %v1433
    %v1435 = vpop.f32.mrf.mxu0
    %v1436 = vadd.f32 0.0, %v1435
    %1437 = vdwg.mxu0
    %1438 = vmatpush.bf16.msra.mxu0 0
    %1439 = vmatpush.bf16.msra.mxu0 0
    %1440 = vmatpush.bf16.msra.mxu0 0
    %1441 = vmatpush.bf16.msra.mxu0 0
    %1442 = vmatpush.bf16.msra.mxu0 0
    %1443 = vmatpush.bf16.msra.mxu0 0
    %1444 = vmatpush.bf16.msra.mxu0 %v1214
    %1445 = vmatpush.bf16.msra.mxu0 %v1150
    %1446 = vmatmul.bf16.gmra.mxu0 %v1178
    %v1447 = vpop.f32.mrf.mxu0
    %v1448 = vadd.f32 0.0, %v1447
    %v1449 = vpop.f32.mrf.mxu0
    %v1450 = vadd.f32 0.0, %v1449
    %1451 = vmatmul.bf16.gmra.mxu0 %v1181
    %v1452 = vpop.f32.mrf.mxu0
    %v1453 = vadd.f32 0.0, %v1452
    %v1454 = vpop.f32.mrf.mxu0
    %v1455 = vadd.f32 0.0, %v1454
    %1456 = vmatmul.bf16.gmra.mxu0 %v1184
    %v1457 = vpop.f32.mrf.mxu0
    %v1458 = vadd.f32 0.0, %v1457
    %v1459 = vpop.f32.mrf.mxu0
    %v1460 = vadd.f32 0.0, %v1459
    %1461 = vdwg.mxu0
    %1462 = vmatpush.bf16.msra.mxu0 0
    %1463 = vmatpush.bf16.msra.mxu0 0
    %1464 = vmatpush.bf16.msra.mxu0 0
    %1465 = vmatpush.bf16.msra.mxu0 0
    %1466 = vmatpush.bf16.msra.mxu0 0
    %1467 = vmatpush.bf16.msra.mxu0 0
    %1468 = vmatpush.bf16.msra.mxu0 %v1217
    %1469 = vmatpush.bf16.msra.mxu0 %v1151
    %1470 = vmatmul.bf16.gmra.mxu0 %v1178
    %v1471 = vpop.f32.mrf.mxu0
    %v1472 = vadd.f32 0.0, %v1471
    %v1473 = vpop.f32.mrf.mxu0
    %v1474 = vadd.f32 0.0, %v1473
    %1475 = vmatmul.bf16.gmra.mxu0 %v1181
    %v1476 = vpop.f32.mrf.mxu0
    %v1477 = vadd.f32 0.0, %v1476
    %v1478 = vpop.f32.mrf.mxu0
    %v1479 = vadd.f32 0.0, %v1478
    %1480 = vmatmul.bf16.gmra.mxu0 %v1184
    %v1481 = vpop.f32.mrf.mxu0
    %v1482 = vadd.f32 0.0, %v1481
    %v1483 = vpop.f32.mrf.mxu0
    %v1484 = vadd.f32 0.0, %v1483
    %1485 = vdwg.mxu0
    %1486 = vmatpush.bf16.msra.mxu0 0
    %1487 = vmatpush.bf16.msra.mxu0 0
    %1488 = vmatpush.bf16.msra.mxu0 0
    %1489 = vmatpush.bf16.msra.mxu0 0
    %1490 = vmatpush.bf16.msra.mxu0 0
    %1491 = vmatpush.bf16.msra.mxu0 0
    %1492 = vmatpush.bf16.msra.mxu0 %v1220
    %1493 = vmatpush.bf16.msra.mxu0 %v1152
    %1494 = vmatmul.bf16.gmra.mxu0 %v1178
    %v1495 = vpop.f32.mrf.mxu0
    %v1496 = vadd.f32 0.0, %v1495
    %v1497 = vpop.f32.mrf.mxu0
    %v1498 = vadd.f32 0.0, %v1497
    %1499 = vmatmul.bf16.gmra.mxu0 %v1181
    %v1500 = vpop.f32.mrf.mxu0
    %v1501 = vadd.f32 0.0, %v1500
    %v1502 = vpop.f32.mrf.mxu0
    %v1503 = vadd.f32 0.0, %v1502
    %1504 = vmatmul.bf16.gmra.mxu0 %v1184
    %v1505 = vpop.f32.mrf.mxu0
    %v1506 = vadd.f32 0.0, %v1505
    %v1507 = vpop.f32.mrf.mxu0
    %v1508 = vadd.f32 0.0, %v1507
    %1509 = vdwg.mxu0
    %v1510 = vadd.f32 %v743, %v1232
    %v1511 = vadd.f32 %v767, %v1256
    %v1512 = vadd.f32 %v791, %v1280
    %v1513 = vadd.f32 %v815, %v1304
    %v1514 = vadd.f32 %v839, %v1328
    %v1515 = vadd.f32 %v863, %v1352
    %v1516 = vadd.f32 %v887, %v1376
    %v1517 = vadd.f32 %v911, %v1400
    %v1518 = vadd.f32 %v935, %v1424
    %v1519 = vadd.f32 %v959, %v1448
    %v1520 = vadd.f32 %v983, %v1472
    %v1521 = vadd.f32 %v1007, %v1496
    %v1522 = vadd.f32 %v745, %v1234
    %v1523 = vadd.f32 %v769, %v1258
    %v1524 = vadd.f32 %v793, %v1282
    %v1525 = vadd.f32 %v817, %v1306
    %v1526 = vadd.f32 %v841, %v1330
    %v1527 = vadd.f32 %v865, %v1354
    %v1528 = vadd.f32 %v889, %v1378
    %v1529 = vadd.f32 %v913, %v1402
    %v1530 = vadd.f32 %v937, %v1426
    %v1531 = vadd.f32 %v961, %v1450
    %v1532 = vadd.f32 %v985, %v1474
    %v1533 = vadd.f32 %v1009, %v1498
    %v1534 = vadd.f32 %v748, %v1237
    %v1535 = vadd.f32 %v772, %v1261
    %v1536 = vadd.f32 %v796, %v1285
    %v1537 = vadd.f32 %v820, %v1309
    %v1538 = vadd.f32 %v844, %v1333
    %v1539 = vadd.f32 %v868, %v1357
    %v1540 = vadd.f32 %v892, %v1381
    %v1541 = vadd.f32 %v916, %v1405
    %v1542 = vadd.f32 %v940, %v1429
    %v1543 = vadd.f32 %v964, %v1453
    %v1544 = vadd.f32 %v988, %v1477
    %v1545 = vadd.f32 %v1012, %v1501
    %v1546 = vadd.f32 %v750, %v1239
    %v1547 = vadd.f32 %v774, %v1263
    %v1548 = vadd.f32 %v798, %v1287
    %v1549 = vadd.f32 %v822, %v1311
    %v1550 = vadd.f32 %v846, %v1335
    %v1551 = vadd.f32 %v870, %v1359
    %v1552 = vadd.f32 %v894, %v1383
    %v1553 = vadd.f32 %v918, %v1407
    %v1554 = vadd.f32 %v942, %v1431
    %v1555 = vadd.f32 %v966, %v1455
    %v1556 = vadd.f32 %v990, %v1479
    %v1557 = vadd.f32 %v1014, %v1503
    %v1558 = vadd.f32 %v753, %v1242
    %v1559 = vadd.f32 %v777, %v1266
    %v1560 = vadd.f32 %v801, %v1290
    %v1561 = vadd.f32 %v825, %v1314
    %v1562 = vadd.f32 %v849, %v1338
    %v1563 = vadd.f32 %v873, %v1362
    %v1564 = vadd.f32 %v897, %v1386
    %v1565 = vadd.f32 %v921, %v1410
    %v1566 = vadd.f32 %v945, %v1434
    %v1567 = vadd.f32 %v969, %v1458
    %v1568 = vadd.f32 %v993, %v1482
    %v1569 = vadd.f32 %v1017, %v1506
    %v1570 = vadd.f32 %v755, %v1244
    %v1571 = vadd.f32 %v779, %v1268
    %v1572 = vadd.f32 %v803, %v1292
    %v1573 = vadd.f32 %v827, %v1316
    %v1574 = vadd.f32 %v851, %v1340
    %v1575 = vadd.f32 %v875, %v1364
    %v1576 = vadd.f32 %v899, %v1388
    %v1577 = vadd.f32 %v923, %v1412
    %v1578 = vadd.f32 %v947, %v1436
    %v1579 = vadd.f32 %v971, %v1460
    %v1580 = vadd.f32 %v995, %v1484
    %v1581 = vadd.f32 %v1019, %v1508
    %vm1582 = vcmask 1044480
    %v1583 = vrot.slane %v45, 3
    %v1584 = vrot.slane %v46, 3
    %v1585 = vsel %vm1582, %v1583, %v1584
    %v1586 = vrot.slane %v47, 3
    %v1587 = vsel %vm1582, %v1584, %v1586
    %v1588 = vrot.slane %v48, 3
    %v1589 = vsel %vm1582, %v1586, %v1588
    %v1590 = vrot.slane %v49, 3
    %v1591 = vrot.slane %v50, 3
    %v1592 = vsel %vm1582, %v1590, %v1591
    %v1593 = vrot.slane %v51, 3
    %v1594 = vsel %vm1582, %v1591, %v1593
    %v1595 = vrot.slane %v52, 3
    %v1596 = vsel %vm1582, %v1593, %v1595
    %v1603 = vpack.c.bf16 %v1587, %v1585
    %v1604 = vpack.c.bf16 %v1592, %v1589
    %v1605 = vpack.c.bf16 %v1596, %v1594
    %s1606 = scalar_lea.vmem [#allocation2], 576
    %v1607 = vld [vmem:[%s1606] sm:$0xff]
    %v1608 = vld [vmem:[%s1606 + $0x8] sm:$0xff]
    %v1609 = vld [vmem:[%s1606 + $0x10] sm:$0xff]
    %v1610 = vld [vmem:[%s1606 + $0x18] sm:$0xff]
    %v1611 = vld [vmem:[%s1606 + $0x20] sm:$0xff]
    %v1612 = vld [vmem:[%s1606 + $0x28] sm:$0xff]
    %v1613 = vld [vmem:[%s1606 + $0x30] sm:$0xff]
    %v1614 = vld [vmem:[%s1606 + $0x38] sm:$0xff]
    %v1615 = vld [vmem:[%s1606 + $0x40] sm:$0xff]
    %v1616 = vld [vmem:[%s1606 + $0x48] sm:$0xff]
    %v1617 = vld [vmem:[%s1606 + $0x50] sm:$0xff]
    %v1618 = vld [vmem:[%s1606 + $0x58] sm:$0xff]
    %v1619 = vld [vmem:[%s1606 + $0x60] sm:$0xff]
    %v1620 = vld [vmem:[%s1606 + $0x68] sm:$0xff]
    %v1621 = vld [vmem:[%s1606 + $0x70] sm:$0xff]
    %v1622 = vld [vmem:[%s1606 + $0x78] sm:$0xff]
    %v1623 = vld [vmem:[%s1606 + $0x80] sm:$0xff]
    %v1624 = vld [vmem:[%s1606 + $0x88] sm:$0xff]
    %v1625 = vld [vmem:[%s1606 + $0x90] sm:$0x33]
    %v1626 = vld [vmem:[%s1606 + $0x98] sm:$0x33]
    %v1627 = vld [vmem:[%s1606 + $0xa0] sm:$0x33]
    %v1628 = vld [vmem:[%s1606 + $0xa8] sm:$0x33]
    %v1629 = vld [vmem:[%s1606 + $0xb0] sm:$0x33]
    %v1630 = vld [vmem:[%s1606 + $0xb8] sm:$0x33]
    %v1655 = vunpack.c.l.b16 %v1607
    %v1656 = vunpack.c.h.b16 %v1607
    %v1657 = vunpack.c.l.b16 %v1608
    %v1658 = vunpack.c.h.b16 %v1608
    %v1659 = vunpack.c.l.b16 %v1609
    %v1660 = vunpack.c.h.b16 %v1609
    %v1661 = vunpack.c.l.b16 %v1610
    %v1662 = vunpack.c.h.b16 %v1610
    %v1663 = vunpack.c.l.b16 %v1611
    %v1664 = vunpack.c.h.b16 %v1611
    %v1665 = vunpack.c.l.b16 %v1612
    %v1666 = vunpack.c.h.b16 %v1612
    %v1667 = vunpack.c.l.b16 %v1613
    %v1668 = vunpack.c.h.b16 %v1613
    %v1669 = vunpack.c.l.b16 %v1614
    %v1670 = vunpack.c.h.b16 %v1614
    %v1671 = vunpack.c.l.b16 %v1615
    %v1672 = vunpack.c.h.b16 %v1615
    %v1673 = vunpack.c.l.b16 %v1616
    %v1674 = vunpack.c.h.b16 %v1616
    %v1675 = vunpack.c.l.b16 %v1617
    %v1676 = vunpack.c.h.b16 %v1617
    %v1677 = vunpack.c.l.b16 %v1618
    %v1678 = vunpack.c.h.b16 %v1618
    %v1679 = vunpack.c.l.b16 %v1619
    %v1680 = vunpack.c.h.b16 %v1619
    %v1681 = vunpack.c.l.b16 %v1620
    %v1682 = vunpack.c.h.b16 %v1620
    %v1683 = vunpack.c.l.b16 %v1621
    %v1684 = vunpack.c.h.b16 %v1621
    %v1685 = vunpack.c.l.b16 %v1622
    %v1686 = vunpack.c.h.b16 %v1622
    %v1687 = vunpack.c.l.b16 %v1623
    %v1688 = vunpack.c.h.b16 %v1623
    %v1689 = vunpack.c.l.b16 %v1624
    %v1690 = vunpack.c.h.b16 %v1624
    %v1691 = vunpack.c.l.b16 %v1625
    %v1692 = vunpack.c.h.b16 %v1625
    %v1693 = vunpack.c.l.b16 %v1626
    %v1694 = vunpack.c.h.b16 %v1626
    %v1695 = vunpack.c.l.b16 %v1627
    %v1696 = vunpack.c.h.b16 %v1627
    %v1697 = vunpack.c.l.b16 %v1628
    %v1698 = vunpack.c.h.b16 %v1628
    %v1699 = vunpack.c.l.b16 %v1629
    %v1700 = vunpack.c.h.b16 %v1629
    %v1701 = vunpack.c.l.b16 %v1630
    %v1702 = vunpack.c.h.b16 %v1630
    %v1703 = vpack.c.b16 %v1667, %v1655
    %v1704 = vpack.c.b16 %v1668, %v1656
    %v1705 = vpack.c.b16 %v1669, %v1657
    %v1706 = vpack.c.b16 %v1670, %v1658
    %v1707 = vpack.c.b16 %v1671, %v1659
    %v1708 = vpack.c.b16 %v1672, %v1660
    %v1709 = vpack.c.b16 %v1673, %v1661
    %v1710 = vpack.c.b16 %v1674, %v1662
    %v1711 = vpack.c.b16 %v1675, %v1663
    %v1712 = vpack.c.b16 %v1676, %v1664
    %v1713 = vpack.c.b16 %v1677, %v1665
    %v1714 = vpack.c.b16 %v1678, %v1666
    %v1715 = vpack.c.b16 %v1691, %v1679
    %v1716 = vpack.c.b16 %v1692, %v1680
    %v1717 = vpack.c.b16 %v1693, %v1681
    %v1718 = vpack.c.b16 %v1694, %v1682
    %v1719 = vpack.c.b16 %v1695, %v1683
    %v1720 = vpack.c.b16 %v1696, %v1684
    %v1721 = vpack.c.b16 %v1697, %v1685
    %v1722 = vpack.c.b16 %v1698, %v1686
    %v1723 = vpack.c.b16 %v1699, %v1687
    %v1724 = vpack.c.b16 %v1700, %v1688
    %v1725 = vpack.c.b16 %v1701, %v1689
    %v1726 = vpack.c.b16 %v1702, %v1690
    %v1740 = vsel %vm245, %v1603, 0
    %v1743 = vsel %vm245, %v1604, 0
    %v1746 = vsel %vm245, %v1605, 0
    %v1749 = vsel %vm255, %v1715, 0
    %v1752 = vsel %vm255, %v1716, 0
    %v1755 = vsel %vm255, %v1717, 0
    %v1758 = vsel %vm255, %v1718, 0
    %v1761 = vsel %vm255, %v1719, 0
    %v1764 = vsel %vm255, %v1720, 0
    %v1767 = vsel %vm255, %v1721, 0
    %v1770 = vsel %vm255, %v1722, 0
    %v1773 = vsel %vm255, %v1723, 0
    %v1776 = vsel %vm255, %v1724, 0
    %v1779 = vsel %vm255, %v1725, 0
    %v1782 = vsel %vm255, %v1726, 0
    %1784 = vmatpush.bf16.msra.mxu0 0
    %1785 = vmatpush.bf16.msra.mxu0 0
    %1786 = vmatpush.bf16.msra.mxu0 0
    %1787 = vmatpush.bf16.msra.mxu0 0
    %1788 = vmatpush.bf16.msra.mxu0 0
    %1789 = vmatpush.bf16.msra.mxu0 0
    %1790 = vmatpush.bf16.msra.mxu0 %v1749
    %1791 = vmatpush.bf16.msra.mxu0 %v1703
    %1792 = vmatmul.bf16.gmra.mxu0 %v1740
    %v1793 = vpop.f32.mrf.mxu0
    %v1794 = vadd.f32 0.0, %v1793
    %v1795 = vpop.f32.mrf.mxu0
    %v1796 = vadd.f32 0.0, %v1795
    %1797 = vmatmul.bf16.gmra.mxu0 %v1743
    %v1798 = vpop.f32.mrf.mxu0
    %v1799 = vadd.f32 0.0, %v1798
    %v1800 = vpop.f32.mrf.mxu0
    %v1801 = vadd.f32 0.0, %v1800
    %1802 = vmatmul.bf16.gmra.mxu0 %v1746
    %v1803 = vpop.f32.mrf.mxu0
    %v1804 = vadd.f32 0.0, %v1803
    %v1805 = vpop.f32.mrf.mxu0
    %v1806 = vadd.f32 0.0, %v1805
    %1807 = vdwg.mxu0
    %1808 = vmatpush.bf16.msra.mxu0 0
    %1809 = vmatpush.bf16.msra.mxu0 0
    %1810 = vmatpush.bf16.msra.mxu0 0
    %1811 = vmatpush.bf16.msra.mxu0 0
    %1812 = vmatpush.bf16.msra.mxu0 0
    %1813 = vmatpush.bf16.msra.mxu0 0
    %1814 = vmatpush.bf16.msra.mxu0 %v1752
    %1815 = vmatpush.bf16.msra.mxu0 %v1704
    %1816 = vmatmul.bf16.gmra.mxu0 %v1740
    %v1817 = vpop.f32.mrf.mxu0
    %v1818 = vadd.f32 0.0, %v1817
    %v1819 = vpop.f32.mrf.mxu0
    %v1820 = vadd.f32 0.0, %v1819
    %1821 = vmatmul.bf16.gmra.mxu0 %v1743
    %v1822 = vpop.f32.mrf.mxu0
    %v1823 = vadd.f32 0.0, %v1822
    %v1824 = vpop.f32.mrf.mxu0
    %v1825 = vadd.f32 0.0, %v1824
    %1826 = vmatmul.bf16.gmra.mxu0 %v1746
    %v1827 = vpop.f32.mrf.mxu0
    %v1828 = vadd.f32 0.0, %v1827
    %v1829 = vpop.f32.mrf.mxu0
    %v1830 = vadd.f32 0.0, %v1829
    %1831 = vdwg.mxu0
    %1832 = vmatpush.bf16.msra.mxu0 0
    %1833 = vmatpush.bf16.msra.mxu0 0
    %1834 = vmatpush.bf16.msra.mxu0 0
    %1835 = vmatpush.bf16.msra.mxu0 0
    %1836 = vmatpush.bf16.msra.mxu0 0
    %1837 = vmatpush.bf16.msra.mxu0 0
    %1838 = vmatpush.bf16.msra.mxu0 %v1755
    %1839 = vmatpush.bf16.msra.mxu0 %v1705
    %1840 = vmatmul.bf16.gmra.mxu0 %v1740
    %v1841 = vpop.f32.mrf.mxu0
    %v1842 = vadd.f32 0.0, %v1841
    %v1843 = vpop.f32.mrf.mxu0
    %v1844 = vadd.f32 0.0, %v1843
    %1845 = vmatmul.bf16.gmra.mxu0 %v1743
    %v1846 = vpop.f32.mrf.mxu0
    %v1847 = vadd.f32 0.0, %v1846
    %v1848 = vpop.f32.mrf.mxu0
    %v1849 = vadd.f32 0.0, %v1848
    %1850 = vmatmul.bf16.gmra.mxu0 %v1746
    %v1851 = vpop.f32.mrf.mxu0
    %v1852 = vadd.f32 0.0, %v1851
    %v1853 = vpop.f32.mrf.mxu0
    %v1854 = vadd.f32 0.0, %v1853
    %1855 = vdwg.mxu0
    %1856 = vmatpush.bf16.msra.mxu0 0
    %1857 = vmatpush.bf16.msra.mxu0 0
    %1858 = vmatpush.bf16.msra.mxu0 0
    %1859 = vmatpush.bf16.msra.mxu0 0
    %1860 = vmatpush.bf16.msra.mxu0 0
    %1861 = vmatpush.bf16.msra.mxu0 0
    %1862 = vmatpush.bf16.msra.mxu0 %v1758
    %1863 = vmatpush.bf16.msra.mxu0 %v1706
    %1864 = vmatmul.bf16.gmra.mxu0 %v1740
    %v1865 = vpop.f32.mrf.mxu0
    %v1866 = vadd.f32 0.0, %v1865
    %v1867 = vpop.f32.mrf.mxu0
    %v1868 = vadd.f32 0.0, %v1867
    %1869 = vmatmul.bf16.gmra.mxu0 %v1743
    %v1870 = vpop.f32.mrf.mxu0
    %v1871 = vadd.f32 0.0, %v1870
    %v1872 = vpop.f32.mrf.mxu0
    %v1873 = vadd.f32 0.0, %v1872
    %1874 = vmatmul.bf16.gmra.mxu0 %v1746
    %v1875 = vpop.f32.mrf.mxu0
    %v1876 = vadd.f32 0.0, %v1875
    %v1877 = vpop.f32.mrf.mxu0
    %v1878 = vadd.f32 0.0, %v1877
    %1879 = vdwg.mxu0
    %1880 = vmatpush.bf16.msra.mxu0 0
    %1881 = vmatpush.bf16.msra.mxu0 0
    %1882 = vmatpush.bf16.msra.mxu0 0
    %1883 = vmatpush.bf16.msra.mxu0 0
    %1884 = vmatpush.bf16.msra.mxu0 0
    %1885 = vmatpush.bf16.msra.mxu0 0
    %1886 = vmatpush.bf16.msra.mxu0 %v1761
    %1887 = vmatpush.bf16.msra.mxu0 %v1707
    %1888 = vmatmul.bf16.gmra.mxu0 %v1740
    %v1889 = vpop.f32.mrf.mxu0
    %v1890 = vadd.f32 0.0, %v1889
    %v1891 = vpop.f32.mrf.mxu0
    %v1892 = vadd.f32 0.0, %v1891
    %1893 = vmatmul.bf16.gmra.mxu0 %v1743
    %v1894 = vpop.f32.mrf.mxu0
    %v1895 = vadd.f32 0.0, %v1894
    %v1896 = vpop.f32.mrf.mxu0
    %v1897 = vadd.f32 0.0, %v1896
    %1898 = vmatmul.bf16.gmra.mxu0 %v1746
    %v1899 = vpop.f32.mrf.mxu0
    %v1900 = vadd.f32 0.0, %v1899
    %v1901 = vpop.f32.mrf.mxu0
    %v1902 = vadd.f32 0.0, %v1901
    %1903 = vdwg.mxu0
    %1904 = vmatpush.bf16.msra.mxu0 0
    %1905 = vmatpush.bf16.msra.mxu0 0
    %1906 = vmatpush.bf16.msra.mxu0 0
    %1907 = vmatpush.bf16.msra.mxu0 0
    %1908 = vmatpush.bf16.msra.mxu0 0
    %1909 = vmatpush.bf16.msra.mxu0 0
    %1910 = vmatpush.bf16.msra.mxu0 %v1764
    %1911 = vmatpush.bf16.msra.mxu0 %v1708
    %1912 = vmatmul.bf16.gmra.mxu0 %v1740
    %v1913 = vpop.f32.mrf.mxu0
    %v1914 = vadd.f32 0.0, %v1913
    %v1915 = vpop.f32.mrf.mxu0
    %v1916 = vadd.f32 0.0, %v1915
    %1917 = vmatmul.bf16.gmra.mxu0 %v1743
    %v1918 = vpop.f32.mrf.mxu0
    %v1919 = vadd.f32 0.0, %v1918
    %v1920 = vpop.f32.mrf.mxu0
    %v1921 = vadd.f32 0.0, %v1920
    %1922 = vmatmul.bf16.gmra.mxu0 %v1746
    %v1923 = vpop.f32.mrf.mxu0
    %v1924 = vadd.f32 0.0, %v1923
    %v1925 = vpop.f32.mrf.mxu0
    %v1926 = vadd.f32 0.0, %v1925
    %1927 = vdwg.mxu0
    %1928 = vmatpush.bf16.msra.mxu0 0
    %1929 = vmatpush.bf16.msra.mxu0 0
    %1930 = vmatpush.bf16.msra.mxu0 0
    %1931 = vmatpush.bf16.msra.mxu0 0
    %1932 = vmatpush.bf16.msra.mxu0 0
    %1933 = vmatpush.bf16.msra.mxu0 0
    %1934 = vmatpush.bf16.msra.mxu0 %v1767
    %1935 = vmatpush.bf16.msra.mxu0 %v1709
    %1936 = vmatmul.bf16.gmra.mxu0 %v1740
    %v1937 = vpop.f32.mrf.mxu0
    %v1938 = vadd.f32 0.0, %v1937
    %v1939 = vpop.f32.mrf.mxu0
    %v1940 = vadd.f32 0.0, %v1939
    %1941 = vmatmul.bf16.gmra.mxu0 %v1743
    %v1942 = vpop.f32.mrf.mxu0
    %v1943 = vadd.f32 0.0, %v1942
    %v1944 = vpop.f32.mrf.mxu0
    %v1945 = vadd.f32 0.0, %v1944
    %1946 = vmatmul.bf16.gmra.mxu0 %v1746
    %v1947 = vpop.f32.mrf.mxu0
    %v1948 = vadd.f32 0.0, %v1947
    %v1949 = vpop.f32.mrf.mxu0
    %v1950 = vadd.f32 0.0, %v1949
    %1951 = vdwg.mxu0
    %1952 = vmatpush.bf16.msra.mxu0 0
    %1953 = vmatpush.bf16.msra.mxu0 0
    %1954 = vmatpush.bf16.msra.mxu0 0
    %1955 = vmatpush.bf16.msra.mxu0 0
    %1956 = vmatpush.bf16.msra.mxu0 0
    %1957 = vmatpush.bf16.msra.mxu0 0
    %1958 = vmatpush.bf16.msra.mxu0 %v1770
    %1959 = vmatpush.bf16.msra.mxu0 %v1710
    %1960 = vmatmul.bf16.gmra.mxu0 %v1740
    %v1961 = vpop.f32.mrf.mxu0
    %v1962 = vadd.f32 0.0, %v1961
    %v1963 = vpop.f32.mrf.mxu0
    %v1964 = vadd.f32 0.0, %v1963
    %1965 = vmatmul.bf16.gmra.mxu0 %v1743
    %v1966 = vpop.f32.mrf.mxu0
    %v1967 = vadd.f32 0.0, %v1966
    %v1968 = vpop.f32.mrf.mxu0
    %v1969 = vadd.f32 0.0, %v1968
    %1970 = vmatmul.bf16.gmra.mxu0 %v1746
    %v1971 = vpop.f32.mrf.mxu0
    %v1972 = vadd.f32 0.0, %v1971
    %v1973 = vpop.f32.mrf.mxu0
    %v1974 = vadd.f32 0.0, %v1973
    %1975 = vdwg.mxu0
    %1976 = vmatpush.bf16.msra.mxu0 0
    %1977 = vmatpush.bf16.msra.mxu0 0
    %1978 = vmatpush.bf16.msra.mxu0 0
    %1979 = vmatpush.bf16.msra.mxu0 0
    %1980 = vmatpush.bf16.msra.mxu0 0
    %1981 = vmatpush.bf16.msra.mxu0 0
    %1982 = vmatpush.bf16.msra.mxu0 %v1773
    %1983 = vmatpush.bf16.msra.mxu0 %v1711
    %1984 = vmatmul.bf16.gmra.mxu0 %v1740
    %v1985 = vpop.f32.mrf.mxu0
    %v1986 = vadd.f32 0.0, %v1985
    %v1987 = vpop.f32.mrf.mxu0
    %v1988 = vadd.f32 0.0, %v1987
    %1989 = vmatmul.bf16.gmra.mxu0 %v1743
    %v1990 = vpop.f32.mrf.mxu0
    %v1991 = vadd.f32 0.0, %v1990
    %v1992 = vpop.f32.mrf.mxu0
    %v1993 = vadd.f32 0.0, %v1992
    %1994 = vmatmul.bf16.gmra.mxu0 %v1746
    %v1995 = vpop.f32.mrf.mxu0
    %v1996 = vadd.f32 0.0, %v1995
    %v1997 = vpop.f32.mrf.mxu0
    %v1998 = vadd.f32 0.0, %v1997
    %1999 = vdwg.mxu0
    %2000 = vmatpush.bf16.msra.mxu0 0
    %2001 = vmatpush.bf16.msra.mxu0 0
    %2002 = vmatpush.bf16.msra.mxu0 0
    %2003 = vmatpush.bf16.msra.mxu0 0
    %2004 = vmatpush.bf16.msra.mxu0 0
    %2005 = vmatpush.bf16.msra.mxu0 0
    %2006 = vmatpush.bf16.msra.mxu0 %v1776
    %2007 = vmatpush.bf16.msra.mxu0 %v1712
    %2008 = vmatmul.bf16.gmra.mxu0 %v1740
    %v2009 = vpop.f32.mrf.mxu0
    %v2010 = vadd.f32 0.0, %v2009
    %v2011 = vpop.f32.mrf.mxu0
    %v2012 = vadd.f32 0.0, %v2011
    %2013 = vmatmul.bf16.gmra.mxu0 %v1743
    %v2014 = vpop.f32.mrf.mxu0
    %v2015 = vadd.f32 0.0, %v2014
    %v2016 = vpop.f32.mrf.mxu0
    %v2017 = vadd.f32 0.0, %v2016
    %2018 = vmatmul.bf16.gmra.mxu0 %v1746
    %v2019 = vpop.f32.mrf.mxu0
    %v2020 = vadd.f32 0.0, %v2019
    %v2021 = vpop.f32.mrf.mxu0
    %v2022 = vadd.f32 0.0, %v2021
    %2023 = vdwg.mxu0
    %2024 = vmatpush.bf16.msra.mxu0 0
    %2025 = vmatpush.bf16.msra.mxu0 0
    %2026 = vmatpush.bf16.msra.mxu0 0
    %2027 = vmatpush.bf16.msra.mxu0 0
    %2028 = vmatpush.bf16.msra.mxu0 0
    %2029 = vmatpush.bf16.msra.mxu0 0
    %2030 = vmatpush.bf16.msra.mxu0 %v1779
    %2031 = vmatpush.bf16.msra.mxu0 %v1713
    %2032 = vmatmul.bf16.gmra.mxu0 %v1740
    %v2033 = vpop.f32.mrf.mxu0
    %v2034 = vadd.f32 0.0, %v2033
    %v2035 = vpop.f32.mrf.mxu0
    %v2036 = vadd.f32 0.0, %v2035
    %2037 = vmatmul.bf16.gmra.mxu0 %v1743
    %v2038 = vpop.f32.mrf.mxu0
    %v2039 = vadd.f32 0.0, %v2038
    %v2040 = vpop.f32.mrf.mxu0
    %v2041 = vadd.f32 0.0, %v2040
    %2042 = vmatmul.bf16.gmra.mxu0 %v1746
    %v2043 = vpop.f32.mrf.mxu0
    %v2044 = vadd.f32 0.0, %v2043
    %v2045 = vpop.f32.mrf.mxu0
    %v2046 = vadd.f32 0.0, %v2045
    %2047 = vdwg.mxu0
    %2048 = vmatpush.bf16.msra.mxu0 0
    %2049 = vmatpush.bf16.msra.mxu0 0
    %2050 = vmatpush.bf16.msra.mxu0 0
    %2051 = vmatpush.bf16.msra.mxu0 0
    %2052 = vmatpush.bf16.msra.mxu0 0
    %2053 = vmatpush.bf16.msra.mxu0 0
    %2054 = vmatpush.bf16.msra.mxu0 %v1782
    %2055 = vmatpush.bf16.msra.mxu0 %v1714
    %2056 = vmatmul.bf16.gmra.mxu0 %v1740
    %v2057 = vpop.f32.mrf.mxu0
    %v2058 = vadd.f32 0.0, %v2057
    %v2059 = vpop.f32.mrf.mxu0
    %v2060 = vadd.f32 0.0, %v2059
    %2061 = vmatmul.bf16.gmra.mxu0 %v1743
    %v2062 = vpop.f32.mrf.mxu0
    %v2063 = vadd.f32 0.0, %v2062
    %v2064 = vpop.f32.mrf.mxu0
    %v2065 = vadd.f32 0.0, %v2064
    %2066 = vmatmul.bf16.gmra.mxu0 %v1746
    %v2067 = vpop.f32.mrf.mxu0
    %v2068 = vadd.f32 0.0, %v2067
    %v2069 = vpop.f32.mrf.mxu0
    %v2070 = vadd.f32 0.0, %v2069
    %2071 = vdwg.mxu0
    %v2072 = vadd.f32 %v1510, %v1794
    %v2073 = vadd.f32 %v1511, %v1818
    %v2074 = vadd.f32 %v1512, %v1842
    %v2075 = vadd.f32 %v1513, %v1866
    %v2076 = vadd.f32 %v1514, %v1890
    %v2077 = vadd.f32 %v1515, %v1914
    %v2078 = vadd.f32 %v1516, %v1938
    %v2079 = vadd.f32 %v1517, %v1962
    %v2080 = vadd.f32 %v1518, %v1986
    %v2081 = vadd.f32 %v1519, %v2010
    %v2082 = vadd.f32 %v1520, %v2034
    %v2083 = vadd.f32 %v1521, %v2058
    %v2084 = vadd.f32 %v1522, %v1796
    %v2085 = vadd.f32 %v1523, %v1820
    %v2086 = vadd.f32 %v1524, %v1844
    %v2087 = vadd.f32 %v1525, %v1868
    %v2088 = vadd.f32 %v1526, %v1892
    %v2089 = vadd.f32 %v1527, %v1916
    %v2090 = vadd.f32 %v1528, %v1940
    %v2091 = vadd.f32 %v1529, %v1964
    %v2092 = vadd.f32 %v1530, %v1988
    %v2093 = vadd.f32 %v1531, %v2012
    %v2094 = vadd.f32 %v1532, %v2036
    %v2095 = vadd.f32 %v1533, %v2060
    %v2096 = vadd.f32 %v1534, %v1799
    %v2097 = vadd.f32 %v1535, %v1823
    %v2098 = vadd.f32 %v1536, %v1847
    %v2099 = vadd.f32 %v1537, %v1871
    %v2100 = vadd.f32 %v1538, %v1895
    %v2101 = vadd.f32 %v1539, %v1919
    %v2102 = vadd.f32 %v1540, %v1943
    %v2103 = vadd.f32 %v1541, %v1967
    %v2104 = vadd.f32 %v1542, %v1991
    %v2105 = vadd.f32 %v1543, %v2015
    %v2106 = vadd.f32 %v1544, %v2039
    %v2107 = vadd.f32 %v1545, %v2063
    %v2108 = vadd.f32 %v1546, %v1801
    %v2109 = vadd.f32 %v1547, %v1825
    %v2110 = vadd.f32 %v1548, %v1849
    %v2111 = vadd.f32 %v1549, %v1873
    %v2112 = vadd.f32 %v1550, %v1897
    %v2113 = vadd.f32 %v1551, %v1921
    %v2114 = vadd.f32 %v1552, %v1945
    %v2115 = vadd.f32 %v1553, %v1969
    %v2116 = vadd.f32 %v1554, %v1993
    %v2117 = vadd.f32 %v1555, %v2017
    %v2118 = vadd.f32 %v1556, %v2041
    %v2119 = vadd.f32 %v1557, %v2065
    %v2120 = vadd.f32 %v1558, %v1804
    %v2121 = vadd.f32 %v1559, %v1828
    %v2122 = vadd.f32 %v1560, %v1852
    %v2123 = vadd.f32 %v1561, %v1876
    %v2124 = vadd.f32 %v1562, %v1900
    %v2125 = vadd.f32 %v1563, %v1924
    %v2126 = vadd.f32 %v1564, %v1948
    %v2127 = vadd.f32 %v1565, %v1972
    %v2128 = vadd.f32 %v1566, %v1996
    %v2129 = vadd.f32 %v1567, %v2020
    %v2130 = vadd.f32 %v1568, %v2044
    %v2131 = vadd.f32 %v1569, %v2068
    %v2132 = vadd.f32 %v1570, %v1806
    %v2133 = vadd.f32 %v1571, %v1830
    %v2134 = vadd.f32 %v1572, %v1854
    %v2135 = vadd.f32 %v1573, %v1878
    %v2136 = vadd.f32 %v1574, %v1902
    %v2137 = vadd.f32 %v1575, %v1926
    %v2138 = vadd.f32 %v1576, %v1950
    %v2139 = vadd.f32 %v1577, %v1974
    %v2140 = vadd.f32 %v1578, %v1998
    %v2141 = vadd.f32 %v1579, %v2022
    %v2142 = vadd.f32 %v1580, %v2046
    %v2143 = vadd.f32 %v1581, %v2070
    %vm2144 = vcmask 1043456
    %v2145 = vrot.slane %v45, 4
    %v2146 = vrot.slane %v46, 4
    %v2147 = vsel %vm2144, %v2145, %v2146
    %v2148 = vrot.slane %v47, 4
    %v2149 = vsel %vm2144, %v2146, %v2148
    %v2150 = vrot.slane %v48, 4
    %v2151 = vsel %vm2144, %v2148, %v2150
    %v2152 = vrot.slane %v49, 4
    %v2153 = vrot.slane %v50, 4
    %v2154 = vsel %vm2144, %v2152, %v2153
    %v2155 = vrot.slane %v51, 4
    %v2156 = vsel %vm2144, %v2153, %v2155
    %v2157 = vrot.slane %v52, 4
    %v2158 = vsel %vm2144, %v2155, %v2157
    %v2165 = vpack.c.bf16 %v2149, %v2147
    %v2166 = vpack.c.bf16 %v2154, %v2151
    %v2167 = vpack.c.bf16 %v2158, %v2156
    %s2168 = scalar_lea.vmem [#allocation2], 768
    %v2169 = vld [vmem:[%s2168] sm:$0xff]
    %v2170 = vld [vmem:[%s2168 + $0x8] sm:$0xff]
    %v2171 = vld [vmem:[%s2168 + $0x10] sm:$0xff]
    %v2172 = vld [vmem:[%s2168 + $0x18] sm:$0xff]
    %v2173 = vld [vmem:[%s2168 + $0x20] sm:$0xff]
    %v2174 = vld [vmem:[%s2168 + $0x28] sm:$0xff]
    %v2175 = vld [vmem:[%s2168 + $0x30] sm:$0xff]
    %v2176 = vld [vmem:[%s2168 + $0x38] sm:$0xff]
    %v2177 = vld [vmem:[%s2168 + $0x40] sm:$0xff]
    %v2178 = vld [vmem:[%s2168 + $0x48] sm:$0xff]
    %v2179 = vld [vmem:[%s2168 + $0x50] sm:$0xff]
    %v2180 = vld [vmem:[%s2168 + $0x58] sm:$0xff]
    %v2181 = vld [vmem:[%s2168 + $0x60] sm:$0xff]
    %v2182 = vld [vmem:[%s2168 + $0x68] sm:$0xff]
    %v2183 = vld [vmem:[%s2168 + $0x70] sm:$0xff]
    %v2184 = vld [vmem:[%s2168 + $0x78] sm:$0xff]
    %v2185 = vld [vmem:[%s2168 + $0x80] sm:$0xff]
    %v2186 = vld [vmem:[%s2168 + $0x88] sm:$0xff]
    %v2187 = vld [vmem:[%s2168 + $0x90] sm:$0x33]
    %v2188 = vld [vmem:[%s2168 + $0x98] sm:$0x33]
    %v2189 = vld [vmem:[%s2168 + $0xa0] sm:$0x33]
    %v2190 = vld [vmem:[%s2168 + $0xa8] sm:$0x33]
    %v2191 = vld [vmem:[%s2168 + $0xb0] sm:$0x33]
    %v2192 = vld [vmem:[%s2168 + $0xb8] sm:$0x33]
    %v2217 = vunpack.c.l.b16 %v2169
    %v2218 = vunpack.c.h.b16 %v2169
    %v2219 = vunpack.c.l.b16 %v2170
    %v2220 = vunpack.c.h.b16 %v2170
    %v2221 = vunpack.c.l.b16 %v2171
    %v2222 = vunpack.c.h.b16 %v2171
    %v2223 = vunpack.c.l.b16 %v2172
    %v2224 = vunpack.c.h.b16 %v2172
    %v2225 = vunpack.c.l.b16 %v2173
    %v2226 = vunpack.c.h.b16 %v2173
    %v2227 = vunpack.c.l.b16 %v2174
    %v2228 = vunpack.c.h.b16 %v2174
    %v2229 = vunpack.c.l.b16 %v2175
    %v2230 = vunpack.c.h.b16 %v2175
    %v2231 = vunpack.c.l.b16 %v2176
    %v2232 = vunpack.c.h.b16 %v2176
    %v2233 = vunpack.c.l.b16 %v2177
    %v2234 = vunpack.c.h.b16 %v2177
    %v2235 = vunpack.c.l.b16 %v2178
    %v2236 = vunpack.c.h.b16 %v2178
    %v2237 = vunpack.c.l.b16 %v2179
    %v2238 = vunpack.c.h.b16 %v2179
    %v2239 = vunpack.c.l.b16 %v2180
    %v2240 = vunpack.c.h.b16 %v2180
    %v2241 = vunpack.c.l.b16 %v2181
    %v2242 = vunpack.c.h.b16 %v2181
    %v2243 = vunpack.c.l.b16 %v2182
    %v2244 = vunpack.c.h.b16 %v2182
    %v2245 = vunpack.c.l.b16 %v2183
    %v2246 = vunpack.c.h.b16 %v2183
    %v2247 = vunpack.c.l.b16 %v2184
    %v2248 = vunpack.c.h.b16 %v2184
    %v2249 = vunpack.c.l.b16 %v2185
    %v2250 = vunpack.c.h.b16 %v2185
    %v2251 = vunpack.c.l.b16 %v2186
    %v2252 = vunpack.c.h.b16 %v2186
    %v2253 = vunpack.c.l.b16 %v2187
    %v2254 = vunpack.c.h.b16 %v2187
    %v2255 = vunpack.c.l.b16 %v2188
    %v2256 = vunpack.c.h.b16 %v2188
    %v2257 = vunpack.c.l.b16 %v2189
    %v2258 = vunpack.c.h.b16 %v2189
    %v2259 = vunpack.c.l.b16 %v2190
    %v2260 = vunpack.c.h.b16 %v2190
    %v2261 = vunpack.c.l.b16 %v2191
    %v2262 = vunpack.c.h.b16 %v2191
    %v2263 = vunpack.c.l.b16 %v2192
    %v2264 = vunpack.c.h.b16 %v2192
    %v2265 = vpack.c.b16 %v2229, %v2217
    %v2266 = vpack.c.b16 %v2230, %v2218
    %v2267 = vpack.c.b16 %v2231, %v2219
    %v2268 = vpack.c.b16 %v2232, %v2220
    %v2269 = vpack.c.b16 %v2233, %v2221
    %v2270 = vpack.c.b16 %v2234, %v2222
    %v2271 = vpack.c.b16 %v2235, %v2223
    %v2272 = vpack.c.b16 %v2236, %v2224
    %v2273 = vpack.c.b16 %v2237, %v2225
    %v2274 = vpack.c.b16 %v2238, %v2226
    %v2275 = vpack.c.b16 %v2239, %v2227
    %v2276 = vpack.c.b16 %v2240, %v2228
    %v2277 = vpack.c.b16 %v2253, %v2241
    %v2278 = vpack.c.b16 %v2254, %v2242
    %v2279 = vpack.c.b16 %v2255, %v2243
    %v2280 = vpack.c.b16 %v2256, %v2244
    %v2281 = vpack.c.b16 %v2257, %v2245
    %v2282 = vpack.c.b16 %v2258, %v2246
    %v2283 = vpack.c.b16 %v2259, %v2247
    %v2284 = vpack.c.b16 %v2260, %v2248
    %v2285 = vpack.c.b16 %v2261, %v2249
    %v2286 = vpack.c.b16 %v2262, %v2250
    %v2287 = vpack.c.b16 %v2263, %v2251
    %v2288 = vpack.c.b16 %v2264, %v2252
    %v2302 = vsel %vm245, %v2165, 0
    %v2305 = vsel %vm245, %v2166, 0
    %v2308 = vsel %vm245, %v2167, 0
    %v2311 = vsel %vm255, %v2277, 0
    %v2314 = vsel %vm255, %v2278, 0
    %v2317 = vsel %vm255, %v2279, 0
    %v2320 = vsel %vm255, %v2280, 0
    %v2323 = vsel %vm255, %v2281, 0
    %v2326 = vsel %vm255, %v2282, 0
    %v2329 = vsel %vm255, %v2283, 0
    %v2332 = vsel %vm255, %v2284, 0
    %v2335 = vsel %vm255, %v2285, 0
    %v2338 = vsel %vm255, %v2286, 0
    %v2341 = vsel %vm255, %v2287, 0
    %v2344 = vsel %vm255, %v2288, 0
    %2346 = vmatpush.bf16.msra.mxu0 0
    %2347 = vmatpush.bf16.msra.mxu0 0
    %2348 = vmatpush.bf16.msra.mxu0 0
    %2349 = vmatpush.bf16.msra.mxu0 0
    %2350 = vmatpush.bf16.msra.mxu0 0
    %2351 = vmatpush.bf16.msra.mxu0 0
    %2352 = vmatpush.bf16.msra.mxu0 %v2311
    %2353 = vmatpush.bf16.msra.mxu0 %v2265
    %2354 = vmatmul.bf16.gmra.mxu0 %v2302
    %v2355 = vpop.f32.mrf.mxu0
    %v2356 = vadd.f32 0.0, %v2355
    %v2357 = vpop.f32.mrf.mxu0
    %v2358 = vadd.f32 0.0, %v2357
    %2359 = vmatmul.bf16.gmra.mxu0 %v2305
    %v2360 = vpop.f32.mrf.mxu0
    %v2361 = vadd.f32 0.0, %v2360
    %v2362 = vpop.f32.mrf.mxu0
    %v2363 = vadd.f32 0.0, %v2362
    %2364 = vmatmul.bf16.gmra.mxu0 %v2308
    %v2365 = vpop.f32.mrf.mxu0
    %v2366 = vadd.f32 0.0, %v2365
    %v2367 = vpop.f32.mrf.mxu0
    %v2368 = vadd.f32 0.0, %v2367
    %2369 = vdwg.mxu0
    %2370 = vmatpush.bf16.msra.mxu0 0
    %2371 = vmatpush.bf16.msra.mxu0 0
    %2372 = vmatpush.bf16.msra.mxu0 0
    %2373 = vmatpush.bf16.msra.mxu0 0
    %2374 = vmatpush.bf16.msra.mxu0 0
    %2375 = vmatpush.bf16.msra.mxu0 0
    %2376 = vmatpush.bf16.msra.mxu0 %v2314
    %2377 = vmatpush.bf16.msra.mxu0 %v2266
    %2378 = vmatmul.bf16.gmra.mxu0 %v2302
    %v2379 = vpop.f32.mrf.mxu0
    %v2380 = vadd.f32 0.0, %v2379
    %v2381 = vpop.f32.mrf.mxu0
    %v2382 = vadd.f32 0.0, %v2381
    %2383 = vmatmul.bf16.gmra.mxu0 %v2305
    %v2384 = vpop.f32.mrf.mxu0
    %v2385 = vadd.f32 0.0, %v2384
    %v2386 = vpop.f32.mrf.mxu0
    %v2387 = vadd.f32 0.0, %v2386
    %2388 = vmatmul.bf16.gmra.mxu0 %v2308
    %v2389 = vpop.f32.mrf.mxu0
    %v2390 = vadd.f32 0.0, %v2389
    %v2391 = vpop.f32.mrf.mxu0
    %v2392 = vadd.f32 0.0, %v2391
    %2393 = vdwg.mxu0
    %2394 = vmatpush.bf16.msra.mxu0 0
    %2395 = vmatpush.bf16.msra.mxu0 0
    %2396 = vmatpush.bf16.msra.mxu0 0
    %2397 = vmatpush.bf16.msra.mxu0 0
    %2398 = vmatpush.bf16.msra.mxu0 0
    %2399 = vmatpush.bf16.msra.mxu0 0
    %2400 = vmatpush.bf16.msra.mxu0 %v2317
    %2401 = vmatpush.bf16.msra.mxu0 %v2267
    %2402 = vmatmul.bf16.gmra.mxu0 %v2302
    %v2403 = vpop.f32.mrf.mxu0
    %v2404 = vadd.f32 0.0, %v2403
    %v2405 = vpop.f32.mrf.mxu0
    %v2406 = vadd.f32 0.0, %v2405
    %2407 = vmatmul.bf16.gmra.mxu0 %v2305
    %v2408 = vpop.f32.mrf.mxu0
    %v2409 = vadd.f32 0.0, %v2408
    %v2410 = vpop.f32.mrf.mxu0
    %v2411 = vadd.f32 0.0, %v2410
    %2412 = vmatmul.bf16.gmra.mxu0 %v2308
    %v2413 = vpop.f32.mrf.mxu0
    %v2414 = vadd.f32 0.0, %v2413
    %v2415 = vpop.f32.mrf.mxu0
    %v2416 = vadd.f32 0.0, %v2415
    %2417 = vdwg.mxu0
    %2418 = vmatpush.bf16.msra.mxu0 0
    %2419 = vmatpush.bf16.msra.mxu0 0
    %2420 = vmatpush.bf16.msra.mxu0 0
    %2421 = vmatpush.bf16.msra.mxu0 0
    %2422 = vmatpush.bf16.msra.mxu0 0
    %2423 = vmatpush.bf16.msra.mxu0 0
    %2424 = vmatpush.bf16.msra.mxu0 %v2320
    %2425 = vmatpush.bf16.msra.mxu0 %v2268
    %2426 = vmatmul.bf16.gmra.mxu0 %v2302
    %v2427 = vpop.f32.mrf.mxu0
    %v2428 = vadd.f32 0.0, %v2427
    %v2429 = vpop.f32.mrf.mxu0
    %v2430 = vadd.f32 0.0, %v2429
    %2431 = vmatmul.bf16.gmra.mxu0 %v2305
    %v2432 = vpop.f32.mrf.mxu0
    %v2433 = vadd.f32 0.0, %v2432
    %v2434 = vpop.f32.mrf.mxu0
    %v2435 = vadd.f32 0.0, %v2434
    %2436 = vmatmul.bf16.gmra.mxu0 %v2308
    %v2437 = vpop.f32.mrf.mxu0
    %v2438 = vadd.f32 0.0, %v2437
    %v2439 = vpop.f32.mrf.mxu0
    %v2440 = vadd.f32 0.0, %v2439
    %2441 = vdwg.mxu0
    %2442 = vmatpush.bf16.msra.mxu0 0
    %2443 = vmatpush.bf16.msra.mxu0 0
    %2444 = vmatpush.bf16.msra.mxu0 0
    %2445 = vmatpush.bf16.msra.mxu0 0
    %2446 = vmatpush.bf16.msra.mxu0 0
    %2447 = vmatpush.bf16.msra.mxu0 0
    %2448 = vmatpush.bf16.msra.mxu0 %v2323
    %2449 = vmatpush.bf16.msra.mxu0 %v2269
    %2450 = vmatmul.bf16.gmra.mxu0 %v2302
    %v2451 = vpop.f32.mrf.mxu0
    %v2452 = vadd.f32 0.0, %v2451
    %v2453 = vpop.f32.mrf.mxu0
    %v2454 = vadd.f32 0.0, %v2453
    %2455 = vmatmul.bf16.gmra.mxu0 %v2305
    %v2456 = vpop.f32.mrf.mxu0
    %v2457 = vadd.f32 0.0, %v2456
    %v2458 = vpop.f32.mrf.mxu0
    %v2459 = vadd.f32 0.0, %v2458
    %2460 = vmatmul.bf16.gmra.mxu0 %v2308
    %v2461 = vpop.f32.mrf.mxu0
    %v2462 = vadd.f32 0.0, %v2461
    %v2463 = vpop.f32.mrf.mxu0
    %v2464 = vadd.f32 0.0, %v2463
    %2465 = vdwg.mxu0
    %2466 = vmatpush.bf16.msra.mxu0 0
    %2467 = vmatpush.bf16.msra.mxu0 0
    %2468 = vmatpush.bf16.msra.mxu0 0
    %2469 = vmatpush.bf16.msra.mxu0 0
    %2470 = vmatpush.bf16.msra.mxu0 0
    %2471 = vmatpush.bf16.msra.mxu0 0
    %2472 = vmatpush.bf16.msra.mxu0 %v2326
    %2473 = vmatpush.bf16.msra.mxu0 %v2270
    %2474 = vmatmul.bf16.gmra.mxu0 %v2302
    %v2475 = vpop.f32.mrf.mxu0
    %v2476 = vadd.f32 0.0, %v2475
    %v2477 = vpop.f32.mrf.mxu0
    %v2478 = vadd.f32 0.0, %v2477
    %2479 = vmatmul.bf16.gmra.mxu0 %v2305
    %v2480 = vpop.f32.mrf.mxu0
    %v2481 = vadd.f32 0.0, %v2480
    %v2482 = vpop.f32.mrf.mxu0
    %v2483 = vadd.f32 0.0, %v2482
    %2484 = vmatmul.bf16.gmra.mxu0 %v2308
    %v2485 = vpop.f32.mrf.mxu0
    %v2486 = vadd.f32 0.0, %v2485
    %v2487 = vpop.f32.mrf.mxu0
    %v2488 = vadd.f32 0.0, %v2487
    %2489 = vdwg.mxu0
    %2490 = vmatpush.bf16.msra.mxu0 0
    %2491 = vmatpush.bf16.msra.mxu0 0
    %2492 = vmatpush.bf16.msra.mxu0 0
    %2493 = vmatpush.bf16.msra.mxu0 0
    %2494 = vmatpush.bf16.msra.mxu0 0
    %2495 = vmatpush.bf16.msra.mxu0 0
    %2496 = vmatpush.bf16.msra.mxu0 %v2329
    %2497 = vmatpush.bf16.msra.mxu0 %v2271
    %2498 = vmatmul.bf16.gmra.mxu0 %v2302
    %v2499 = vpop.f32.mrf.mxu0
    %v2500 = vadd.f32 0.0, %v2499
    %v2501 = vpop.f32.mrf.mxu0
    %v2502 = vadd.f32 0.0, %v2501
    %2503 = vmatmul.bf16.gmra.mxu0 %v2305
    %v2504 = vpop.f32.mrf.mxu0
    %v2505 = vadd.f32 0.0, %v2504
    %v2506 = vpop.f32.mrf.mxu0
    %v2507 = vadd.f32 0.0, %v2506
    %2508 = vmatmul.bf16.gmra.mxu0 %v2308
    %v2509 = vpop.f32.mrf.mxu0
    %v2510 = vadd.f32 0.0, %v2509
    %v2511 = vpop.f32.mrf.mxu0
    %v2512 = vadd.f32 0.0, %v2511
    %2513 = vdwg.mxu0
    %2514 = vmatpush.bf16.msra.mxu0 0
    %2515 = vmatpush.bf16.msra.mxu0 0
    %2516 = vmatpush.bf16.msra.mxu0 0
    %2517 = vmatpush.bf16.msra.mxu0 0
    %2518 = vmatpush.bf16.msra.mxu0 0
    %2519 = vmatpush.bf16.msra.mxu0 0
    %2520 = vmatpush.bf16.msra.mxu0 %v2332
    %2521 = vmatpush.bf16.msra.mxu0 %v2272
    %2522 = vmatmul.bf16.gmra.mxu0 %v2302
    %v2523 = vpop.f32.mrf.mxu0
    %v2524 = vadd.f32 0.0, %v2523
    %v2525 = vpop.f32.mrf.mxu0
    %v2526 = vadd.f32 0.0, %v2525
    %2527 = vmatmul.bf16.gmra.mxu0 %v2305
    %v2528 = vpop.f32.mrf.mxu0
    %v2529 = vadd.f32 0.0, %v2528
    %v2530 = vpop.f32.mrf.mxu0
    %v2531 = vadd.f32 0.0, %v2530
    %2532 = vmatmul.bf16.gmra.mxu0 %v2308
    %v2533 = vpop.f32.mrf.mxu0
    %v2534 = vadd.f32 0.0, %v2533
    %v2535 = vpop.f32.mrf.mxu0
    %v2536 = vadd.f32 0.0, %v2535
    %2537 = vdwg.mxu0
    %2538 = vmatpush.bf16.msra.mxu0 0
    %2539 = vmatpush.bf16.msra.mxu0 0
    %2540 = vmatpush.bf16.msra.mxu0 0
    %2541 = vmatpush.bf16.msra.mxu0 0
    %2542 = vmatpush.bf16.msra.mxu0 0
    %2543 = vmatpush.bf16.msra.mxu0 0
    %2544 = vmatpush.bf16.msra.mxu0 %v2335
    %2545 = vmatpush.bf16.msra.mxu0 %v2273
    %2546 = vmatmul.bf16.gmra.mxu0 %v2302
    %v2547 = vpop.f32.mrf.mxu0
    %v2548 = vadd.f32 0.0, %v2547
    %v2549 = vpop.f32.mrf.mxu0
    %v2550 = vadd.f32 0.0, %v2549
    %2551 = vmatmul.bf16.gmra.mxu0 %v2305
    %v2552 = vpop.f32.mrf.mxu0
    %v2553 = vadd.f32 0.0, %v2552
    %v2554 = vpop.f32.mrf.mxu0
    %v2555 = vadd.f32 0.0, %v2554
    %2556 = vmatmul.bf16.gmra.mxu0 %v2308
    %v2557 = vpop.f32.mrf.mxu0
    %v2558 = vadd.f32 0.0, %v2557
    %v2559 = vpop.f32.mrf.mxu0
    %v2560 = vadd.f32 0.0, %v2559
    %2561 = vdwg.mxu0
    %2562 = vmatpush.bf16.msra.mxu0 0
    %2563 = vmatpush.bf16.msra.mxu0 0
    %2564 = vmatpush.bf16.msra.mxu0 0
    %2565 = vmatpush.bf16.msra.mxu0 0
    %2566 = vmatpush.bf16.msra.mxu0 0
    %2567 = vmatpush.bf16.msra.mxu0 0
    %2568 = vmatpush.bf16.msra.mxu0 %v2338
    %2569 = vmatpush.bf16.msra.mxu0 %v2274
    %2570 = vmatmul.bf16.gmra.mxu0 %v2302
    %v2571 = vpop.f32.mrf.mxu0
    %v2572 = vadd.f32 0.0, %v2571
    %v2573 = vpop.f32.mrf.mxu0
    %v2574 = vadd.f32 0.0, %v2573
    %2575 = vmatmul.bf16.gmra.mxu0 %v2305
    %v2576 = vpop.f32.mrf.mxu0
    %v2577 = vadd.f32 0.0, %v2576
    %v2578 = vpop.f32.mrf.mxu0
    %v2579 = vadd.f32 0.0, %v2578
    %2580 = vmatmul.bf16.gmra.mxu0 %v2308
    %v2581 = vpop.f32.mrf.mxu0
    %v2582 = vadd.f32 0.0, %v2581
    %v2583 = vpop.f32.mrf.mxu0
    %v2584 = vadd.f32 0.0, %v2583
    %2585 = vdwg.mxu0
    %2586 = vmatpush.bf16.msra.mxu0 0
    %2587 = vmatpush.bf16.msra.mxu0 0
    %2588 = vmatpush.bf16.msra.mxu0 0
    %2589 = vmatpush.bf16.msra.mxu0 0
    %2590 = vmatpush.bf16.msra.mxu0 0
    %2591 = vmatpush.bf16.msra.mxu0 0
    %2592 = vmatpush.bf16.msra.mxu0 %v2341
    %2593 = vmatpush.bf16.msra.mxu0 %v2275
    %2594 = vmatmul.bf16.gmra.mxu0 %v2302
    %v2595 = vpop.f32.mrf.mxu0
    %v2596 = vadd.f32 0.0, %v2595
    %v2597 = vpop.f32.mrf.mxu0
    %v2598 = vadd.f32 0.0, %v2597
    %2599 = vmatmul.bf16.gmra.mxu0 %v2305
    %v2600 = vpop.f32.mrf.mxu0
    %v2601 = vadd.f32 0.0, %v2600
    %v2602 = vpop.f32.mrf.mxu0
    %v2603 = vadd.f32 0.0, %v2602
    %2604 = vmatmul.bf16.gmra.mxu0 %v2308
    %v2605 = vpop.f32.mrf.mxu0
    %v2606 = vadd.f32 0.0, %v2605
    %v2607 = vpop.f32.mrf.mxu0
    %v2608 = vadd.f32 0.0, %v2607
    %2609 = vdwg.mxu0
    %2610 = vmatpush.bf16.msra.mxu0 0
    %2611 = vmatpush.bf16.msra.mxu0 0
    %2612 = vmatpush.bf16.msra.mxu0 0
    %2613 = vmatpush.bf16.msra.mxu0 0
    %2614 = vmatpush.bf16.msra.mxu0 0
    %2615 = vmatpush.bf16.msra.mxu0 0
    %2616 = vmatpush.bf16.msra.mxu0 %v2344
    %2617 = vmatpush.bf16.msra.mxu0 %v2276
    %2618 = vmatmul.bf16.gmra.mxu0 %v2302
    %v2619 = vpop.f32.mrf.mxu0
    %v2620 = vadd.f32 0.0, %v2619
    %v2621 = vpop.f32.mrf.mxu0
    %v2622 = vadd.f32 0.0, %v2621
    %2623 = vmatmul.bf16.gmra.mxu0 %v2305
    %v2624 = vpop.f32.mrf.mxu0
    %v2625 = vadd.f32 0.0, %v2624
    %v2626 = vpop.f32.mrf.mxu0
    %v2627 = vadd.f32 0.0, %v2626
    %2628 = vmatmul.bf16.gmra.mxu0 %v2308
    %v2629 = vpop.f32.mrf.mxu0
    %v2630 = vadd.f32 0.0, %v2629
    %v2631 = vpop.f32.mrf.mxu0
    %v2632 = vadd.f32 0.0, %v2631
    %2633 = vdwg.mxu0
    %v2634 = vadd.f32 %v2072, %v2356
    %v2635 = vadd.f32 %v2073, %v2380
    %v2636 = vadd.f32 %v2074, %v2404
    %v2637 = vadd.f32 %v2075, %v2428
    %v2638 = vadd.f32 %v2076, %v2452
    %v2639 = vadd.f32 %v2077, %v2476
    %v2640 = vadd.f32 %v2078, %v2500
    %v2641 = vadd.f32 %v2079, %v2524
    %v2642 = vadd.f32 %v2080, %v2548
    %v2643 = vadd.f32 %v2081, %v2572
    %v2644 = vadd.f32 %v2082, %v2596
    %v2645 = vadd.f32 %v2083, %v2620
    %v2646 = vadd.f32 %v2084, %v2358
    %v2647 = vadd.f32 %v2085, %v2382
    %v2648 = vadd.f32 %v2086, %v2406
    %v2649 = vadd.f32 %v2087, %v2430
    %v2650 = vadd.f32 %v2088, %v2454
    %v2651 = vadd.f32 %v2089, %v2478
    %v2652 = vadd.f32 %v2090, %v2502
    %v2653 = vadd.f32 %v2091, %v2526
    %v2654 = vadd.f32 %v2092, %v2550
    %v2655 = vadd.f32 %v2093, %v2574
    %v2656 = vadd.f32 %v2094, %v2598
    %v2657 = vadd.f32 %v2095, %v2622
    %v2658 = vadd.f32 %v2096, %v2361
    %v2659 = vadd.f32 %v2097, %v2385
    %v2660 = vadd.f32 %v2098, %v2409
    %v2661 = vadd.f32 %v2099, %v2433
    %v2662 = vadd.f32 %v2100, %v2457
    %v2663 = vadd.f32 %v2101, %v2481
    %v2664 = vadd.f32 %v2102, %v2505
    %v2665 = vadd.f32 %v2103, %v2529
    %v2666 = vadd.f32 %v2104, %v2553
    %v2667 = vadd.f32 %v2105, %v2577
    %v2668 = vadd.f32 %v2106, %v2601
    %v2669 = vadd.f32 %v2107, %v2625
    %v2670 = vadd.f32 %v2108, %v2363
    %v2671 = vadd.f32 %v2109, %v2387
    %v2672 = vadd.f32 %v2110, %v2411
    %v2673 = vadd.f32 %v2111, %v2435
    %v2674 = vadd.f32 %v2112, %v2459
    %v2675 = vadd.f32 %v2113, %v2483
    %v2676 = vadd.f32 %v2114, %v2507
    %v2677 = vadd.f32 %v2115, %v2531
    %v2678 = vadd.f32 %v2116, %v2555
    %v2679 = vadd.f32 %v2117, %v2579
    %v2680 = vadd.f32 %v2118, %v2603
    %v2681 = vadd.f32 %v2119, %v2627
    %v2682 = vadd.f32 %v2120, %v2366
    %v2683 = vadd.f32 %v2121, %v2390
    %v2684 = vadd.f32 %v2122, %v2414
    %v2685 = vadd.f32 %v2123, %v2438
    %v2686 = vadd.f32 %v2124, %v2462
    %v2687 = vadd.f32 %v2125, %v2486
    %v2688 = vadd.f32 %v2126, %v2510
    %v2689 = vadd.f32 %v2127, %v2534
    %v2690 = vadd.f32 %v2128, %v2558
    %v2691 = vadd.f32 %v2129, %v2582
    %v2692 = vadd.f32 %v2130, %v2606
    %v2693 = vadd.f32 %v2131, %v2630
    %v2694 = vadd.f32 %v2132, %v2368
    %v2695 = vadd.f32 %v2133, %v2392
    %v2696 = vadd.f32 %v2134, %v2416
    %v2697 = vadd.f32 %v2135, %v2440
    %v2698 = vadd.f32 %v2136, %v2464
    %v2699 = vadd.f32 %v2137, %v2488
    %v2700 = vadd.f32 %v2138, %v2512
    %v2701 = vadd.f32 %v2139, %v2536
    %v2702 = vadd.f32 %v2140, %v2560
    %v2703 = vadd.f32 %v2141, %v2584
    %v2704 = vadd.f32 %v2142, %v2608
    %v2705 = vadd.f32 %v2143, %v2632
    %v2706 = vld [vmem:[#allocation4] sm:$0xff]
    %v2707 = vld [vmem:[#allocation4 + $0x8] sm:$0xf]
    %v2710 = vperm.slane %v2706, 0
    %v2711 = vperm.slane %v2706, 1
    %v2712 = vperm.slane %v2706, 2
    %v2713 = vperm.slane %v2706, 3
    %v2714 = vperm.slane %v2706, 4
    %v2715 = vperm.slane %v2706, 5
    %v2716 = vperm.slane %v2706, 6
    %v2717 = vperm.slane %v2706, 7
    %v2718 = vperm.slane %v2707, 0
    %v2719 = vperm.slane %v2707, 1
    %v2720 = vperm.slane %v2707, 2
    %v2721 = vperm.slane %v2707, 3
    %v2734 = vadd.f32 %v2634, %v2710
    %v2735 = vadd.f32 %v2635, %v2711
    %v2736 = vadd.f32 %v2636, %v2712
    %v2737 = vadd.f32 %v2637, %v2713
    %v2738 = vadd.f32 %v2638, %v2714
    %v2739 = vadd.f32 %v2639, %v2715
    %v2740 = vadd.f32 %v2640, %v2716
    %v2741 = vadd.f32 %v2641, %v2717
    %v2742 = vadd.f32 %v2642, %v2718
    %v2743 = vadd.f32 %v2643, %v2719
    %v2744 = vadd.f32 %v2644, %v2720
    %v2745 = vadd.f32 %v2645, %v2721
    %v2746 = vadd.f32 %v2646, %v2710
    %v2747 = vadd.f32 %v2647, %v2711
    %v2748 = vadd.f32 %v2648, %v2712
    %v2749 = vadd.f32 %v2649, %v2713
    %v2750 = vadd.f32 %v2650, %v2714
    %v2751 = vadd.f32 %v2651, %v2715
    %v2752 = vadd.f32 %v2652, %v2716
    %v2753 = vadd.f32 %v2653, %v2717
    %v2754 = vadd.f32 %v2654, %v2718
    %v2755 = vadd.f32 %v2655, %v2719
    %v2756 = vadd.f32 %v2656, %v2720
    %v2757 = vadd.f32 %v2657, %v2721
    %v2758 = vadd.f32 %v2658, %v2710
    %v2759 = vadd.f32 %v2659, %v2711
    %v2760 = vadd.f32 %v2660, %v2712
    %v2761 = vadd.f32 %v2661, %v2713
    %v2762 = vadd.f32 %v2662, %v2714
    %v2763 = vadd.f32 %v2663, %v2715
    %v2764 = vadd.f32 %v2664, %v2716
    %v2765 = vadd.f32 %v2665, %v2717
    %v2766 = vadd.f32 %v2666, %v2718
    %v2767 = vadd.f32 %v2667, %v2719
    %v2768 = vadd.f32 %v2668, %v2720
    %v2769 = vadd.f32 %v2669, %v2721
    %v2770 = vadd.f32 %v2670, %v2710
    %v2771 = vadd.f32 %v2671, %v2711
    %v2772 = vadd.f32 %v2672, %v2712
    %v2773 = vadd.f32 %v2673, %v2713
    %v2774 = vadd.f32 %v2674, %v2714
    %v2775 = vadd.f32 %v2675, %v2715
    %v2776 = vadd.f32 %v2676, %v2716
    %v2777 = vadd.f32 %v2677, %v2717
    %v2778 = vadd.f32 %v2678, %v2718
    %v2779 = vadd.f32 %v2679, %v2719
    %v2780 = vadd.f32 %v2680, %v2720
    %v2781 = vadd.f32 %v2681, %v2721
    %v2782 = vadd.f32 %v2682, %v2710
    %v2783 = vadd.f32 %v2683, %v2711
    %v2784 = vadd.f32 %v2684, %v2712
    %v2785 = vadd.f32 %v2685, %v2713
    %v2786 = vadd.f32 %v2686, %v2714
    %v2787 = vadd.f32 %v2687, %v2715
    %v2788 = vadd.f32 %v2688, %v2716
    %v2789 = vadd.f32 %v2689, %v2717
    %v2790 = vadd.f32 %v2690, %v2718
    %v2791 = vadd.f32 %v2691, %v2719
    %v2792 = vadd.f32 %v2692, %v2720
    %v2793 = vadd.f32 %v2693, %v2721
    %v2794 = vadd.f32 %v2694, %v2710
    %v2795 = vadd.f32 %v2695, %v2711
    %v2796 = vadd.f32 %v2696, %v2712
    %v2797 = vadd.f32 %v2697, %v2713
    %v2798 = vadd.f32 %v2698, %v2714
    %v2799 = vadd.f32 %v2699, %v2715
    %v2800 = vadd.f32 %v2700, %v2716
    %v2801 = vadd.f32 %v2701, %v2717
    %v2802 = vadd.f32 %v2702, %v2718
    %v2803 = vadd.f32 %v2703, %v2719
    %v2804 = vadd.f32 %v2704, %v2720
    %v2805 = vadd.f32 %v2705, %v2721
    %2812 = vrot.lane.b32.xlu0 %v2734, 64
    %v2813 = vpop.permute.xlu0 %2812
    %2814 = vrot.lane.b32.xlu0 %v2746, 64
    %v2815 = vpop.permute.xlu0 %2814
    %2816 = vrot.lane.b32.xlu0 %v2758, 64
    %v2817 = vpop.permute.xlu0 %2816
    %2818 = vrot.lane.b32.xlu0 %v2770, 64
    %v2819 = vpop.permute.xlu0 %2818
    %2820 = vrot.lane.b32.xlu0 %v2782, 64
    %v2821 = vpop.permute.xlu0 %2820
    %2822 = vrot.lane.b32.xlu0 %v2794, 64
    %v2823 = vpop.permute.xlu0 %2822
    %v2830 = vmax.f32 %v2734, %v2813
    %v2831 = vmax.f32 %v2746, %v2815
    %v2832 = vmax.f32 %v2758, %v2817
    %v2833 = vmax.f32 %v2770, %v2819
    %v2834 = vmax.f32 %v2782, %v2821
    %v2835 = vmax.f32 %v2794, %v2823
    %2842 = vrot.lane.b32.xlu0 %v2735, 64
    %v2843 = vpop.permute.xlu0 %2842
    %2844 = vrot.lane.b32.xlu0 %v2747, 64
    %v2845 = vpop.permute.xlu0 %2844
    %2846 = vrot.lane.b32.xlu0 %v2759, 64
    %v2847 = vpop.permute.xlu0 %2846
    %2848 = vrot.lane.b32.xlu0 %v2771, 64
    %v2849 = vpop.permute.xlu0 %2848
    %2850 = vrot.lane.b32.xlu0 %v2783, 64
    %v2851 = vpop.permute.xlu0 %2850
    %2852 = vrot.lane.b32.xlu0 %v2795, 64
    %v2853 = vpop.permute.xlu0 %2852
    %v2860 = vmax.f32 %v2735, %v2843
    %v2861 = vmax.f32 %v2747, %v2845
    %v2862 = vmax.f32 %v2759, %v2847
    %v2863 = vmax.f32 %v2771, %v2849
    %v2864 = vmax.f32 %v2783, %v2851
    %v2865 = vmax.f32 %v2795, %v2853
    %2872 = vrot.lane.b32.xlu0 %v2736, 64
    %v2873 = vpop.permute.xlu0 %2872
    %2874 = vrot.lane.b32.xlu0 %v2748, 64
    %v2875 = vpop.permute.xlu0 %2874
    %2876 = vrot.lane.b32.xlu0 %v2760, 64
    %v2877 = vpop.permute.xlu0 %2876
    %2878 = vrot.lane.b32.xlu0 %v2772, 64
    %v2879 = vpop.permute.xlu0 %2878
    %2880 = vrot.lane.b32.xlu0 %v2784, 64
    %v2881 = vpop.permute.xlu0 %2880
    %2882 = vrot.lane.b32.xlu0 %v2796, 64
    %v2883 = vpop.permute.xlu0 %2882
    %v2890 = vmax.f32 %v2736, %v2873
    %v2891 = vmax.f32 %v2748, %v2875
    %v2892 = vmax.f32 %v2760, %v2877
    %v2893 = vmax.f32 %v2772, %v2879
    %v2894 = vmax.f32 %v2784, %v2881
    %v2895 = vmax.f32 %v2796, %v2883
    %2902 = vrot.lane.b32.xlu0 %v2737, 64
    %v2903 = vpop.permute.xlu0 %2902
    %2904 = vrot.lane.b32.xlu0 %v2749, 64
    %v2905 = vpop.permute.xlu0 %2904
    %2906 = vrot.lane.b32.xlu0 %v2761, 64
    %v2907 = vpop.permute.xlu0 %2906
    %2908 = vrot.lane.b32.xlu0 %v2773, 64
    %v2909 = vpop.permute.xlu0 %2908
    %2910 = vrot.lane.b32.xlu0 %v2785, 64
    %v2911 = vpop.permute.xlu0 %2910
    %2912 = vrot.lane.b32.xlu0 %v2797, 64
    %v2913 = vpop.permute.xlu0 %2912
    %v2920 = vmax.f32 %v2737, %v2903
    %v2921 = vmax.f32 %v2749, %v2905
    %v2922 = vmax.f32 %v2761, %v2907
    %v2923 = vmax.f32 %v2773, %v2909
    %v2924 = vmax.f32 %v2785, %v2911
    %v2925 = vmax.f32 %v2797, %v2913
    %2932 = vrot.lane.b32.xlu0 %v2738, 64
    %v2933 = vpop.permute.xlu0 %2932
    %2934 = vrot.lane.b32.xlu0 %v2750, 64
    %v2935 = vpop.permute.xlu0 %2934
    %2936 = vrot.lane.b32.xlu0 %v2762, 64
    %v2937 = vpop.permute.xlu0 %2936
    %2938 = vrot.lane.b32.xlu0 %v2774, 64
    %v2939 = vpop.permute.xlu0 %2938
    %2940 = vrot.lane.b32.xlu0 %v2786, 64
    %v2941 = vpop.permute.xlu0 %2940
    %2942 = vrot.lane.b32.xlu0 %v2798, 64
    %v2943 = vpop.permute.xlu0 %2942
    %v2950 = vmax.f32 %v2738, %v2933
    %v2951 = vmax.f32 %v2750, %v2935
    %v2952 = vmax.f32 %v2762, %v2937
    %v2953 = vmax.f32 %v2774, %v2939
    %v2954 = vmax.f32 %v2786, %v2941
    %v2955 = vmax.f32 %v2798, %v2943
    %2962 = vrot.lane.b32.xlu0 %v2739, 64
    %v2963 = vpop.permute.xlu0 %2962
    %2964 = vrot.lane.b32.xlu0 %v2751, 64
    %v2965 = vpop.permute.xlu0 %2964
    %2966 = vrot.lane.b32.xlu0 %v2763, 64
    %v2967 = vpop.permute.xlu0 %2966
    %2968 = vrot.lane.b32.xlu0 %v2775, 64
    %v2969 = vpop.permute.xlu0 %2968
    %2970 = vrot.lane.b32.xlu0 %v2787, 64
    %v2971 = vpop.permute.xlu0 %2970
    %2972 = vrot.lane.b32.xlu0 %v2799, 64
    %v2973 = vpop.permute.xlu0 %2972
    %v2980 = vmax.f32 %v2739, %v2963
    %v2981 = vmax.f32 %v2751, %v2965
    %v2982 = vmax.f32 %v2763, %v2967
    %v2983 = vmax.f32 %v2775, %v2969
    %v2984 = vmax.f32 %v2787, %v2971
    %v2985 = vmax.f32 %v2799, %v2973
    %2992 = vrot.lane.b32.xlu0 %v2740, 64
    %v2993 = vpop.permute.xlu0 %2992
    %2994 = vrot.lane.b32.xlu0 %v2752, 64
    %v2995 = vpop.permute.xlu0 %2994
    %2996 = vrot.lane.b32.xlu0 %v2764, 64
    %v2997 = vpop.permute.xlu0 %2996
    %2998 = vrot.lane.b32.xlu0 %v2776, 64
    %v2999 = vpop.permute.xlu0 %2998
    %3000 = vrot.lane.b32.xlu0 %v2788, 64
    %v3001 = vpop.permute.xlu0 %3000
    %3002 = vrot.lane.b32.xlu0 %v2800, 64
    %v3003 = vpop.permute.xlu0 %3002
    %v3010 = vmax.f32 %v2740, %v2993
    %v3011 = vmax.f32 %v2752, %v2995
    %v3012 = vmax.f32 %v2764, %v2997
    %v3013 = vmax.f32 %v2776, %v2999
    %v3014 = vmax.f32 %v2788, %v3001
    %v3015 = vmax.f32 %v2800, %v3003
    %3022 = vrot.lane.b32.xlu0 %v2741, 64
    %v3023 = vpop.permute.xlu0 %3022
    %3024 = vrot.lane.b32.xlu0 %v2753, 64
    %v3025 = vpop.permute.xlu0 %3024
    %3026 = vrot.lane.b32.xlu0 %v2765, 64
    %v3027 = vpop.permute.xlu0 %3026
    %3028 = vrot.lane.b32.xlu0 %v2777, 64
    %v3029 = vpop.permute.xlu0 %3028
    %3030 = vrot.lane.b32.xlu0 %v2789, 64
    %v3031 = vpop.permute.xlu0 %3030
    %3032 = vrot.lane.b32.xlu0 %v2801, 64
    %v3033 = vpop.permute.xlu0 %3032
    %v3040 = vmax.f32 %v2741, %v3023
    %v3041 = vmax.f32 %v2753, %v3025
    %v3042 = vmax.f32 %v2765, %v3027
    %v3043 = vmax.f32 %v2777, %v3029
    %v3044 = vmax.f32 %v2789, %v3031
    %v3045 = vmax.f32 %v2801, %v3033
    %3052 = vrot.lane.b32.xlu0 %v2742, 64
    %v3053 = vpop.permute.xlu0 %3052
    %3054 = vrot.lane.b32.xlu0 %v2754, 64
    %v3055 = vpop.permute.xlu0 %3054
    %3056 = vrot.lane.b32.xlu0 %v2766, 64
    %v3057 = vpop.permute.xlu0 %3056
    %3058 = vrot.lane.b32.xlu0 %v2778, 64
    %v3059 = vpop.permute.xlu0 %3058
    %3060 = vrot.lane.b32.xlu0 %v2790, 64
    %v3061 = vpop.permute.xlu0 %3060
    %3062 = vrot.lane.b32.xlu0 %v2802, 64
    %v3063 = vpop.permute.xlu0 %3062
    %v3070 = vmax.f32 %v2742, %v3053
    %v3071 = vmax.f32 %v2754, %v3055
    %v3072 = vmax.f32 %v2766, %v3057
    %v3073 = vmax.f32 %v2778, %v3059
    %v3074 = vmax.f32 %v2790, %v3061
    %v3075 = vmax.f32 %v2802, %v3063
    %3082 = vrot.lane.b32.xlu0 %v2743, 64
    %v3083 = vpop.permute.xlu0 %3082
    %3084 = vrot.lane.b32.xlu0 %v2755, 64
    %v3085 = vpop.permute.xlu0 %3084
    %3086 = vrot.lane.b32.xlu0 %v2767, 64
    %v3087 = vpop.permute.xlu0 %3086
    %3088 = vrot.lane.b32.xlu0 %v2779, 64
    %v3089 = vpop.permute.xlu0 %3088
    %3090 = vrot.lane.b32.xlu0 %v2791, 64
    %v3091 = vpop.permute.xlu0 %3090
    %3092 = vrot.lane.b32.xlu0 %v2803, 64
    %v3093 = vpop.permute.xlu0 %3092
    %v3100 = vmax.f32 %v2743, %v3083
    %v3101 = vmax.f32 %v2755, %v3085
    %v3102 = vmax.f32 %v2767, %v3087
    %v3103 = vmax.f32 %v2779, %v3089
    %v3104 = vmax.f32 %v2791, %v3091
    %v3105 = vmax.f32 %v2803, %v3093
    %3112 = vrot.lane.b32.xlu0 %v2744, 64
    %v3113 = vpop.permute.xlu0 %3112
    %3114 = vrot.lane.b32.xlu0 %v2756, 64
    %v3115 = vpop.permute.xlu0 %3114
    %3116 = vrot.lane.b32.xlu0 %v2768, 64
    %v3117 = vpop.permute.xlu0 %3116
    %3118 = vrot.lane.b32.xlu0 %v2780, 64
    %v3119 = vpop.permute.xlu0 %3118
    %3120 = vrot.lane.b32.xlu0 %v2792, 64
    %v3121 = vpop.permute.xlu0 %3120
    %3122 = vrot.lane.b32.xlu0 %v2804, 64
    %v3123 = vpop.permute.xlu0 %3122
    %v3130 = vmax.f32 %v2744, %v3113
    %v3131 = vmax.f32 %v2756, %v3115
    %v3132 = vmax.f32 %v2768, %v3117
    %v3133 = vmax.f32 %v2780, %v3119
    %v3134 = vmax.f32 %v2792, %v3121
    %v3135 = vmax.f32 %v2804, %v3123
    %3142 = vrot.lane.b32.xlu0 %v2745, 64
    %v3143 = vpop.permute.xlu0 %3142
    %3144 = vrot.lane.b32.xlu0 %v2757, 64
    %v3145 = vpop.permute.xlu0 %3144
    %3146 = vrot.lane.b32.xlu0 %v2769, 64
    %v3147 = vpop.permute.xlu0 %3146
    %3148 = vrot.lane.b32.xlu0 %v2781, 64
    %v3149 = vpop.permute.xlu0 %3148
    %3150 = vrot.lane.b32.xlu0 %v2793, 64
    %v3151 = vpop.permute.xlu0 %3150
    %3152 = vrot.lane.b32.xlu0 %v2805, 64
    %v3153 = vpop.permute.xlu0 %3152
    %v3160 = vmax.f32 %v2745, %v3143
    %v3161 = vmax.f32 %v2757, %v3145
    %v3162 = vmax.f32 %v2769, %v3147
    %v3163 = vmax.f32 %v2781, %v3149
    %v3164 = vmax.f32 %v2793, %v3151
    %v3165 = vmax.f32 %v2805, %v3153
    %3172 = vrot.lane.b32.xlu0 %v2860, 64
    %v3173 = vpop.permute.xlu0 %3172
    %3174 = vrot.lane.b32.xlu0 %v2861, 64
    %v3175 = vpop.permute.xlu0 %3174
    %3176 = vrot.lane.b32.xlu0 %v2862, 64
    %v3177 = vpop.permute.xlu0 %3176
    %3178 = vrot.lane.b32.xlu0 %v2863, 64
    %v3179 = vpop.permute.xlu0 %3178
    %3180 = vrot.lane.b32.xlu0 %v2864, 64
    %v3181 = vpop.permute.xlu0 %3180
    %3182 = vrot.lane.b32.xlu0 %v2865, 64
    %v3183 = vpop.permute.xlu0 %3182
    %3196 = vrot.lane.b32.xlu0 %v2920, 64
    %v3197 = vpop.permute.xlu0 %3196
    %3198 = vrot.lane.b32.xlu0 %v2921, 64
    %v3199 = vpop.permute.xlu0 %3198
    %3200 = vrot.lane.b32.xlu0 %v2922, 64
    %v3201 = vpop.permute.xlu0 %3200
    %3202 = vrot.lane.b32.xlu0 %v2923, 64
    %v3203 = vpop.permute.xlu0 %3202
    %3204 = vrot.lane.b32.xlu0 %v2924, 64
    %v3205 = vpop.permute.xlu0 %3204
    %3206 = vrot.lane.b32.xlu0 %v2925, 64
    %v3207 = vpop.permute.xlu0 %3206
    %3220 = vrot.lane.b32.xlu0 %v2980, 64
    %v3221 = vpop.permute.xlu0 %3220
    %3222 = vrot.lane.b32.xlu0 %v2981, 64
    %v3223 = vpop.permute.xlu0 %3222
    %3224 = vrot.lane.b32.xlu0 %v2982, 64
    %v3225 = vpop.permute.xlu0 %3224
    %3226 = vrot.lane.b32.xlu0 %v2983, 64
    %v3227 = vpop.permute.xlu0 %3226
    %3228 = vrot.lane.b32.xlu0 %v2984, 64
    %v3229 = vpop.permute.xlu0 %3228
    %3230 = vrot.lane.b32.xlu0 %v2985, 64
    %v3231 = vpop.permute.xlu0 %3230
    %3244 = vrot.lane.b32.xlu0 %v3040, 64
    %v3245 = vpop.permute.xlu0 %3244
    %3246 = vrot.lane.b32.xlu0 %v3041, 64
    %v3247 = vpop.permute.xlu0 %3246
    %3248 = vrot.lane.b32.xlu0 %v3042, 64
    %v3249 = vpop.permute.xlu0 %3248
    %3250 = vrot.lane.b32.xlu0 %v3043, 64
    %v3251 = vpop.permute.xlu0 %3250
    %3252 = vrot.lane.b32.xlu0 %v3044, 64
    %v3253 = vpop.permute.xlu0 %3252
    %3254 = vrot.lane.b32.xlu0 %v3045, 64
    %v3255 = vpop.permute.xlu0 %3254
    %3268 = vrot.lane.b32.xlu0 %v3100, 64
    %v3269 = vpop.permute.xlu0 %3268
    %3270 = vrot.lane.b32.xlu0 %v3101, 64
    %v3271 = vpop.permute.xlu0 %3270
    %3272 = vrot.lane.b32.xlu0 %v3102, 64
    %v3273 = vpop.permute.xlu0 %3272
    %3274 = vrot.lane.b32.xlu0 %v3103, 64
    %v3275 = vpop.permute.xlu0 %3274
    %3276 = vrot.lane.b32.xlu0 %v3104, 64
    %v3277 = vpop.permute.xlu0 %3276
    %3278 = vrot.lane.b32.xlu0 %v3105, 64
    %v3279 = vpop.permute.xlu0 %3278
    %3292 = vrot.lane.b32.xlu0 %v3160, 64
    %v3293 = vpop.permute.xlu0 %3292
    %3294 = vrot.lane.b32.xlu0 %v3161, 64
    %v3295 = vpop.permute.xlu0 %3294
    %3296 = vrot.lane.b32.xlu0 %v3162, 64
    %v3297 = vpop.permute.xlu0 %3296
    %3298 = vrot.lane.b32.xlu0 %v3163, 64
    %v3299 = vpop.permute.xlu0 %3298
    %3300 = vrot.lane.b32.xlu0 %v3164, 64
    %v3301 = vpop.permute.xlu0 %3300
    %3302 = vrot.lane.b32.xlu0 %v3165, 64
    %v3303 = vpop.permute.xlu0 %3302
    %vm3310 = vcmask 523264
    %v3311 = vsel %vm3310, %v2830, %v3173
    %v3312 = vsel %vm3310, %v2831, %v3175
    %v3313 = vsel %vm3310, %v2832, %v3177
    %v3314 = vsel %vm3310, %v2833, %v3179
    %v3315 = vsel %vm3310, %v2834, %v3181
    %v3316 = vsel %vm3310, %v2835, %v3183
    %v3317 = vsel %vm3310, %v2890, %v3197
    %v3318 = vsel %vm3310, %v2891, %v3199
    %v3319 = vsel %vm3310, %v2892, %v3201
    %v3320 = vsel %vm3310, %v2893, %v3203
    %v3321 = vsel %vm3310, %v2894, %v3205
    %v3322 = vsel %vm3310, %v2895, %v3207
    %v3323 = vsel %vm3310, %v2950, %v3221
    %v3324 = vsel %vm3310, %v2951, %v3223
    %v3325 = vsel %vm3310, %v2952, %v3225
    %v3326 = vsel %vm3310, %v2953, %v3227
    %v3327 = vsel %vm3310, %v2954, %v3229
    %v3328 = vsel %vm3310, %v2955, %v3231
    %v3329 = vsel %vm3310, %v3010, %v3245
    %v3330 = vsel %vm3310, %v3011, %v3247
    %v3331 = vsel %vm3310, %v3012, %v3249
    %v3332 = vsel %vm3310, %v3013, %v3251
    %v3333 = vsel %vm3310, %v3014, %v3253
    %v3334 = vsel %vm3310, %v3015, %v3255
    %v3335 = vsel %vm3310, %v3070, %v3269
    %v3336 = vsel %vm3310, %v3071, %v3271
    %v3337 = vsel %vm3310, %v3072, %v3273
    %v3338 = vsel %vm3310, %v3073, %v3275
    %v3339 = vsel %vm3310, %v3074, %v3277
    %v3340 = vsel %vm3310, %v3075, %v3279
    %v3341 = vsel %vm3310, %v3130, %v3293
    %v3342 = vsel %vm3310, %v3131, %v3295
    %v3343 = vsel %vm3310, %v3132, %v3297
    %v3344 = vsel %vm3310, %v3133, %v3299
    %v3345 = vsel %vm3310, %v3134, %v3301
    %v3346 = vsel %vm3310, %v3135, %v3303
    %v3383 = vrot.slane %v3317, 6
    %v3384 = vrot.slane %v3323, 4
    %v3385 = vrot.slane %v3329, 2
    %v3386 = vrot.slane %v3341, 6
    %v3387 = vrot.slane %v3318, 6
    %v3388 = vrot.slane %v3324, 4
    %v3389 = vrot.slane %v3330, 2
    %v3390 = vrot.slane %v3342, 6
    %v3391 = vrot.slane %v3319, 6
    %v3392 = vrot.slane %v3325, 4
    %v3393 = vrot.slane %v3331, 2
    %v3394 = vrot.slane %v3343, 6
    %v3395 = vrot.slane %v3320, 6
    %v3396 = vrot.slane %v3326, 4
    %v3397 = vrot.slane %v3332, 2
    %v3398 = vrot.slane %v3344, 6
    %v3399 = vrot.slane %v3321, 6
    %v3400 = vrot.slane %v3327, 4
    %v3401 = vrot.slane %v3333, 2
    %v3402 = vrot.slane %v3345, 6
    %v3403 = vrot.slane %v3322, 6
    %v3404 = vrot.slane %v3328, 4
    %v3405 = vrot.slane %v3334, 2
    %v3406 = vrot.slane %v3346, 6
    %vm3407 = vcmask 1041408
    %v3408 = vsel %vm3407, %v3311, %v3383
    %vm3409 = vcmask 1045508
    %v3410 = vsel %vm3409, %v3384, %v3385
    %v3411 = vsel %vm2144, %v3408, %v3410
    %v3412 = vsel %vm3407, %v3335, %v3386
    %vm3413 = vcmask 1043458
    %v3414 = vsel %vm3413, %v3311, %v3383
    %v3415 = vsel %vm255, %v3385, %v3384
    %vm3416 = vcmask 1045506
    %v3417 = vsel %vm3416, %v3414, %v3415
    %v3418 = vrot.slane %v3417, 2
    %v3419 = vsel %vm3413, %v3335, %v3386
    %v3420 = vrot.slane %v3419, 2
    %v3421 = vsel %vm3409, %v3311, %v3383
    %v3422 = vsel %vm3407, %v3384, %v3385
    %v3423 = vsel %vm2144, %v3422, %v3421
    %v3424 = vrot.slane %v3423, 4
    %v3425 = vsel %vm3409, %v3335, %v3386
    %v3426 = vrot.slane %v3425, 4
    %v3427 = vsel %vm255, %v3383, %v3311
    %v3428 = vsel %vm3413, %v3384, %v3385
    %v3429 = vsel %vm3416, %v3428, %v3427
    %v3430 = vrot.slane %v3429, 6
    %v3431 = vsel %vm255, %v3386, %v3335
    %v3432 = vrot.slane %v3431, 6
    %v3433 = vsel %vm3407, %v3312, %v3387
    %v3434 = vsel %vm3409, %v3388, %v3389
    %v3435 = vsel %vm2144, %v3433, %v3434
    %v3436 = vsel %vm3407, %v3336, %v3390
    %v3437 = vsel %vm3413, %v3312, %v3387
    %v3438 = vsel %vm255, %v3389, %v3388
    %v3439 = vsel %vm3416, %v3437, %v3438
    %v3440 = vrot.slane %v3439, 2
    %v3441 = vsel %vm3413, %v3336, %v3390
    %v3442 = vrot.slane %v3441, 2
    %v3443 = vsel %vm3409, %v3312, %v3387
    %v3444 = vsel %vm3407, %v3388, %v3389
    %v3445 = vsel %vm2144, %v3444, %v3443
    %v3446 = vrot.slane %v3445, 4
    %v3447 = vsel %vm3409, %v3336, %v3390
    %v3448 = vrot.slane %v3447, 4
    %v3449 = vsel %vm255, %v3387, %v3312
    %v3450 = vsel %vm3413, %v3388, %v3389
    %v3451 = vsel %vm3416, %v3450, %v3449
    %v3452 = vrot.slane %v3451, 6
    %v3453 = vsel %vm255, %v3390, %v3336
    %v3454 = vrot.slane %v3453, 6
    %v3455 = vsel %vm3407, %v3313, %v3391
    %v3456 = vsel %vm3409, %v3392, %v3393
    %v3457 = vsel %vm2144, %v3455, %v3456
    %v3458 = vsel %vm3407, %v3337, %v3394
    %v3459 = vsel %vm3413, %v3313, %v3391
    %v3460 = vsel %vm255, %v3393, %v3392
    %v3461 = vsel %vm3416, %v3459, %v3460
    %v3462 = vrot.slane %v3461, 2
    %v3463 = vsel %vm3413, %v3337, %v3394
    %v3464 = vrot.slane %v3463, 2
    %v3465 = vsel %vm3409, %v3313, %v3391
    %v3466 = vsel %vm3407, %v3392, %v3393
    %v3467 = vsel %vm2144, %v3466, %v3465
    %v3468 = vrot.slane %v3467, 4
    %v3469 = vsel %vm3409, %v3337, %v3394
    %v3470 = vrot.slane %v3469, 4
    %v3471 = vsel %vm255, %v3391, %v3313
    %v3472 = vsel %vm3413, %v3392, %v3393
    %v3473 = vsel %vm3416, %v3472, %v3471
    %v3474 = vrot.slane %v3473, 6
    %v3475 = vsel %vm255, %v3394, %v3337
    %v3476 = vrot.slane %v3475, 6
    %v3477 = vsel %vm3407, %v3314, %v3395
    %v3478 = vsel %vm3409, %v3396, %v3397
    %v3479 = vsel %vm2144, %v3477, %v3478
    %v3480 = vsel %vm3407, %v3338, %v3398
    %v3481 = vsel %vm3413, %v3314, %v3395
    %v3482 = vsel %vm255, %v3397, %v3396
    %v3483 = vsel %vm3416, %v3481, %v3482
    %v3484 = vrot.slane %v3483, 2
    %v3485 = vsel %vm3413, %v3338, %v3398
    %v3486 = vrot.slane %v3485, 2
    %v3487 = vsel %vm3409, %v3314, %v3395
    %v3488 = vsel %vm3407, %v3396, %v3397
    %v3489 = vsel %vm2144, %v3488, %v3487
    %v3490 = vrot.slane %v3489, 4
    %v3491 = vsel %vm3409, %v3338, %v3398
    %v3492 = vrot.slane %v3491, 4
    %v3493 = vsel %vm255, %v3395, %v3314
    %v3494 = vsel %vm3413, %v3396, %v3397
    %v3495 = vsel %vm3416, %v3494, %v3493
    %v3496 = vrot.slane %v3495, 6
    %v3497 = vsel %vm255, %v3398, %v3338
    %v3498 = vrot.slane %v3497, 6
    %v3499 = vsel %vm3407, %v3315, %v3399
    %v3500 = vsel %vm3409, %v3400, %v3401
    %v3501 = vsel %vm2144, %v3499, %v3500
    %v3502 = vsel %vm3407, %v3339, %v3402
    %v3503 = vsel %vm3413, %v3315, %v3399
    %v3504 = vsel %vm255, %v3401, %v3400
    %v3505 = vsel %vm3416, %v3503, %v3504
    %v3506 = vrot.slane %v3505, 2
    %v3507 = vsel %vm3413, %v3339, %v3402
    %v3508 = vrot.slane %v3507, 2
    %v3509 = vsel %vm3409, %v3315, %v3399
    %v3510 = vsel %vm3407, %v3400, %v3401
    %v3511 = vsel %vm2144, %v3510, %v3509
    %v3512 = vrot.slane %v3511, 4
    %v3513 = vsel %vm3409, %v3339, %v3402
    %v3514 = vrot.slane %v3513, 4
    %v3515 = vsel %vm255, %v3399, %v3315
    %v3516 = vsel %vm3413, %v3400, %v3401
    %v3517 = vsel %vm3416, %v3516, %v3515
    %v3518 = vrot.slane %v3517, 6
    %v3519 = vsel %vm255, %v3402, %v3339
    %v3520 = vrot.slane %v3519, 6
    %v3521 = vsel %vm3407, %v3316, %v3403
    %v3522 = vsel %vm3409, %v3404, %v3405
    %v3523 = vsel %vm2144, %v3521, %v3522
    %v3524 = vsel %vm3407, %v3340, %v3406
    %v3525 = vsel %vm3413, %v3316, %v3403
    %v3526 = vsel %vm255, %v3405, %v3404
    %v3527 = vsel %vm3416, %v3525, %v3526
    %v3528 = vrot.slane %v3527, 2
    %v3529 = vsel %vm3413, %v3340, %v3406
    %v3530 = vrot.slane %v3529, 2
    %v3531 = vsel %vm3409, %v3316, %v3403
    %v3532 = vsel %vm3407, %v3404, %v3405
    %v3533 = vsel %vm2144, %v3532, %v3531
    %v3534 = vrot.slane %v3533, 4
    %v3535 = vsel %vm3409, %v3340, %v3406
    %v3536 = vrot.slane %v3535, 4
    %v3537 = vsel %vm255, %v3403, %v3316
    %v3538 = vsel %vm3413, %v3404, %v3405
    %v3539 = vsel %vm3416, %v3538, %v3537
    %v3540 = vrot.slane %v3539, 6
    %v3541 = vsel %vm255, %v3406, %v3340
    %v3542 = vrot.slane %v3541, 6
    %v3591 = vrot.slane %v3411, 7
    %v3592 = vrot.slane %v3591, 2
    %v3593 = vrot.slane %v3412, 7
    %v3594 = vrot.slane %v3593, 2
    %v3595 = vrot.slane %v3418, 7
    %v3596 = vrot.slane %v3595, 2
    %v3597 = vrot.slane %v3420, 7
    %v3598 = vrot.slane %v3597, 2
    %v3599 = vrot.slane %v3424, 7
    %v3600 = vrot.slane %v3599, 2
    %v3601 = vrot.slane %v3426, 7
    %v3602 = vrot.slane %v3601, 2
    %v3603 = vrot.slane %v3430, 7
    %v3604 = vrot.slane %v3603, 2
    %v3605 = vrot.slane %v3432, 7
    %v3606 = vrot.slane %v3605, 2
    %v3607 = vrot.slane %v3435, 7
    %v3608 = vrot.slane %v3607, 2
    %v3609 = vrot.slane %v3436, 7
    %v3610 = vrot.slane %v3609, 2
    %v3611 = vrot.slane %v3440, 7
    %v3612 = vrot.slane %v3611, 2
    %v3613 = vrot.slane %v3442, 7
    %v3614 = vrot.slane %v3613, 2
    %v3615 = vrot.slane %v3446, 7
    %v3616 = vrot.slane %v3615, 2
    %v3617 = vrot.slane %v3448, 7
    %v3618 = vrot.slane %v3617, 2
    %v3619 = vrot.slane %v3452, 7
    %v3620 = vrot.slane %v3619, 2
    %v3621 = vrot.slane %v3454, 7
    %v3622 = vrot.slane %v3621, 2
    %v3623 = vrot.slane %v3457, 7
    %v3624 = vrot.slane %v3623, 2
    %v3625 = vrot.slane %v3458, 7
    %v3626 = vrot.slane %v3625, 2
    %v3627 = vrot.slane %v3462, 7
    %v3628 = vrot.slane %v3627, 2
    %v3629 = vrot.slane %v3464, 7
    %v3630 = vrot.slane %v3629, 2
    %v3631 = vrot.slane %v3468, 7
    %v3632 = vrot.slane %v3631, 2
    %v3633 = vrot.slane %v3470, 7
    %v3634 = vrot.slane %v3633, 2
    %v3635 = vrot.slane %v3474, 7
    %v3636 = vrot.slane %v3635, 2
    %v3637 = vrot.slane %v3476, 7
    %v3638 = vrot.slane %v3637, 2
    %v3639 = vrot.slane %v3479, 7
    %v3640 = vrot.slane %v3639, 2
    %v3641 = vrot.slane %v3480, 7
    %v3642 = vrot.slane %v3641, 2
    %v3643 = vrot.slane %v3484, 7
    %v3644 = vrot.slane %v3643, 2
    %v3645 = vrot.slane %v3486, 7
    %v3646 = vrot.slane %v3645, 2
    %v3647 = vrot.slane %v3490, 7
    %v3648 = vrot.slane %v3647, 2
    %v3649 = vrot.slane %v3492, 7
    %v3650 = vrot.slane %v3649, 2
    %v3651 = vrot.slane %v3496, 7
    %v3652 = vrot.slane %v3651, 2
    %v3653 = vrot.slane %v3498, 7
    %v3654 = vrot.slane %v3653, 2
    %v3655 = vrot.slane %v3501, 7
    %v3656 = vrot.slane %v3655, 2
    %v3657 = vrot.slane %v3502, 7
    %v3658 = vrot.slane %v3657, 2
    %v3659 = vrot.slane %v3506, 7
    %v3660 = vrot.slane %v3659, 2
    %v3661 = vrot.slane %v3508, 7
    %v3662 = vrot.slane %v3661, 2
    %v3663 = vrot.slane %v3512, 7
    %v3664 = vrot.slane %v3663, 2
    %v3665 = vrot.slane %v3514, 7
    %v3666 = vrot.slane %v3665, 2
    %v3667 = vrot.slane %v3518, 7
    %v3668 = vrot.slane %v3667, 2
    %v3669 = vrot.slane %v3520, 7
    %v3670 = vrot.slane %v3669, 2
    %v3671 = vrot.slane %v3523, 7
    %v3672 = vrot.slane %v3671, 2
    %v3673 = vrot.slane %v3524, 7
    %v3674 = vrot.slane %v3673, 2
    %v3675 = vrot.slane %v3528, 7
    %v3676 = vrot.slane %v3675, 2
    %v3677 = vrot.slane %v3530, 7
    %v3678 = vrot.slane %v3677, 2
    %v3679 = vrot.slane %v3534, 7
    %v3680 = vrot.slane %v3679, 2
    %v3681 = vrot.slane %v3536, 7
    %v3682 = vrot.slane %v3681, 2
    %v3683 = vrot.slane %v3540, 7
    %v3684 = vrot.slane %v3683, 2
    %v3685 = vrot.slane %v3542, 7
    %v3686 = vrot.slane %v3685, 2
    %v3735 = vmax.f32 %v3411, %v3592
    %v3736 = vmax.f32 %v3412, %v3594
    %v3737 = vmax.f32 %v3418, %v3596
    %v3738 = vmax.f32 %v3420, %v3598
    %v3739 = vmax.f32 %v3424, %v3600
    %v3740 = vmax.f32 %v3426, %v3602
    %v3741 = vmax.f32 %v3430, %v3604
    %v3742 = vmax.f32 %v3432, %v3606
    %v3743 = vmax.f32 %v3435, %v3608
    %v3744 = vmax.f32 %v3436, %v3610
    %v3745 = vmax.f32 %v3440, %v3612
    %v3746 = vmax.f32 %v3442, %v3614
    %v3747 = vmax.f32 %v3446, %v3616
    %v3748 = vmax.f32 %v3448, %v3618
    %v3749 = vmax.f32 %v3452, %v3620
    %v3750 = vmax.f32 %v3454, %v3622
    %v3751 = vmax.f32 %v3457, %v3624
    %v3752 = vmax.f32 %v3458, %v3626
    %v3753 = vmax.f32 %v3462, %v3628
    %v3754 = vmax.f32 %v3464, %v3630
    %v3755 = vmax.f32 %v3468, %v3632
    %v3756 = vmax.f32 %v3470, %v3634
    %v3757 = vmax.f32 %v3474, %v3636
    %v3758 = vmax.f32 %v3476, %v3638
    %v3759 = vmax.f32 %v3479, %v3640
    %v3760 = vmax.f32 %v3480, %v3642
    %v3761 = vmax.f32 %v3484, %v3644
    %v3762 = vmax.f32 %v3486, %v3646
    %v3763 = vmax.f32 %v3490, %v3648
    %v3764 = vmax.f32 %v3492, %v3650
    %v3765 = vmax.f32 %v3496, %v3652
    %v3766 = vmax.f32 %v3498, %v3654
    %v3767 = vmax.f32 %v3501, %v3656
    %v3768 = vmax.f32 %v3502, %v3658
    %v3769 = vmax.f32 %v3506, %v3660
    %v3770 = vmax.f32 %v3508, %v3662
    %v3771 = vmax.f32 %v3512, %v3664
    %v3772 = vmax.f32 %v3514, %v3666
    %v3773 = vmax.f32 %v3518, %v3668
    %v3774 = vmax.f32 %v3520, %v3670
    %v3775 = vmax.f32 %v3523, %v3672
    %v3776 = vmax.f32 %v3524, %v3674
    %v3777 = vmax.f32 %v3528, %v3676
    %v3778 = vmax.f32 %v3530, %v3678
    %v3779 = vmax.f32 %v3534, %v3680
    %v3780 = vmax.f32 %v3536, %v3682
    %v3781 = vmax.f32 %v3540, %v3684
    %v3782 = vmax.f32 %v3542, %v3686
    %v3783 = vmax.f32 %v3735, 0.0
    %v3784 = vmax.f32 %v3736, 0.0
    %v3785 = vmax.f32 %v3737, 0.0
    %v3786 = vmax.f32 %v3738, 0.0
    %v3787 = vmax.f32 %v3739, 0.0
    %v3788 = vmax.f32 %v3740, 0.0
    %v3789 = vmax.f32 %v3741, 0.0
    %v3790 = vmax.f32 %v3742, 0.0
    %v3791 = vmax.f32 %v3743, 0.0
    %v3792 = vmax.f32 %v3744, 0.0
    %v3793 = vmax.f32 %v3745, 0.0
    %v3794 = vmax.f32 %v3746, 0.0
    %v3795 = vmax.f32 %v3747, 0.0
    %v3796 = vmax.f32 %v3748, 0.0
    %v3797 = vmax.f32 %v3749, 0.0
    %v3798 = vmax.f32 %v3750, 0.0
    %v3799 = vmax.f32 %v3751, 0.0
    %v3800 = vmax.f32 %v3752, 0.0
    %v3801 = vmax.f32 %v3753, 0.0
    %v3802 = vmax.f32 %v3754, 0.0
    %v3803 = vmax.f32 %v3755, 0.0
    %v3804 = vmax.f32 %v3756, 0.0
    %v3805 = vmax.f32 %v3757, 0.0
    %v3806 = vmax.f32 %v3758, 0.0
    %v3807 = vmax.f32 %v3759, 0.0
    %v3808 = vmax.f32 %v3760, 0.0
    %v3809 = vmax.f32 %v3761, 0.0
    %v3810 = vmax.f32 %v3762, 0.0
    %v3811 = vmax.f32 %v3763, 0.0
    %v3812 = vmax.f32 %v3764, 0.0
    %v3813 = vmax.f32 %v3765, 0.0
    %v3814 = vmax.f32 %v3766, 0.0
    %v3815 = vmax.f32 %v3767, 0.0
    %v3816 = vmax.f32 %v3768, 0.0
    %v3817 = vmax.f32 %v3769, 0.0
    %v3818 = vmax.f32 %v3770, 0.0
    %v3819 = vmax.f32 %v3771, 0.0
    %v3820 = vmax.f32 %v3772, 0.0
    %v3821 = vmax.f32 %v3773, 0.0
    %v3822 = vmax.f32 %v3774, 0.0
    %v3823 = vmax.f32 %v3775, 0.0
    %v3824 = vmax.f32 %v3776, 0.0
    %v3825 = vmax.f32 %v3777, 0.0
    %v3826 = vmax.f32 %v3778, 0.0
    %v3827 = vmax.f32 %v3779, 0.0
    %v3828 = vmax.f32 %v3780, 0.0
    %v3829 = vmax.f32 %v3781, 0.0
    %v3830 = vmax.f32 %v3782, 0.0
    %v3879 = vperm.slane %v3783, 0
    %v3880 = vperm.slane %v3783, 2
    %v3881 = vperm.slane %v3783, 4
    %v3882 = vperm.slane %v3783, 6
    %v3883 = vperm.slane %v3784, 0
    %v3884 = vperm.slane %v3784, 2
    %v3885 = vperm.slane %v3785, 0
    %v3886 = vperm.slane %v3785, 2
    %v3887 = vperm.slane %v3785, 4
    %v3888 = vperm.slane %v3785, 6
    %v3889 = vperm.slane %v3786, 0
    %v3890 = vperm.slane %v3786, 2
    %v3891 = vperm.slane %v3787, 0
    %v3892 = vperm.slane %v3787, 2
    %v3893 = vperm.slane %v3787, 4
    %v3894 = vperm.slane %v3787, 6
    %v3895 = vperm.slane %v3788, 0
    %v3896 = vperm.slane %v3788, 2
    %v3897 = vperm.slane %v3789, 0
    %v3898 = vperm.slane %v3789, 2
    %v3899 = vperm.slane %v3789, 4
    %v3900 = vperm.slane %v3789, 6
    %v3901 = vperm.slane %v3790, 0
    %v3902 = vperm.slane %v3790, 2
    %v3903 = vperm.slane %v3791, 0
    %v3904 = vperm.slane %v3791, 2
    %v3905 = vperm.slane %v3791, 4
    %v3906 = vperm.slane %v3791, 6
    %v3907 = vperm.slane %v3792, 0
    %v3908 = vperm.slane %v3792, 2
    %v3909 = vperm.slane %v3793, 0
    %v3910 = vperm.slane %v3793, 2
    %v3911 = vperm.slane %v3793, 4
    %v3912 = vperm.slane %v3793, 6
    %v3913 = vperm.slane %v3794, 0
    %v3914 = vperm.slane %v3794, 2
    %v3915 = vperm.slane %v3795, 0
    %v3916 = vperm.slane %v3795, 2
    %v3917 = vperm.slane %v3795, 4
    %v3918 = vperm.slane %v3795, 6
    %v3919 = vperm.slane %v3796, 0
    %v3920 = vperm.slane %v3796, 2
    %v3921 = vperm.slane %v3797, 0
    %v3922 = vperm.slane %v3797, 2
    %v3923 = vperm.slane %v3797, 4
    %v3924 = vperm.slane %v3797, 6
    %v3925 = vperm.slane %v3798, 0
    %v3926 = vperm.slane %v3798, 2
    %v3927 = vperm.slane %v3799, 0
    %v3928 = vperm.slane %v3799, 2
    %v3929 = vperm.slane %v3799, 4
    %v3930 = vperm.slane %v3799, 6
    %v3931 = vperm.slane %v3800, 0
    %v3932 = vperm.slane %v3800, 2
    %v3933 = vperm.slane %v3801, 0
    %v3934 = vperm.slane %v3801, 2
    %v3935 = vperm.slane %v3801, 4
    %v3936 = vperm.slane %v3801, 6
    %v3937 = vperm.slane %v3802, 0
    %v3938 = vperm.slane %v3802, 2
    %v3939 = vperm.slane %v3803, 0
    %v3940 = vperm.slane %v3803, 2
    %v3941 = vperm.slane %v3803, 4
    %v3942 = vperm.slane %v3803, 6
    %v3943 = vperm.slane %v3804, 0
    %v3944 = vperm.slane %v3804, 2
    %v3945 = vperm.slane %v3805, 0
    %v3946 = vperm.slane %v3805, 2
    %v3947 = vperm.slane %v3805, 4
    %v3948 = vperm.slane %v3805, 6
    %v3949 = vperm.slane %v3806, 0
    %v3950 = vperm.slane %v3806, 2
    %v3951 = vperm.slane %v3807, 0
    %v3952 = vperm.slane %v3807, 2
    %v3953 = vperm.slane %v3807, 4
    %v3954 = vperm.slane %v3807, 6
    %v3955 = vperm.slane %v3808, 0
    %v3956 = vperm.slane %v3808, 2
    %v3957 = vperm.slane %v3809, 0
    %v3958 = vperm.slane %v3809, 2
    %v3959 = vperm.slane %v3809, 4
    %v3960 = vperm.slane %v3809, 6
    %v3961 = vperm.slane %v3810, 0
    %v3962 = vperm.slane %v3810, 2
    %v3963 = vperm.slane %v3811, 0
    %v3964 = vperm.slane %v3811, 2
    %v3965 = vperm.slane %v3811, 4
    %v3966 = vperm.slane %v3811, 6
    %v3967 = vperm.slane %v3812, 0
    %v3968 = vperm.slane %v3812, 2
    %v3969 = vperm.slane %v3813, 0
    %v3970 = vperm.slane %v3813, 2
    %v3971 = vperm.slane %v3813, 4
    %v3972 = vperm.slane %v3813, 6
    %v3973 = vperm.slane %v3814, 0
    %v3974 = vperm.slane %v3814, 2
    %v3975 = vperm.slane %v3815, 0
    %v3976 = vperm.slane %v3815, 2
    %v3977 = vperm.slane %v3815, 4
    %v3978 = vperm.slane %v3815, 6
    %v3979 = vperm.slane %v3816, 0
    %v3980 = vperm.slane %v3816, 2
    %v3981 = vperm.slane %v3817, 0
    %v3982 = vperm.slane %v3817, 2
    %v3983 = vperm.slane %v3817, 4
    %v3984 = vperm.slane %v3817, 6
    %v3985 = vperm.slane %v3818, 0
    %v3986 = vperm.slane %v3818, 2
    %v3987 = vperm.slane %v3819, 0
    %v3988 = vperm.slane %v3819, 2
    %v3989 = vperm.slane %v3819, 4
    %v3990 = vperm.slane %v3819, 6
    %v3991 = vperm.slane %v3820, 0
    %v3992 = vperm.slane %v3820, 2
    %v3993 = vperm.slane %v3821, 0
    %v3994 = vperm.slane %v3821, 2
    %v3995 = vperm.slane %v3821, 4
    %v3996 = vperm.slane %v3821, 6
    %v3997 = vperm.slane %v3822, 0
    %v3998 = vperm.slane %v3822, 2
    %v3999 = vperm.slane %v3823, 0
    %v4000 = vperm.slane %v3823, 2
    %v4001 = vperm.slane %v3823, 4
    %v4002 = vperm.slane %v3823, 6
    %v4003 = vperm.slane %v3824, 0
    %v4004 = vperm.slane %v3824, 2
    %v4005 = vperm.slane %v3825, 0
    %v4006 = vperm.slane %v3825, 2
    %v4007 = vperm.slane %v3825, 4
    %v4008 = vperm.slane %v3825, 6
    %v4009 = vperm.slane %v3826, 0
    %v4010 = vperm.slane %v3826, 2
    %v4011 = vperm.slane %v3827, 0
    %v4012 = vperm.slane %v3827, 2
    %v4013 = vperm.slane %v3827, 4
    %v4014 = vperm.slane %v3827, 6
    %v4015 = vperm.slane %v3828, 0
    %v4016 = vperm.slane %v3828, 2
    %v4017 = vperm.slane %v3829, 0
    %v4018 = vperm.slane %v3829, 2
    %v4019 = vperm.slane %v3829, 4
    %v4020 = vperm.slane %v3829, 6
    %v4021 = vperm.slane %v3830, 0
    %v4022 = vperm.slane %v3830, 2
    %v4167 = vpack.c.bf16 %v3880, %v3879
    %v4168 = vpack.c.bf16 %v3882, %v3881
    %v4169 = vpack.c.bf16 %v3884, %v3883
    %v4170 = vpack.c.bf16 %v3886, %v3885
    %v4171 = vpack.c.bf16 %v3888, %v3887
    %v4172 = vpack.c.bf16 %v3890, %v3889
    %v4173 = vpack.c.bf16 %v3892, %v3891
    %v4174 = vpack.c.bf16 %v3894, %v3893
    %v4175 = vpack.c.bf16 %v3896, %v3895
    %v4176 = vpack.c.bf16 %v3898, %v3897
    %v4177 = vpack.c.bf16 %v3900, %v3899
    %v4178 = vpack.c.bf16 %v3902, %v3901
    %v4179 = vpack.c.bf16 %v3904, %v3903
    %v4180 = vpack.c.bf16 %v3906, %v3905
    %v4181 = vpack.c.bf16 %v3908, %v3907
    %v4182 = vpack.c.bf16 %v3910, %v3909
    %v4183 = vpack.c.bf16 %v3912, %v3911
    %v4184 = vpack.c.bf16 %v3914, %v3913
    %v4185 = vpack.c.bf16 %v3916, %v3915
    %v4186 = vpack.c.bf16 %v3918, %v3917
    %v4187 = vpack.c.bf16 %v3920, %v3919
    %v4188 = vpack.c.bf16 %v3922, %v3921
    %v4189 = vpack.c.bf16 %v3924, %v3923
    %v4190 = vpack.c.bf16 %v3926, %v3925
    %v4191 = vpack.c.bf16 %v3928, %v3927
    %v4192 = vpack.c.bf16 %v3930, %v3929
    %v4193 = vpack.c.bf16 %v3932, %v3931
    %v4194 = vpack.c.bf16 %v3934, %v3933
    %v4195 = vpack.c.bf16 %v3936, %v3935
    %v4196 = vpack.c.bf16 %v3938, %v3937
    %v4197 = vpack.c.bf16 %v3940, %v3939
    %v4198 = vpack.c.bf16 %v3942, %v3941
    %v4199 = vpack.c.bf16 %v3944, %v3943
    %v4200 = vpack.c.bf16 %v3946, %v3945
    %v4201 = vpack.c.bf16 %v3948, %v3947
    %v4202 = vpack.c.bf16 %v3950, %v3949
    %v4203 = vpack.c.bf16 %v3952, %v3951
    %v4204 = vpack.c.bf16 %v3954, %v3953
    %v4205 = vpack.c.bf16 %v3956, %v3955
    %v4206 = vpack.c.bf16 %v3958, %v3957
    %v4207 = vpack.c.bf16 %v3960, %v3959
    %v4208 = vpack.c.bf16 %v3962, %v3961
    %v4209 = vpack.c.bf16 %v3964, %v3963
    %v4210 = vpack.c.bf16 %v3966, %v3965
    %v4211 = vpack.c.bf16 %v3968, %v3967
    %v4212 = vpack.c.bf16 %v3970, %v3969
    %v4213 = vpack.c.bf16 %v3972, %v3971
    %v4214 = vpack.c.bf16 %v3974, %v3973
    %v4215 = vpack.c.bf16 %v3976, %v3975
    %v4216 = vpack.c.bf16 %v3978, %v3977
    %v4217 = vpack.c.bf16 %v3980, %v3979
    %v4218 = vpack.c.bf16 %v3982, %v3981
    %v4219 = vpack.c.bf16 %v3984, %v3983
    %v4220 = vpack.c.bf16 %v3986, %v3985
    %v4221 = vpack.c.bf16 %v3988, %v3987
    %v4222 = vpack.c.bf16 %v3990, %v3989
    %v4223 = vpack.c.bf16 %v3992, %v3991
    %v4224 = vpack.c.bf16 %v3994, %v3993
    %v4225 = vpack.c.bf16 %v3996, %v3995
    %v4226 = vpack.c.bf16 %v3998, %v3997
    %v4227 = vpack.c.bf16 %v4000, %v3999
    %v4228 = vpack.c.bf16 %v4002, %v4001
    %v4229 = vpack.c.bf16 %v4004, %v4003
    %v4230 = vpack.c.bf16 %v4006, %v4005
    %v4231 = vpack.c.bf16 %v4008, %v4007
    %v4232 = vpack.c.bf16 %v4010, %v4009
    %v4233 = vpack.c.bf16 %v4012, %v4011
    %v4234 = vpack.c.bf16 %v4014, %v4013
    %v4235 = vpack.c.bf16 %v4016, %v4015
    %v4236 = vpack.c.bf16 %v4018, %v4017
    %v4237 = vpack.c.bf16 %v4020, %v4019
    %v4238 = vpack.c.bf16 %v4022, %v4021
    %v4311 = vunpack.c.l.b16 %v4167
    %v4312 = vunpack.c.h.b16 %v4167
    %v4313 = vunpack.c.l.b16 %v4168
    %v4314 = vunpack.c.h.b16 %v4168
    %v4315 = vunpack.c.l.b16 %v4169
    %v4316 = vunpack.c.h.b16 %v4169
    %v4317 = vunpack.c.l.b16 %v4170
    %v4318 = vunpack.c.h.b16 %v4170
    %v4319 = vunpack.c.l.b16 %v4171
    %v4320 = vunpack.c.h.b16 %v4171
    %v4321 = vunpack.c.l.b16 %v4172
    %v4322 = vunpack.c.h.b16 %v4172
    %v4323 = vunpack.c.l.b16 %v4173
    %v4324 = vunpack.c.h.b16 %v4173
    %v4325 = vunpack.c.l.b16 %v4174
    %v4326 = vunpack.c.h.b16 %v4174
    %v4327 = vunpack.c.l.b16 %v4175
    %v4328 = vunpack.c.h.b16 %v4175
    %v4329 = vunpack.c.l.b16 %v4176
    %v4330 = vunpack.c.h.b16 %v4176
    %v4331 = vunpack.c.l.b16 %v4177
    %v4332 = vunpack.c.h.b16 %v4177
    %v4333 = vunpack.c.l.b16 %v4178
    %v4334 = vunpack.c.h.b16 %v4178
    %v4335 = vunpack.c.l.b16 %v4179
    %v4336 = vunpack.c.h.b16 %v4179
    %v4337 = vunpack.c.l.b16 %v4180
    %v4338 = vunpack.c.h.b16 %v4180
    %v4339 = vunpack.c.l.b16 %v4181
    %v4340 = vunpack.c.h.b16 %v4181
    %v4341 = vunpack.c.l.b16 %v4182
    %v4342 = vunpack.c.h.b16 %v4182
    %v4343 = vunpack.c.l.b16 %v4183
    %v4344 = vunpack.c.h.b16 %v4183
    %v4345 = vunpack.c.l.b16 %v4184
    %v4346 = vunpack.c.h.b16 %v4184
    %v4347 = vunpack.c.l.b16 %v4185
    %v4348 = vunpack.c.h.b16 %v4185
    %v4349 = vunpack.c.l.b16 %v4186
    %v4350 = vunpack.c.h.b16 %v4186
    %v4351 = vunpack.c.l.b16 %v4187
    %v4352 = vunpack.c.h.b16 %v4187
    %v4353 = vunpack.c.l.b16 %v4188
    %v4354 = vunpack.c.h.b16 %v4188
    %v4355 = vunpack.c.l.b16 %v4189
    %v4356 = vunpack.c.h.b16 %v4189
    %v4357 = vunpack.c.l.b16 %v4190
    %v4358 = vunpack.c.h.b16 %v4190
    %v4359 = vunpack.c.l.b16 %v4191
    %v4360 = vunpack.c.h.b16 %v4191
    %v4361 = vunpack.c.l.b16 %v4192
    %v4362 = vunpack.c.h.b16 %v4192
    %v4363 = vunpack.c.l.b16 %v4193
    %v4364 = vunpack.c.h.b16 %v4193
    %v4365 = vunpack.c.l.b16 %v4194
    %v4366 = vunpack.c.h.b16 %v4194
    %v4367 = vunpack.c.l.b16 %v4195
    %v4368 = vunpack.c.h.b16 %v4195
    %v4369 = vunpack.c.l.b16 %v4196
    %v4370 = vunpack.c.h.b16 %v4196
    %v4371 = vunpack.c.l.b16 %v4197
    %v4372 = vunpack.c.h.b16 %v4197
    %v4373 = vunpack.c.l.b16 %v4198
    %v4374 = vunpack.c.h.b16 %v4198
    %v4375 = vunpack.c.l.b16 %v4199
    %v4376 = vunpack.c.h.b16 %v4199
    %v4377 = vunpack.c.l.b16 %v4200
    %v4378 = vunpack.c.h.b16 %v4200
    %v4379 = vunpack.c.l.b16 %v4201
    %v4380 = vunpack.c.h.b16 %v4201
    %v4381 = vunpack.c.l.b16 %v4202
    %v4382 = vunpack.c.h.b16 %v4202
    %v4383 = vunpack.c.l.b16 %v4203
    %v4384 = vunpack.c.h.b16 %v4203
    %v4385 = vunpack.c.l.b16 %v4204
    %v4386 = vunpack.c.h.b16 %v4204
    %v4387 = vunpack.c.l.b16 %v4205
    %v4388 = vunpack.c.h.b16 %v4205
    %v4389 = vunpack.c.l.b16 %v4206
    %v4390 = vunpack.c.h.b16 %v4206
    %v4391 = vunpack.c.l.b16 %v4207
    %v4392 = vunpack.c.h.b16 %v4207
    %v4393 = vunpack.c.l.b16 %v4208
    %v4394 = vunpack.c.h.b16 %v4208
    %v4395 = vunpack.c.l.b16 %v4209
    %v4396 = vunpack.c.h.b16 %v4209
    %v4397 = vunpack.c.l.b16 %v4210
    %v4398 = vunpack.c.h.b16 %v4210
    %v4399 = vunpack.c.l.b16 %v4211
    %v4400 = vunpack.c.h.b16 %v4211
    %v4401 = vunpack.c.l.b16 %v4212
    %v4402 = vunpack.c.h.b16 %v4212
    %v4403 = vunpack.c.l.b16 %v4213
    %v4404 = vunpack.c.h.b16 %v4213
    %v4405 = vunpack.c.l.b16 %v4214
    %v4406 = vunpack.c.h.b16 %v4214
    %v4407 = vunpack.c.l.b16 %v4215
    %v4408 = vunpack.c.h.b16 %v4215
    %v4409 = vunpack.c.l.b16 %v4216
    %v4410 = vunpack.c.h.b16 %v4216
    %v4411 = vunpack.c.l.b16 %v4217
    %v4412 = vunpack.c.h.b16 %v4217
    %v4413 = vunpack.c.l.b16 %v4218
    %v4414 = vunpack.c.h.b16 %v4218
    %v4415 = vunpack.c.l.b16 %v4219
    %v4416 = vunpack.c.h.b16 %v4219
    %v4417 = vunpack.c.l.b16 %v4220
    %v4418 = vunpack.c.h.b16 %v4220
    %v4419 = vunpack.c.l.b16 %v4221
    %v4420 = vunpack.c.h.b16 %v4221
    %v4421 = vunpack.c.l.b16 %v4222
    %v4422 = vunpack.c.h.b16 %v4222
    %v4423 = vunpack.c.l.b16 %v4223
    %v4424 = vunpack.c.h.b16 %v4223
    %v4425 = vunpack.c.l.b16 %v4224
    %v4426 = vunpack.c.h.b16 %v4224
    %v4427 = vunpack.c.l.b16 %v4225
    %v4428 = vunpack.c.h.b16 %v4225
    %v4429 = vunpack.c.l.b16 %v4226
    %v4430 = vunpack.c.h.b16 %v4226
    %v4431 = vunpack.c.l.b16 %v4227
    %v4432 = vunpack.c.h.b16 %v4227
    %v4433 = vunpack.c.l.b16 %v4228
    %v4434 = vunpack.c.h.b16 %v4228
    %v4435 = vunpack.c.l.b16 %v4229
    %v4436 = vunpack.c.h.b16 %v4229
    %v4437 = vunpack.c.l.b16 %v4230
    %v4438 = vunpack.c.h.b16 %v4230
    %v4439 = vunpack.c.l.b16 %v4231
    %v4440 = vunpack.c.h.b16 %v4231
    %v4441 = vunpack.c.l.b16 %v4232
    %v4442 = vunpack.c.h.b16 %v4232
    %v4443 = vunpack.c.l.b16 %v4233
    %v4444 = vunpack.c.h.b16 %v4233
    %v4445 = vunpack.c.l.b16 %v4234
    %v4446 = vunpack.c.h.b16 %v4234
    %v4447 = vunpack.c.l.b16 %v4235
    %v4448 = vunpack.c.h.b16 %v4235
    %v4449 = vunpack.c.l.b16 %v4236
    %v4450 = vunpack.c.h.b16 %v4236
    %v4451 = vunpack.c.l.b16 %v4237
    %v4452 = vunpack.c.h.b16 %v4237
    %v4453 = vunpack.c.l.b16 %v4238
    %v4454 = vunpack.c.h.b16 %v4238
    %v4455 = vrot.slane %v4317, 7
    %vm4456 = vcmask 1041409
    %v4457 = vsel %vm4456, %v4455, %v4311
    %v4458 = vrot.slane %v4323, 6
    %vm4459 = vcmask 1042434
    %v4460 = vsel %vm4459, %v4458, %v4457
    %v4461 = vrot.slane %v4329, 5
    %vm4462 = vcmask 1043459
    %v4463 = vsel %vm4462, %v4461, %v4460
    %v4464 = vrot.slane %v4335, 4
    %vm4465 = vcmask 1044484
    %v4466 = vsel %vm4465, %v4464, %v4463
    %v4467 = vrot.slane %v4341, 3
    %vm4468 = vcmask 1045509
    %v4469 = vsel %vm4468, %v4467, %v4466
    %v4470 = vrot.slane %v4347, 2
    %vm4471 = vcmask 1046534
    %v4472 = vsel %vm4471, %v4470, %v4469
    %v4473 = vrot.slane %v4353, 1
    %vm4474 = vcmask 1047559
    %v4475 = vsel %vm4474, %v4473, %v4472
    %v4476 = vrot.slane %v4318, 7
    %v4477 = vsel %vm4456, %v4476, %v4312
    %v4478 = vrot.slane %v4324, 6
    %v4479 = vsel %vm4459, %v4478, %v4477
    %v4480 = vrot.slane %v4330, 5
    %v4481 = vsel %vm4462, %v4480, %v4479
    %v4482 = vrot.slane %v4336, 4
    %v4483 = vsel %vm4465, %v4482, %v4481
    %v4484 = vrot.slane %v4342, 3
    %v4485 = vsel %vm4468, %v4484, %v4483
    %v4486 = vrot.slane %v4348, 2
    %v4487 = vsel %vm4471, %v4486, %v4485
    %v4488 = vrot.slane %v4354, 1
    %v4489 = vsel %vm4474, %v4488, %v4487
    %v4490 = vrot.slane %v4319, 7
    %v4491 = vsel %vm4456, %v4490, %v4313
    %v4492 = vrot.slane %v4325, 6
    %v4493 = vsel %vm4459, %v4492, %v4491
    %v4494 = vrot.slane %v4331, 5
    %v4495 = vsel %vm4462, %v4494, %v4493
    %v4496 = vrot.slane %v4337, 4
    %v4497 = vsel %vm4465, %v4496, %v4495
    %v4498 = vrot.slane %v4343, 3
    %v4499 = vsel %vm4468, %v4498, %v4497
    %v4500 = vrot.slane %v4349, 2
    %v4501 = vsel %vm4471, %v4500, %v4499
    %v4502 = vrot.slane %v4355, 1
    %v4503 = vsel %vm4474, %v4502, %v4501
    %v4504 = vrot.slane %v4320, 7
    %v4505 = vsel %vm4456, %v4504, %v4314
    %v4506 = vrot.slane %v4326, 6
    %v4507 = vsel %vm4459, %v4506, %v4505
    %v4508 = vrot.slane %v4332, 5
    %v4509 = vsel %vm4462, %v4508, %v4507
    %v4510 = vrot.slane %v4338, 4
    %v4511 = vsel %vm4465, %v4510, %v4509
    %v4512 = vrot.slane %v4344, 3
    %v4513 = vsel %vm4468, %v4512, %v4511
    %v4514 = vrot.slane %v4350, 2
    %v4515 = vsel %vm4471, %v4514, %v4513
    %v4516 = vrot.slane %v4356, 1
    %v4517 = vsel %vm4474, %v4516, %v4515
    %v4518 = vrot.slane %v4321, 7
    %v4519 = vsel %vm4456, %v4518, %v4315
    %v4520 = vrot.slane %v4327, 6
    %v4521 = vsel %vm4459, %v4520, %v4519
    %v4522 = vrot.slane %v4333, 5
    %v4523 = vsel %vm4462, %v4522, %v4521
    %v4524 = vrot.slane %v4339, 4
    %v4525 = vsel %vm4465, %v4524, %v4523
    %v4526 = vrot.slane %v4345, 3
    %v4527 = vsel %vm4468, %v4526, %v4525
    %v4528 = vrot.slane %v4351, 2
    %v4529 = vsel %vm4471, %v4528, %v4527
    %v4530 = vrot.slane %v4357, 1
    %v4531 = vsel %vm4474, %v4530, %v4529
    %v4532 = vrot.slane %v4322, 7
    %v4533 = vsel %vm4456, %v4532, %v4316
    %v4534 = vrot.slane %v4328, 6
    %v4535 = vsel %vm4459, %v4534, %v4533
    %v4536 = vrot.slane %v4334, 5
    %v4537 = vsel %vm4462, %v4536, %v4535
    %v4538 = vrot.slane %v4340, 4
    %v4539 = vsel %vm4465, %v4538, %v4537
    %v4540 = vrot.slane %v4346, 3
    %v4541 = vsel %vm4468, %v4540, %v4539
    %v4542 = vrot.slane %v4352, 2
    %v4543 = vsel %vm4471, %v4542, %v4541
    %v4544 = vrot.slane %v4358, 1
    %v4545 = vsel %vm4474, %v4544, %v4543
    %v4546 = vrot.slane %v4365, 7
    %v4547 = vsel %vm4456, %v4546, %v4359
    %v4548 = vrot.slane %v4371, 6
    %v4549 = vsel %vm4459, %v4548, %v4547
    %v4550 = vrot.slane %v4377, 5
    %v4551 = vsel %vm4462, %v4550, %v4549
    %v4552 = vrot.slane %v4366, 7
    %v4553 = vsel %vm4456, %v4552, %v4360
    %v4554 = vrot.slane %v4372, 6
    %v4555 = vsel %vm4459, %v4554, %v4553
    %v4556 = vrot.slane %v4378, 5
    %v4557 = vsel %vm4462, %v4556, %v4555
    %v4558 = vrot.slane %v4367, 7
    %v4559 = vsel %vm4456, %v4558, %v4361
    %v4560 = vrot.slane %v4373, 6
    %v4561 = vsel %vm4459, %v4560, %v4559
    %v4562 = vrot.slane %v4379, 5
    %v4563 = vsel %vm4462, %v4562, %v4561
    %v4564 = vrot.slane %v4368, 7
    %v4565 = vsel %vm4456, %v4564, %v4362
    %v4566 = vrot.slane %v4374, 6
    %v4567 = vsel %vm4459, %v4566, %v4565
    %v4568 = vrot.slane %v4380, 5
    %v4569 = vsel %vm4462, %v4568, %v4567
    %v4570 = vrot.slane %v4369, 7
    %v4571 = vsel %vm4456, %v4570, %v4363
    %v4572 = vrot.slane %v4375, 6
    %v4573 = vsel %vm4459, %v4572, %v4571
    %v4574 = vrot.slane %v4381, 5
    %v4575 = vsel %vm4462, %v4574, %v4573
    %v4576 = vrot.slane %v4370, 7
    %v4577 = vsel %vm4456, %v4576, %v4364
    %v4578 = vrot.slane %v4376, 6
    %v4579 = vsel %vm4459, %v4578, %v4577
    %v4580 = vrot.slane %v4382, 5
    %v4581 = vsel %vm4462, %v4580, %v4579
    %v4582 = vrot.slane %v4389, 7
    %v4583 = vsel %vm4456, %v4582, %v4383
    %v4584 = vrot.slane %v4395, 6
    %v4585 = vsel %vm4459, %v4584, %v4583
    %v4586 = vrot.slane %v4401, 5
    %v4587 = vsel %vm4462, %v4586, %v4585
    %v4588 = vrot.slane %v4407, 4
    %v4589 = vsel %vm4465, %v4588, %v4587
    %v4590 = vrot.slane %v4413, 3
    %v4591 = vsel %vm4468, %v4590, %v4589
    %v4592 = vrot.slane %v4419, 2
    %v4593 = vsel %vm4471, %v4592, %v4591
    %v4594 = vrot.slane %v4425, 1
    %v4595 = vsel %vm4474, %v4594, %v4593
    %v4596 = vrot.slane %v4390, 7
    %v4597 = vsel %vm4456, %v4596, %v4384
    %v4598 = vrot.slane %v4396, 6
    %v4599 = vsel %vm4459, %v4598, %v4597
    %v4600 = vrot.slane %v4402, 5
    %v4601 = vsel %vm4462, %v4600, %v4599
    %v4602 = vrot.slane %v4408, 4
    %v4603 = vsel %vm4465, %v4602, %v4601
    %v4604 = vrot.slane %v4414, 3
    %v4605 = vsel %vm4468, %v4604, %v4603
    %v4606 = vrot.slane %v4420, 2
    %v4607 = vsel %vm4471, %v4606, %v4605
    %v4608 = vrot.slane %v4426, 1
    %v4609 = vsel %vm4474, %v4608, %v4607
    %v4610 = vrot.slane %v4391, 7
    %v4611 = vsel %vm4456, %v4610, %v4385
    %v4612 = vrot.slane %v4397, 6
    %v4613 = vsel %vm4459, %v4612, %v4611
    %v4614 = vrot.slane %v4403, 5
    %v4615 = vsel %vm4462, %v4614, %v4613
    %v4616 = vrot.slane %v4409, 4
    %v4617 = vsel %vm4465, %v4616, %v4615
    %v4618 = vrot.slane %v4415, 3
    %v4619 = vsel %vm4468, %v4618, %v4617
    %v4620 = vrot.slane %v4421, 2
    %v4621 = vsel %vm4471, %v4620, %v4619
    %v4622 = vrot.slane %v4427, 1
    %v4623 = vsel %vm4474, %v4622, %v4621
    %v4624 = vrot.slane %v4392, 7
    %v4625 = vsel %vm4456, %v4624, %v4386
    %v4626 = vrot.slane %v4398, 6
    %v4627 = vsel %vm4459, %v4626, %v4625
    %v4628 = vrot.slane %v4404, 5
    %v4629 = vsel %vm4462, %v4628, %v4627
    %v4630 = vrot.slane %v4410, 4
    %v4631 = vsel %vm4465, %v4630, %v4629
    %v4632 = vrot.slane %v4416, 3
    %v4633 = vsel %vm4468, %v4632, %v4631
    %v4634 = vrot.slane %v4422, 2
    %v4635 = vsel %vm4471, %v4634, %v4633
    %v4636 = vrot.slane %v4428, 1
    %v4637 = vsel %vm4474, %v4636, %v4635
    %v4638 = vrot.slane %v4393, 7
    %v4639 = vsel %vm4456, %v4638, %v4387
    %v4640 = vrot.slane %v4399, 6
    %v4641 = vsel %vm4459, %v4640, %v4639
    %v4642 = vrot.slane %v4405, 5
    %v4643 = vsel %vm4462, %v4642, %v4641
    %v4644 = vrot.slane %v4411, 4
    %v4645 = vsel %vm4465, %v4644, %v4643
    %v4646 = vrot.slane %v4417, 3
    %v4647 = vsel %vm4468, %v4646, %v4645
    %v4648 = vrot.slane %v4423, 2
    %v4649 = vsel %vm4471, %v4648, %v4647
    %v4650 = vrot.slane %v4429, 1
    %v4651 = vsel %vm4474, %v4650, %v4649
    %v4652 = vrot.slane %v4394, 7
    %v4653 = vsel %vm4456, %v4652, %v4388
    %v4654 = vrot.slane %v4400, 6
    %v4655 = vsel %vm4459, %v4654, %v4653
    %v4656 = vrot.slane %v4406, 5
    %v4657 = vsel %vm4462, %v4656, %v4655
    %v4658 = vrot.slane %v4412, 4
    %v4659 = vsel %vm4465, %v4658, %v4657
    %v4660 = vrot.slane %v4418, 3
    %v4661 = vsel %vm4468, %v4660, %v4659
    %v4662 = vrot.slane %v4424, 2
    %v4663 = vsel %vm4471, %v4662, %v4661
    %v4664 = vrot.slane %v4430, 1
    %v4665 = vsel %vm4474, %v4664, %v4663
    %v4666 = vrot.slane %v4437, 7
    %v4667 = vsel %vm4456, %v4666, %v4431
    %v4668 = vrot.slane %v4443, 6
    %v4669 = vsel %vm4459, %v4668, %v4667
    %v4670 = vrot.slane %v4449, 5
    %v4671 = vsel %vm4462, %v4670, %v4669
    %v4672 = vrot.slane %v4438, 7
    %v4673 = vsel %vm4456, %v4672, %v4432
    %v4674 = vrot.slane %v4444, 6
    %v4675 = vsel %vm4459, %v4674, %v4673
    %v4676 = vrot.slane %v4450, 5
    %v4677 = vsel %vm4462, %v4676, %v4675
    %v4678 = vrot.slane %v4439, 7
    %v4679 = vsel %vm4456, %v4678, %v4433
    %v4680 = vrot.slane %v4445, 6
    %v4681 = vsel %vm4459, %v4680, %v4679
    %v4682 = vrot.slane %v4451, 5
    %v4683 = vsel %vm4462, %v4682, %v4681
    %v4684 = vrot.slane %v4440, 7
    %v4685 = vsel %vm4456, %v4684, %v4434
    %v4686 = vrot.slane %v4446, 6
    %v4687 = vsel %vm4459, %v4686, %v4685
    %v4688 = vrot.slane %v4452, 5
    %v4689 = vsel %vm4462, %v4688, %v4687
    %v4690 = vrot.slane %v4441, 7
    %v4691 = vsel %vm4456, %v4690, %v4435
    %v4692 = vrot.slane %v4447, 6
    %v4693 = vsel %vm4459, %v4692, %v4691
    %v4694 = vrot.slane %v4453, 5
    %v4695 = vsel %vm4462, %v4694, %v4693
    %v4696 = vrot.slane %v4442, 7
    %v4697 = vsel %vm4456, %v4696, %v4436
    %v4698 = vrot.slane %v4448, 6
    %v4699 = vsel %vm4459, %v4698, %v4697
    %v4700 = vrot.slane %v4454, 5
    %v4701 = vsel %vm4462, %v4700, %v4699
    %v4702 = vpack.c.b16 %v4489, %v4475
    %v4703 = vpack.c.b16 %v4517, %v4503
    %v4704 = vpack.c.b16 %v4545, %v4531
    %v4705 = vpack.c.b16 %v4557, %v4551
    %v4706 = vpack.c.b16 %v4569, %v4563
    %v4707 = vpack.c.b16 %v4581, %v4575
    %v4708 = vpack.c.b16 %v4609, %v4595
    %v4709 = vpack.c.b16 %v4637, %v4623
    %v4710 = vpack.c.b16 %v4665, %v4651
    %v4711 = vpack.c.b16 %v4677, %v4671
    %v4712 = vpack.c.b16 %v4689, %v4683
    %v4713 = vpack.c.b16 %v4701, %v4695
    %4726 = vst [vmem:[%s3] sm:$0xff] %v4702
    %4727 = vst [vmem:[%s3 + $0x8] sm:$0xff] %v4703
    %4728 = vst [vmem:[%s3 + $0x10] sm:$0xff] %v4704
    %4729 = vst [vmem:[%s3 + $0x18] sm:$0x33] %v4705
    %4730 = vst [vmem:[%s3 + $0x20] sm:$0x33] %v4706
    %4731 = vst [vmem:[%s3 + $0x28] sm:$0x33] %v4707
    %4732 = vst [vmem:[%s3 + $0x30] sm:$0xff] %v4708
    %4733 = vst [vmem:[%s3 + $0x38] sm:$0xff] %v4709
    %4734 = vst [vmem:[%s3 + $0x40] sm:$0xff] %v4710
    %4735 = vst [vmem:[%s3 + $0x48] sm:$0x33] %v4711
    %4736 = vst [vmem:[%s3 + $0x50] sm:$0x33] %v4712
    %4737 = vst [vmem:[%s3 + $0x58] sm:$0x33] %v4713
    // Predicated region
    $region22: #{cnn_mnist_forward.3} parent=1 // pred_check
      _
    $region23: #{cnn_mnist_forward.3} parent=1 // pred_check_branch
      %4739 = sbr.rel (0) target = $region25
    $region24: #{cnn_mnist_forward.3} parent=1 // pred_region
      _
    $region25: #{cnn_mnist_forward.3} parent=1 // pred_fallthru
      _
    // Predicated region
    $region26: #{cnn_mnist_forward.3} parent=1 // pred_check
      _
    $region27: #{cnn_mnist_forward.3} parent=1 // pred_check_branch
      %4741 = sbr.rel (0) target = $region29
    $region28: #{cnn_mnist_forward.3} parent=1 // pred_region
      _
    $region29: #{cnn_mnist_forward.3} parent=1 // pred_fallthru
      _
    %4742 = vsyncpa [#allocation3], 1
    %4743 = vsyncpa [#allocation5], 1

// kernel: cnn_mnist_forward.4
$region0: #{cnn_mnist_forward.4}
  #allocation0 [shape = 'u32[]', space=smem, size = 0x4, offset = 0x4, fixed_abs, tag = 'smem constant byte address 0x4 - core index']
  #allocation1 [shape = 'u32[72,128]{1,0:T(1,128)}', space=vmem, size = 0x9000, scoped, tag = 'internal scratch']
  %s0 = inlined_call_operand.vmem [shape: bf16[2,12,768], index: 0, kind: input, shape index: {}]
  %s1 = inlined_call_operand.hbm [shape: bf16[5,768,512], index: 1, kind: input, shape index: {}]
  %s2 = inlined_call_operand.hbm [shape: f32[1,512], index: 2, kind: input, shape index: {}]
  %s3 = inlined_call_operand.vmem [shape: bf16[2,1024], index: 3, kind: output, shape index: {}]
  %s4 = sld [smem:[#allocation0]]
  $region30: #{cnn_mnist_forward.4} parent=0
    _
  %s6 = ssub.s32 1, %s4
  %s7 = scalar_select 0, %s6, %s4
  $region1: #{cnn_mnist_forward.4} parent=0
    #allocation2 [shape = 'u8[3932160]{0}', space=vmem, size = 0x3c0000, scoped, tag = 'input window, operand 1, single buffered']
    #allocation3 [shape = 's32[1]{0}', space=sflag, size = 0x4, scoped, tag = 'scoped memory for cnn_mnist_forward.4']
    #allocation4 [shape = 'u8[2048]{0}', space=vmem, size = 0x800, scoped, tag = 'input window, operand 2, single buffered']
    #allocation5 [shape = 's32[1]{0}', space=sflag, size = 0x4, scoped, tag = 'scoped memory for cnn_mnist_forward.4']
    %8 = vsyncpa [#allocation3], 0
    %9 = vsyncpa [#allocation5], 0
    // Predicated region
    $region2: #{cnn_mnist_forward.4} parent=1 // pred_check
      _
    $region3: #{cnn_mnist_forward.4} parent=1 // pred_check_branch
      %11 = sbr.rel (0) target = $region5
    $region4: #{cnn_mnist_forward.4} parent=1 // pred_region
      _
    $region5: #{cnn_mnist_forward.4} parent=1 // pred_fallthru
      _
    // Predicated region
    $region6: #{cnn_mnist_forward.4} parent=1 // pred_check
      _
    $region7: #{cnn_mnist_forward.4} parent=1 // pred_check_branch
      %13 = sbr.rel (0) target = $region9
    $region8: #{cnn_mnist_forward.4} parent=1 // pred_region
      %15 = vsyncadd [#allocation3], 0
      %s16 = sshll.u32 %s1, 4
      %s17 = int_to_ptr.hbm [resolvable:$true] %s16
      %s18 = sshll.u32 [#allocation2], 4
      %s19 = int_to_ptr.vmem [resolvable:$true] %s18
      %24 = dma.hbm_to_vmem [thread:$0]  %s17, 122880, %s19, [#allocation3], 256, 256, 16
    $region9: #{cnn_mnist_forward.4} parent=1 // pred_fallthru
      _
    // Predicated region
    $region10: #{cnn_mnist_forward.4} parent=1 // pred_check
      _
    $region11: #{cnn_mnist_forward.4} parent=1 // pred_check_branch
      %26 = sbr.rel (0) target = $region13
    $region12: #{cnn_mnist_forward.4} parent=1 // pred_region
      %28 = vsyncadd [#allocation5], 0
      %s30 = sshll.u32 %s2, 4
      %s31 = int_to_ptr.hbm [resolvable:$true] %s30
      %s32 = sshll.u32 [#allocation4], 4
      %s33 = int_to_ptr.vmem [resolvable:$true] %s32
      %35 = dma.hbm_to_vmem [thread:$0]  %s31, 64, %s33, [#allocation5]
    $region13: #{cnn_mnist_forward.4} parent=1 // pred_fallthru
      _
    // Predicated region
    $region14: #{cnn_mnist_forward.4} parent=1 // pred_check
      _
    $region15: #{cnn_mnist_forward.4} parent=1 // pred_check_branch
      %37 = sbr.rel (0) target = $region17
    $region16: #{cnn_mnist_forward.4} parent=1 // pred_region
      %39 = dma.done [#allocation3], 122880
    $region17: #{cnn_mnist_forward.4} parent=1 // pred_fallthru
      _
    // Predicated region
    $region18: #{cnn_mnist_forward.4} parent=1 // pred_check
      _
    $region19: #{cnn_mnist_forward.4} parent=1 // pred_check_branch
      %41 = sbr.rel (0) target = $region21
    $region20: #{cnn_mnist_forward.4} parent=1 // pred_region
      %43 = dma.done [#allocation5], 64
    $region21: #{cnn_mnist_forward.4} parent=1 // pred_fallthru
      _
    %v44 = vld [vmem:[%s0] sm:$0xff]
    %v45 = vld [vmem:[%s0 + $0x8] sm:$0xff]
    %v46 = vld [vmem:[%s0 + $0x10] sm:$0xff]
    %v47 = vld [vmem:[%s0 + $0x18] sm:$0x33]
    %v48 = vld [vmem:[%s0 + $0x20] sm:$0x33]
    %v49 = vld [vmem:[%s0 + $0x28] sm:$0x33]
    %v50 = vld [vmem:[%s0 + $0x30] sm:$0xff]
    %v51 = vld [vmem:[%s0 + $0x38] sm:$0xff]
    %v52 = vld [vmem:[%s0 + $0x40] sm:$0xff]
    %v53 = vld [vmem:[%s0 + $0x48] sm:$0x33]
    %v54 = vld [vmem:[%s0 + $0x50] sm:$0x33]
    %v55 = vld [vmem:[%s0 + $0x58] sm:$0x33]
    %v56 = vld [vmem:[#allocation2] sm:$0xff]
    %v57 = vld [vmem:[#allocation2 + $0x8] sm:$0xff]
    %v58 = vld [vmem:[#allocation2 + $0x10] sm:$0xff]
    %v59 = vld [vmem:[#allocation2 + $0x18] sm:$0xff]
    %v60 = vld [vmem:[#allocation2 + $0x20] sm:$0xff]
    %v61 = vld [vmem:[#allocation2 + $0x28] sm:$0xff]
    %v62 = vld [vmem:[#allocation2 + $0x30] sm:$0xff]
    %v63 = vld [vmem:[#allocation2 + $0x38] sm:$0xff]
    %v64 = vld [vmem:[#allocation2 + $0x40] sm:$0xff]
    %v65 = vld [vmem:[#allocation2 + $0x48] sm:$0xff]
    %v66 = vld [vmem:[#allocation2 + $0x50] sm:$0xff]
    %v67 = vld [vmem:[#allocation2 + $0x58] sm:$0xff]
    %v68 = vld [vmem:[#allocation2 + $0x60] sm:$0xff]
    %v69 = vld [vmem:[#allocation2 + $0x68] sm:$0xff]
    %v70 = vld [vmem:[#allocation2 + $0x70] sm:$0xff]
    %v71 = vld [vmem:[#allocation2 + $0x78] sm:$0xff]
    %v72 = vld [vmem:[#allocation2 + $0x80] sm:$0xff]
    %v73 = vld [vmem:[#allocation2 + $0x88] sm:$0xff]
    %v74 = vld [vmem:[#allocation2 + $0x90] sm:$0xff]
    %v75 = vld [vmem:[#allocation2 + $0x98] sm:$0xff]
    %v76 = vld [vmem:[#allocation2 + $0xa0] sm:$0xff]
    %v77 = vld [vmem:[#allocation2 + $0xa8] sm:$0xff]
    %v78 = vld [vmem:[#allocation2 + $0xb0] sm:$0xff]
    %v79 = vld [vmem:[#allocation2 + $0xb8] sm:$0xff]
    %v80 = vld [vmem:[#allocation2 + $0xc0] sm:$0xff]
    %v81 = vld [vmem:[#allocation2 + $0xc8] sm:$0xff]
    %v82 = vld [vmem:[#allocation2 + $0xd0] sm:$0xff]
    %v83 = vld [vmem:[#allocation2 + $0xd8] sm:$0xff]
    %v84 = vld [vmem:[#allocation2 + $0xe0] sm:$0xff]
    %v85 = vld [vmem:[#allocation2 + $0xe8] sm:$0xff]
    %v86 = vld [vmem:[#allocation2 + $0xf0] sm:$0xff]
    %v87 = vld [vmem:[#allocation2 + $0xf8] sm:$0xff]
    %v88 = vld [vmem:[#allocation2 + $0x100] sm:$0xff]
    %v89 = vld [vmem:[#allocation2 + $0x108] sm:$0xff]
    %v90 = vld [vmem:[#allocation2 + $0x110] sm:$0xff]
    %v91 = vld [vmem:[#allocation2 + $0x118] sm:$0xff]
    %v92 = vld [vmem:[#allocation2 + $0x120] sm:$0xff]
    %v93 = vld [vmem:[#allocation2 + $0x128] sm:$0xff]
    %v94 = vld [vmem:[#allocation2 + $0x130] sm:$0xff]
    %v95 = vld [vmem:[#allocation2 + $0x138] sm:$0xff]
    %v96 = vld [vmem:[#allocation2 + $0x140] sm:$0xff]
    %v97 = vld [vmem:[#allocation2 + $0x148] sm:$0xff]
    %v98 = vld [vmem:[#allocation2 + $0x150] sm:$0xff]
    %v99 = vld [vmem:[#allocation2 + $0x158] sm:$0xff]
    %v100 = vld [vmem:[#allocation2 + $0x160] sm:$0xff]
    %v101 = vld [vmem:[#allocation2 + $0x168] sm:$0xff]
    %v102 = vld [vmem:[#allocation2 + $0x170] sm:$0xff]
    %v103 = vld [vmem:[#allocation2 + $0x178] sm:$0xff]
    %v104 = vld [vmem:[#allocation2 + $0x180] sm:$0xff]
    %v105 = vld [vmem:[#allocation2 + $0x188] sm:$0xff]
    %v106 = vld [vmem:[#allocation2 + $0x190] sm:$0xff]
    %v107 = vld [vmem:[#allocation2 + $0x198] sm:$0xff]
    %v108 = vld [vmem:[#allocation2 + $0x1a0] sm:$0xff]
    %v109 = vld [vmem:[#allocation2 + $0x1a8] sm:$0xff]
    %v110 = vld [vmem:[#allocation2 + $0x1b0] sm:$0xff]
    %v111 = vld [vmem:[#allocation2 + $0x1b8] sm:$0xff]
    %v112 = vld [vmem:[#allocation2 + $0x1c0] sm:$0xff]
    %v113 = vld [vmem:[#allocation2 + $0x1c8] sm:$0xff]
    %v114 = vld [vmem:[#allocation2 + $0x1d0] sm:$0xff]
    %v115 = vld [vmem:[#allocation2 + $0x1d8] sm:$0xff]
    %v116 = vld [vmem:[#allocation2 + $0x1e0] sm:$0xff]
    %v117 = vld [vmem:[#allocation2 + $0x1e8] sm:$0xff]
    %v118 = vld [vmem:[#allocation2 + $0x1f0] sm:$0xff]
    %v119 = vld [vmem:[#allocation2 + $0x1f8] sm:$0xff]
    %v120 = vld [vmem:[#allocation2 + $0x200] sm:$0xff]
    %v121 = vld [vmem:[#allocation2 + $0x208] sm:$0xff]
    %v122 = vld [vmem:[#allocation2 + $0x210] sm:$0xff]
    %v123 = vld [vmem:[#allocation2 + $0x218] sm:$0xff]
    %v124 = vld [vmem:[#allocation2 + $0x220] sm:$0xff]
    %v125 = vld [vmem:[#allocation2 + $0x228] sm:$0xff]
    %v126 = vld [vmem:[#allocation2 + $0x230] sm:$0xff]
    %v127 = vld [vmem:[#allocation2 + $0x238] sm:$0xff]
    %v128 = vld [vmem:[#allocation2 + $0x240] sm:$0xff]
    %v129 = vld [vmem:[#allocation2 + $0x248] sm:$0xff]
    %v130 = vld [vmem:[#allocation2 + $0x250] sm:$0xff]
    %v131 = vld [vmem:[#allocation2 + $0x258] sm:$0xff]
    %v132 = vld [vmem:[#allocation2 + $0x260] sm:$0xff]
    %v133 = vld [vmem:[#allocation2 + $0x268] sm:$0xff]
    %v134 = vld [vmem:[#allocation2 + $0x270] sm:$0xff]
    %v135 = vld [vmem:[#allocation2 + $0x278] sm:$0xff]
    %v136 = vld [vmem:[#allocation2 + $0x280] sm:$0xff]
    %v137 = vld [vmem:[#allocation2 + $0x288] sm:$0xff]
    %v138 = vld [vmem:[#allocation2 + $0x290] sm:$0xff]
    %v139 = vld [vmem:[#allocation2 + $0x298] sm:$0xff]
    %v140 = vld [vmem:[#allocation2 + $0x2a0] sm:$0xff]
    %v141 = vld [vmem:[#allocation2 + $0x2a8] sm:$0xff]
    %v142 = vld [vmem:[#allocation2 + $0x2b0] sm:$0xff]
    %v143 = vld [vmem:[#allocation2 + $0x2b8] sm:$0xff]
    %v144 = vld [vmem:[#allocation2 + $0x2c0] sm:$0xff]
    %v145 = vld [vmem:[#allocation2 + $0x2c8] sm:$0xff]
    %v146 = vld [vmem:[#allocation2 + $0x2d0] sm:$0xff]
    %v147 = vld [vmem:[#allocation2 + $0x2d8] sm:$0xff]
    %v148 = vld [vmem:[#allocation2 + $0x2e0] sm:$0xff]
    %v149 = vld [vmem:[#allocation2 + $0x2e8] sm:$0xff]
    %v150 = vld [vmem:[#allocation2 + $0x2f0] sm:$0xff]
    %v151 = vld [vmem:[#allocation2 + $0x2f8] sm:$0xff]
    %v152 = vld [vmem:[#allocation2 + $0x300] sm:$0xff]
    %v153 = vld [vmem:[#allocation2 + $0x308] sm:$0xff]
    %v154 = vld [vmem:[#allocation2 + $0x310] sm:$0xff]
    %v155 = vld [vmem:[#allocation2 + $0x318] sm:$0xff]
    %v156 = vld [vmem:[#allocation2 + $0x320] sm:$0xff]
    %v157 = vld [vmem:[#allocation2 + $0x328] sm:$0xff]
    %v158 = vld [vmem:[#allocation2 + $0x330] sm:$0xff]
    %v159 = vld [vmem:[#allocation2 + $0x338] sm:$0xff]
    %v160 = vld [vmem:[#allocation2 + $0x340] sm:$0xff]
    %v161 = vld [vmem:[#allocation2 + $0x348] sm:$0xff]
    %v162 = vld [vmem:[#allocation2 + $0x350] sm:$0xff]
    %v163 = vld [vmem:[#allocation2 + $0x358] sm:$0xff]
    %v164 = vld [vmem:[#allocation2 + $0x360] sm:$0xff]
    %v165 = vld [vmem:[#allocation2 + $0x368] sm:$0xff]
    %v166 = vld [vmem:[#allocation2 + $0x370] sm:$0xff]
    %v167 = vld [vmem:[#allocation2 + $0x378] sm:$0xff]
    %v168 = vld [vmem:[#allocation2 + $0x380] sm:$0xff]
    %v169 = vld [vmem:[#allocation2 + $0x388] sm:$0xff]
    %v170 = vld [vmem:[#allocation2 + $0x390] sm:$0xff]
    %v171 = vld [vmem:[#allocation2 + $0x398] sm:$0xff]
    %v172 = vld [vmem:[#allocation2 + $0x3a0] sm:$0xff]
    %v173 = vld [vmem:[#allocation2 + $0x3a8] sm:$0xff]
    %v174 = vld [vmem:[#allocation2 + $0x3b0] sm:$0xff]
    %v175 = vld [vmem:[#allocation2 + $0x3b8] sm:$0xff]
    %v176 = vld [vmem:[#allocation2 + $0x3c0] sm:$0xff]
    %v177 = vld [vmem:[#allocation2 + $0x3c8] sm:$0xff]
    %v178 = vld [vmem:[#allocation2 + $0x3d0] sm:$0xff]
    %v179 = vld [vmem:[#allocation2 + $0x3d8] sm:$0xff]
    %v180 = vld [vmem:[#allocation2 + $0x3e0] sm:$0xff]
    %v181 = vld [vmem:[#allocation2 + $0x3e8] sm:$0xff]
    %v182 = vld [vmem:[#allocation2 + $0x3f0] sm:$0xff]
    %v183 = vld [vmem:[#allocation2 + $0x3f8] sm:$0xff]
    %v184 = vld [vmem:[#allocation2 + $0x400] sm:$0xff]
    %v185 = vld [vmem:[#allocation2 + $0x408] sm:$0xff]
    %v186 = vld [vmem:[#allocation2 + $0x410] sm:$0xff]
    %v187 = vld [vmem:[#allocation2 + $0x418] sm:$0xff]
    %v188 = vld [vmem:[#allocation2 + $0x420] sm:$0xff]
    %v189 = vld [vmem:[#allocation2 + $0x428] sm:$0xff]
    %v190 = vld [vmem:[#allocation2 + $0x430] sm:$0xff]
    %v191 = vld [vmem:[#allocation2 + $0x438] sm:$0xff]
    %v192 = vld [vmem:[#allocation2 + $0x440] sm:$0xff]
    %v193 = vld [vmem:[#allocation2 + $0x448] sm:$0xff]
    %v194 = vld [vmem:[#allocation2 + $0x450] sm:$0xff]
    %v195 = vld [vmem:[#allocation2 + $0x458] sm:$0xff]
    %v196 = vld [vmem:[#allocation2 + $0x460] sm:$0xff]
    %v197 = vld [vmem:[#allocation2 + $0x468] sm:$0xff]
    %v198 = vld [vmem:[#allocation2 + $0x470] sm:$0xff]
    %v199 = vld [vmem:[#allocation2 + $0x478] sm:$0xff]
    %v200 = vld [vmem:[#allocation2 + $0x480] sm:$0xff]
    %v201 = vld [vmem:[#allocation2 + $0x488] sm:$0xff]
    %v202 = vld [vmem:[#allocation2 + $0x490] sm:$0xff]
    %v203 = vld [vmem:[#allocation2 + $0x498] sm:$0xff]
    %v204 = vld [vmem:[#allocation2 + $0x4a0] sm:$0xff]
    %v205 = vld [vmem:[#allocation2 + $0x4a8] sm:$0xff]
    %v206 = vld [vmem:[#allocation2 + $0x4b0] sm:$0xff]
    %v207 = vld [vmem:[#allocation2 + $0x4b8] sm:$0xff]
    %v208 = vld [vmem:[#allocation2 + $0x4c0] sm:$0xff]
    %v209 = vld [vmem:[#allocation2 + $0x4c8] sm:$0xff]
    %v210 = vld [vmem:[#allocation2 + $0x4d0] sm:$0xff]
    %v211 = vld [vmem:[#allocation2 + $0x4d8] sm:$0xff]
    %v212 = vld [vmem:[#allocation2 + $0x4e0] sm:$0xff]
    %v213 = vld [vmem:[#allocation2 + $0x4e8] sm:$0xff]
    %v214 = vld [vmem:[#allocation2 + $0x4f0] sm:$0xff]
    %v215 = vld [vmem:[#allocation2 + $0x4f8] sm:$0xff]
    %v216 = vld [vmem:[#allocation2 + $0x500] sm:$0xff]
    %v217 = vld [vmem:[#allocation2 + $0x508] sm:$0xff]
    %v218 = vld [vmem:[#allocation2 + $0x510] sm:$0xff]
    %v219 = vld [vmem:[#allocation2 + $0x518] sm:$0xff]
    %v220 = vld [vmem:[#allocation2 + $0x520] sm:$0xff]
    %v221 = vld [vmem:[#allocation2 + $0x528] sm:$0xff]
    %v222 = vld [vmem:[#allocation2 + $0x530] sm:$0xff]
    %v223 = vld [vmem:[#allocation2 + $0x538] sm:$0xff]
    %v224 = vld [vmem:[#allocation2 + $0x540] sm:$0xff]
    %v225 = vld [vmem:[#allocation2 + $0x548] sm:$0xff]
    %v226 = vld [vmem:[#allocation2 + $0x550] sm:$0xff]
    %v227 = vld [vmem:[#allocation2 + $0x558] sm:$0xff]
    %v228 = vld [vmem:[#allocation2 + $0x560] sm:$0xff]
    %v229 = vld [vmem:[#allocation2 + $0x568] sm:$0xff]
    %v230 = vld [vmem:[#allocation2 + $0x570] sm:$0xff]
    %v231 = vld [vmem:[#allocation2 + $0x578] sm:$0xff]
    %v232 = vld [vmem:[#allocation2 + $0x580] sm:$0xff]
    %v233 = vld [vmem:[#allocation2 + $0x588] sm:$0xff]
    %v234 = vld [vmem:[#allocation2 + $0x590] sm:$0xff]
    %v235 = vld [vmem:[#allocation2 + $0x598] sm:$0xff]
    %v236 = vld [vmem:[#allocation2 + $0x5a0] sm:$0xff]
    %v237 = vld [vmem:[#allocation2 + $0x5a8] sm:$0xff]
    %v238 = vld [vmem:[#allocation2 + $0x5b0] sm:$0xff]
    %v239 = vld [vmem:[#allocation2 + $0x5b8] sm:$0xff]
    %v240 = vld [vmem:[#allocation2 + $0x5c0] sm:$0xff]
    %v241 = vld [vmem:[#allocation2 + $0x5c8] sm:$0xff]
    %v242 = vld [vmem:[#allocation2 + $0x5d0] sm:$0xff]
    %v243 = vld [vmem:[#allocation2 + $0x5d8] sm:$0xff]
    %v244 = vld [vmem:[#allocation2 + $0x5e0] sm:$0xff]
    %v245 = vld [vmem:[#allocation2 + $0x5e8] sm:$0xff]
    %v246 = vld [vmem:[#allocation2 + $0x5f0] sm:$0xff]
    %v247 = vld [vmem:[#allocation2 + $0x5f8] sm:$0xff]
    %vm248 = vsmask.f32 3328
    %vm249 = vsmask.f32 7440
    %vm250 = vmor %vm248, %vm249
    %v252 = vshrl.u32 %v44, 16
    %v254 = vrot.slane %v252, 4
    %v255 = vshll.u32 %v44, 16
    %v257 = vrot.slane %v255, 5
    %v258 = vor.u32 %v254, %v257
    %v259 = vrot.slane %v258, 4
    %v261 = vshll.u32 %v47, 16
    %v263 = vrot.slane %v261, 5
    %v264 = vsel %vm250, %v259, %v263
    %v266 = vshrl.u32 %v45, 16
    %v268 = vrot.slane %v266, 4
    %v269 = vshll.u32 %v45, 16
    %v271 = vrot.slane %v269, 5
    %v272 = vor.u32 %v268, %v271
    %v273 = vrot.slane %v272, 4
    %v275 = vshll.u32 %v48, 16
    %v277 = vrot.slane %v275, 5
    %v278 = vsel %vm250, %v273, %v277
    %v280 = vshrl.u32 %v46, 16
    %v282 = vrot.slane %v280, 4
    %v283 = vshll.u32 %v46, 16
    %v285 = vrot.slane %v283, 5
    %v286 = vor.u32 %v282, %v285
    %v287 = vrot.slane %v286, 4
    %v289 = vshll.u32 %v49, 16
    %v291 = vrot.slane %v289, 5
    %v292 = vsel %vm250, %v287, %v291
    %v294 = vshrl.u32 %v50, 16
    %v296 = vrot.slane %v294, 4
    %v297 = vshll.u32 %v50, 16
    %v299 = vrot.slane %v297, 5
    %v300 = vor.u32 %v296, %v299
    %v301 = vrot.slane %v300, 4
    %v303 = vshll.u32 %v53, 16
    %v305 = vrot.slane %v303, 5
    %v306 = vsel %vm250, %v301, %v305
    %v308 = vshrl.u32 %v51, 16
    %v310 = vrot.slane %v308, 4
    %v311 = vshll.u32 %v51, 16
    %v313 = vrot.slane %v311, 5
    %v314 = vor.u32 %v310, %v313
    %v315 = vrot.slane %v314, 4
    %v317 = vshll.u32 %v54, 16
    %v319 = vrot.slane %v317, 5
    %v320 = vsel %vm250, %v315, %v319
    %v322 = vshrl.u32 %v52, 16
    %v324 = vrot.slane %v322, 4
    %v325 = vshll.u32 %v52, 16
    %v327 = vrot.slane %v325, 5
    %v328 = vor.u32 %v324, %v327
    %v329 = vrot.slane %v328, 4
    %v331 = vshll.u32 %v55, 16
    %v333 = vrot.slane %v331, 5
    %v334 = vsel %vm250, %v329, %v333
    %s335 = scalar_lea.vmem [#allocation2], 1536
    %v336 = vld [vmem:[%s335] sm:$0xff]
    %v337 = vld [vmem:[%s335 + $0x8] sm:$0xff]
    %v338 = vld [vmem:[%s335 + $0x10] sm:$0xff]
    %v339 = vld [vmem:[%s335 + $0x18] sm:$0xff]
    %v340 = vld [vmem:[%s335 + $0x20] sm:$0xff]
    %v341 = vld [vmem:[%s335 + $0x28] sm:$0xff]
    %v342 = vld [vmem:[%s335 + $0x30] sm:$0xff]
    %v343 = vld [vmem:[%s335 + $0x38] sm:$0xff]
    %v344 = vld [vmem:[%s335 + $0x40] sm:$0xff]
    %v345 = vld [vmem:[%s335 + $0x48] sm:$0xff]
    %v346 = vld [vmem:[%s335 + $0x50] sm:$0xff]
    %v347 = vld [vmem:[%s335 + $0x58] sm:$0xff]
    %v348 = vld [vmem:[%s335 + $0x60] sm:$0xff]
    %v349 = vld [vmem:[%s335 + $0x68] sm:$0xff]
    %v350 = vld [vmem:[%s335 + $0x70] sm:$0xff]
    %v351 = vld [vmem:[%s335 + $0x78] sm:$0xff]
    %v352 = vld [vmem:[%s335 + $0x80] sm:$0xff]
    %v353 = vld [vmem:[%s335 + $0x88] sm:$0xff]
    %v354 = vld [vmem:[%s335 + $0x90] sm:$0xff]
    %v355 = vld [vmem:[%s335 + $0x98] sm:$0xff]
    %v356 = vld [vmem:[%s335 + $0xa0] sm:$0xff]
    %v357 = vld [vmem:[%s335 + $0xa8] sm:$0xff]
    %v358 = vld [vmem:[%s335 + $0xb0] sm:$0xff]
    %v359 = vld [vmem:[%s335 + $0xb8] sm:$0xff]
    %v360 = vld [vmem:[%s335 + $0xc0] sm:$0xff]
    %v361 = vld [vmem:[%s335 + $0xc8] sm:$0xff]
    %v362 = vld [vmem:[%s335 + $0xd0] sm:$0xff]
    %v363 = vld [vmem:[%s335 + $0xd8] sm:$0xff]
    %v364 = vld [vmem:[%s335 + $0xe0] sm:$0xff]
    %v365 = vld [vmem:[%s335 + $0xe8] sm:$0xff]
    %v366 = vld [vmem:[%s335 + $0xf0] sm:$0xff]
    %v367 = vld [vmem:[%s335 + $0xf8] sm:$0xff]
    %v368 = vld [vmem:[%s335 + $0x100] sm:$0xff]
    %v369 = vld [vmem:[%s335 + $0x108] sm:$0xff]
    %v370 = vld [vmem:[%s335 + $0x110] sm:$0xff]
    %v371 = vld [vmem:[%s335 + $0x118] sm:$0xff]
    %v372 = vld [vmem:[%s335 + $0x120] sm:$0xff]
    %v373 = vld [vmem:[%s335 + $0x128] sm:$0xff]
    %v374 = vld [vmem:[%s335 + $0x130] sm:$0xff]
    %v375 = vld [vmem:[%s335 + $0x138] sm:$0xff]
    %v376 = vld [vmem:[%s335 + $0x140] sm:$0xff]
    %v377 = vld [vmem:[%s335 + $0x148] sm:$0xff]
    %v378 = vld [vmem:[%s335 + $0x150] sm:$0xff]
    %v379 = vld [vmem:[%s335 + $0x158] sm:$0xff]
    %v380 = vld [vmem:[%s335 + $0x160] sm:$0xff]
    %v381 = vld [vmem:[%s335 + $0x168] sm:$0xff]
    %v382 = vld [vmem:[%s335 + $0x170] sm:$0xff]
    %v383 = vld [vmem:[%s335 + $0x178] sm:$0xff]
    %v384 = vld [vmem:[%s335 + $0x180] sm:$0xff]
    %v385 = vld [vmem:[%s335 + $0x188] sm:$0xff]
    %v386 = vld [vmem:[%s335 + $0x190] sm:$0xff]
    %v387 = vld [vmem:[%s335 + $0x198] sm:$0xff]
    %v388 = vld [vmem:[%s335 + $0x1a0] sm:$0xff]
    %v389 = vld [vmem:[%s335 + $0x1a8] sm:$0xff]
    %v390 = vld [vmem:[%s335 + $0x1b0] sm:$0xff]
    %v391 = vld [vmem:[%s335 + $0x1b8] sm:$0xff]
    %v392 = vld [vmem:[%s335 + $0x1c0] sm:$0xff]
    %v393 = vld [vmem:[%s335 + $0x1c8] sm:$0xff]
    %v394 = vld [vmem:[%s335 + $0x1d0] sm:$0xff]
    %v395 = vld [vmem:[%s335 + $0x1d8] sm:$0xff]
    %v396 = vld [vmem:[%s335 + $0x1e0] sm:$0xff]
    %v397 = vld [vmem:[%s335 + $0x1e8] sm:$0xff]
    %v398 = vld [vmem:[%s335 + $0x1f0] sm:$0xff]
    %v399 = vld [vmem:[%s335 + $0x1f8] sm:$0xff]
    %v400 = vld [vmem:[%s335 + $0x200] sm:$0xff]
    %v401 = vld [vmem:[%s335 + $0x208] sm:$0xff]
    %v402 = vld [vmem:[%s335 + $0x210] sm:$0xff]
    %v403 = vld [vmem:[%s335 + $0x218] sm:$0xff]
    %v404 = vld [vmem:[%s335 + $0x220] sm:$0xff]
    %v405 = vld [vmem:[%s335 + $0x228] sm:$0xff]
    %v406 = vld [vmem:[%s335 + $0x230] sm:$0xff]
    %v407 = vld [vmem:[%s335 + $0x238] sm:$0xff]
    %v408 = vld [vmem:[%s335 + $0x240] sm:$0xff]
    %v409 = vld [vmem:[%s335 + $0x248] sm:$0xff]
    %v410 = vld [vmem:[%s335 + $0x250] sm:$0xff]
    %v411 = vld [vmem:[%s335 + $0x258] sm:$0xff]
    %v412 = vld [vmem:[%s335 + $0x260] sm:$0xff]
    %v413 = vld [vmem:[%s335 + $0x268] sm:$0xff]
    %v414 = vld [vmem:[%s335 + $0x270] sm:$0xff]
    %v415 = vld [vmem:[%s335 + $0x278] sm:$0xff]
    %v416 = vld [vmem:[%s335 + $0x280] sm:$0xff]
    %v417 = vld [vmem:[%s335 + $0x288] sm:$0xff]
    %v418 = vld [vmem:[%s335 + $0x290] sm:$0xff]
    %v419 = vld [vmem:[%s335 + $0x298] sm:$0xff]
    %v420 = vld [vmem:[%s335 + $0x2a0] sm:$0xff]
    %v421 = vld [vmem:[%s335 + $0x2a8] sm:$0xff]
    %v422 = vld [vmem:[%s335 + $0x2b0] sm:$0xff]
    %v423 = vld [vmem:[%s335 + $0x2b8] sm:$0xff]
    %v424 = vld [vmem:[%s335 + $0x2c0] sm:$0xff]
    %v425 = vld [vmem:[%s335 + $0x2c8] sm:$0xff]
    %v426 = vld [vmem:[%s335 + $0x2d0] sm:$0xff]
    %v427 = vld [vmem:[%s335 + $0x2d8] sm:$0xff]
    %v428 = vld [vmem:[%s335 + $0x2e0] sm:$0xff]
    %v429 = vld [vmem:[%s335 + $0x2e8] sm:$0xff]
    %v430 = vld [vmem:[%s335 + $0x2f0] sm:$0xff]
    %v431 = vld [vmem:[%s335 + $0x2f8] sm:$0xff]
    %v432 = vld [vmem:[%s335 + $0x300] sm:$0xff]
    %v433 = vld [vmem:[%s335 + $0x308] sm:$0xff]
    %v434 = vld [vmem:[%s335 + $0x310] sm:$0xff]
    %v435 = vld [vmem:[%s335 + $0x318] sm:$0xff]
    %v436 = vld [vmem:[%s335 + $0x320] sm:$0xff]
    %v437 = vld [vmem:[%s335 + $0x328] sm:$0xff]
    %v438 = vld [vmem:[%s335 + $0x330] sm:$0xff]
    %v439 = vld [vmem:[%s335 + $0x338] sm:$0xff]
    %v440 = vld [vmem:[%s335 + $0x340] sm:$0xff]
    %v441 = vld [vmem:[%s335 + $0x348] sm:$0xff]
    %v442 = vld [vmem:[%s335 + $0x350] sm:$0xff]
    %v443 = vld [vmem:[%s335 + $0x358] sm:$0xff]
    %v444 = vld [vmem:[%s335 + $0x360] sm:$0xff]
    %v445 = vld [vmem:[%s335 + $0x368] sm:$0xff]
    %v446 = vld [vmem:[%s335 + $0x370] sm:$0xff]
    %v447 = vld [vmem:[%s335 + $0x378] sm:$0xff]
    %v448 = vld [vmem:[%s335 + $0x380] sm:$0xff]
    %v449 = vld [vmem:[%s335 + $0x388] sm:$0xff]
    %v450 = vld [vmem:[%s335 + $0x390] sm:$0xff]
    %v451 = vld [vmem:[%s335 + $0x398] sm:$0xff]
    %v452 = vld [vmem:[%s335 + $0x3a0] sm:$0xff]
    %v453 = vld [vmem:[%s335 + $0x3a8] sm:$0xff]
    %v454 = vld [vmem:[%s335 + $0x3b0] sm:$0xff]
    %v455 = vld [vmem:[%s335 + $0x3b8] sm:$0xff]
    %v456 = vld [vmem:[%s335 + $0x3c0] sm:$0xff]
    %v457 = vld [vmem:[%s335 + $0x3c8] sm:$0xff]
    %v458 = vld [vmem:[%s335 + $0x3d0] sm:$0xff]
    %v459 = vld [vmem:[%s335 + $0x3d8] sm:$0xff]
    %v460 = vld [vmem:[%s335 + $0x3e0] sm:$0xff]
    %v461 = vld [vmem:[%s335 + $0x3e8] sm:$0xff]
    %v462 = vld [vmem:[%s335 + $0x3f0] sm:$0xff]
    %v463 = vld [vmem:[%s335 + $0x3f8] sm:$0xff]
    %v464 = vld [vmem:[%s335 + $0x400] sm:$0xff]
    %v465 = vld [vmem:[%s335 + $0x408] sm:$0xff]
    %v466 = vld [vmem:[%s335 + $0x410] sm:$0xff]
    %v467 = vld [vmem:[%s335 + $0x418] sm:$0xff]
    %v468 = vld [vmem:[%s335 + $0x420] sm:$0xff]
    %v469 = vld [vmem:[%s335 + $0x428] sm:$0xff]
    %v470 = vld [vmem:[%s335 + $0x430] sm:$0xff]
    %v471 = vld [vmem:[%s335 + $0x438] sm:$0xff]
    %v472 = vld [vmem:[%s335 + $0x440] sm:$0xff]
    %v473 = vld [vmem:[%s335 + $0x448] sm:$0xff]
    %v474 = vld [vmem:[%s335 + $0x450] sm:$0xff]
    %v475 = vld [vmem:[%s335 + $0x458] sm:$0xff]
    %v476 = vld [vmem:[%s335 + $0x460] sm:$0xff]
    %v477 = vld [vmem:[%s335 + $0x468] sm:$0xff]
    %v478 = vld [vmem:[%s335 + $0x470] sm:$0xff]
    %v479 = vld [vmem:[%s335 + $0x478] sm:$0xff]
    %v480 = vld [vmem:[%s335 + $0x480] sm:$0xff]
    %v481 = vld [vmem:[%s335 + $0x488] sm:$0xff]
    %v482 = vld [vmem:[%s335 + $0x490] sm:$0xff]
    %v483 = vld [vmem:[%s335 + $0x498] sm:$0xff]
    %v484 = vld [vmem:[%s335 + $0x4a0] sm:$0xff]
    %v485 = vld [vmem:[%s335 + $0x4a8] sm:$0xff]
    %v486 = vld [vmem:[%s335 + $0x4b0] sm:$0xff]
    %v487 = vld [vmem:[%s335 + $0x4b8] sm:$0xff]
    %v488 = vld [vmem:[%s335 + $0x4c0] sm:$0xff]
    %v489 = vld [vmem:[%s335 + $0x4c8] sm:$0xff]
    %v490 = vld [vmem:[%s335 + $0x4d0] sm:$0xff]
    %v491 = vld [vmem:[%s335 + $0x4d8] sm:$0xff]
    %v492 = vld [vmem:[%s335 + $0x4e0] sm:$0xff]
    %v493 = vld [vmem:[%s335 + $0x4e8] sm:$0xff]
    %v494 = vld [vmem:[%s335 + $0x4f0] sm:$0xff]
    %v495 = vld [vmem:[%s335 + $0x4f8] sm:$0xff]
    %v496 = vld [vmem:[%s335 + $0x500] sm:$0xff]
    %v497 = vld [vmem:[%s335 + $0x508] sm:$0xff]
    %v498 = vld [vmem:[%s335 + $0x510] sm:$0xff]
    %v499 = vld [vmem:[%s335 + $0x518] sm:$0xff]
    %v500 = vld [vmem:[%s335 + $0x520] sm:$0xff]
    %v501 = vld [vmem:[%s335 + $0x528] sm:$0xff]
    %v502 = vld [vmem:[%s335 + $0x530] sm:$0xff]
    %v503 = vld [vmem:[%s335 + $0x538] sm:$0xff]
    %v504 = vld [vmem:[%s335 + $0x540] sm:$0xff]
    %v505 = vld [vmem:[%s335 + $0x548] sm:$0xff]
    %v506 = vld [vmem:[%s335 + $0x550] sm:$0xff]
    %v507 = vld [vmem:[%s335 + $0x558] sm:$0xff]
    %v508 = vld [vmem:[%s335 + $0x560] sm:$0xff]
    %v509 = vld [vmem:[%s335 + $0x568] sm:$0xff]
    %v510 = vld [vmem:[%s335 + $0x570] sm:$0xff]
    %v511 = vld [vmem:[%s335 + $0x578] sm:$0xff]
    %v512 = vld [vmem:[%s335 + $0x580] sm:$0xff]
    %v513 = vld [vmem:[%s335 + $0x588] sm:$0xff]
    %v514 = vld [vmem:[%s335 + $0x590] sm:$0xff]
    %v515 = vld [vmem:[%s335 + $0x598] sm:$0xff]
    %v516 = vld [vmem:[%s335 + $0x5a0] sm:$0xff]
    %v517 = vld [vmem:[%s335 + $0x5a8] sm:$0xff]
    %v518 = vld [vmem:[%s335 + $0x5b0] sm:$0xff]
    %v519 = vld [vmem:[%s335 + $0x5b8] sm:$0xff]
    %v520 = vld [vmem:[%s335 + $0x5c0] sm:$0xff]
    %v521 = vld [vmem:[%s335 + $0x5c8] sm:$0xff]
    %v522 = vld [vmem:[%s335 + $0x5d0] sm:$0xff]
    %v523 = vld [vmem:[%s335 + $0x5d8] sm:$0xff]
    %v524 = vld [vmem:[%s335 + $0x5e0] sm:$0xff]
    %v525 = vld [vmem:[%s335 + $0x5e8] sm:$0xff]
    %v526 = vld [vmem:[%s335 + $0x5f0] sm:$0xff]
    %v527 = vld [vmem:[%s335 + $0x5f8] sm:$0xff]
    %v528 = vunpack.c.l.b16 %v264
    %v529 = vunpack.c.h.b16 %v264
    %v530 = vunpack.c.l.b16 %v278
    %v531 = vunpack.c.h.b16 %v278
    %v532 = vunpack.c.l.b16 %v292
    %v533 = vunpack.c.h.b16 %v292
    %v534 = vunpack.c.l.b16 %v306
    %v535 = vunpack.c.h.b16 %v306
    %v536 = vunpack.c.l.b16 %v320
    %v537 = vunpack.c.h.b16 %v320
    %v538 = vunpack.c.l.b16 %v334
    %v539 = vunpack.c.h.b16 %v334
    %v540 = vpack.c.b16 %v534, %v528
    %v541 = vpack.c.b16 %v535, %v529
    %v542 = vpack.c.b16 %v536, %v530
    %v543 = vpack.c.b16 %v537, %v531
    %v544 = vpack.c.b16 %v538, %v532
    %v545 = vpack.c.b16 %v539, %v533
    %v744 = vunpack.c.l.b16 %v336
    %v745 = vunpack.c.h.b16 %v336
    %v746 = vunpack.c.l.b16 %v337
    %v747 = vunpack.c.h.b16 %v337
    %v748 = vunpack.c.l.b16 %v338
    %v749 = vunpack.c.h.b16 %v338
    %v750 = vunpack.c.l.b16 %v339
    %v751 = vunpack.c.h.b16 %v339
    %v752 = vunpack.c.l.b16 %v340
    %v753 = vunpack.c.h.b16 %v340
    %v754 = vunpack.c.l.b16 %v341
    %v755 = vunpack.c.h.b16 %v341
    %v756 = vunpack.c.l.b16 %v342
    %v757 = vunpack.c.h.b16 %v342
    %v758 = vunpack.c.l.b16 %v343
    %v759 = vunpack.c.h.b16 %v343
    %v760 = vunpack.c.l.b16 %v344
    %v761 = vunpack.c.h.b16 %v344
    %v762 = vunpack.c.l.b16 %v345
    %v763 = vunpack.c.h.b16 %v345
    %v764 = vunpack.c.l.b16 %v346
    %v765 = vunpack.c.h.b16 %v346
    %v766 = vunpack.c.l.b16 %v347
    %v767 = vunpack.c.h.b16 %v347
    %v768 = vunpack.c.l.b16 %v348
    %v769 = vunpack.c.h.b16 %v348
    %v770 = vunpack.c.l.b16 %v349
    %v771 = vunpack.c.h.b16 %v349
    %v772 = vunpack.c.l.b16 %v350
    %v773 = vunpack.c.h.b16 %v350
    %v774 = vunpack.c.l.b16 %v351
    %v775 = vunpack.c.h.b16 %v351
    %v776 = vunpack.c.l.b16 %v352
    %v777 = vunpack.c.h.b16 %v352
    %v778 = vunpack.c.l.b16 %v353
    %v779 = vunpack.c.h.b16 %v353
    %v780 = vunpack.c.l.b16 %v354
    %v781 = vunpack.c.h.b16 %v354
    %v782 = vunpack.c.l.b16 %v355
    %v783 = vunpack.c.h.b16 %v355
    %v784 = vunpack.c.l.b16 %v356
    %v785 = vunpack.c.h.b16 %v356
    %v786 = vunpack.c.l.b16 %v357
    %v787 = vunpack.c.h.b16 %v357
    %v788 = vunpack.c.l.b16 %v358
    %v789 = vunpack.c.h.b16 %v358
    %v790 = vunpack.c.l.b16 %v359
    %v791 = vunpack.c.h.b16 %v359
    %v792 = vunpack.c.l.b16 %v360
    %v793 = vunpack.c.h.b16 %v360
    %v794 = vunpack.c.l.b16 %v361
    %v795 = vunpack.c.h.b16 %v361
    %v796 = vunpack.c.l.b16 %v362
    %v797 = vunpack.c.h.b16 %v362
    %v798 = vunpack.c.l.b16 %v363
    %v799 = vunpack.c.h.b16 %v363
    %v800 = vunpack.c.l.b16 %v364
    %v801 = vunpack.c.h.b16 %v364
    %v802 = vunpack.c.l.b16 %v365
    %v803 = vunpack.c.h.b16 %v365
    %v804 = vunpack.c.l.b16 %v366
    %v805 = vunpack.c.h.b16 %v366
    %v806 = vunpack.c.l.b16 %v367
    %v807 = vunpack.c.h.b16 %v367
    %v808 = vunpack.c.l.b16 %v368
    %v809 = vunpack.c.h.b16 %v368
    %v810 = vunpack.c.l.b16 %v369
    %v811 = vunpack.c.h.b16 %v369
    %v812 = vunpack.c.l.b16 %v370
    %v813 = vunpack.c.h.b16 %v370
    %v814 = vunpack.c.l.b16 %v371
    %v815 = vunpack.c.h.b16 %v371
    %v816 = vunpack.c.l.b16 %v372
    %v817 = vunpack.c.h.b16 %v372
    %v818 = vunpack.c.l.b16 %v373
    %v819 = vunpack.c.h.b16 %v373
    %v820 = vunpack.c.l.b16 %v374
    %v821 = vunpack.c.h.b16 %v374
    %v822 = vunpack.c.l.b16 %v375
    %v823 = vunpack.c.h.b16 %v375
    %v824 = vunpack.c.l.b16 %v376
    %v825 = vunpack.c.h.b16 %v376
    %v826 = vunpack.c.l.b16 %v377
    %v827 = vunpack.c.h.b16 %v377
    %v828 = vunpack.c.l.b16 %v378
    %v829 = vunpack.c.h.b16 %v378
    %v830 = vunpack.c.l.b16 %v379
    %v831 = vunpack.c.h.b16 %v379
    %v832 = vunpack.c.l.b16 %v380
    %v833 = vunpack.c.h.b16 %v380
    %v834 = vunpack.c.l.b16 %v381
    %v835 = vunpack.c.h.b16 %v381
    %v836 = vunpack.c.l.b16 %v382
    %v837 = vunpack.c.h.b16 %v382
    %v838 = vunpack.c.l.b16 %v383
    %v839 = vunpack.c.h.b16 %v383
    %v840 = vunpack.c.l.b16 %v384
    %v841 = vunpack.c.h.b16 %v384
    %v842 = vunpack.c.l.b16 %v385
    %v843 = vunpack.c.h.b16 %v385
    %v844 = vunpack.c.l.b16 %v386
    %v845 = vunpack.c.h.b16 %v386
    %v846 = vunpack.c.l.b16 %v387
    %v847 = vunpack.c.h.b16 %v387
    %v848 = vunpack.c.l.b16 %v388
    %v849 = vunpack.c.h.b16 %v388
    %v850 = vunpack.c.l.b16 %v389
    %v851 = vunpack.c.h.b16 %v389
    %v852 = vunpack.c.l.b16 %v390
    %v853 = vunpack.c.h.b16 %v390
    %v854 = vunpack.c.l.b16 %v391
    %v855 = vunpack.c.h.b16 %v391
    %v856 = vunpack.c.l.b16 %v392
    %v857 = vunpack.c.h.b16 %v392
    %v858 = vunpack.c.l.b16 %v393
    %v859 = vunpack.c.h.b16 %v393
    %v860 = vunpack.c.l.b16 %v394
    %v861 = vunpack.c.h.b16 %v394
    %v862 = vunpack.c.l.b16 %v395
    %v863 = vunpack.c.h.b16 %v395
    %v864 = vunpack.c.l.b16 %v396
    %v865 = vunpack.c.h.b16 %v396
    %v866 = vunpack.c.l.b16 %v397
    %v867 = vunpack.c.h.b16 %v397
    %v868 = vunpack.c.l.b16 %v398
    %v869 = vunpack.c.h.b16 %v398
    %v870 = vunpack.c.l.b16 %v399
    %v871 = vunpack.c.h.b16 %v399
    %v872 = vunpack.c.l.b16 %v400
    %v873 = vunpack.c.h.b16 %v400
    %v874 = vunpack.c.l.b16 %v401
    %v875 = vunpack.c.h.b16 %v401
    %v876 = vunpack.c.l.b16 %v402
    %v877 = vunpack.c.h.b16 %v402
    %v878 = vunpack.c.l.b16 %v403
    %v879 = vunpack.c.h.b16 %v403
    %v880 = vunpack.c.l.b16 %v404
    %v881 = vunpack.c.h.b16 %v404
    %v882 = vunpack.c.l.b16 %v405
    %v883 = vunpack.c.h.b16 %v405
    %v884 = vunpack.c.l.b16 %v406
    %v885 = vunpack.c.h.b16 %v406
    %v886 = vunpack.c.l.b16 %v407
    %v887 = vunpack.c.h.b16 %v407
    %v888 = vunpack.c.l.b16 %v408
    %v889 = vunpack.c.h.b16 %v408
    %v890 = vunpack.c.l.b16 %v409
    %v891 = vunpack.c.h.b16 %v409
    %v892 = vunpack.c.l.b16 %v410
    %v893 = vunpack.c.h.b16 %v410
    %v894 = vunpack.c.l.b16 %v411
    %v895 = vunpack.c.h.b16 %v411
    %v896 = vunpack.c.l.b16 %v412
    %v897 = vunpack.c.h.b16 %v412
    %v898 = vunpack.c.l.b16 %v413
    %v899 = vunpack.c.h.b16 %v413
    %v900 = vunpack.c.l.b16 %v414
    %v901 = vunpack.c.h.b16 %v414
    %v902 = vunpack.c.l.b16 %v415
    %v903 = vunpack.c.h.b16 %v415
    %v904 = vunpack.c.l.b16 %v416
    %v905 = vunpack.c.h.b16 %v416
    %v906 = vunpack.c.l.b16 %v417
    %v907 = vunpack.c.h.b16 %v417
    %v908 = vunpack.c.l.b16 %v418
    %v909 = vunpack.c.h.b16 %v418
    %v910 = vunpack.c.l.b16 %v419
    %v911 = vunpack.c.h.b16 %v419
    %v912 = vunpack.c.l.b16 %v420
    %v913 = vunpack.c.h.b16 %v420
    %v914 = vunpack.c.l.b16 %v421
    %v915 = vunpack.c.h.b16 %v421
    %v916 = vunpack.c.l.b16 %v422
    %v917 = vunpack.c.h.b16 %v422
    %v918 = vunpack.c.l.b16 %v423
    %v919 = vunpack.c.h.b16 %v423
    %v920 = vunpack.c.l.b16 %v424
    %v921 = vunpack.c.h.b16 %v424
    %v922 = vunpack.c.l.b16 %v425
    %v923 = vunpack.c.h.b16 %v425
    %v924 = vunpack.c.l.b16 %v426
    %v925 = vunpack.c.h.b16 %v426
    %v926 = vunpack.c.l.b16 %v427
    %v927 = vunpack.c.h.b16 %v427
    %v928 = vunpack.c.l.b16 %v428
    %v929 = vunpack.c.h.b16 %v428
    %v930 = vunpack.c.l.b16 %v429
    %v931 = vunpack.c.h.b16 %v429
    %v932 = vunpack.c.l.b16 %v430
    %v933 = vunpack.c.h.b16 %v430
    %v934 = vunpack.c.l.b16 %v431
    %v935 = vunpack.c.h.b16 %v431
    %v936 = vunpack.c.l.b16 %v432
    %v937 = vunpack.c.h.b16 %v432
    %v938 = vunpack.c.l.b16 %v433
    %v939 = vunpack.c.h.b16 %v433
    %v940 = vunpack.c.l.b16 %v434
    %v941 = vunpack.c.h.b16 %v434
    %v942 = vunpack.c.l.b16 %v435
    %v943 = vunpack.c.h.b16 %v435
    %v944 = vunpack.c.l.b16 %v436
    %v945 = vunpack.c.h.b16 %v436
    %v946 = vunpack.c.l.b16 %v437
    %v947 = vunpack.c.h.b16 %v437
    %v948 = vunpack.c.l.b16 %v438
    %v949 = vunpack.c.h.b16 %v438
    %v950 = vunpack.c.l.b16 %v439
    %v951 = vunpack.c.h.b16 %v439
    %v952 = vunpack.c.l.b16 %v440
    %v953 = vunpack.c.h.b16 %v440
    %v954 = vunpack.c.l.b16 %v441
    %v955 = vunpack.c.h.b16 %v441
    %v956 = vunpack.c.l.b16 %v442
    %v957 = vunpack.c.h.b16 %v442
    %v958 = vunpack.c.l.b16 %v443
    %v959 = vunpack.c.h.b16 %v443
    %v960 = vunpack.c.l.b16 %v444
    %v961 = vunpack.c.h.b16 %v444
    %v962 = vunpack.c.l.b16 %v445
    %v963 = vunpack.c.h.b16 %v445
    %v964 = vunpack.c.l.b16 %v446
    %v965 = vunpack.c.h.b16 %v446
    %v966 = vunpack.c.l.b16 %v447
    %v967 = vunpack.c.h.b16 %v447
    %v968 = vunpack.c.l.b16 %v448
    %v969 = vunpack.c.h.b16 %v448
    %v970 = vunpack.c.l.b16 %v449
    %v971 = vunpack.c.h.b16 %v449
    %v972 = vunpack.c.l.b16 %v450
    %v973 = vunpack.c.h.b16 %v450
    %v974 = vunpack.c.l.b16 %v451
    %v975 = vunpack.c.h.b16 %v451
    %v976 = vunpack.c.l.b16 %v452
    %v977 = vunpack.c.h.b16 %v452
    %v978 = vunpack.c.l.b16 %v453
    %v979 = vunpack.c.h.b16 %v453
    %v980 = vunpack.c.l.b16 %v454
    %v981 = vunpack.c.h.b16 %v454
    %v982 = vunpack.c.l.b16 %v455
    %v983 = vunpack.c.h.b16 %v455
    %v984 = vunpack.c.l.b16 %v456
    %v985 = vunpack.c.h.b16 %v456
    %v986 = vunpack.c.l.b16 %v457
    %v987 = vunpack.c.h.b16 %v457
    %v988 = vunpack.c.l.b16 %v458
    %v989 = vunpack.c.h.b16 %v458
    %v990 = vunpack.c.l.b16 %v459
    %v991 = vunpack.c.h.b16 %v459
    %v992 = vunpack.c.l.b16 %v460
    %v993 = vunpack.c.h.b16 %v460
    %v994 = vunpack.c.l.b16 %v461
    %v995 = vunpack.c.h.b16 %v461
    %v996 = vunpack.c.l.b16 %v462
    %v997 = vunpack.c.h.b16 %v462
    %v998 = vunpack.c.l.b16 %v463
    %v999 = vunpack.c.h.b16 %v463
    %v1000 = vunpack.c.l.b16 %v464
    %v1001 = vunpack.c.h.b16 %v464
    %v1002 = vunpack.c.l.b16 %v465
    %v1003 = vunpack.c.h.b16 %v465
    %v1004 = vunpack.c.l.b16 %v466
    %v1005 = vunpack.c.h.b16 %v466
    %v1006 = vunpack.c.l.b16 %v467
    %v1007 = vunpack.c.h.b16 %v467
    %v1008 = vunpack.c.l.b16 %v468
    %v1009 = vunpack.c.h.b16 %v468
    %v1010 = vunpack.c.l.b16 %v469
    %v1011 = vunpack.c.h.b16 %v469
    %v1012 = vunpack.c.l.b16 %v470
    %v1013 = vunpack.c.h.b16 %v470
    %v1014 = vunpack.c.l.b16 %v471
    %v1015 = vunpack.c.h.b16 %v471
    %v1016 = vunpack.c.l.b16 %v472
    %v1017 = vunpack.c.h.b16 %v472
    %v1018 = vunpack.c.l.b16 %v473
    %v1019 = vunpack.c.h.b16 %v473
    %v1020 = vunpack.c.l.b16 %v474
    %v1021 = vunpack.c.h.b16 %v474
    %v1022 = vunpack.c.l.b16 %v475
    %v1023 = vunpack.c.h.b16 %v475
    %v1024 = vunpack.c.l.b16 %v476
    %v1025 = vunpack.c.h.b16 %v476
    %v1026 = vunpack.c.l.b16 %v477
    %v1027 = vunpack.c.h.b16 %v477
    %v1028 = vunpack.c.l.b16 %v478
    %v1029 = vunpack.c.h.b16 %v478
    %v1030 = vunpack.c.l.b16 %v479
    %v1031 = vunpack.c.h.b16 %v479
    %v1032 = vunpack.c.l.b16 %v480
    %v1033 = vunpack.c.h.b16 %v480
    %v1034 = vunpack.c.l.b16 %v481
    %v1035 = vunpack.c.h.b16 %v481
    %v1036 = vunpack.c.l.b16 %v482
    %v1037 = vunpack.c.h.b16 %v482
    %v1038 = vunpack.c.l.b16 %v483
    %v1039 = vunpack.c.h.b16 %v483
    %v1040 = vunpack.c.l.b16 %v484
    %v1041 = vunpack.c.h.b16 %v484
    %v1042 = vunpack.c.l.b16 %v485
    %v1043 = vunpack.c.h.b16 %v485
    %v1044 = vunpack.c.l.b16 %v486
    %v1045 = vunpack.c.h.b16 %v486
    %v1046 = vunpack.c.l.b16 %v487
    %v1047 = vunpack.c.h.b16 %v487
    %v1048 = vunpack.c.l.b16 %v488
    %v1049 = vunpack.c.h.b16 %v488
    %v1050 = vunpack.c.l.b16 %v489
    %v1051 = vunpack.c.h.b16 %v489
    %v1052 = vunpack.c.l.b16 %v490
    %v1053 = vunpack.c.h.b16 %v490
    %v1054 = vunpack.c.l.b16 %v491
    %v1055 = vunpack.c.h.b16 %v491
    %v1056 = vunpack.c.l.b16 %v492
    %v1057 = vunpack.c.h.b16 %v492
    %v1058 = vunpack.c.l.b16 %v493
    %v1059 = vunpack.c.h.b16 %v493
    %v1060 = vunpack.c.l.b16 %v494
    %v1061 = vunpack.c.h.b16 %v494
    %v1062 = vunpack.c.l.b16 %v495
    %v1063 = vunpack.c.h.b16 %v495
    %v1064 = vunpack.c.l.b16 %v496
    %v1065 = vunpack.c.h.b16 %v496
    %v1066 = vunpack.c.l.b16 %v497
    %v1067 = vunpack.c.h.b16 %v497
    %v1068 = vunpack.c.l.b16 %v498
    %v1069 = vunpack.c.h.b16 %v498
    %v1070 = vunpack.c.l.b16 %v499
    %v1071 = vunpack.c.h.b16 %v499
    %v1072 = vunpack.c.l.b16 %v500
    %v1073 = vunpack.c.h.b16 %v500
    %v1074 = vunpack.c.l.b16 %v501
    %v1075 = vunpack.c.h.b16 %v501
    %v1076 = vunpack.c.l.b16 %v502
    %v1077 = vunpack.c.h.b16 %v502
    %v1078 = vunpack.c.l.b16 %v503
    %v1079 = vunpack.c.h.b16 %v503
    %v1080 = vunpack.c.l.b16 %v504
    %v1081 = vunpack.c.h.b16 %v504
    %v1082 = vunpack.c.l.b16 %v505
    %v1083 = vunpack.c.h.b16 %v505
    %v1084 = vunpack.c.l.b16 %v506
    %v1085 = vunpack.c.h.b16 %v506
    %v1086 = vunpack.c.l.b16 %v507
    %v1087 = vunpack.c.h.b16 %v507
    %v1088 = vunpack.c.l.b16 %v508
    %v1089 = vunpack.c.h.b16 %v508
    %v1090 = vunpack.c.l.b16 %v509
    %v1091 = vunpack.c.h.b16 %v509
    %v1092 = vunpack.c.l.b16 %v510
    %v1093 = vunpack.c.h.b16 %v510
    %v1094 = vunpack.c.l.b16 %v511
    %v1095 = vunpack.c.h.b16 %v511
    %v1096 = vunpack.c.l.b16 %v512
    %v1097 = vunpack.c.h.b16 %v512
    %v1098 = vunpack.c.l.b16 %v513
    %v1099 = vunpack.c.h.b16 %v513
    %v1100 = vunpack.c.l.b16 %v514
    %v1101 = vunpack.c.h.b16 %v514
    %v1102 = vunpack.c.l.b16 %v515
    %v1103 = vunpack.c.h.b16 %v515
    %v1104 = vunpack.c.l.b16 %v516
    %v1105 = vunpack.c.h.b16 %v516
    %v1106 = vunpack.c.l.b16 %v517
    %v1107 = vunpack.c.h.b16 %v517
    %v1108 = vunpack.c.l.b16 %v518
    %v1109 = vunpack.c.h.b16 %v518
    %v1110 = vunpack.c.l.b16 %v519
    %v1111 = vunpack.c.h.b16 %v519
    %v1112 = vunpack.c.l.b16 %v520
    %v1113 = vunpack.c.h.b16 %v520
    %v1114 = vunpack.c.l.b16 %v521
    %v1115 = vunpack.c.h.b16 %v521
    %v1116 = vunpack.c.l.b16 %v522
    %v1117 = vunpack.c.h.b16 %v522
    %v1118 = vunpack.c.l.b16 %v523
    %v1119 = vunpack.c.h.b16 %v523
    %v1120 = vunpack.c.l.b16 %v524
    %v1121 = vunpack.c.h.b16 %v524
    %v1122 = vunpack.c.l.b16 %v525
    %v1123 = vunpack.c.h.b16 %v525
    %v1124 = vunpack.c.l.b16 %v526
    %v1125 = vunpack.c.h.b16 %v526
    %v1126 = vunpack.c.l.b16 %v527
    %v1127 = vunpack.c.h.b16 %v527
    %v1128 = vpack.c.b16 %v748, %v744
    %v1129 = vpack.c.b16 %v749, %v745
    %v1130 = vpack.c.b16 %v750, %v746
    %v1131 = vpack.c.b16 %v751, %v747
    %v1132 = vpack.c.b16 %v756, %v752
    %v1133 = vpack.c.b16 %v757, %v753
    %v1134 = vpack.c.b16 %v758, %v754
    %v1135 = vpack.c.b16 %v759, %v755
    %v1136 = vpack.c.b16 %v764, %v760
    %v1137 = vpack.c.b16 %v765, %v761
    %v1138 = vpack.c.b16 %v766, %v762
    %v1139 = vpack.c.b16 %v767, %v763
    %v1140 = vpack.c.b16 %v772, %v768
    %v1141 = vpack.c.b16 %v773, %v769
    %v1142 = vpack.c.b16 %v774, %v770
    %v1143 = vpack.c.b16 %v775, %v771
    %v1144 = vpack.c.b16 %v780, %v776
    %v1145 = vpack.c.b16 %v781, %v777
    %v1146 = vpack.c.b16 %v782, %v778
    %v1147 = vpack.c.b16 %v783, %v779
    %v1148 = vpack.c.b16 %v788, %v784
    %v1149 = vpack.c.b16 %v789, %v785
    %v1150 = vpack.c.b16 %v790, %v786
    %v1151 = vpack.c.b16 %v791, %v787
    %v1152 = vpack.c.b16 %v796, %v792
    %v1153 = vpack.c.b16 %v797, %v793
    %v1154 = vpack.c.b16 %v798, %v794
    %v1155 = vpack.c.b16 %v799, %v795
    %v1156 = vpack.c.b16 %v804, %v800
    %v1157 = vpack.c.b16 %v805, %v801
    %v1158 = vpack.c.b16 %v806, %v802
    %v1159 = vpack.c.b16 %v807, %v803
    %v1160 = vpack.c.b16 %v812, %v808
    %v1161 = vpack.c.b16 %v813, %v809
    %v1162 = vpack.c.b16 %v814, %v810
    %v1163 = vpack.c.b16 %v815, %v811
    %v1164 = vpack.c.b16 %v820, %v816
    %v1165 = vpack.c.b16 %v821, %v817
    %v1166 = vpack.c.b16 %v822, %v818
    %v1167 = vpack.c.b16 %v823, %v819
    %v1168 = vpack.c.b16 %v828, %v824
    %v1169 = vpack.c.b16 %v829, %v825
    %v1170 = vpack.c.b16 %v830, %v826
    %v1171 = vpack.c.b16 %v831, %v827
    %v1172 = vpack.c.b16 %v836, %v832
    %v1173 = vpack.c.b16 %v837, %v833
    %v1174 = vpack.c.b16 %v838, %v834
    %v1175 = vpack.c.b16 %v839, %v835
    %v1176 = vpack.c.b16 %v844, %v840
    %v1177 = vpack.c.b16 %v845, %v841
    %v1178 = vpack.c.b16 %v846, %v842
    %v1179 = vpack.c.b16 %v847, %v843
    %v1180 = vpack.c.b16 %v852, %v848
    %v1181 = vpack.c.b16 %v853, %v849
    %v1182 = vpack.c.b16 %v854, %v850
    %v1183 = vpack.c.b16 %v855, %v851
    %v1184 = vpack.c.b16 %v860, %v856
    %v1185 = vpack.c.b16 %v861, %v857
    %v1186 = vpack.c.b16 %v862, %v858
    %v1187 = vpack.c.b16 %v863, %v859
    %v1188 = vpack.c.b16 %v868, %v864
    %v1189 = vpack.c.b16 %v869, %v865
    %v1190 = vpack.c.b16 %v870, %v866
    %v1191 = vpack.c.b16 %v871, %v867
    %v1192 = vpack.c.b16 %v876, %v872
    %v1193 = vpack.c.b16 %v877, %v873
    %v1194 = vpack.c.b16 %v878, %v874
    %v1195 = vpack.c.b16 %v879, %v875
    %v1196 = vpack.c.b16 %v884, %v880
    %v1197 = vpack.c.b16 %v885, %v881
    %v1198 = vpack.c.b16 %v886, %v882
    %v1199 = vpack.c.b16 %v887, %v883
    %v1200 = vpack.c.b16 %v892, %v888
    %v1201 = vpack.c.b16 %v893, %v889
    %v1202 = vpack.c.b16 %v894, %v890
    %v1203 = vpack.c.b16 %v895, %v891
    %v1204 = vpack.c.b16 %v900, %v896
    %v1205 = vpack.c.b16 %v901, %v897
    %v1206 = vpack.c.b16 %v902, %v898
    %v1207 = vpack.c.b16 %v903, %v899
    %v1208 = vpack.c.b16 %v908, %v904
    %v1209 = vpack.c.b16 %v909, %v905
    %v1210 = vpack.c.b16 %v910, %v906
    %v1211 = vpack.c.b16 %v911, %v907
    %v1212 = vpack.c.b16 %v916, %v912
    %v1213 = vpack.c.b16 %v917, %v913
    %v1214 = vpack.c.b16 %v918, %v914
    %v1215 = vpack.c.b16 %v919, %v915
    %v1216 = vpack.c.b16 %v924, %v920
    %v1217 = vpack.c.b16 %v925, %v921
    %v1218 = vpack.c.b16 %v926, %v922
    %v1219 = vpack.c.b16 %v927, %v923
    %v1220 = vpack.c.b16 %v932, %v928
    %v1221 = vpack.c.b16 %v933, %v929
    %v1222 = vpack.c.b16 %v934, %v930
    %v1223 = vpack.c.b16 %v935, %v931
    %v1224 = vpack.c.b16 %v940, %v936
    %v1225 = vpack.c.b16 %v941, %v937
    %v1226 = vpack.c.b16 %v942, %v938
    %v1227 = vpack.c.b16 %v943, %v939
    %v1228 = vpack.c.b16 %v948, %v944
    %v1229 = vpack.c.b16 %v949, %v945
    %v1230 = vpack.c.b16 %v950, %v946
    %v1231 = vpack.c.b16 %v951, %v947
    %v1232 = vpack.c.b16 %v956, %v952
    %v1233 = vpack.c.b16 %v957, %v953
    %v1234 = vpack.c.b16 %v958, %v954
    %v1235 = vpack.c.b16 %v959, %v955
    %v1236 = vpack.c.b16 %v964, %v960
    %v1237 = vpack.c.b16 %v965, %v961
    %v1238 = vpack.c.b16 %v966, %v962
    %v1239 = vpack.c.b16 %v967, %v963
    %v1240 = vpack.c.b16 %v972, %v968
    %v1241 = vpack.c.b16 %v973, %v969
    %v1242 = vpack.c.b16 %v974, %v970
    %v1243 = vpack.c.b16 %v975, %v971
    %v1244 = vpack.c.b16 %v980, %v976
    %v1245 = vpack.c.b16 %v981, %v977
    %v1246 = vpack.c.b16 %v982, %v978
    %v1247 = vpack.c.b16 %v983, %v979
    %v1248 = vpack.c.b16 %v988, %v984
    %v1249 = vpack.c.b16 %v989, %v985
    %v1250 = vpack.c.b16 %v990, %v986
    %v1251 = vpack.c.b16 %v991, %v987
    %v1252 = vpack.c.b16 %v996, %v992
    %v1253 = vpack.c.b16 %v997, %v993
    %v1254 = vpack.c.b16 %v998, %v994
    %v1255 = vpack.c.b16 %v999, %v995
    %v1256 = vpack.c.b16 %v1004, %v1000
    %v1257 = vpack.c.b16 %v1005, %v1001
    %v1258 = vpack.c.b16 %v1006, %v1002
    %v1259 = vpack.c.b16 %v1007, %v1003
    %v1260 = vpack.c.b16 %v1012, %v1008
    %v1261 = vpack.c.b16 %v1013, %v1009
    %v1262 = vpack.c.b16 %v1014, %v1010
    %v1263 = vpack.c.b16 %v1015, %v1011
    %v1264 = vpack.c.b16 %v1020, %v1016
    %v1265 = vpack.c.b16 %v1021, %v1017
    %v1266 = vpack.c.b16 %v1022, %v1018
    %v1267 = vpack.c.b16 %v1023, %v1019
    %v1268 = vpack.c.b16 %v1028, %v1024
    %v1269 = vpack.c.b16 %v1029, %v1025
    %v1270 = vpack.c.b16 %v1030, %v1026
    %v1271 = vpack.c.b16 %v1031, %v1027
    %v1272 = vpack.c.b16 %v1036, %v1032
    %v1273 = vpack.c.b16 %v1037, %v1033
    %v1274 = vpack.c.b16 %v1038, %v1034
    %v1275 = vpack.c.b16 %v1039, %v1035
    %v1276 = vpack.c.b16 %v1044, %v1040
    %v1277 = vpack.c.b16 %v1045, %v1041
    %v1278 = vpack.c.b16 %v1046, %v1042
    %v1279 = vpack.c.b16 %v1047, %v1043
    %v1280 = vpack.c.b16 %v1052, %v1048
    %v1281 = vpack.c.b16 %v1053, %v1049
    %v1282 = vpack.c.b16 %v1054, %v1050
    %v1283 = vpack.c.b16 %v1055, %v1051
    %v1284 = vpack.c.b16 %v1060, %v1056
    %v1285 = vpack.c.b16 %v1061, %v1057
    %v1286 = vpack.c.b16 %v1062, %v1058
    %v1287 = vpack.c.b16 %v1063, %v1059
    %v1288 = vpack.c.b16 %v1068, %v1064
    %v1289 = vpack.c.b16 %v1069, %v1065
    %v1290 = vpack.c.b16 %v1070, %v1066
    %v1291 = vpack.c.b16 %v1071, %v1067
    %v1292 = vpack.c.b16 %v1076, %v1072
    %v1293 = vpack.c.b16 %v1077, %v1073
    %v1294 = vpack.c.b16 %v1078, %v1074
    %v1295 = vpack.c.b16 %v1079, %v1075
    %v1296 = vpack.c.b16 %v1084, %v1080
    %v1297 = vpack.c.b16 %v1085, %v1081
    %v1298 = vpack.c.b16 %v1086, %v1082
    %v1299 = vpack.c.b16 %v1087, %v1083
    %v1300 = vpack.c.b16 %v1092, %v1088
    %v1301 = vpack.c.b16 %v1093, %v1089
    %v1302 = vpack.c.b16 %v1094, %v1090
    %v1303 = vpack.c.b16 %v1095, %v1091
    %v1304 = vpack.c.b16 %v1100, %v1096
    %v1305 = vpack.c.b16 %v1101, %v1097
    %v1306 = vpack.c.b16 %v1102, %v1098
    %v1307 = vpack.c.b16 %v1103, %v1099
    %v1308 = vpack.c.b16 %v1108, %v1104
    %v1309 = vpack.c.b16 %v1109, %v1105
    %v1310 = vpack.c.b16 %v1110, %v1106
    %v1311 = vpack.c.b16 %v1111, %v1107
    %v1312 = vpack.c.b16 %v1116, %v1112
    %v1313 = vpack.c.b16 %v1117, %v1113
    %v1314 = vpack.c.b16 %v1118, %v1114
    %v1315 = vpack.c.b16 %v1119, %v1115
    %v1316 = vpack.c.b16 %v1124, %v1120
    %v1317 = vpack.c.b16 %v1125, %v1121
    %v1318 = vpack.c.b16 %v1126, %v1122
    %v1319 = vpack.c.b16 %v1127, %v1123
    %1512 = vmatpush.bf16.msra.mxu0 %v1156
    %1513 = vmatpush.bf16.msra.mxu0 %v1152
    %1514 = vmatpush.bf16.msra.mxu0 %v1148
    %1515 = vmatpush.bf16.msra.mxu0 %v1144
    %1516 = vmatpush.bf16.msra.mxu0 %v1140
    %1517 = vmatpush.bf16.msra.mxu0 %v1136
    %1518 = vmatpush.bf16.msra.mxu0 %v1132
    %1519 = vmatpush.bf16.msra.mxu0 %v1128
    %1520 = vmatmul.bf16.gmra.mxu0 %v540
    %v1521 = vpop.f32.mrf.mxu0
    %v1522 = vadd.f32 0.0, %v1521
    %v1523 = vpop.f32.mrf.mxu0
    %v1524 = vadd.f32 0.0, %v1523
    %1525 = vdwg.mxu0
    %1526 = vmatpush.bf16.msra.mxu0 %v1188
    %1527 = vmatpush.bf16.msra.mxu0 %v1184
    %1528 = vmatpush.bf16.msra.mxu0 %v1180
    %1529 = vmatpush.bf16.msra.mxu0 %v1176
    %1530 = vmatpush.bf16.msra.mxu0 %v1172
    %1531 = vmatpush.bf16.msra.mxu0 %v1168
    %1532 = vmatpush.bf16.msra.mxu0 %v1164
    %1533 = vmatpush.bf16.msra.mxu0 %v1160
    %1534 = vmatmul.bf16.gmra.mxu0 %v541
    %v1535 = vpop.f32.mrf.mxu0
    %v1536 = vadd.f32 %v1522, %v1535
    %v1537 = vpop.f32.mrf.mxu0
    %v1538 = vadd.f32 %v1524, %v1537
    %1539 = vdwg.mxu0
    %1540 = vmatpush.bf16.msra.mxu0 %v1220
    %1541 = vmatpush.bf16.msra.mxu0 %v1216
    %1542 = vmatpush.bf16.msra.mxu0 %v1212
    %1543 = vmatpush.bf16.msra.mxu0 %v1208
    %1544 = vmatpush.bf16.msra.mxu0 %v1204
    %1545 = vmatpush.bf16.msra.mxu0 %v1200
    %1546 = vmatpush.bf16.msra.mxu0 %v1196
    %1547 = vmatpush.bf16.msra.mxu0 %v1192
    %1548 = vmatmul.bf16.gmra.mxu0 %v542
    %v1549 = vpop.f32.mrf.mxu0
    %v1550 = vadd.f32 %v1536, %v1549
    %v1551 = vpop.f32.mrf.mxu0
    %v1552 = vadd.f32 %v1538, %v1551
    %1553 = vdwg.mxu0
    %1554 = vmatpush.bf16.msra.mxu0 %v1252
    %1555 = vmatpush.bf16.msra.mxu0 %v1248
    %1556 = vmatpush.bf16.msra.mxu0 %v1244
    %1557 = vmatpush.bf16.msra.mxu0 %v1240
    %1558 = vmatpush.bf16.msra.mxu0 %v1236
    %1559 = vmatpush.bf16.msra.mxu0 %v1232
    %1560 = vmatpush.bf16.msra.mxu0 %v1228
    %1561 = vmatpush.bf16.msra.mxu0 %v1224
    %1562 = vmatmul.bf16.gmra.mxu0 %v543
    %v1563 = vpop.f32.mrf.mxu0
    %v1564 = vadd.f32 %v1550, %v1563
    %v1565 = vpop.f32.mrf.mxu0
    %v1566 = vadd.f32 %v1552, %v1565
    %1567 = vdwg.mxu0
    %1568 = vmatpush.bf16.msra.mxu0 %v1284
    %1569 = vmatpush.bf16.msra.mxu0 %v1280
    %1570 = vmatpush.bf16.msra.mxu0 %v1276
    %1571 = vmatpush.bf16.msra.mxu0 %v1272
    %1572 = vmatpush.bf16.msra.mxu0 %v1268
    %1573 = vmatpush.bf16.msra.mxu0 %v1264
    %1574 = vmatpush.bf16.msra.mxu0 %v1260
    %1575 = vmatpush.bf16.msra.mxu0 %v1256
    %1576 = vmatmul.bf16.gmra.mxu0 %v544
    %v1577 = vpop.f32.mrf.mxu0
    %v1578 = vadd.f32 %v1564, %v1577
    %v1579 = vpop.f32.mrf.mxu0
    %v1580 = vadd.f32 %v1566, %v1579
    %1581 = vdwg.mxu0
    %1582 = vmatpush.bf16.msra.mxu0 %v1316
    %1583 = vmatpush.bf16.msra.mxu0 %v1312
    %1584 = vmatpush.bf16.msra.mxu0 %v1308
    %1585 = vmatpush.bf16.msra.mxu0 %v1304
    %1586 = vmatpush.bf16.msra.mxu0 %v1300
    %1587 = vmatpush.bf16.msra.mxu0 %v1296
    %1588 = vmatpush.bf16.msra.mxu0 %v1292
    %1589 = vmatpush.bf16.msra.mxu0 %v1288
    %1590 = vmatmul.bf16.gmra.mxu0 %v545
    %v1591 = vpop.f32.mrf.mxu0
    %v1592 = vadd.f32 %v1578, %v1591
    %v1593 = vpop.f32.mrf.mxu0
    %v1594 = vadd.f32 %v1580, %v1593
    %1595 = vdwg.mxu0
    %1596 = vmatpush.bf16.msra.mxu0 %v1157
    %1597 = vmatpush.bf16.msra.mxu0 %v1153
    %1598 = vmatpush.bf16.msra.mxu0 %v1149
    %1599 = vmatpush.bf16.msra.mxu0 %v1145
    %1600 = vmatpush.bf16.msra.mxu0 %v1141
    %1601 = vmatpush.bf16.msra.mxu0 %v1137
    %1602 = vmatpush.bf16.msra.mxu0 %v1133
    %1603 = vmatpush.bf16.msra.mxu0 %v1129
    %1604 = vmatmul.bf16.gmra.mxu0 %v540
    %v1605 = vpop.f32.mrf.mxu0
    %v1606 = vadd.f32 0.0, %v1605
    %v1607 = vpop.f32.mrf.mxu0
    %v1608 = vadd.f32 0.0, %v1607
    %1609 = vdwg.mxu0
    %1610 = vmatpush.bf16.msra.mxu0 %v1189
    %1611 = vmatpush.bf16.msra.mxu0 %v1185
    %1612 = vmatpush.bf16.msra.mxu0 %v1181
    %1613 = vmatpush.bf16.msra.mxu0 %v1177
    %1614 = vmatpush.bf16.msra.mxu0 %v1173
    %1615 = vmatpush.bf16.msra.mxu0 %v1169
    %1616 = vmatpush.bf16.msra.mxu0 %v1165
    %1617 = vmatpush.bf16.msra.mxu0 %v1161
    %1618 = vmatmul.bf16.gmra.mxu0 %v541
    %v1619 = vpop.f32.mrf.mxu0
    %v1620 = vadd.f32 %v1606, %v1619
    %v1621 = vpop.f32.mrf.mxu0
    %v1622 = vadd.f32 %v1608, %v1621
    %1623 = vdwg.mxu0
    %1624 = vmatpush.bf16.msra.mxu0 %v1221
    %1625 = vmatpush.bf16.msra.mxu0 %v1217
    %1626 = vmatpush.bf16.msra.mxu0 %v1213
    %1627 = vmatpush.bf16.msra.mxu0 %v1209
    %1628 = vmatpush.bf16.msra.mxu0 %v1205
    %1629 = vmatpush.bf16.msra.mxu0 %v1201
    %1630 = vmatpush.bf16.msra.mxu0 %v1197
    %1631 = vmatpush.bf16.msra.mxu0 %v1193
    %1632 = vmatmul.bf16.gmra.mxu0 %v542
    %v1633 = vpop.f32.mrf.mxu0
    %v1634 = vadd.f32 %v1620, %v1633
    %v1635 = vpop.f32.mrf.mxu0
    %v1636 = vadd.f32 %v1622, %v1635
    %1637 = vdwg.mxu0
    %1638 = vmatpush.bf16.msra.mxu0 %v1253
    %1639 = vmatpush.bf16.msra.mxu0 %v1249
    %1640 = vmatpush.bf16.msra.mxu0 %v1245
    %1641 = vmatpush.bf16.msra.mxu0 %v1241
    %1642 = vmatpush.bf16.msra.mxu0 %v1237
    %1643 = vmatpush.bf16.msra.mxu0 %v1233
    %1644 = vmatpush.bf16.msra.mxu0 %v1229
    %1645 = vmatpush.bf16.msra.mxu0 %v1225
    %1646 = vmatmul.bf16.gmra.mxu0 %v543
    %v1647 = vpop.f32.mrf.mxu0
    %v1648 = vadd.f32 %v1634, %v1647
    %v1649 = vpop.f32.mrf.mxu0
    %v1650 = vadd.f32 %v1636, %v1649
    %1651 = vdwg.mxu0
    %1652 = vmatpush.bf16.msra.mxu0 %v1285
    %1653 = vmatpush.bf16.msra.mxu0 %v1281
    %1654 = vmatpush.bf16.msra.mxu0 %v1277
    %1655 = vmatpush.bf16.msra.mxu0 %v1273
    %1656 = vmatpush.bf16.msra.mxu0 %v1269
    %1657 = vmatpush.bf16.msra.mxu0 %v1265
    %1658 = vmatpush.bf16.msra.mxu0 %v1261
    %1659 = vmatpush.bf16.msra.mxu0 %v1257
    %1660 = vmatmul.bf16.gmra.mxu0 %v544
    %v1661 = vpop.f32.mrf.mxu0
    %v1662 = vadd.f32 %v1648, %v1661
    %v1663 = vpop.f32.mrf.mxu0
    %v1664 = vadd.f32 %v1650, %v1663
    %1665 = vdwg.mxu0
    %1666 = vmatpush.bf16.msra.mxu0 %v1317
    %1667 = vmatpush.bf16.msra.mxu0 %v1313
    %1668 = vmatpush.bf16.msra.mxu0 %v1309
    %1669 = vmatpush.bf16.msra.mxu0 %v1305
    %1670 = vmatpush.bf16.msra.mxu0 %v1301
    %1671 = vmatpush.bf16.msra.mxu0 %v1297
    %1672 = vmatpush.bf16.msra.mxu0 %v1293
    %1673 = vmatpush.bf16.msra.mxu0 %v1289
    %1674 = vmatmul.bf16.gmra.mxu0 %v545
    %v1675 = vpop.f32.mrf.mxu0
    %v1676 = vadd.f32 %v1662, %v1675
    %v1677 = vpop.f32.mrf.mxu0
    %v1678 = vadd.f32 %v1664, %v1677
    %1679 = vdwg.mxu0
    %1680 = vmatpush.bf16.msra.mxu0 %v1158
    %1681 = vmatpush.bf16.msra.mxu0 %v1154
    %1682 = vmatpush.bf16.msra.mxu0 %v1150
    %1683 = vmatpush.bf16.msra.mxu0 %v1146
    %1684 = vmatpush.bf16.msra.mxu0 %v1142
    %1685 = vmatpush.bf16.msra.mxu0 %v1138
    %1686 = vmatpush.bf16.msra.mxu0 %v1134
    %1687 = vmatpush.bf16.msra.mxu0 %v1130
    %1688 = vmatmul.bf16.gmra.mxu0 %v540
    %v1689 = vpop.f32.mrf.mxu0
    %v1690 = vadd.f32 0.0, %v1689
    %v1691 = vpop.f32.mrf.mxu0
    %v1692 = vadd.f32 0.0, %v1691
    %1693 = vdwg.mxu0
    %1694 = vmatpush.bf16.msra.mxu0 %v1190
    %1695 = vmatpush.bf16.msra.mxu0 %v1186
    %1696 = vmatpush.bf16.msra.mxu0 %v1182
    %1697 = vmatpush.bf16.msra.mxu0 %v1178
    %1698 = vmatpush.bf16.msra.mxu0 %v1174
    %1699 = vmatpush.bf16.msra.mxu0 %v1170
    %1700 = vmatpush.bf16.msra.mxu0 %v1166
    %1701 = vmatpush.bf16.msra.mxu0 %v1162
    %1702 = vmatmul.bf16.gmra.mxu0 %v541
    %v1703 = vpop.f32.mrf.mxu0
    %v1704 = vadd.f32 %v1690, %v1703
    %v1705 = vpop.f32.mrf.mxu0
    %v1706 = vadd.f32 %v1692, %v1705
    %1707 = vdwg.mxu0
    %1708 = vmatpush.bf16.msra.mxu0 %v1222
    %1709 = vmatpush.bf16.msra.mxu0 %v1218
    %1710 = vmatpush.bf16.msra.mxu0 %v1214
    %1711 = vmatpush.bf16.msra.mxu0 %v1210
    %1712 = vmatpush.bf16.msra.mxu0 %v1206
    %1713 = vmatpush.bf16.msra.mxu0 %v1202
    %1714 = vmatpush.bf16.msra.mxu0 %v1198
    %1715 = vmatpush.bf16.msra.mxu0 %v1194
    %1716 = vmatmul.bf16.gmra.mxu0 %v542
    %v1717 = vpop.f32.mrf.mxu0
    %v1718 = vadd.f32 %v1704, %v1717
    %v1719 = vpop.f32.mrf.mxu0
    %v1720 = vadd.f32 %v1706, %v1719
    %1721 = vdwg.mxu0
    %1722 = vmatpush.bf16.msra.mxu0 %v1254
    %1723 = vmatpush.bf16.msra.mxu0 %v1250
    %1724 = vmatpush.bf16.msra.mxu0 %v1246
    %1725 = vmatpush.bf16.msra.mxu0 %v1242
    %1726 = vmatpush.bf16.msra.mxu0 %v1238
    %1727 = vmatpush.bf16.msra.mxu0 %v1234
    %1728 = vmatpush.bf16.msra.mxu0 %v1230
    %1729 = vmatpush.bf16.msra.mxu0 %v1226
    %1730 = vmatmul.bf16.gmra.mxu0 %v543
    %v1731 = vpop.f32.mrf.mxu0
    %v1732 = vadd.f32 %v1718, %v1731
    %v1733 = vpop.f32.mrf.mxu0
    %v1734 = vadd.f32 %v1720, %v1733
    %1735 = vdwg.mxu0
    %1736 = vmatpush.bf16.msra.mxu0 %v1286
    %1737 = vmatpush.bf16.msra.mxu0 %v1282
    %1738 = vmatpush.bf16.msra.mxu0 %v1278
    %1739 = vmatpush.bf16.msra.mxu0 %v1274
    %1740 = vmatpush.bf16.msra.mxu0 %v1270
    %1741 = vmatpush.bf16.msra.mxu0 %v1266
    %1742 = vmatpush.bf16.msra.mxu0 %v1262
    %1743 = vmatpush.bf16.msra.mxu0 %v1258
    %1744 = vmatmul.bf16.gmra.mxu0 %v544
    %v1745 = vpop.f32.mrf.mxu0
    %v1746 = vadd.f32 %v1732, %v1745
    %v1747 = vpop.f32.mrf.mxu0
    %v1748 = vadd.f32 %v1734, %v1747
    %1749 = vdwg.mxu0
    %1750 = vmatpush.bf16.msra.mxu0 %v1318
    %1751 = vmatpush.bf16.msra.mxu0 %v1314
    %1752 = vmatpush.bf16.msra.mxu0 %v1310
    %1753 = vmatpush.bf16.msra.mxu0 %v1306
    %1754 = vmatpush.bf16.msra.mxu0 %v1302
    %1755 = vmatpush.bf16.msra.mxu0 %v1298
    %1756 = vmatpush.bf16.msra.mxu0 %v1294
    %1757 = vmatpush.bf16.msra.mxu0 %v1290
    %1758 = vmatmul.bf16.gmra.mxu0 %v545
    %v1759 = vpop.f32.mrf.mxu0
    %v1760 = vadd.f32 %v1746, %v1759
    %v1761 = vpop.f32.mrf.mxu0
    %v1762 = vadd.f32 %v1748, %v1761
    %1763 = vdwg.mxu0
    %1764 = vmatpush.bf16.msra.mxu0 %v1159
    %1765 = vmatpush.bf16.msra.mxu0 %v1155
    %1766 = vmatpush.bf16.msra.mxu0 %v1151
    %1767 = vmatpush.bf16.msra.mxu0 %v1147
    %1768 = vmatpush.bf16.msra.mxu0 %v1143
    %1769 = vmatpush.bf16.msra.mxu0 %v1139
    %1770 = vmatpush.bf16.msra.mxu0 %v1135
    %1771 = vmatpush.bf16.msra.mxu0 %v1131
    %1772 = vmatmul.bf16.gmra.mxu0 %v540
    %v1773 = vpop.f32.mrf.mxu0
    %v1774 = vadd.f32 0.0, %v1773
    %v1775 = vpop.f32.mrf.mxu0
    %v1776 = vadd.f32 0.0, %v1775
    %1777 = vdwg.mxu0
    %1778 = vmatpush.bf16.msra.mxu0 %v1191
    %1779 = vmatpush.bf16.msra.mxu0 %v1187
    %1780 = vmatpush.bf16.msra.mxu0 %v1183
    %1781 = vmatpush.bf16.msra.mxu0 %v1179
    %1782 = vmatpush.bf16.msra.mxu0 %v1175
    %1783 = vmatpush.bf16.msra.mxu0 %v1171
    %1784 = vmatpush.bf16.msra.mxu0 %v1167
    %1785 = vmatpush.bf16.msra.mxu0 %v1163
    %1786 = vmatmul.bf16.gmra.mxu0 %v541
    %v1787 = vpop.f32.mrf.mxu0
    %v1788 = vadd.f32 %v1774, %v1787
    %v1789 = vpop.f32.mrf.mxu0
    %v1790 = vadd.f32 %v1776, %v1789
    %1791 = vdwg.mxu0
    %1792 = vmatpush.bf16.msra.mxu0 %v1223
    %1793 = vmatpush.bf16.msra.mxu0 %v1219
    %1794 = vmatpush.bf16.msra.mxu0 %v1215
    %1795 = vmatpush.bf16.msra.mxu0 %v1211
    %1796 = vmatpush.bf16.msra.mxu0 %v1207
    %1797 = vmatpush.bf16.msra.mxu0 %v1203
    %1798 = vmatpush.bf16.msra.mxu0 %v1199
    %1799 = vmatpush.bf16.msra.mxu0 %v1195
    %1800 = vmatmul.bf16.gmra.mxu0 %v542
    %v1801 = vpop.f32.mrf.mxu0
    %v1802 = vadd.f32 %v1788, %v1801
    %v1803 = vpop.f32.mrf.mxu0
    %v1804 = vadd.f32 %v1790, %v1803
    %1805 = vdwg.mxu0
    %1806 = vmatpush.bf16.msra.mxu0 %v1255
    %1807 = vmatpush.bf16.msra.mxu0 %v1251
    %1808 = vmatpush.bf16.msra.mxu0 %v1247
    %1809 = vmatpush.bf16.msra.mxu0 %v1243
    %1810 = vmatpush.bf16.msra.mxu0 %v1239
    %1811 = vmatpush.bf16.msra.mxu0 %v1235
    %1812 = vmatpush.bf16.msra.mxu0 %v1231
    %1813 = vmatpush.bf16.msra.mxu0 %v1227
    %1814 = vmatmul.bf16.gmra.mxu0 %v543
    %v1815 = vpop.f32.mrf.mxu0
    %v1816 = vadd.f32 %v1802, %v1815
    %v1817 = vpop.f32.mrf.mxu0
    %v1818 = vadd.f32 %v1804, %v1817
    %1819 = vdwg.mxu0
    %1820 = vmatpush.bf16.msra.mxu0 %v1287
    %1821 = vmatpush.bf16.msra.mxu0 %v1283
    %1822 = vmatpush.bf16.msra.mxu0 %v1279
    %1823 = vmatpush.bf16.msra.mxu0 %v1275
    %1824 = vmatpush.bf16.msra.mxu0 %v1271
    %1825 = vmatpush.bf16.msra.mxu0 %v1267
    %1826 = vmatpush.bf16.msra.mxu0 %v1263
    %1827 = vmatpush.bf16.msra.mxu0 %v1259
    %1828 = vmatmul.bf16.gmra.mxu0 %v544
    %v1829 = vpop.f32.mrf.mxu0
    %v1830 = vadd.f32 %v1816, %v1829
    %v1831 = vpop.f32.mrf.mxu0
    %v1832 = vadd.f32 %v1818, %v1831
    %1833 = vdwg.mxu0
    %1834 = vmatpush.bf16.msra.mxu0 %v1319
    %1835 = vmatpush.bf16.msra.mxu0 %v1315
    %1836 = vmatpush.bf16.msra.mxu0 %v1311
    %1837 = vmatpush.bf16.msra.mxu0 %v1307
    %1838 = vmatpush.bf16.msra.mxu0 %v1303
    %1839 = vmatpush.bf16.msra.mxu0 %v1299
    %1840 = vmatpush.bf16.msra.mxu0 %v1295
    %1841 = vmatpush.bf16.msra.mxu0 %v1291
    %1842 = vmatmul.bf16.gmra.mxu0 %v545
    %v1843 = vpop.f32.mrf.mxu0
    %v1844 = vadd.f32 %v1830, %v1843
    %v1845 = vpop.f32.mrf.mxu0
    %v1846 = vadd.f32 %v1832, %v1845
    %1847 = vdwg.mxu0
    %v1854 = vunpack.c.l.b16 %v44
    %v1855 = vunpack.c.h.b16 %v44
    %v1856 = vunpack.c.l.b16 %v45
    %v1857 = vunpack.c.h.b16 %v45
    %v1858 = vunpack.c.l.b16 %v46
    %v1859 = vunpack.c.h.b16 %v46
    %v1860 = vunpack.c.l.b16 %v50
    %v1861 = vunpack.c.h.b16 %v50
    %v1862 = vunpack.c.l.b16 %v51
    %v1863 = vunpack.c.h.b16 %v51
    %v1864 = vunpack.c.l.b16 %v52
    %v1865 = vunpack.c.h.b16 %v52
    %v1866 = vpack.c.b16 %v1860, %v1854
    %v1867 = vpack.c.b16 %v1861, %v1855
    %v1868 = vpack.c.b16 %v1862, %v1856
    %v1869 = vpack.c.b16 %v1863, %v1857
    %v1870 = vpack.c.b16 %v1864, %v1858
    %v1871 = vpack.c.b16 %v1865, %v1859
    %v2070 = vunpack.c.l.b16 %v56
    %v2071 = vunpack.c.h.b16 %v56
    %v2072 = vunpack.c.l.b16 %v57
    %v2073 = vunpack.c.h.b16 %v57
    %v2074 = vunpack.c.l.b16 %v58
    %v2075 = vunpack.c.h.b16 %v58
    %v2076 = vunpack.c.l.b16 %v59
    %v2077 = vunpack.c.h.b16 %v59
    %v2078 = vunpack.c.l.b16 %v60
    %v2079 = vunpack.c.h.b16 %v60
    %v2080 = vunpack.c.l.b16 %v61
    %v2081 = vunpack.c.h.b16 %v61
    %v2082 = vunpack.c.l.b16 %v62
    %v2083 = vunpack.c.h.b16 %v62
    %v2084 = vunpack.c.l.b16 %v63
    %v2085 = vunpack.c.h.b16 %v63
    %v2086 = vunpack.c.l.b16 %v64
    %v2087 = vunpack.c.h.b16 %v64
    %v2088 = vunpack.c.l.b16 %v65
    %v2089 = vunpack.c.h.b16 %v65
    %v2090 = vunpack.c.l.b16 %v66
    %v2091 = vunpack.c.h.b16 %v66
    %v2092 = vunpack.c.l.b16 %v67
    %v2093 = vunpack.c.h.b16 %v67
    %v2094 = vunpack.c.l.b16 %v68
    %v2095 = vunpack.c.h.b16 %v68
    %v2096 = vunpack.c.l.b16 %v69
    %v2097 = vunpack.c.h.b16 %v69
    %v2098 = vunpack.c.l.b16 %v70
    %v2099 = vunpack.c.h.b16 %v70
    %v2100 = vunpack.c.l.b16 %v71
    %v2101 = vunpack.c.h.b16 %v71
    %v2102 = vunpack.c.l.b16 %v72
    %v2103 = vunpack.c.h.b16 %v72
    %v2104 = vunpack.c.l.b16 %v73
    %v2105 = vunpack.c.h.b16 %v73
    %v2106 = vunpack.c.l.b16 %v74
    %v2107 = vunpack.c.h.b16 %v74
    %v2108 = vunpack.c.l.b16 %v75
    %v2109 = vunpack.c.h.b16 %v75
    %v2110 = vunpack.c.l.b16 %v76
    %v2111 = vunpack.c.h.b16 %v76
    %v2112 = vunpack.c.l.b16 %v77
    %v2113 = vunpack.c.h.b16 %v77
    %v2114 = vunpack.c.l.b16 %v78
    %v2115 = vunpack.c.h.b16 %v78
    %v2116 = vunpack.c.l.b16 %v79
    %v2117 = vunpack.c.h.b16 %v79
    %v2118 = vunpack.c.l.b16 %v80
    %v2119 = vunpack.c.h.b16 %v80
    %v2120 = vunpack.c.l.b16 %v81
    %v2121 = vunpack.c.h.b16 %v81
    %v2122 = vunpack.c.l.b16 %v82
    %v2123 = vunpack.c.h.b16 %v82
    %v2124 = vunpack.c.l.b16 %v83
    %v2125 = vunpack.c.h.b16 %v83
    %v2126 = vunpack.c.l.b16 %v84
    %v2127 = vunpack.c.h.b16 %v84
    %v2128 = vunpack.c.l.b16 %v85
    %v2129 = vunpack.c.h.b16 %v85
    %v2130 = vunpack.c.l.b16 %v86
    %v2131 = vunpack.c.h.b16 %v86
    %v2132 = vunpack.c.l.b16 %v87
    %v2133 = vunpack.c.h.b16 %v87
    %v2134 = vunpack.c.l.b16 %v88
    %v2135 = vunpack.c.h.b16 %v88
    %v2136 = vunpack.c.l.b16 %v89
    %v2137 = vunpack.c.h.b16 %v89
    %v2138 = vunpack.c.l.b16 %v90
    %v2139 = vunpack.c.h.b16 %v90
    %v2140 = vunpack.c.l.b16 %v91
    %v2141 = vunpack.c.h.b16 %v91
    %v2142 = vunpack.c.l.b16 %v92
    %v2143 = vunpack.c.h.b16 %v92
    %v2144 = vunpack.c.l.b16 %v93
    %v2145 = vunpack.c.h.b16 %v93
    %v2146 = vunpack.c.l.b16 %v94
    %v2147 = vunpack.c.h.b16 %v94
    %v2148 = vunpack.c.l.b16 %v95
    %v2149 = vunpack.c.h.b16 %v95
    %v2150 = vunpack.c.l.b16 %v96
    %v2151 = vunpack.c.h.b16 %v96
    %v2152 = vunpack.c.l.b16 %v97
    %v2153 = vunpack.c.h.b16 %v97
    %v2154 = vunpack.c.l.b16 %v98
    %v2155 = vunpack.c.h.b16 %v98
    %v2156 = vunpack.c.l.b16 %v99
    %v2157 = vunpack.c.h.b16 %v99
    %v2158 = vunpack.c.l.b16 %v100
    %v2159 = vunpack.c.h.b16 %v100
    %v2160 = vunpack.c.l.b16 %v101
    %v2161 = vunpack.c.h.b16 %v101
    %v2162 = vunpack.c.l.b16 %v102
    %v2163 = vunpack.c.h.b16 %v102
    %v2164 = vunpack.c.l.b16 %v103
    %v2165 = vunpack.c.h.b16 %v103
    %v2166 = vunpack.c.l.b16 %v104
    %v2167 = vunpack.c.h.b16 %v104
    %v2168 = vunpack.c.l.b16 %v105
    %v2169 = vunpack.c.h.b16 %v105
    %v2170 = vunpack.c.l.b16 %v106
    %v2171 = vunpack.c.h.b16 %v106
    %v2172 = vunpack.c.l.b16 %v107
    %v2173 = vunpack.c.h.b16 %v107
    %v2174 = vunpack.c.l.b16 %v108
    %v2175 = vunpack.c.h.b16 %v108
    %v2176 = vunpack.c.l.b16 %v109
    %v2177 = vunpack.c.h.b16 %v109
    %v2178 = vunpack.c.l.b16 %v110
    %v2179 = vunpack.c.h.b16 %v110
    %v2180 = vunpack.c.l.b16 %v111
    %v2181 = vunpack.c.h.b16 %v111
    %v2182 = vunpack.c.l.b16 %v112
    %v2183 = vunpack.c.h.b16 %v112
    %v2184 = vunpack.c.l.b16 %v113
    %v2185 = vunpack.c.h.b16 %v113
    %v2186 = vunpack.c.l.b16 %v114
    %v2187 = vunpack.c.h.b16 %v114
    %v2188 = vunpack.c.l.b16 %v115
    %v2189 = vunpack.c.h.b16 %v115
    %v2190 = vunpack.c.l.b16 %v116
    %v2191 = vunpack.c.h.b16 %v116
    %v2192 = vunpack.c.l.b16 %v117
    %v2193 = vunpack.c.h.b16 %v117
    %v2194 = vunpack.c.l.b16 %v118
    %v2195 = vunpack.c.h.b16 %v118
    %v2196 = vunpack.c.l.b16 %v119
    %v2197 = vunpack.c.h.b16 %v119
    %v2198 = vunpack.c.l.b16 %v120
    %v2199 = vunpack.c.h.b16 %v120
    %v2200 = vunpack.c.l.b16 %v121
    %v2201 = vunpack.c.h.b16 %v121
    %v2202 = vunpack.c.l.b16 %v122
    %v2203 = vunpack.c.h.b16 %v122
    %v2204 = vunpack.c.l.b16 %v123
    %v2205 = vunpack.c.h.b16 %v123
    %v2206 = vunpack.c.l.b16 %v124
    %v2207 = vunpack.c.h.b16 %v124
    %v2208 = vunpack.c.l.b16 %v125
    %v2209 = vunpack.c.h.b16 %v125
    %v2210 = vunpack.c.l.b16 %v126
    %v2211 = vunpack.c.h.b16 %v126
    %v2212 = vunpack.c.l.b16 %v127
    %v2213 = vunpack.c.h.b16 %v127
    %v2214 = vunpack.c.l.b16 %v128
    %v2215 = vunpack.c.h.b16 %v128
    %v2216 = vunpack.c.l.b16 %v129
    %v2217 = vunpack.c.h.b16 %v129
    %v2218 = vunpack.c.l.b16 %v130
    %v2219 = vunpack.c.h.b16 %v130
    %v2220 = vunpack.c.l.b16 %v131
    %v2221 = vunpack.c.h.b16 %v131
    %v2222 = vunpack.c.l.b16 %v132
    %v2223 = vunpack.c.h.b16 %v132
    %v2224 = vunpack.c.l.b16 %v133
    %v2225 = vunpack.c.h.b16 %v133
    %v2226 = vunpack.c.l.b16 %v134
    %v2227 = vunpack.c.h.b16 %v134
    %v2228 = vunpack.c.l.b16 %v135
    %v2229 = vunpack.c.h.b16 %v135
    %v2230 = vunpack.c.l.b16 %v136
    %v2231 = vunpack.c.h.b16 %v136
    %v2232 = vunpack.c.l.b16 %v137
    %v2233 = vunpack.c.h.b16 %v137
    %v2234 = vunpack.c.l.b16 %v138
    %v2235 = vunpack.c.h.b16 %v138
    %v2236 = vunpack.c.l.b16 %v139
    %v2237 = vunpack.c.h.b16 %v139
    %v2238 = vunpack.c.l.b16 %v140
    %v2239 = vunpack.c.h.b16 %v140
    %v2240 = vunpack.c.l.b16 %v141
    %v2241 = vunpack.c.h.b16 %v141
    %v2242 = vunpack.c.l.b16 %v142
    %v2243 = vunpack.c.h.b16 %v142
    %v2244 = vunpack.c.l.b16 %v143
    %v2245 = vunpack.c.h.b16 %v143
    %v2246 = vunpack.c.l.b16 %v144
    %v2247 = vunpack.c.h.b16 %v144
    %v2248 = vunpack.c.l.b16 %v145
    %v2249 = vunpack.c.h.b16 %v145
    %v2250 = vunpack.c.l.b16 %v146
    %v2251 = vunpack.c.h.b16 %v146
    %v2252 = vunpack.c.l.b16 %v147
    %v2253 = vunpack.c.h.b16 %v147
    %v2254 = vunpack.c.l.b16 %v148
    %v2255 = vunpack.c.h.b16 %v148
    %v2256 = vunpack.c.l.b16 %v149
    %v2257 = vunpack.c.h.b16 %v149
    %v2258 = vunpack.c.l.b16 %v150
    %v2259 = vunpack.c.h.b16 %v150
    %v2260 = vunpack.c.l.b16 %v151
    %v2261 = vunpack.c.h.b16 %v151
    %v2262 = vunpack.c.l.b16 %v152
    %v2263 = vunpack.c.h.b16 %v152
    %v2264 = vunpack.c.l.b16 %v153
    %v2265 = vunpack.c.h.b16 %v153
    %v2266 = vunpack.c.l.b16 %v154
    %v2267 = vunpack.c.h.b16 %v154
    %v2268 = vunpack.c.l.b16 %v155
    %v2269 = vunpack.c.h.b16 %v155
    %v2270 = vunpack.c.l.b16 %v156
    %v2271 = vunpack.c.h.b16 %v156
    %v2272 = vunpack.c.l.b16 %v157
    %v2273 = vunpack.c.h.b16 %v157
    %v2274 = vunpack.c.l.b16 %v158
    %v2275 = vunpack.c.h.b16 %v158
    %v2276 = vunpack.c.l.b16 %v159
    %v2277 = vunpack.c.h.b16 %v159
    %v2278 = vunpack.c.l.b16 %v160
    %v2279 = vunpack.c.h.b16 %v160
    %v2280 = vunpack.c.l.b16 %v161
    %v2281 = vunpack.c.h.b16 %v161
    %v2282 = vunpack.c.l.b16 %v162
    %v2283 = vunpack.c.h.b16 %v162
    %v2284 = vunpack.c.l.b16 %v163
    %v2285 = vunpack.c.h.b16 %v163
    %v2286 = vunpack.c.l.b16 %v164
    %v2287 = vunpack.c.h.b16 %v164
    %v2288 = vunpack.c.l.b16 %v165
    %v2289 = vunpack.c.h.b16 %v165
    %v2290 = vunpack.c.l.b16 %v166
    %v2291 = vunpack.c.h.b16 %v166
    %v2292 = vunpack.c.l.b16 %v167
    %v2293 = vunpack.c.h.b16 %v167
    %v2294 = vunpack.c.l.b16 %v168
    %v2295 = vunpack.c.h.b16 %v168
    %v2296 = vunpack.c.l.b16 %v169
    %v2297 = vunpack.c.h.b16 %v169
    %v2298 = vunpack.c.l.b16 %v170
    %v2299 = vunpack.c.h.b16 %v170
    %v2300 = vunpack.c.l.b16 %v171
    %v2301 = vunpack.c.h.b16 %v171
    %v2302 = vunpack.c.l.b16 %v172
    %v2303 = vunpack.c.h.b16 %v172
    %v2304 = vunpack.c.l.b16 %v173
    %v2305 = vunpack.c.h.b16 %v173
    %v2306 = vunpack.c.l.b16 %v174
    %v2307 = vunpack.c.h.b16 %v174
    %v2308 = vunpack.c.l.b16 %v175
    %v2309 = vunpack.c.h.b16 %v175
    %v2310 = vunpack.c.l.b16 %v176
    %v2311 = vunpack.c.h.b16 %v176
    %v2312 = vunpack.c.l.b16 %v177
    %v2313 = vunpack.c.h.b16 %v177
    %v2314 = vunpack.c.l.b16 %v178
    %v2315 = vunpack.c.h.b16 %v178
    %v2316 = vunpack.c.l.b16 %v179
    %v2317 = vunpack.c.h.b16 %v179
    %v2318 = vunpack.c.l.b16 %v180
    %v2319 = vunpack.c.h.b16 %v180
    %v2320 = vunpack.c.l.b16 %v181
    %v2321 = vunpack.c.h.b16 %v181
    %v2322 = vunpack.c.l.b16 %v182
    %v2323 = vunpack.c.h.b16 %v182
    %v2324 = vunpack.c.l.b16 %v183
    %v2325 = vunpack.c.h.b16 %v183
    %v2326 = vunpack.c.l.b16 %v184
    %v2327 = vunpack.c.h.b16 %v184
    %v2328 = vunpack.c.l.b16 %v185
    %v2329 = vunpack.c.h.b16 %v185
    %v2330 = vunpack.c.l.b16 %v186
    %v2331 = vunpack.c.h.b16 %v186
    %v2332 = vunpack.c.l.b16 %v187
    %v2333 = vunpack.c.h.b16 %v187
    %v2334 = vunpack.c.l.b16 %v188
    %v2335 = vunpack.c.h.b16 %v188
    %v2336 = vunpack.c.l.b16 %v189
    %v2337 = vunpack.c.h.b16 %v189
    %v2338 = vunpack.c.l.b16 %v190
    %v2339 = vunpack.c.h.b16 %v190
    %v2340 = vunpack.c.l.b16 %v191
    %v2341 = vunpack.c.h.b16 %v191
    %v2342 = vunpack.c.l.b16 %v192
    %v2343 = vunpack.c.h.b16 %v192
    %v2344 = vunpack.c.l.b16 %v193
    %v2345 = vunpack.c.h.b16 %v193
    %v2346 = vunpack.c.l.b16 %v194
    %v2347 = vunpack.c.h.b16 %v194
    %v2348 = vunpack.c.l.b16 %v195
    %v2349 = vunpack.c.h.b16 %v195
    %v2350 = vunpack.c.l.b16 %v196
    %v2351 = vunpack.c.h.b16 %v196
    %v2352 = vunpack.c.l.b16 %v197
    %v2353 = vunpack.c.h.b16 %v197
    %v2354 = vunpack.c.l.b16 %v198
    %v2355 = vunpack.c.h.b16 %v198
    %v2356 = vunpack.c.l.b16 %v199
    %v2357 = vunpack.c.h.b16 %v199
    %v2358 = vunpack.c.l.b16 %v200
    %v2359 = vunpack.c.h.b16 %v200
    %v2360 = vunpack.c.l.b16 %v201
    %v2361 = vunpack.c.h.b16 %v201
    %v2362 = vunpack.c.l.b16 %v202
    %v2363 = vunpack.c.h.b16 %v202
    %v2364 = vunpack.c.l.b16 %v203
    %v2365 = vunpack.c.h.b16 %v203
    %v2366 = vunpack.c.l.b16 %v204
    %v2367 = vunpack.c.h.b16 %v204
    %v2368 = vunpack.c.l.b16 %v205
    %v2369 = vunpack.c.h.b16 %v205
    %v2370 = vunpack.c.l.b16 %v206
    %v2371 = vunpack.c.h.b16 %v206
    %v2372 = vunpack.c.l.b16 %v207
    %v2373 = vunpack.c.h.b16 %v207
    %v2374 = vunpack.c.l.b16 %v208
    %v2375 = vunpack.c.h.b16 %v208
    %v2376 = vunpack.c.l.b16 %v209
    %v2377 = vunpack.c.h.b16 %v209
    %v2378 = vunpack.c.l.b16 %v210
    %v2379 = vunpack.c.h.b16 %v210
    %v2380 = vunpack.c.l.b16 %v211
    %v2381 = vunpack.c.h.b16 %v211
    %v2382 = vunpack.c.l.b16 %v212
    %v2383 = vunpack.c.h.b16 %v212
    %v2384 = vunpack.c.l.b16 %v213
    %v2385 = vunpack.c.h.b16 %v213
    %v2386 = vunpack.c.l.b16 %v214
    %v2387 = vunpack.c.h.b16 %v214
    %v2388 = vunpack.c.l.b16 %v215
    %v2389 = vunpack.c.h.b16 %v215
    %v2390 = vunpack.c.l.b16 %v216
    %v2391 = vunpack.c.h.b16 %v216
    %v2392 = vunpack.c.l.b16 %v217
    %v2393 = vunpack.c.h.b16 %v217
    %v2394 = vunpack.c.l.b16 %v218
    %v2395 = vunpack.c.h.b16 %v218
    %v2396 = vunpack.c.l.b16 %v219
    %v2397 = vunpack.c.h.b16 %v219
    %v2398 = vunpack.c.l.b16 %v220
    %v2399 = vunpack.c.h.b16 %v220
    %v2400 = vunpack.c.l.b16 %v221
    %v2401 = vunpack.c.h.b16 %v221
    %v2402 = vunpack.c.l.b16 %v222
    %v2403 = vunpack.c.h.b16 %v222
    %v2404 = vunpack.c.l.b16 %v223
    %v2405 = vunpack.c.h.b16 %v223
    %v2406 = vunpack.c.l.b16 %v224
    %v2407 = vunpack.c.h.b16 %v224
    %v2408 = vunpack.c.l.b16 %v225
    %v2409 = vunpack.c.h.b16 %v225
    %v2410 = vunpack.c.l.b16 %v226
    %v2411 = vunpack.c.h.b16 %v226
    %v2412 = vunpack.c.l.b16 %v227
    %v2413 = vunpack.c.h.b16 %v227
    %v2414 = vunpack.c.l.b16 %v228
    %v2415 = vunpack.c.h.b16 %v228
    %v2416 = vunpack.c.l.b16 %v229
    %v2417 = vunpack.c.h.b16 %v229
    %v2418 = vunpack.c.l.b16 %v230
    %v2419 = vunpack.c.h.b16 %v230
    %v2420 = vunpack.c.l.b16 %v231
    %v2421 = vunpack.c.h.b16 %v231
    %v2422 = vunpack.c.l.b16 %v232
    %v2423 = vunpack.c.h.b16 %v232
    %v2424 = vunpack.c.l.b16 %v233
    %v2425 = vunpack.c.h.b16 %v233
    %v2426 = vunpack.c.l.b16 %v234
    %v2427 = vunpack.c.h.b16 %v234
    %v2428 = vunpack.c.l.b16 %v235
    %v2429 = vunpack.c.h.b16 %v235
    %v2430 = vunpack.c.l.b16 %v236
    %v2431 = vunpack.c.h.b16 %v236
    %v2432 = vunpack.c.l.b16 %v237
    %v2433 = vunpack.c.h.b16 %v237
    %v2434 = vunpack.c.l.b16 %v238
    %v2435 = vunpack.c.h.b16 %v238
    %v2436 = vunpack.c.l.b16 %v239
    %v2437 = vunpack.c.h.b16 %v239
    %v2438 = vunpack.c.l.b16 %v240
    %v2439 = vunpack.c.h.b16 %v240
    %v2440 = vunpack.c.l.b16 %v241
    %v2441 = vunpack.c.h.b16 %v241
    %v2442 = vunpack.c.l.b16 %v242
    %v2443 = vunpack.c.h.b16 %v242
    %v2444 = vunpack.c.l.b16 %v243
    %v2445 = vunpack.c.h.b16 %v243
    %v2446 = vunpack.c.l.b16 %v244
    %v2447 = vunpack.c.h.b16 %v244
    %v2448 = vunpack.c.l.b16 %v245
    %v2449 = vunpack.c.h.b16 %v245
    %v2450 = vunpack.c.l.b16 %v246
    %v2451 = vunpack.c.h.b16 %v246
    %v2452 = vunpack.c.l.b16 %v247
    %v2453 = vunpack.c.h.b16 %v247
    %v2454 = vpack.c.b16 %v2074, %v2070
    %v2455 = vpack.c.b16 %v2075, %v2071
    %v2456 = vpack.c.b16 %v2076, %v2072
    %v2457 = vpack.c.b16 %v2077, %v2073
    %v2458 = vpack.c.b16 %v2082, %v2078
    %v2459 = vpack.c.b16 %v2083, %v2079
    %v2460 = vpack.c.b16 %v2084, %v2080
    %v2461 = vpack.c.b16 %v2085, %v2081
    %v2462 = vpack.c.b16 %v2090, %v2086
    %v2463 = vpack.c.b16 %v2091, %v2087
    %v2464 = vpack.c.b16 %v2092, %v2088
    %v2465 = vpack.c.b16 %v2093, %v2089
    %v2466 = vpack.c.b16 %v2098, %v2094
    %v2467 = vpack.c.b16 %v2099, %v2095
    %v2468 = vpack.c.b16 %v2100, %v2096
    %v2469 = vpack.c.b16 %v2101, %v2097
    %v2470 = vpack.c.b16 %v2106, %v2102
    %v2471 = vpack.c.b16 %v2107, %v2103
    %v2472 = vpack.c.b16 %v2108, %v2104
    %v2473 = vpack.c.b16 %v2109, %v2105
    %v2474 = vpack.c.b16 %v2114, %v2110
    %v2475 = vpack.c.b16 %v2115, %v2111
    %v2476 = vpack.c.b16 %v2116, %v2112
    %v2477 = vpack.c.b16 %v2117, %v2113
    %v2478 = vpack.c.b16 %v2122, %v2118
    %v2479 = vpack.c.b16 %v2123, %v2119
    %v2480 = vpack.c.b16 %v2124, %v2120
    %v2481 = vpack.c.b16 %v2125, %v2121
    %v2482 = vpack.c.b16 %v2130, %v2126
    %v2483 = vpack.c.b16 %v2131, %v2127
    %v2484 = vpack.c.b16 %v2132, %v2128
    %v2485 = vpack.c.b16 %v2133, %v2129
    %v2486 = vpack.c.b16 %v2138, %v2134
    %v2487 = vpack.c.b16 %v2139, %v2135
    %v2488 = vpack.c.b16 %v2140, %v2136
    %v2489 = vpack.c.b16 %v2141, %v2137
    %v2490 = vpack.c.b16 %v2146, %v2142
    %v2491 = vpack.c.b16 %v2147, %v2143
    %v2492 = vpack.c.b16 %v2148, %v2144
    %v2493 = vpack.c.b16 %v2149, %v2145
    %v2494 = vpack.c.b16 %v2154, %v2150
    %v2495 = vpack.c.b16 %v2155, %v2151
    %v2496 = vpack.c.b16 %v2156, %v2152
    %v2497 = vpack.c.b16 %v2157, %v2153
    %v2498 = vpack.c.b16 %v2162, %v2158
    %v2499 = vpack.c.b16 %v2163, %v2159
    %v2500 = vpack.c.b16 %v2164, %v2160
    %v2501 = vpack.c.b16 %v2165, %v2161
    %v2502 = vpack.c.b16 %v2170, %v2166
    %v2503 = vpack.c.b16 %v2171, %v2167
    %v2504 = vpack.c.b16 %v2172, %v2168
    %v2505 = vpack.c.b16 %v2173, %v2169
    %v2506 = vpack.c.b16 %v2178, %v2174
    %v2507 = vpack.c.b16 %v2179, %v2175
    %v2508 = vpack.c.b16 %v2180, %v2176
    %v2509 = vpack.c.b16 %v2181, %v2177
    %v2510 = vpack.c.b16 %v2186, %v2182
    %v2511 = vpack.c.b16 %v2187, %v2183
    %v2512 = vpack.c.b16 %v2188, %v2184
    %v2513 = vpack.c.b16 %v2189, %v2185
    %v2514 = vpack.c.b16 %v2194, %v2190
    %v2515 = vpack.c.b16 %v2195, %v2191
    %v2516 = vpack.c.b16 %v2196, %v2192
    %v2517 = vpack.c.b16 %v2197, %v2193
    %v2518 = vpack.c.b16 %v2202, %v2198
    %v2519 = vpack.c.b16 %v2203, %v2199
    %v2520 = vpack.c.b16 %v2204, %v2200
    %v2521 = vpack.c.b16 %v2205, %v2201
    %v2522 = vpack.c.b16 %v2210, %v2206
    %v2523 = vpack.c.b16 %v2211, %v2207
    %v2524 = vpack.c.b16 %v2212, %v2208
    %v2525 = vpack.c.b16 %v2213, %v2209
    %v2526 = vpack.c.b16 %v2218, %v2214
    %v2527 = vpack.c.b16 %v2219, %v2215
    %v2528 = vpack.c.b16 %v2220, %v2216
    %v2529 = vpack.c.b16 %v2221, %v2217
    %v2530 = vpack.c.b16 %v2226, %v2222
    %v2531 = vpack.c.b16 %v2227, %v2223
    %v2532 = vpack.c.b16 %v2228, %v2224
    %v2533 = vpack.c.b16 %v2229, %v2225
    %v2534 = vpack.c.b16 %v2234, %v2230
    %v2535 = vpack.c.b16 %v2235, %v2231
    %v2536 = vpack.c.b16 %v2236, %v2232
    %v2537 = vpack.c.b16 %v2237, %v2233
    %v2538 = vpack.c.b16 %v2242, %v2238
    %v2539 = vpack.c.b16 %v2243, %v2239
    %v2540 = vpack.c.b16 %v2244, %v2240
    %v2541 = vpack.c.b16 %v2245, %v2241
    %v2542 = vpack.c.b16 %v2250, %v2246
    %v2543 = vpack.c.b16 %v2251, %v2247
    %v2544 = vpack.c.b16 %v2252, %v2248
    %v2545 = vpack.c.b16 %v2253, %v2249
    %v2546 = vpack.c.b16 %v2258, %v2254
    %v2547 = vpack.c.b16 %v2259, %v2255
    %v2548 = vpack.c.b16 %v2260, %v2256
    %v2549 = vpack.c.b16 %v2261, %v2257
    %v2550 = vpack.c.b16 %v2266, %v2262
    %v2551 = vpack.c.b16 %v2267, %v2263
    %v2552 = vpack.c.b16 %v2268, %v2264
    %v2553 = vpack.c.b16 %v2269, %v2265
    %v2554 = vpack.c.b16 %v2274, %v2270
    %v2555 = vpack.c.b16 %v2275, %v2271
    %v2556 = vpack.c.b16 %v2276, %v2272
    %v2557 = vpack.c.b16 %v2277, %v2273
    %v2558 = vpack.c.b16 %v2282, %v2278
    %v2559 = vpack.c.b16 %v2283, %v2279
    %v2560 = vpack.c.b16 %v2284, %v2280
    %v2561 = vpack.c.b16 %v2285, %v2281
    %v2562 = vpack.c.b16 %v2290, %v2286
    %v2563 = vpack.c.b16 %v2291, %v2287
    %v2564 = vpack.c.b16 %v2292, %v2288
    %v2565 = vpack.c.b16 %v2293, %v2289
    %v2566 = vpack.c.b16 %v2298, %v2294
    %v2567 = vpack.c.b16 %v2299, %v2295
    %v2568 = vpack.c.b16 %v2300, %v2296
    %v2569 = vpack.c.b16 %v2301, %v2297
    %v2570 = vpack.c.b16 %v2306, %v2302
    %v2571 = vpack.c.b16 %v2307, %v2303
    %v2572 = vpack.c.b16 %v2308, %v2304
    %v2573 = vpack.c.b16 %v2309, %v2305
    %v2574 = vpack.c.b16 %v2314, %v2310
    %v2575 = vpack.c.b16 %v2315, %v2311
    %v2576 = vpack.c.b16 %v2316, %v2312
    %v2577 = vpack.c.b16 %v2317, %v2313
    %v2578 = vpack.c.b16 %v2322, %v2318
    %v2579 = vpack.c.b16 %v2323, %v2319
    %v2580 = vpack.c.b16 %v2324, %v2320
    %v2581 = vpack.c.b16 %v2325, %v2321
    %v2582 = vpack.c.b16 %v2330, %v2326
    %v2583 = vpack.c.b16 %v2331, %v2327
    %v2584 = vpack.c.b16 %v2332, %v2328
    %v2585 = vpack.c.b16 %v2333, %v2329
    %v2586 = vpack.c.b16 %v2338, %v2334
    %v2587 = vpack.c.b16 %v2339, %v2335
    %v2588 = vpack.c.b16 %v2340, %v2336
    %v2589 = vpack.c.b16 %v2341, %v2337
    %v2590 = vpack.c.b16 %v2346, %v2342
    %v2591 = vpack.c.b16 %v2347, %v2343
    %v2592 = vpack.c.b16 %v2348, %v2344
    %v2593 = vpack.c.b16 %v2349, %v2345
    %v2594 = vpack.c.b16 %v2354, %v2350
    %v2595 = vpack.c.b16 %v2355, %v2351
    %v2596 = vpack.c.b16 %v2356, %v2352
    %v2597 = vpack.c.b16 %v2357, %v2353
    %v2598 = vpack.c.b16 %v2362, %v2358
    %v2599 = vpack.c.b16 %v2363, %v2359
    %v2600 = vpack.c.b16 %v2364, %v2360
    %v2601 = vpack.c.b16 %v2365, %v2361
    %v2602 = vpack.c.b16 %v2370, %v2366
    %v2603 = vpack.c.b16 %v2371, %v2367
    %v2604 = vpack.c.b16 %v2372, %v2368
    %v2605 = vpack.c.b16 %v2373, %v2369
    %v2606 = vpack.c.b16 %v2378, %v2374
    %v2607 = vpack.c.b16 %v2379, %v2375
    %v2608 = vpack.c.b16 %v2380, %v2376
    %v2609 = vpack.c.b16 %v2381, %v2377
    %v2610 = vpack.c.b16 %v2386, %v2382
    %v2611 = vpack.c.b16 %v2387, %v2383
    %v2612 = vpack.c.b16 %v2388, %v2384
    %v2613 = vpack.c.b16 %v2389, %v2385
    %v2614 = vpack.c.b16 %v2394, %v2390
    %v2615 = vpack.c.b16 %v2395, %v2391
    %v2616 = vpack.c.b16 %v2396, %v2392
    %v2617 = vpack.c.b16 %v2397, %v2393
    %v2618 = vpack.c.b16 %v2402, %v2398
    %v2619 = vpack.c.b16 %v2403, %v2399
    %v2620 = vpack.c.b16 %v2404, %v2400
    %v2621 = vpack.c.b16 %v2405, %v2401
    %v2622 = vpack.c.b16 %v2410, %v2406
    %v2623 = vpack.c.b16 %v2411, %v2407
    %v2624 = vpack.c.b16 %v2412, %v2408
    %v2625 = vpack.c.b16 %v2413, %v2409
    %v2626 = vpack.c.b16 %v2418, %v2414
    %v2627 = vpack.c.b16 %v2419, %v2415
    %v2628 = vpack.c.b16 %v2420, %v2416
    %v2629 = vpack.c.b16 %v2421, %v2417
    %v2630 = vpack.c.b16 %v2426, %v2422
    %v2631 = vpack.c.b16 %v2427, %v2423
    %v2632 = vpack.c.b16 %v2428, %v2424
    %v2633 = vpack.c.b16 %v2429, %v2425
    %v2634 = vpack.c.b16 %v2434, %v2430
    %v2635 = vpack.c.b16 %v2435, %v2431
    %v2636 = vpack.c.b16 %v2436, %v2432
    %v2637 = vpack.c.b16 %v2437, %v2433
    %v2638 = vpack.c.b16 %v2442, %v2438
    %v2639 = vpack.c.b16 %v2443, %v2439
    %v2640 = vpack.c.b16 %v2444, %v2440
    %v2641 = vpack.c.b16 %v2445, %v2441
    %v2642 = vpack.c.b16 %v2450, %v2446
    %v2643 = vpack.c.b16 %v2451, %v2447
    %v2644 = vpack.c.b16 %v2452, %v2448
    %v2645 = vpack.c.b16 %v2453, %v2449
    %2838 = vmatpush.bf16.msra.mxu0 %v2482
    %2839 = vmatpush.bf16.msra.mxu0 %v2478
    %2840 = vmatpush.bf16.msra.mxu0 %v2474
    %2841 = vmatpush.bf16.msra.mxu0 %v2470
    %2842 = vmatpush.bf16.msra.mxu0 %v2466
    %2843 = vmatpush.bf16.msra.mxu0 %v2462
    %2844 = vmatpush.bf16.msra.mxu0 %v2458
    %2845 = vmatpush.bf16.msra.mxu0 %v2454
    %2846 = vmatmul.bf16.gmra.mxu0 %v1866
    %v2847 = vpop.f32.mrf.mxu0
    %v2848 = vadd.f32 %v1592, %v2847
    %v2849 = vpop.f32.mrf.mxu0
    %v2850 = vadd.f32 %v1594, %v2849
    %2851 = vdwg.mxu0
    %2852 = vmatpush.bf16.msra.mxu0 %v2514
    %2853 = vmatpush.bf16.msra.mxu0 %v2510
    %2854 = vmatpush.bf16.msra.mxu0 %v2506
    %2855 = vmatpush.bf16.msra.mxu0 %v2502
    %2856 = vmatpush.bf16.msra.mxu0 %v2498
    %2857 = vmatpush.bf16.msra.mxu0 %v2494
    %2858 = vmatpush.bf16.msra.mxu0 %v2490
    %2859 = vmatpush.bf16.msra.mxu0 %v2486
    %2860 = vmatmul.bf16.gmra.mxu0 %v1867
    %v2861 = vpop.f32.mrf.mxu0
    %v2862 = vadd.f32 %v2848, %v2861
    %v2863 = vpop.f32.mrf.mxu0
    %v2864 = vadd.f32 %v2850, %v2863
    %2865 = vdwg.mxu0
    %2866 = vmatpush.bf16.msra.mxu0 %v2546
    %2867 = vmatpush.bf16.msra.mxu0 %v2542
    %2868 = vmatpush.bf16.msra.mxu0 %v2538
    %2869 = vmatpush.bf16.msra.mxu0 %v2534
    %2870 = vmatpush.bf16.msra.mxu0 %v2530
    %2871 = vmatpush.bf16.msra.mxu0 %v2526
    %2872 = vmatpush.bf16.msra.mxu0 %v2522
    %2873 = vmatpush.bf16.msra.mxu0 %v2518
    %2874 = vmatmul.bf16.gmra.mxu0 %v1868
    %v2875 = vpop.f32.mrf.mxu0
    %v2876 = vadd.f32 %v2862, %v2875
    %v2877 = vpop.f32.mrf.mxu0
    %v2878 = vadd.f32 %v2864, %v2877
    %2879 = vdwg.mxu0
    %2880 = vmatpush.bf16.msra.mxu0 %v2578
    %2881 = vmatpush.bf16.msra.mxu0 %v2574
    %2882 = vmatpush.bf16.msra.mxu0 %v2570
    %2883 = vmatpush.bf16.msra.mxu0 %v2566
    %2884 = vmatpush.bf16.msra.mxu0 %v2562
    %2885 = vmatpush.bf16.msra.mxu0 %v2558
    %2886 = vmatpush.bf16.msra.mxu0 %v2554
    %2887 = vmatpush.bf16.msra.mxu0 %v2550
    %2888 = vmatmul.bf16.gmra.mxu0 %v1869
    %v2889 = vpop.f32.mrf.mxu0
    %v2890 = vadd.f32 %v2876, %v2889
    %v2891 = vpop.f32.mrf.mxu0
    %v2892 = vadd.f32 %v2878, %v2891
    %2893 = vdwg.mxu0
    %2894 = vmatpush.bf16.msra.mxu0 %v2610
    %2895 = vmatpush.bf16.msra.mxu0 %v2606
    %2896 = vmatpush.bf16.msra.mxu0 %v2602
    %2897 = vmatpush.bf16.msra.mxu0 %v2598
    %2898 = vmatpush.bf16.msra.mxu0 %v2594
    %2899 = vmatpush.bf16.msra.mxu0 %v2590
    %2900 = vmatpush.bf16.msra.mxu0 %v2586
    %2901 = vmatpush.bf16.msra.mxu0 %v2582
    %2902 = vmatmul.bf16.gmra.mxu0 %v1870
    %v2903 = vpop.f32.mrf.mxu0
    %v2904 = vadd.f32 %v2890, %v2903
    %v2905 = vpop.f32.mrf.mxu0
    %v2906 = vadd.f32 %v2892, %v2905
    %2907 = vdwg.mxu0
    %2908 = vmatpush.bf16.msra.mxu0 %v2642
    %2909 = vmatpush.bf16.msra.mxu0 %v2638
    %2910 = vmatpush.bf16.msra.mxu0 %v2634
    %2911 = vmatpush.bf16.msra.mxu0 %v2630
    %2912 = vmatpush.bf16.msra.mxu0 %v2626
    %2913 = vmatpush.bf16.msra.mxu0 %v2622
    %2914 = vmatpush.bf16.msra.mxu0 %v2618
    %2915 = vmatpush.bf16.msra.mxu0 %v2614
    %2916 = vmatmul.bf16.gmra.mxu0 %v1871
    %v2917 = vpop.f32.mrf.mxu0
    %v2918 = vadd.f32 %v2904, %v2917
    %v2919 = vpop.f32.mrf.mxu0
    %v2920 = vadd.f32 %v2906, %v2919
    %2921 = vdwg.mxu0
    %2922 = vmatpush.bf16.msra.mxu0 %v2483
    %2923 = vmatpush.bf16.msra.mxu0 %v2479
    %2924 = vmatpush.bf16.msra.mxu0 %v2475
    %2925 = vmatpush.bf16.msra.mxu0 %v2471
    %2926 = vmatpush.bf16.msra.mxu0 %v2467
    %2927 = vmatpush.bf16.msra.mxu0 %v2463
    %2928 = vmatpush.bf16.msra.mxu0 %v2459
    %2929 = vmatpush.bf16.msra.mxu0 %v2455
    %2930 = vmatmul.bf16.gmra.mxu0 %v1866
    %v2931 = vpop.f32.mrf.mxu0
    %v2932 = vadd.f32 %v1676, %v2931
    %v2933 = vpop.f32.mrf.mxu0
    %v2934 = vadd.f32 %v1678, %v2933
    %2935 = vdwg.mxu0
    %2936 = vmatpush.bf16.msra.mxu0 %v2515
    %2937 = vmatpush.bf16.msra.mxu0 %v2511
    %2938 = vmatpush.bf16.msra.mxu0 %v2507
    %2939 = vmatpush.bf16.msra.mxu0 %v2503
    %2940 = vmatpush.bf16.msra.mxu0 %v2499
    %2941 = vmatpush.bf16.msra.mxu0 %v2495
    %2942 = vmatpush.bf16.msra.mxu0 %v2491
    %2943 = vmatpush.bf16.msra.mxu0 %v2487
    %2944 = vmatmul.bf16.gmra.mxu0 %v1867
    %v2945 = vpop.f32.mrf.mxu0
    %v2946 = vadd.f32 %v2932, %v2945
    %v2947 = vpop.f32.mrf.mxu0
    %v2948 = vadd.f32 %v2934, %v2947
    %2949 = vdwg.mxu0
    %2950 = vmatpush.bf16.msra.mxu0 %v2547
    %2951 = vmatpush.bf16.msra.mxu0 %v2543
    %2952 = vmatpush.bf16.msra.mxu0 %v2539
    %2953 = vmatpush.bf16.msra.mxu0 %v2535
    %2954 = vmatpush.bf16.msra.mxu0 %v2531
    %2955 = vmatpush.bf16.msra.mxu0 %v2527
    %2956 = vmatpush.bf16.msra.mxu0 %v2523
    %2957 = vmatpush.bf16.msra.mxu0 %v2519
    %2958 = vmatmul.bf16.gmra.mxu0 %v1868
    %v2959 = vpop.f32.mrf.mxu0
    %v2960 = vadd.f32 %v2946, %v2959
    %v2961 = vpop.f32.mrf.mxu0
    %v2962 = vadd.f32 %v2948, %v2961
    %2963 = vdwg.mxu0
    %2964 = vmatpush.bf16.msra.mxu0 %v2579
    %2965 = vmatpush.bf16.msra.mxu0 %v2575
    %2966 = vmatpush.bf16.msra.mxu0 %v2571
    %2967 = vmatpush.bf16.msra.mxu0 %v2567
    %2968 = vmatpush.bf16.msra.mxu0 %v2563
    %2969 = vmatpush.bf16.msra.mxu0 %v2559
    %2970 = vmatpush.bf16.msra.mxu0 %v2555
    %2971 = vmatpush.bf16.msra.mxu0 %v2551
    %2972 = vmatmul.bf16.gmra.mxu0 %v1869
    %v2973 = vpop.f32.mrf.mxu0
    %v2974 = vadd.f32 %v2960, %v2973
    %v2975 = vpop.f32.mrf.mxu0
    %v2976 = vadd.f32 %v2962, %v2975
    %2977 = vdwg.mxu0
    %2978 = vmatpush.bf16.msra.mxu0 %v2611
    %2979 = vmatpush.bf16.msra.mxu0 %v2607
    %2980 = vmatpush.bf16.msra.mxu0 %v2603
    %2981 = vmatpush.bf16.msra.mxu0 %v2599
    %2982 = vmatpush.bf16.msra.mxu0 %v2595
    %2983 = vmatpush.bf16.msra.mxu0 %v2591
    %2984 = vmatpush.bf16.msra.mxu0 %v2587
    %2985 = vmatpush.bf16.msra.mxu0 %v2583
    %2986 = vmatmul.bf16.gmra.mxu0 %v1870
    %v2987 = vpop.f32.mrf.mxu0
    %v2988 = vadd.f32 %v2974, %v2987
    %v2989 = vpop.f32.mrf.mxu0
    %v2990 = vadd.f32 %v2976, %v2989
    %2991 = vdwg.mxu0
    %2992 = vmatpush.bf16.msra.mxu0 %v2643
    %2993 = vmatpush.bf16.msra.mxu0 %v2639
    %2994 = vmatpush.bf16.msra.mxu0 %v2635
    %2995 = vmatpush.bf16.msra.mxu0 %v2631
    %2996 = vmatpush.bf16.msra.mxu0 %v2627
    %2997 = vmatpush.bf16.msra.mxu0 %v2623
    %2998 = vmatpush.bf16.msra.mxu0 %v2619
    %2999 = vmatpush.bf16.msra.mxu0 %v2615
    %3000 = vmatmul.bf16.gmra.mxu0 %v1871
    %v3001 = vpop.f32.mrf.mxu0
    %v3002 = vadd.f32 %v2988, %v3001
    %v3003 = vpop.f32.mrf.mxu0
    %v3004 = vadd.f32 %v2990, %v3003
    %3005 = vdwg.mxu0
    %3006 = vmatpush.bf16.msra.mxu0 %v2484
    %3007 = vmatpush.bf16.msra.mxu0 %v2480
    %3008 = vmatpush.bf16.msra.mxu0 %v2476
    %3009 = vmatpush.bf16.msra.mxu0 %v2472
    %3010 = vmatpush.bf16.msra.mxu0 %v2468
    %3011 = vmatpush.bf16.msra.mxu0 %v2464
    %3012 = vmatpush.bf16.msra.mxu0 %v2460
    %3013 = vmatpush.bf16.msra.mxu0 %v2456
    %3014 = vmatmul.bf16.gmra.mxu0 %v1866
    %v3015 = vpop.f32.mrf.mxu0
    %v3016 = vadd.f32 %v1760, %v3015
    %v3017 = vpop.f32.mrf.mxu0
    %v3018 = vadd.f32 %v1762, %v3017
    %3019 = vdwg.mxu0
    %3020 = vmatpush.bf16.msra.mxu0 %v2516
    %3021 = vmatpush.bf16.msra.mxu0 %v2512
    %3022 = vmatpush.bf16.msra.mxu0 %v2508
    %3023 = vmatpush.bf16.msra.mxu0 %v2504
    %3024 = vmatpush.bf16.msra.mxu0 %v2500
    %3025 = vmatpush.bf16.msra.mxu0 %v2496
    %3026 = vmatpush.bf16.msra.mxu0 %v2492
    %3027 = vmatpush.bf16.msra.mxu0 %v2488
    %3028 = vmatmul.bf16.gmra.mxu0 %v1867
    %v3029 = vpop.f32.mrf.mxu0
    %v3030 = vadd.f32 %v3016, %v3029
    %v3031 = vpop.f32.mrf.mxu0
    %v3032 = vadd.f32 %v3018, %v3031
    %3033 = vdwg.mxu0
    %3034 = vmatpush.bf16.msra.mxu0 %v2548
    %3035 = vmatpush.bf16.msra.mxu0 %v2544
    %3036 = vmatpush.bf16.msra.mxu0 %v2540
    %3037 = vmatpush.bf16.msra.mxu0 %v2536
    %3038 = vmatpush.bf16.msra.mxu0 %v2532
    %3039 = vmatpush.bf16.msra.mxu0 %v2528
    %3040 = vmatpush.bf16.msra.mxu0 %v2524
    %3041 = vmatpush.bf16.msra.mxu0 %v2520
    %3042 = vmatmul.bf16.gmra.mxu0 %v1868
    %v3043 = vpop.f32.mrf.mxu0
    %v3044 = vadd.f32 %v3030, %v3043
    %v3045 = vpop.f32.mrf.mxu0
    %v3046 = vadd.f32 %v3032, %v3045
    %3047 = vdwg.mxu0
    %3048 = vmatpush.bf16.msra.mxu0 %v2580
    %3049 = vmatpush.bf16.msra.mxu0 %v2576
    %3050 = vmatpush.bf16.msra.mxu0 %v2572
    %3051 = vmatpush.bf16.msra.mxu0 %v2568
    %3052 = vmatpush.bf16.msra.mxu0 %v2564
    %3053 = vmatpush.bf16.msra.mxu0 %v2560
    %3054 = vmatpush.bf16.msra.mxu0 %v2556
    %3055 = vmatpush.bf16.msra.mxu0 %v2552
    %3056 = vmatmul.bf16.gmra.mxu0 %v1869
    %v3057 = vpop.f32.mrf.mxu0
    %v3058 = vadd.f32 %v3044, %v3057
    %v3059 = vpop.f32.mrf.mxu0
    %v3060 = vadd.f32 %v3046, %v3059
    %3061 = vdwg.mxu0
    %3062 = vmatpush.bf16.msra.mxu0 %v2612
    %3063 = vmatpush.bf16.msra.mxu0 %v2608
    %3064 = vmatpush.bf16.msra.mxu0 %v2604
    %3065 = vmatpush.bf16.msra.mxu0 %v2600
    %3066 = vmatpush.bf16.msra.mxu0 %v2596
    %3067 = vmatpush.bf16.msra.mxu0 %v2592
    %3068 = vmatpush.bf16.msra.mxu0 %v2588
    %3069 = vmatpush.bf16.msra.mxu0 %v2584
    %3070 = vmatmul.bf16.gmra.mxu0 %v1870
    %v3071 = vpop.f32.mrf.mxu0
    %v3072 = vadd.f32 %v3058, %v3071
    %v3073 = vpop.f32.mrf.mxu0
    %v3074 = vadd.f32 %v3060, %v3073
    %3075 = vdwg.mxu0
    %3076 = vmatpush.bf16.msra.mxu0 %v2644
    %3077 = vmatpush.bf16.msra.mxu0 %v2640
    %3078 = vmatpush.bf16.msra.mxu0 %v2636
    %3079 = vmatpush.bf16.msra.mxu0 %v2632
    %3080 = vmatpush.bf16.msra.mxu0 %v2628
    %3081 = vmatpush.bf16.msra.mxu0 %v2624
    %3082 = vmatpush.bf16.msra.mxu0 %v2620
    %3083 = vmatpush.bf16.msra.mxu0 %v2616
    %3084 = vmatmul.bf16.gmra.mxu0 %v1871
    %v3085 = vpop.f32.mrf.mxu0
    %v3086 = vadd.f32 %v3072, %v3085
    %v3087 = vpop.f32.mrf.mxu0
    %v3088 = vadd.f32 %v3074, %v3087
    %3089 = vdwg.mxu0
    %3090 = vmatpush.bf16.msra.mxu0 %v2485
    %3091 = vmatpush.bf16.msra.mxu0 %v2481
    %3092 = vmatpush.bf16.msra.mxu0 %v2477
    %3093 = vmatpush.bf16.msra.mxu0 %v2473
    %3094 = vmatpush.bf16.msra.mxu0 %v2469
    %3095 = vmatpush.bf16.msra.mxu0 %v2465
    %3096 = vmatpush.bf16.msra.mxu0 %v2461
    %3097 = vmatpush.bf16.msra.mxu0 %v2457
    %3098 = vmatmul.bf16.gmra.mxu0 %v1866
    %v3099 = vpop.f32.mrf.mxu0
    %v3100 = vadd.f32 %v1844, %v3099
    %v3101 = vpop.f32.mrf.mxu0
    %v3102 = vadd.f32 %v1846, %v3101
    %3103 = vdwg.mxu0
    %3104 = vmatpush.bf16.msra.mxu0 %v2517
    %3105 = vmatpush.bf16.msra.mxu0 %v2513
    %3106 = vmatpush.bf16.msra.mxu0 %v2509
    %3107 = vmatpush.bf16.msra.mxu0 %v2505
    %3108 = vmatpush.bf16.msra.mxu0 %v2501
    %3109 = vmatpush.bf16.msra.mxu0 %v2497
    %3110 = vmatpush.bf16.msra.mxu0 %v2493
    %3111 = vmatpush.bf16.msra.mxu0 %v2489
    %3112 = vmatmul.bf16.gmra.mxu0 %v1867
    %v3113 = vpop.f32.mrf.mxu0
    %v3114 = vadd.f32 %v3100, %v3113
    %v3115 = vpop.f32.mrf.mxu0
    %v3116 = vadd.f32 %v3102, %v3115
    %3117 = vdwg.mxu0
    %3118 = vmatpush.bf16.msra.mxu0 %v2549
    %3119 = vmatpush.bf16.msra.mxu0 %v2545
    %3120 = vmatpush.bf16.msra.mxu0 %v2541
    %3121 = vmatpush.bf16.msra.mxu0 %v2537
    %3122 = vmatpush.bf16.msra.mxu0 %v2533
    %3123 = vmatpush.bf16.msra.mxu0 %v2529
    %3124 = vmatpush.bf16.msra.mxu0 %v2525
    %3125 = vmatpush.bf16.msra.mxu0 %v2521
    %3126 = vmatmul.bf16.gmra.mxu0 %v1868
    %v3127 = vpop.f32.mrf.mxu0
    %v3128 = vadd.f32 %v3114, %v3127
    %v3129 = vpop.f32.mrf.mxu0
    %v3130 = vadd.f32 %v3116, %v3129
    %3131 = vdwg.mxu0
    %3132 = vmatpush.bf16.msra.mxu0 %v2581
    %3133 = vmatpush.bf16.msra.mxu0 %v2577
    %3134 = vmatpush.bf16.msra.mxu0 %v2573
    %3135 = vmatpush.bf16.msra.mxu0 %v2569
    %3136 = vmatpush.bf16.msra.mxu0 %v2565
    %3137 = vmatpush.bf16.msra.mxu0 %v2561
    %3138 = vmatpush.bf16.msra.mxu0 %v2557
    %3139 = vmatpush.bf16.msra.mxu0 %v2553
    %3140 = vmatmul.bf16.gmra.mxu0 %v1869
    %v3141 = vpop.f32.mrf.mxu0
    %v3142 = vadd.f32 %v3128, %v3141
    %v3143 = vpop.f32.mrf.mxu0
    %v3144 = vadd.f32 %v3130, %v3143
    %3145 = vdwg.mxu0
    %3146 = vmatpush.bf16.msra.mxu0 %v2613
    %3147 = vmatpush.bf16.msra.mxu0 %v2609
    %3148 = vmatpush.bf16.msra.mxu0 %v2605
    %3149 = vmatpush.bf16.msra.mxu0 %v2601
    %3150 = vmatpush.bf16.msra.mxu0 %v2597
    %3151 = vmatpush.bf16.msra.mxu0 %v2593
    %3152 = vmatpush.bf16.msra.mxu0 %v2589
    %3153 = vmatpush.bf16.msra.mxu0 %v2585
    %3154 = vmatmul.bf16.gmra.mxu0 %v1870
    %v3155 = vpop.f32.mrf.mxu0
    %v3156 = vadd.f32 %v3142, %v3155
    %v3157 = vpop.f32.mrf.mxu0
    %v3158 = vadd.f32 %v3144, %v3157
    %3159 = vdwg.mxu0
    %3160 = vmatpush.bf16.msra.mxu0 %v2645
    %3161 = vmatpush.bf16.msra.mxu0 %v2641
    %3162 = vmatpush.bf16.msra.mxu0 %v2637
    %3163 = vmatpush.bf16.msra.mxu0 %v2633
    %3164 = vmatpush.bf16.msra.mxu0 %v2629
    %3165 = vmatpush.bf16.msra.mxu0 %v2625
    %3166 = vmatpush.bf16.msra.mxu0 %v2621
    %3167 = vmatpush.bf16.msra.mxu0 %v2617
    %3168 = vmatmul.bf16.gmra.mxu0 %v1871
    %v3169 = vpop.f32.mrf.mxu0
    %v3170 = vadd.f32 %v3156, %v3169
    %v3171 = vpop.f32.mrf.mxu0
    %v3172 = vadd.f32 %v3158, %v3171
    %3173 = vdwg.mxu0
    %vm3180 = vcmask 1042432
    %vm3181 = vcmask 1046532
    %vm3182 = vmor %vm3180, %vm3181
    %v3183 = vrot.slane %v44, 5
    %v3184 = vrot.slane %v3183, 4
    %v3185 = vrot.slane %v47, 5
    %v3186 = vsel %vm3182, %v3184, %v3185
    %v3187 = vrot.slane %v45, 5
    %v3188 = vrot.slane %v3187, 4
    %v3189 = vrot.slane %v48, 5
    %v3190 = vsel %vm3182, %v3188, %v3189
    %v3191 = vrot.slane %v46, 5
    %v3192 = vrot.slane %v3191, 4
    %v3193 = vrot.slane %v49, 5
    %v3194 = vsel %vm3182, %v3192, %v3193
    %v3195 = vrot.slane %v50, 5
    %v3196 = vrot.slane %v3195, 4
    %v3197 = vrot.slane %v53, 5
    %v3198 = vsel %vm3182, %v3196, %v3197
    %v3199 = vrot.slane %v51, 5
    %v3200 = vrot.slane %v3199, 4
    %v3201 = vrot.slane %v54, 5
    %v3202 = vsel %vm3182, %v3200, %v3201
    %v3203 = vrot.slane %v52, 5
    %v3204 = vrot.slane %v3203, 4
    %v3205 = vrot.slane %v55, 5
    %v3206 = vsel %vm3182, %v3204, %v3205
    %s3207 = scalar_lea.vmem [#allocation2], 3072
    %v3208 = vld [vmem:[%s3207] sm:$0xff]
    %v3209 = vld [vmem:[%s3207 + $0x8] sm:$0xff]
    %v3210 = vld [vmem:[%s3207 + $0x10] sm:$0xff]
    %v3211 = vld [vmem:[%s3207 + $0x18] sm:$0xff]
    %v3212 = vld [vmem:[%s3207 + $0x20] sm:$0xff]
    %v3213 = vld [vmem:[%s3207 + $0x28] sm:$0xff]
    %v3214 = vld [vmem:[%s3207 + $0x30] sm:$0xff]
    %v3215 = vld [vmem:[%s3207 + $0x38] sm:$0xff]
    %v3216 = vld [vmem:[%s3207 + $0x40] sm:$0xff]
    %v3217 = vld [vmem:[%s3207 + $0x48] sm:$0xff]
    %v3218 = vld [vmem:[%s3207 + $0x50] sm:$0xff]
    %v3219 = vld [vmem:[%s3207 + $0x58] sm:$0xff]
    %v3220 = vld [vmem:[%s3207 + $0x60] sm:$0xff]
    %v3221 = vld [vmem:[%s3207 + $0x68] sm:$0xff]
    %v3222 = vld [vmem:[%s3207 + $0x70] sm:$0xff]
    %v3223 = vld [vmem:[%s3207 + $0x78] sm:$0xff]
    %v3224 = vld [vmem:[%s3207 + $0x80] sm:$0xff]
    %v3225 = vld [vmem:[%s3207 + $0x88] sm:$0xff]
    %v3226 = vld [vmem:[%s3207 + $0x90] sm:$0xff]
    %v3227 = vld [vmem:[%s3207 + $0x98] sm:$0xff]
    %v3228 = vld [vmem:[%s3207 + $0xa0] sm:$0xff]
    %v3229 = vld [vmem:[%s3207 + $0xa8] sm:$0xff]
    %v3230 = vld [vmem:[%s3207 + $0xb0] sm:$0xff]
    %v3231 = vld [vmem:[%s3207 + $0xb8] sm:$0xff]
    %v3232 = vld [vmem:[%s3207 + $0xc0] sm:$0xff]
    %v3233 = vld [vmem:[%s3207 + $0xc8] sm:$0xff]
    %v3234 = vld [vmem:[%s3207 + $0xd0] sm:$0xff]
    %v3235 = vld [vmem:[%s3207 + $0xd8] sm:$0xff]
    %v3236 = vld [vmem:[%s3207 + $0xe0] sm:$0xff]
    %v3237 = vld [vmem:[%s3207 + $0xe8] sm:$0xff]
    %v3238 = vld [vmem:[%s3207 + $0xf0] sm:$0xff]
    %v3239 = vld [vmem:[%s3207 + $0xf8] sm:$0xff]
    %v3240 = vld [vmem:[%s3207 + $0x100] sm:$0xff]
    %v3241 = vld [vmem:[%s3207 + $0x108] sm:$0xff]
    %v3242 = vld [vmem:[%s3207 + $0x110] sm:$0xff]
    %v3243 = vld [vmem:[%s3207 + $0x118] sm:$0xff]
    %v3244 = vld [vmem:[%s3207 + $0x120] sm:$0xff]
    %v3245 = vld [vmem:[%s3207 + $0x128] sm:$0xff]
    %v3246 = vld [vmem:[%s3207 + $0x130] sm:$0xff]
    %v3247 = vld [vmem:[%s3207 + $0x138] sm:$0xff]
    %v3248 = vld [vmem:[%s3207 + $0x140] sm:$0xff]
    %v3249 = vld [vmem:[%s3207 + $0x148] sm:$0xff]
    %v3250 = vld [vmem:[%s3207 + $0x150] sm:$0xff]
    %v3251 = vld [vmem:[%s3207 + $0x158] sm:$0xff]
    %v3252 = vld [vmem:[%s3207 + $0x160] sm:$0xff]
    %v3253 = vld [vmem:[%s3207 + $0x168] sm:$0xff]
    %v3254 = vld [vmem:[%s3207 + $0x170] sm:$0xff]
    %v3255 = vld [vmem:[%s3207 + $0x178] sm:$0xff]
    %v3256 = vld [vmem:[%s3207 + $0x180] sm:$0xff]
    %v3257 = vld [vmem:[%s3207 + $0x188] sm:$0xff]
    %v3258 = vld [vmem:[%s3207 + $0x190] sm:$0xff]
    %v3259 = vld [vmem:[%s3207 + $0x198] sm:$0xff]
    %v3260 = vld [vmem:[%s3207 + $0x1a0] sm:$0xff]
    %v3261 = vld [vmem:[%s3207 + $0x1a8] sm:$0xff]
    %v3262 = vld [vmem:[%s3207 + $0x1b0] sm:$0xff]
    %v3263 = vld [vmem:[%s3207 + $0x1b8] sm:$0xff]
    %v3264 = vld [vmem:[%s3207 + $0x1c0] sm:$0xff]
    %v3265 = vld [vmem:[%s3207 + $0x1c8] sm:$0xff]
    %v3266 = vld [vmem:[%s3207 + $0x1d0] sm:$0xff]
    %v3267 = vld [vmem:[%s3207 + $0x1d8] sm:$0xff]
    %v3268 = vld [vmem:[%s3207 + $0x1e0] sm:$0xff]
    %v3269 = vld [vmem:[%s3207 + $0x1e8] sm:$0xff]
    %v3270 = vld [vmem:[%s3207 + $0x1f0] sm:$0xff]
    %v3271 = vld [vmem:[%s3207 + $0x1f8] sm:$0xff]
    %v3272 = vld [vmem:[%s3207 + $0x200] sm:$0xff]
    %v3273 = vld [vmem:[%s3207 + $0x208] sm:$0xff]
    %v3274 = vld [vmem:[%s3207 + $0x210] sm:$0xff]
    %v3275 = vld [vmem:[%s3207 + $0x218] sm:$0xff]
    %v3276 = vld [vmem:[%s3207 + $0x220] sm:$0xff]
    %v3277 = vld [vmem:[%s3207 + $0x228] sm:$0xff]
    %v3278 = vld [vmem:[%s3207 + $0x230] sm:$0xff]
    %v3279 = vld [vmem:[%s3207 + $0x238] sm:$0xff]
    %v3280 = vld [vmem:[%s3207 + $0x240] sm:$0xff]
    %v3281 = vld [vmem:[%s3207 + $0x248] sm:$0xff]
    %v3282 = vld [vmem:[%s3207 + $0x250] sm:$0xff]
    %v3283 = vld [vmem:[%s3207 + $0x258] sm:$0xff]
    %v3284 = vld [vmem:[%s3207 + $0x260] sm:$0xff]
    %v3285 = vld [vmem:[%s3207 + $0x268] sm:$0xff]
    %v3286 = vld [vmem:[%s3207 + $0x270] sm:$0xff]
    %v3287 = vld [vmem:[%s3207 + $0x278] sm:$0xff]
    %v3288 = vld [vmem:[%s3207 + $0x280] sm:$0xff]
    %v3289 = vld [vmem:[%s3207 + $0x288] sm:$0xff]
    %v3290 = vld [vmem:[%s3207 + $0x290] sm:$0xff]
    %v3291 = vld [vmem:[%s3207 + $0x298] sm:$0xff]
    %v3292 = vld [vmem:[%s3207 + $0x2a0] sm:$0xff]
    %v3293 = vld [vmem:[%s3207 + $0x2a8] sm:$0xff]
    %v3294 = vld [vmem:[%s3207 + $0x2b0] sm:$0xff]
    %v3295 = vld [vmem:[%s3207 + $0x2b8] sm:$0xff]
    %v3296 = vld [vmem:[%s3207 + $0x2c0] sm:$0xff]
    %v3297 = vld [vmem:[%s3207 + $0x2c8] sm:$0xff]
    %v3298 = vld [vmem:[%s3207 + $0x2d0] sm:$0xff]
    %v3299 = vld [vmem:[%s3207 + $0x2d8] sm:$0xff]
    %v3300 = vld [vmem:[%s3207 + $0x2e0] sm:$0xff]
    %v3301 = vld [vmem:[%s3207 + $0x2e8] sm:$0xff]
    %v3302 = vld [vmem:[%s3207 + $0x2f0] sm:$0xff]
    %v3303 = vld [vmem:[%s3207 + $0x2f8] sm:$0xff]
    %v3304 = vld [vmem:[%s3207 + $0x300] sm:$0xff]
    %v3305 = vld [vmem:[%s3207 + $0x308] sm:$0xff]
    %v3306 = vld [vmem:[%s3207 + $0x310] sm:$0xff]
    %v3307 = vld [vmem:[%s3207 + $0x318] sm:$0xff]
    %v3308 = vld [vmem:[%s3207 + $0x320] sm:$0xff]
    %v3309 = vld [vmem:[%s3207 + $0x328] sm:$0xff]
    %v3310 = vld [vmem:[%s3207 + $0x330] sm:$0xff]
    %v3311 = vld [vmem:[%s3207 + $0x338] sm:$0xff]
    %v3312 = vld [vmem:[%s3207 + $0x340] sm:$0xff]
    %v3313 = vld [vmem:[%s3207 + $0x348] sm:$0xff]
    %v3314 = vld [vmem:[%s3207 + $0x350] sm:$0xff]
    %v3315 = vld [vmem:[%s3207 + $0x358] sm:$0xff]
    %v3316 = vld [vmem:[%s3207 + $0x360] sm:$0xff]
    %v3317 = vld [vmem:[%s3207 + $0x368] sm:$0xff]
    %v3318 = vld [vmem:[%s3207 + $0x370] sm:$0xff]
    %v3319 = vld [vmem:[%s3207 + $0x378] sm:$0xff]
    %v3320 = vld [vmem:[%s3207 + $0x380] sm:$0xff]
    %v3321 = vld [vmem:[%s3207 + $0x388] sm:$0xff]
    %v3322 = vld [vmem:[%s3207 + $0x390] sm:$0xff]
    %v3323 = vld [vmem:[%s3207 + $0x398] sm:$0xff]
    %v3324 = vld [vmem:[%s3207 + $0x3a0] sm:$0xff]
    %v3325 = vld [vmem:[%s3207 + $0x3a8] sm:$0xff]
    %v3326 = vld [vmem:[%s3207 + $0x3b0] sm:$0xff]
    %v3327 = vld [vmem:[%s3207 + $0x3b8] sm:$0xff]
    %v3328 = vld [vmem:[%s3207 + $0x3c0] sm:$0xff]
    %v3329 = vld [vmem:[%s3207 + $0x3c8] sm:$0xff]
    %v3330 = vld [vmem:[%s3207 + $0x3d0] sm:$0xff]
    %v3331 = vld [vmem:[%s3207 + $0x3d8] sm:$0xff]
    %v3332 = vld [vmem:[%s3207 + $0x3e0] sm:$0xff]
    %v3333 = vld [vmem:[%s3207 + $0x3e8] sm:$0xff]
    %v3334 = vld [vmem:[%s3207 + $0x3f0] sm:$0xff]
    %v3335 = vld [vmem:[%s3207 + $0x3f8] sm:$0xff]
    %v3336 = vld [vmem:[%s3207 + $0x400] sm:$0xff]
    %v3337 = vld [vmem:[%s3207 + $0x408] sm:$0xff]
    %v3338 = vld [vmem:[%s3207 + $0x410] sm:$0xff]
    %v3339 = vld [vmem:[%s3207 + $0x418] sm:$0xff]
    %v3340 = vld [vmem:[%s3207 + $0x420] sm:$0xff]
    %v3341 = vld [vmem:[%s3207 + $0x428] sm:$0xff]
    %v3342 = vld [vmem:[%s3207 + $0x430] sm:$0xff]
    %v3343 = vld [vmem:[%s3207 + $0x438] sm:$0xff]
    %v3344 = vld [vmem:[%s3207 + $0x440] sm:$0xff]
    %v3345 = vld [vmem:[%s3207 + $0x448] sm:$0xff]
    %v3346 = vld [vmem:[%s3207 + $0x450] sm:$0xff]
    %v3347 = vld [vmem:[%s3207 + $0x458] sm:$0xff]
    %v3348 = vld [vmem:[%s3207 + $0x460] sm:$0xff]
    %v3349 = vld [vmem:[%s3207 + $0x468] sm:$0xff]
    %v3350 = vld [vmem:[%s3207 + $0x470] sm:$0xff]
    %v3351 = vld [vmem:[%s3207 + $0x478] sm:$0xff]
    %v3352 = vld [vmem:[%s3207 + $0x480] sm:$0xff]
    %v3353 = vld [vmem:[%s3207 + $0x488] sm:$0xff]
    %v3354 = vld [vmem:[%s3207 + $0x490] sm:$0xff]
    %v3355 = vld [vmem:[%s3207 + $0x498] sm:$0xff]
    %v3356 = vld [vmem:[%s3207 + $0x4a0] sm:$0xff]
    %v3357 = vld [vmem:[%s3207 + $0x4a8] sm:$0xff]
    %v3358 = vld [vmem:[%s3207 + $0x4b0] sm:$0xff]
    %v3359 = vld [vmem:[%s3207 + $0x4b8] sm:$0xff]
    %v3360 = vld [vmem:[%s3207 + $0x4c0] sm:$0xff]
    %v3361 = vld [vmem:[%s3207 + $0x4c8] sm:$0xff]
    %v3362 = vld [vmem:[%s3207 + $0x4d0] sm:$0xff]
    %v3363 = vld [vmem:[%s3207 + $0x4d8] sm:$0xff]
    %v3364 = vld [vmem:[%s3207 + $0x4e0] sm:$0xff]
    %v3365 = vld [vmem:[%s3207 + $0x4e8] sm:$0xff]
    %v3366 = vld [vmem:[%s3207 + $0x4f0] sm:$0xff]
    %v3367 = vld [vmem:[%s3207 + $0x4f8] sm:$0xff]
    %v3368 = vld [vmem:[%s3207 + $0x500] sm:$0xff]
    %v3369 = vld [vmem:[%s3207 + $0x508] sm:$0xff]
    %v3370 = vld [vmem:[%s3207 + $0x510] sm:$0xff]
    %v3371 = vld [vmem:[%s3207 + $0x518] sm:$0xff]
    %v3372 = vld [vmem:[%s3207 + $0x520] sm:$0xff]
    %v3373 = vld [vmem:[%s3207 + $0x528] sm:$0xff]
    %v3374 = vld [vmem:[%s3207 + $0x530] sm:$0xff]
    %v3375 = vld [vmem:[%s3207 + $0x538] sm:$0xff]
    %v3376 = vld [vmem:[%s3207 + $0x540] sm:$0xff]
    %v3377 = vld [vmem:[%s3207 + $0x548] sm:$0xff]
    %v3378 = vld [vmem:[%s3207 + $0x550] sm:$0xff]
    %v3379 = vld [vmem:[%s3207 + $0x558] sm:$0xff]
    %v3380 = vld [vmem:[%s3207 + $0x560] sm:$0xff]
    %v3381 = vld [vmem:[%s3207 + $0x568] sm:$0xff]
    %v3382 = vld [vmem:[%s3207 + $0x570] sm:$0xff]
    %v3383 = vld [vmem:[%s3207 + $0x578] sm:$0xff]
    %v3384 = vld [vmem:[%s3207 + $0x580] sm:$0xff]
    %v3385 = vld [vmem:[%s3207 + $0x588] sm:$0xff]
    %v3386 = vld [vmem:[%s3207 + $0x590] sm:$0xff]
    %v3387 = vld [vmem:[%s3207 + $0x598] sm:$0xff]
    %v3388 = vld [vmem:[%s3207 + $0x5a0] sm:$0xff]
    %v3389 = vld [vmem:[%s3207 + $0x5a8] sm:$0xff]
    %v3390 = vld [vmem:[%s3207 + $0x5b0] sm:$0xff]
    %v3391 = vld [vmem:[%s3207 + $0x5b8] sm:$0xff]
    %v3392 = vld [vmem:[%s3207 + $0x5c0] sm:$0xff]
    %v3393 = vld [vmem:[%s3207 + $0x5c8] sm:$0xff]
    %v3394 = vld [vmem:[%s3207 + $0x5d0] sm:$0xff]
    %v3395 = vld [vmem:[%s3207 + $0x5d8] sm:$0xff]
    %v3396 = vld [vmem:[%s3207 + $0x5e0] sm:$0xff]
    %v3397 = vld [vmem:[%s3207 + $0x5e8] sm:$0xff]
    %v3398 = vld [vmem:[%s3207 + $0x5f0] sm:$0xff]
    %v3399 = vld [vmem:[%s3207 + $0x5f8] sm:$0xff]
    %v3400 = vunpack.c.l.b16 %v3186
    %v3401 = vunpack.c.h.b16 %v3186
    %v3402 = vunpack.c.l.b16 %v3190
    %v3403 = vunpack.c.h.b16 %v3190
    %v3404 = vunpack.c.l.b16 %v3194
    %v3405 = vunpack.c.h.b16 %v3194
    %v3406 = vunpack.c.l.b16 %v3198
    %v3407 = vunpack.c.h.b16 %v3198
    %v3408 = vunpack.c.l.b16 %v3202
    %v3409 = vunpack.c.h.b16 %v3202
    %v3410 = vunpack.c.l.b16 %v3206
    %v3411 = vunpack.c.h.b16 %v3206
    %v3412 = vpack.c.b16 %v3406, %v3400
    %v3413 = vpack.c.b16 %v3407, %v3401
    %v3414 = vpack.c.b16 %v3408, %v3402
    %v3415 = vpack.c.b16 %v3409, %v3403
    %v3416 = vpack.c.b16 %v3410, %v3404
    %v3417 = vpack.c.b16 %v3411, %v3405
    %v3616 = vunpack.c.l.b16 %v3208
    %v3617 = vunpack.c.h.b16 %v3208
    %v3618 = vunpack.c.l.b16 %v3209
    %v3619 = vunpack.c.h.b16 %v3209
    %v3620 = vunpack.c.l.b16 %v3210
    %v3621 = vunpack.c.h.b16 %v3210
    %v3622 = vunpack.c.l.b16 %v3211
    %v3623 = vunpack.c.h.b16 %v3211
    %v3624 = vunpack.c.l.b16 %v3212
    %v3625 = vunpack.c.h.b16 %v3212
    %v3626 = vunpack.c.l.b16 %v3213
    %v3627 = vunpack.c.h.b16 %v3213
    %v3628 = vunpack.c.l.b16 %v3214
    %v3629 = vunpack.c.h.b16 %v3214
    %v3630 = vunpack.c.l.b16 %v3215
    %v3631 = vunpack.c.h.b16 %v3215
    %v3632 = vunpack.c.l.b16 %v3216
    %v3633 = vunpack.c.h.b16 %v3216
    %v3634 = vunpack.c.l.b16 %v3217
    %v3635 = vunpack.c.h.b16 %v3217
    %v3636 = vunpack.c.l.b16 %v3218
    %v3637 = vunpack.c.h.b16 %v3218
    %v3638 = vunpack.c.l.b16 %v3219
    %v3639 = vunpack.c.h.b16 %v3219
    %v3640 = vunpack.c.l.b16 %v3220
    %v3641 = vunpack.c.h.b16 %v3220
    %v3642 = vunpack.c.l.b16 %v3221
    %v3643 = vunpack.c.h.b16 %v3221
    %v3644 = vunpack.c.l.b16 %v3222
    %v3645 = vunpack.c.h.b16 %v3222
    %v3646 = vunpack.c.l.b16 %v3223
    %v3647 = vunpack.c.h.b16 %v3223
    %v3648 = vunpack.c.l.b16 %v3224
    %v3649 = vunpack.c.h.b16 %v3224
    %v3650 = vunpack.c.l.b16 %v3225
    %v3651 = vunpack.c.h.b16 %v3225
    %v3652 = vunpack.c.l.b16 %v3226
    %v3653 = vunpack.c.h.b16 %v3226
    %v3654 = vunpack.c.l.b16 %v3227
    %v3655 = vunpack.c.h.b16 %v3227
    %v3656 = vunpack.c.l.b16 %v3228
    %v3657 = vunpack.c.h.b16 %v3228
    %v3658 = vunpack.c.l.b16 %v3229
    %v3659 = vunpack.c.h.b16 %v3229
    %v3660 = vunpack.c.l.b16 %v3230
    %v3661 = vunpack.c.h.b16 %v3230
    %v3662 = vunpack.c.l.b16 %v3231
    %v3663 = vunpack.c.h.b16 %v3231
    %v3664 = vunpack.c.l.b16 %v3232
    %v3665 = vunpack.c.h.b16 %v3232
    %v3666 = vunpack.c.l.b16 %v3233
    %v3667 = vunpack.c.h.b16 %v3233
    %v3668 = vunpack.c.l.b16 %v3234
    %v3669 = vunpack.c.h.b16 %v3234
    %v3670 = vunpack.c.l.b16 %v3235
    %v3671 = vunpack.c.h.b16 %v3235
    %v3672 = vunpack.c.l.b16 %v3236
    %v3673 = vunpack.c.h.b16 %v3236
    %v3674 = vunpack.c.l.b16 %v3237
    %v3675 = vunpack.c.h.b16 %v3237
    %v3676 = vunpack.c.l.b16 %v3238
    %v3677 = vunpack.c.h.b16 %v3238
    %v3678 = vunpack.c.l.b16 %v3239
    %v3679 = vunpack.c.h.b16 %v3239
    %v3680 = vunpack.c.l.b16 %v3240
    %v3681 = vunpack.c.h.b16 %v3240
    %v3682 = vunpack.c.l.b16 %v3241
    %v3683 = vunpack.c.h.b16 %v3241
    %v3684 = vunpack.c.l.b16 %v3242
    %v3685 = vunpack.c.h.b16 %v3242
    %v3686 = vunpack.c.l.b16 %v3243
    %v3687 = vunpack.c.h.b16 %v3243
    %v3688 = vunpack.c.l.b16 %v3244
    %v3689 = vunpack.c.h.b16 %v3244
    %v3690 = vunpack.c.l.b16 %v3245
    %v3691 = vunpack.c.h.b16 %v3245
    %v3692 = vunpack.c.l.b16 %v3246
    %v3693 = vunpack.c.h.b16 %v3246
    %v3694 = vunpack.c.l.b16 %v3247
    %v3695 = vunpack.c.h.b16 %v3247
    %v3696 = vunpack.c.l.b16 %v3248
    %v3697 = vunpack.c.h.b16 %v3248
    %v3698 = vunpack.c.l.b16 %v3249
    %v3699 = vunpack.c.h.b16 %v3249
    %v3700 = vunpack.c.l.b16 %v3250
    %v3701 = vunpack.c.h.b16 %v3250
    %v3702 = vunpack.c.l.b16 %v3251
    %v3703 = vunpack.c.h.b16 %v3251
    %v3704 = vunpack.c.l.b16 %v3252
    %v3705 = vunpack.c.h.b16 %v3252
    %v3706 = vunpack.c.l.b16 %v3253
    %v3707 = vunpack.c.h.b16 %v3253
    %v3708 = vunpack.c.l.b16 %v3254
    %v3709 = vunpack.c.h.b16 %v3254
    %v3710 = vunpack.c.l.b16 %v3255
    %v3711 = vunpack.c.h.b16 %v3255
    %v3712 = vunpack.c.l.b16 %v3256
    %v3713 = vunpack.c.h.b16 %v3256
    %v3714 = vunpack.c.l.b16 %v3257
    %v3715 = vunpack.c.h.b16 %v3257
    %v3716 = vunpack.c.l.b16 %v3258
    %v3717 = vunpack.c.h.b16 %v3258
    %v3718 = vunpack.c.l.b16 %v3259
    %v3719 = vunpack.c.h.b16 %v3259
    %v3720 = vunpack.c.l.b16 %v3260
    %v3721 = vunpack.c.h.b16 %v3260
    %v3722 = vunpack.c.l.b16 %v3261
    %v3723 = vunpack.c.h.b16 %v3261
    %v3724 = vunpack.c.l.b16 %v3262
    %v3725 = vunpack.c.h.b16 %v3262
    %v3726 = vunpack.c.l.b16 %v3263
    %v3727 = vunpack.c.h.b16 %v3263
    %v3728 = vunpack.c.l.b16 %v3264
    %v3729 = vunpack.c.h.b16 %v3264
    %v3730 = vunpack.c.l.b16 %v3265
    %v3731 = vunpack.c.h.b16 %v3265
    %v3732 = vunpack.c.l.b16 %v3266
    %v3733 = vunpack.c.h.b16 %v3266
    %v3734 = vunpack.c.l.b16 %v3267
    %v3735 = vunpack.c.h.b16 %v3267
    %v3736 = vunpack.c.l.b16 %v3268
    %v3737 = vunpack.c.h.b16 %v3268
    %v3738 = vunpack.c.l.b16 %v3269
    %v3739 = vunpack.c.h.b16 %v3269
    %v3740 = vunpack.c.l.b16 %v3270
    %v3741 = vunpack.c.h.b16 %v3270
    %v3742 = vunpack.c.l.b16 %v3271
    %v3743 = vunpack.c.h.b16 %v3271
    %v3744 = vunpack.c.l.b16 %v3272
    %v3745 = vunpack.c.h.b16 %v3272
    %v3746 = vunpack.c.l.b16 %v3273
    %v3747 = vunpack.c.h.b16 %v3273
    %v3748 = vunpack.c.l.b16 %v3274
    %v3749 = vunpack.c.h.b16 %v3274
    %v3750 = vunpack.c.l.b16 %v3275
    %v3751 = vunpack.c.h.b16 %v3275
    %v3752 = vunpack.c.l.b16 %v3276
    %v3753 = vunpack.c.h.b16 %v3276
    %v3754 = vunpack.c.l.b16 %v3277
    %v3755 = vunpack.c.h.b16 %v3277
    %v3756 = vunpack.c.l.b16 %v3278
    %v3757 = vunpack.c.h.b16 %v3278
    %v3758 = vunpack.c.l.b16 %v3279
    %v3759 = vunpack.c.h.b16 %v3279
    %v3760 = vunpack.c.l.b16 %v3280
    %v3761 = vunpack.c.h.b16 %v3280
    %v3762 = vunpack.c.l.b16 %v3281
    %v3763 = vunpack.c.h.b16 %v3281
    %v3764 = vunpack.c.l.b16 %v3282
    %v3765 = vunpack.c.h.b16 %v3282
    %v3766 = vunpack.c.l.b16 %v3283
    %v3767 = vunpack.c.h.b16 %v3283
    %v3768 = vunpack.c.l.b16 %v3284
    %v3769 = vunpack.c.h.b16 %v3284
    %v3770 = vunpack.c.l.b16 %v3285
    %v3771 = vunpack.c.h.b16 %v3285
    %v3772 = vunpack.c.l.b16 %v3286
    %v3773 = vunpack.c.h.b16 %v3286
    %v3774 = vunpack.c.l.b16 %v3287
    %v3775 = vunpack.c.h.b16 %v3287
    %v3776 = vunpack.c.l.b16 %v3288
    %v3777 = vunpack.c.h.b16 %v3288
    %v3778 = vunpack.c.l.b16 %v3289
    %v3779 = vunpack.c.h.b16 %v3289
    %v3780 = vunpack.c.l.b16 %v3290
    %v3781 = vunpack.c.h.b16 %v3290
    %v3782 = vunpack.c.l.b16 %v3291
    %v3783 = vunpack.c.h.b16 %v3291
    %v3784 = vunpack.c.l.b16 %v3292
    %v3785 = vunpack.c.h.b16 %v3292
    %v3786 = vunpack.c.l.b16 %v3293
    %v3787 = vunpack.c.h.b16 %v3293
    %v3788 = vunpack.c.l.b16 %v3294
    %v3789 = vunpack.c.h.b16 %v3294
    %v3790 = vunpack.c.l.b16 %v3295
    %v3791 = vunpack.c.h.b16 %v3295
    %v3792 = vunpack.c.l.b16 %v3296
    %v3793 = vunpack.c.h.b16 %v3296
    %v3794 = vunpack.c.l.b16 %v3297
    %v3795 = vunpack.c.h.b16 %v3297
    %v3796 = vunpack.c.l.b16 %v3298
    %v3797 = vunpack.c.h.b16 %v3298
    %v3798 = vunpack.c.l.b16 %v3299
    %v3799 = vunpack.c.h.b16 %v3299
    %v3800 = vunpack.c.l.b16 %v3300
    %v3801 = vunpack.c.h.b16 %v3300
    %v3802 = vunpack.c.l.b16 %v3301
    %v3803 = vunpack.c.h.b16 %v3301
    %v3804 = vunpack.c.l.b16 %v3302
    %v3805 = vunpack.c.h.b16 %v3302
    %v3806 = vunpack.c.l.b16 %v3303
    %v3807 = vunpack.c.h.b16 %v3303
    %v3808 = vunpack.c.l.b16 %v3304
    %v3809 = vunpack.c.h.b16 %v3304
    %v3810 = vunpack.c.l.b16 %v3305
    %v3811 = vunpack.c.h.b16 %v3305
    %v3812 = vunpack.c.l.b16 %v3306
    %v3813 = vunpack.c.h.b16 %v3306
    %v3814 = vunpack.c.l.b16 %v3307
    %v3815 = vunpack.c.h.b16 %v3307
    %v3816 = vunpack.c.l.b16 %v3308
    %v3817 = vunpack.c.h.b16 %v3308
    %v3818 = vunpack.c.l.b16 %v3309
    %v3819 = vunpack.c.h.b16 %v3309
    %v3820 = vunpack.c.l.b16 %v3310
    %v3821 = vunpack.c.h.b16 %v3310
    %v3822 = vunpack.c.l.b16 %v3311
    %v3823 = vunpack.c.h.b16 %v3311
    %v3824 = vunpack.c.l.b16 %v3312
    %v3825 = vunpack.c.h.b16 %v3312
    %v3826 = vunpack.c.l.b16 %v3313
    %v3827 = vunpack.c.h.b16 %v3313
    %v3828 = vunpack.c.l.b16 %v3314
    %v3829 = vunpack.c.h.b16 %v3314
    %v3830 = vunpack.c.l.b16 %v3315
    %v3831 = vunpack.c.h.b16 %v3315
    %v3832 = vunpack.c.l.b16 %v3316
    %v3833 = vunpack.c.h.b16 %v3316
    %v3834 = vunpack.c.l.b16 %v3317
    %v3835 = vunpack.c.h.b16 %v3317
    %v3836 = vunpack.c.l.b16 %v3318
    %v3837 = vunpack.c.h.b16 %v3318
    %v3838 = vunpack.c.l.b16 %v3319
    %v3839 = vunpack.c.h.b16 %v3319
    %v3840 = vunpack.c.l.b16 %v3320
    %v3841 = vunpack.c.h.b16 %v3320
    %v3842 = vunpack.c.l.b16 %v3321
    %v3843 = vunpack.c.h.b16 %v3321
    %v3844 = vunpack.c.l.b16 %v3322
    %v3845 = vunpack.c.h.b16 %v3322
    %v3846 = vunpack.c.l.b16 %v3323
    %v3847 = vunpack.c.h.b16 %v3323
    %v3848 = vunpack.c.l.b16 %v3324
    %v3849 = vunpack.c.h.b16 %v3324
    %v3850 = vunpack.c.l.b16 %v3325
    %v3851 = vunpack.c.h.b16 %v3325
    %v3852 = vunpack.c.l.b16 %v3326
    %v3853 = vunpack.c.h.b16 %v3326
    %v3854 = vunpack.c.l.b16 %v3327
    %v3855 = vunpack.c.h.b16 %v3327
    %v3856 = vunpack.c.l.b16 %v3328
    %v3857 = vunpack.c.h.b16 %v3328
    %v3858 = vunpack.c.l.b16 %v3329
    %v3859 = vunpack.c.h.b16 %v3329
    %v3860 = vunpack.c.l.b16 %v3330
    %v3861 = vunpack.c.h.b16 %v3330
    %v3862 = vunpack.c.l.b16 %v3331
    %v3863 = vunpack.c.h.b16 %v3331
    %v3864 = vunpack.c.l.b16 %v3332
    %v3865 = vunpack.c.h.b16 %v3332
    %v3866 = vunpack.c.l.b16 %v3333
    %v3867 = vunpack.c.h.b16 %v3333
    %v3868 = vunpack.c.l.b16 %v3334
    %v3869 = vunpack.c.h.b16 %v3334
    %v3870 = vunpack.c.l.b16 %v3335
    %v3871 = vunpack.c.h.b16 %v3335
    %v3872 = vunpack.c.l.b16 %v3336
    %v3873 = vunpack.c.h.b16 %v3336
    %v3874 = vunpack.c.l.b16 %v3337
    %v3875 = vunpack.c.h.b16 %v3337
    %v3876 = vunpack.c.l.b16 %v3338
    %v3877 = vunpack.c.h.b16 %v3338
    %v3878 = vunpack.c.l.b16 %v3339
    %v3879 = vunpack.c.h.b16 %v3339
    %v3880 = vunpack.c.l.b16 %v3340
    %v3881 = vunpack.c.h.b16 %v3340
    %v3882 = vunpack.c.l.b16 %v3341
    %v3883 = vunpack.c.h.b16 %v3341
    %v3884 = vunpack.c.l.b16 %v3342
    %v3885 = vunpack.c.h.b16 %v3342
    %v3886 = vunpack.c.l.b16 %v3343
    %v3887 = vunpack.c.h.b16 %v3343
    %v3888 = vunpack.c.l.b16 %v3344
    %v3889 = vunpack.c.h.b16 %v3344
    %v3890 = vunpack.c.l.b16 %v3345
    %v3891 = vunpack.c.h.b16 %v3345
    %v3892 = vunpack.c.l.b16 %v3346
    %v3893 = vunpack.c.h.b16 %v3346
    %v3894 = vunpack.c.l.b16 %v3347
    %v3895 = vunpack.c.h.b16 %v3347
    %v3896 = vunpack.c.l.b16 %v3348
    %v3897 = vunpack.c.h.b16 %v3348
    %v3898 = vunpack.c.l.b16 %v3349
    %v3899 = vunpack.c.h.b16 %v3349
    %v3900 = vunpack.c.l.b16 %v3350
    %v3901 = vunpack.c.h.b16 %v3350
    %v3902 = vunpack.c.l.b16 %v3351
    %v3903 = vunpack.c.h.b16 %v3351
    %v3904 = vunpack.c.l.b16 %v3352
    %v3905 = vunpack.c.h.b16 %v3352
    %v3906 = vunpack.c.l.b16 %v3353
    %v3907 = vunpack.c.h.b16 %v3353
    %v3908 = vunpack.c.l.b16 %v3354
    %v3909 = vunpack.c.h.b16 %v3354
    %v3910 = vunpack.c.l.b16 %v3355
    %v3911 = vunpack.c.h.b16 %v3355
    %v3912 = vunpack.c.l.b16 %v3356
    %v3913 = vunpack.c.h.b16 %v3356
    %v3914 = vunpack.c.l.b16 %v3357
    %v3915 = vunpack.c.h.b16 %v3357
    %v3916 = vunpack.c.l.b16 %v3358
    %v3917 = vunpack.c.h.b16 %v3358
    %v3918 = vunpack.c.l.b16 %v3359
    %v3919 = vunpack.c.h.b16 %v3359
    %v3920 = vunpack.c.l.b16 %v3360
    %v3921 = vunpack.c.h.b16 %v3360
    %v3922 = vunpack.c.l.b16 %v3361
    %v3923 = vunpack.c.h.b16 %v3361
    %v3924 = vunpack.c.l.b16 %v3362
    %v3925 = vunpack.c.h.b16 %v3362
    %v3926 = vunpack.c.l.b16 %v3363
    %v3927 = vunpack.c.h.b16 %v3363
    %v3928 = vunpack.c.l.b16 %v3364
    %v3929 = vunpack.c.h.b16 %v3364
    %v3930 = vunpack.c.l.b16 %v3365
    %v3931 = vunpack.c.h.b16 %v3365
    %v3932 = vunpack.c.l.b16 %v3366
    %v3933 = vunpack.c.h.b16 %v3366
    %v3934 = vunpack.c.l.b16 %v3367
    %v3935 = vunpack.c.h.b16 %v3367
    %v3936 = vunpack.c.l.b16 %v3368
    %v3937 = vunpack.c.h.b16 %v3368
    %v3938 = vunpack.c.l.b16 %v3369
    %v3939 = vunpack.c.h.b16 %v3369
    %v3940 = vunpack.c.l.b16 %v3370
    %v3941 = vunpack.c.h.b16 %v3370
    %v3942 = vunpack.c.l.b16 %v3371
    %v3943 = vunpack.c.h.b16 %v3371
    %v3944 = vunpack.c.l.b16 %v3372
    %v3945 = vunpack.c.h.b16 %v3372
    %v3946 = vunpack.c.l.b16 %v3373
    %v3947 = vunpack.c.h.b16 %v3373
    %v3948 = vunpack.c.l.b16 %v3374
    %v3949 = vunpack.c.h.b16 %v3374
    %v3950 = vunpack.c.l.b16 %v3375
    %v3951 = vunpack.c.h.b16 %v3375
    %v3952 = vunpack.c.l.b16 %v3376
    %v3953 = vunpack.c.h.b16 %v3376
    %v3954 = vunpack.c.l.b16 %v3377
    %v3955 = vunpack.c.h.b16 %v3377
    %v3956 = vunpack.c.l.b16 %v3378
    %v3957 = vunpack.c.h.b16 %v3378
    %v3958 = vunpack.c.l.b16 %v3379
    %v3959 = vunpack.c.h.b16 %v3379
    %v3960 = vunpack.c.l.b16 %v3380
    %v3961 = vunpack.c.h.b16 %v3380
    %v3962 = vunpack.c.l.b16 %v3381
    %v3963 = vunpack.c.h.b16 %v3381
    %v3964 = vunpack.c.l.b16 %v3382
    %v3965 = vunpack.c.h.b16 %v3382
    %v3966 = vunpack.c.l.b16 %v3383
    %v3967 = vunpack.c.h.b16 %v3383
    %v3968 = vunpack.c.l.b16 %v3384
    %v3969 = vunpack.c.h.b16 %v3384
    %v3970 = vunpack.c.l.b16 %v3385
    %v3971 = vunpack.c.h.b16 %v3385
    %v3972 = vunpack.c.l.b16 %v3386
    %v3973 = vunpack.c.h.b16 %v3386
    %v3974 = vunpack.c.l.b16 %v3387
    %v3975 = vunpack.c.h.b16 %v3387
    %v3976 = vunpack.c.l.b16 %v3388
    %v3977 = vunpack.c.h.b16 %v3388
    %v3978 = vunpack.c.l.b16 %v3389
    %v3979 = vunpack.c.h.b16 %v3389
    %v3980 = vunpack.c.l.b16 %v3390
    %v3981 = vunpack.c.h.b16 %v3390
    %v3982 = vunpack.c.l.b16 %v3391
    %v3983 = vunpack.c.h.b16 %v3391
    %v3984 = vunpack.c.l.b16 %v3392
    %v3985 = vunpack.c.h.b16 %v3392
    %v3986 = vunpack.c.l.b16 %v3393
    %v3987 = vunpack.c.h.b16 %v3393
    %v3988 = vunpack.c.l.b16 %v3394
    %v3989 = vunpack.c.h.b16 %v3394
    %v3990 = vunpack.c.l.b16 %v3395
    %v3991 = vunpack.c.h.b16 %v3395
    %v3992 = vunpack.c.l.b16 %v3396
    %v3993 = vunpack.c.h.b16 %v3396
    %v3994 = vunpack.c.l.b16 %v3397
    %v3995 = vunpack.c.h.b16 %v3397
    %v3996 = vunpack.c.l.b16 %v3398
    %v3997 = vunpack.c.h.b16 %v3398
    %v3998 = vunpack.c.l.b16 %v3399
    %v3999 = vunpack.c.h.b16 %v3399
    %v4000 = vpack.c.b16 %v3620, %v3616
    %v4001 = vpack.c.b16 %v3621, %v3617
    %v4002 = vpack.c.b16 %v3622, %v3618
    %v4003 = vpack.c.b16 %v3623, %v3619
    %v4004 = vpack.c.b16 %v3628, %v3624
    %v4005 = vpack.c.b16 %v3629, %v3625
    %v4006 = vpack.c.b16 %v3630, %v3626
    %v4007 = vpack.c.b16 %v3631, %v3627
    %v4008 = vpack.c.b16 %v3636, %v3632
    %v4009 = vpack.c.b16 %v3637, %v3633
    %v4010 = vpack.c.b16 %v3638, %v3634
    %v4011 = vpack.c.b16 %v3639, %v3635
    %v4012 = vpack.c.b16 %v3644, %v3640
    %v4013 = vpack.c.b16 %v3645, %v3641
    %v4014 = vpack.c.b16 %v3646, %v3642
    %v4015 = vpack.c.b16 %v3647, %v3643
    %v4016 = vpack.c.b16 %v3652, %v3648
    %v4017 = vpack.c.b16 %v3653, %v3649
    %v4018 = vpack.c.b16 %v3654, %v3650
    %v4019 = vpack.c.b16 %v3655, %v3651
    %v4020 = vpack.c.b16 %v3660, %v3656
    %v4021 = vpack.c.b16 %v3661, %v3657
    %v4022 = vpack.c.b16 %v3662, %v3658
    %v4023 = vpack.c.b16 %v3663, %v3659
    %v4024 = vpack.c.b16 %v3668, %v3664
    %v4025 = vpack.c.b16 %v3669, %v3665
    %v4026 = vpack.c.b16 %v3670, %v3666
    %v4027 = vpack.c.b16 %v3671, %v3667
    %v4028 = vpack.c.b16 %v3676, %v3672
    %v4029 = vpack.c.b16 %v3677, %v3673
    %v4030 = vpack.c.b16 %v3678, %v3674
    %v4031 = vpack.c.b16 %v3679, %v3675
    %v4032 = vpack.c.b16 %v3684, %v3680
    %v4033 = vpack.c.b16 %v3685, %v3681
    %v4034 = vpack.c.b16 %v3686, %v3682
    %v4035 = vpack.c.b16 %v3687, %v3683
    %v4036 = vpack.c.b16 %v3692, %v3688
    %v4037 = vpack.c.b16 %v3693, %v3689
    %v4038 = vpack.c.b16 %v3694, %v3690
    %v4039 = vpack.c.b16 %v3695, %v3691
    %v4040 = vpack.c.b16 %v3700, %v3696
    %v4041 = vpack.c.b16 %v3701, %v3697
    %v4042 = vpack.c.b16 %v3702, %v3698
    %v4043 = vpack.c.b16 %v3703, %v3699
    %v4044 = vpack.c.b16 %v3708, %v3704
    %v4045 = vpack.c.b16 %v3709, %v3705
    %v4046 = vpack.c.b16 %v3710, %v3706
    %v4047 = vpack.c.b16 %v3711, %v3707
    %v4048 = vpack.c.b16 %v3716, %v3712
    %v4049 = vpack.c.b16 %v3717, %v3713
    %v4050 = vpack.c.b16 %v3718, %v3714
    %v4051 = vpack.c.b16 %v3719, %v3715
    %v4052 = vpack.c.b16 %v3724, %v3720
    %v4053 = vpack.c.b16 %v3725, %v3721
    %v4054 = vpack.c.b16 %v3726, %v3722
    %v4055 = vpack.c.b16 %v3727, %v3723
    %v4056 = vpack.c.b16 %v3732, %v3728
    %v4057 = vpack.c.b16 %v3733, %v3729
    %v4058 = vpack.c.b16 %v3734, %v3730
    %v4059 = vpack.c.b16 %v3735, %v3731
    %v4060 = vpack.c.b16 %v3740, %v3736
    %v4061 = vpack.c.b16 %v3741, %v3737
    %v4062 = vpack.c.b16 %v3742, %v3738
    %v4063 = vpack.c.b16 %v3743, %v3739
    %v4064 = vpack.c.b16 %v3748, %v3744
    %v4065 = vpack.c.b16 %v3749, %v3745
    %v4066 = vpack.c.b16 %v3750, %v3746
    %v4067 = vpack.c.b16 %v3751, %v3747
    %v4068 = vpack.c.b16 %v3756, %v3752
    %v4069 = vpack.c.b16 %v3757, %v3753
    %v4070 = vpack.c.b16 %v3758, %v3754
    %v4071 = vpack.c.b16 %v3759, %v3755
    %v4072 = vpack.c.b16 %v3764, %v3760
    %v4073 = vpack.c.b16 %v3765, %v3761
    %v4074 = vpack.c.b16 %v3766, %v3762
    %v4075 = vpack.c.b16 %v3767, %v3763
    %v4076 = vpack.c.b16 %v3772, %v3768
    %v4077 = vpack.c.b16 %v3773, %v3769
    %v4078 = vpack.c.b16 %v3774, %v3770
    %v4079 = vpack.c.b16 %v3775, %v3771
    %v4080 = vpack.c.b16 %v3780, %v3776
    %v4081 = vpack.c.b16 %v3781, %v3777
    %v4082 = vpack.c.b16 %v3782, %v3778
    %v4083 = vpack.c.b16 %v3783, %v3779
    %v4084 = vpack.c.b16 %v3788, %v3784
    %v4085 = vpack.c.b16 %v3789, %v3785
    %v4086 = vpack.c.b16 %v3790, %v3786
    %v4087 = vpack.c.b16 %v3791, %v3787
    %v4088 = vpack.c.b16 %v3796, %v3792
    %v4089 = vpack.c.b16 %v3797, %v3793
    %v4090 = vpack.c.b16 %v3798, %v3794
    %v4091 = vpack.c.b16 %v3799, %v3795
    %v4092 = vpack.c.b16 %v3804, %v3800
    %v4093 = vpack.c.b16 %v3805, %v3801
    %v4094 = vpack.c.b16 %v3806, %v3802
    %v4095 = vpack.c.b16 %v3807, %v3803
    %v4096 = vpack.c.b16 %v3812, %v3808
    %v4097 = vpack.c.b16 %v3813, %v3809
    %v4098 = vpack.c.b16 %v3814, %v3810
    %v4099 = vpack.c.b16 %v3815, %v3811
    %v4100 = vpack.c.b16 %v3820, %v3816
    %v4101 = vpack.c.b16 %v3821, %v3817
    %v4102 = vpack.c.b16 %v3822, %v3818
    %v4103 = vpack.c.b16 %v3823, %v3819
    %v4104 = vpack.c.b16 %v3828, %v3824
    %v4105 = vpack.c.b16 %v3829, %v3825
    %v4106 = vpack.c.b16 %v3830, %v3826
    %v4107 = vpack.c.b16 %v3831, %v3827
    %v4108 = vpack.c.b16 %v3836, %v3832
    %v4109 = vpack.c.b16 %v3837, %v3833
    %v4110 = vpack.c.b16 %v3838, %v3834
    %v4111 = vpack.c.b16 %v3839, %v3835
    %v4112 = vpack.c.b16 %v3844, %v3840
    %v4113 = vpack.c.b16 %v3845, %v3841
    %v4114 = vpack.c.b16 %v3846, %v3842
    %v4115 = vpack.c.b16 %v3847, %v3843
    %v4116 = vpack.c.b16 %v3852, %v3848
    %v4117 = vpack.c.b16 %v3853, %v3849
    %v4118 = vpack.c.b16 %v3854, %v3850
    %v4119 = vpack.c.b16 %v3855, %v3851
    %v4120 = vpack.c.b16 %v3860, %v3856
    %v4121 = vpack.c.b16 %v3861, %v3857
    %v4122 = vpack.c.b16 %v3862, %v3858
    %v4123 = vpack.c.b16 %v3863, %v3859
    %v4124 = vpack.c.b16 %v3868, %v3864
    %v4125 = vpack.c.b16 %v3869, %v3865
    %v4126 = vpack.c.b16 %v3870, %v3866
    %v4127 = vpack.c.b16 %v3871, %v3867
    %v4128 = vpack.c.b16 %v3876, %v3872
    %v4129 = vpack.c.b16 %v3877, %v3873
    %v4130 = vpack.c.b16 %v3878, %v3874
    %v4131 = vpack.c.b16 %v3879, %v3875
    %v4132 = vpack.c.b16 %v3884, %v3880
    %v4133 = vpack.c.b16 %v3885, %v3881
    %v4134 = vpack.c.b16 %v3886, %v3882
    %v4135 = vpack.c.b16 %v3887, %v3883
    %v4136 = vpack.c.b16 %v3892, %v3888
    %v4137 = vpack.c.b16 %v3893, %v3889
    %v4138 = vpack.c.b16 %v3894, %v3890
    %v4139 = vpack.c.b16 %v3895, %v3891
    %v4140 = vpack.c.b16 %v3900, %v3896
    %v4141 = vpack.c.b16 %v3901, %v3897
    %v4142 = vpack.c.b16 %v3902, %v3898
    %v4143 = vpack.c.b16 %v3903, %v3899
    %v4144 = vpack.c.b16 %v3908, %v3904
    %v4145 = vpack.c.b16 %v3909, %v3905
    %v4146 = vpack.c.b16 %v3910, %v3906
    %v4147 = vpack.c.b16 %v3911, %v3907
    %v4148 = vpack.c.b16 %v3916, %v3912
    %v4149 = vpack.c.b16 %v3917, %v3913
    %v4150 = vpack.c.b16 %v3918, %v3914
    %v4151 = vpack.c.b16 %v3919, %v3915
    %v4152 = vpack.c.b16 %v3924, %v3920
    %v4153 = vpack.c.b16 %v3925, %v3921
    %v4154 = vpack.c.b16 %v3926, %v3922
    %v4155 = vpack.c.b16 %v3927, %v3923
    %v4156 = vpack.c.b16 %v3932, %v3928
    %v4157 = vpack.c.b16 %v3933, %v3929
    %v4158 = vpack.c.b16 %v3934, %v3930
    %v4159 = vpack.c.b16 %v3935, %v3931
    %v4160 = vpack.c.b16 %v3940, %v3936
    %v4161 = vpack.c.b16 %v3941, %v3937
    %v4162 = vpack.c.b16 %v3942, %v3938
    %v4163 = vpack.c.b16 %v3943, %v3939
    %v4164 = vpack.c.b16 %v3948, %v3944
    %v4165 = vpack.c.b16 %v3949, %v3945
    %v4166 = vpack.c.b16 %v3950, %v3946
    %v4167 = vpack.c.b16 %v3951, %v3947
    %v4168 = vpack.c.b16 %v3956, %v3952
    %v4169 = vpack.c.b16 %v3957, %v3953
    %v4170 = vpack.c.b16 %v3958, %v3954
    %v4171 = vpack.c.b16 %v3959, %v3955
    %v4172 = vpack.c.b16 %v3964, %v3960
    %v4173 = vpack.c.b16 %v3965, %v3961
    %v4174 = vpack.c.b16 %v3966, %v3962
    %v4175 = vpack.c.b16 %v3967, %v3963
    %v4176 = vpack.c.b16 %v3972, %v3968
    %v4177 = vpack.c.b16 %v3973, %v3969
    %v4178 = vpack.c.b16 %v3974, %v3970
    %v4179 = vpack.c.b16 %v3975, %v3971
    %v4180 = vpack.c.b16 %v3980, %v3976
    %v4181 = vpack.c.b16 %v3981, %v3977
    %v4182 = vpack.c.b16 %v3982, %v3978
    %v4183 = vpack.c.b16 %v3983, %v3979
    %v4184 = vpack.c.b16 %v3988, %v3984
    %v4185 = vpack.c.b16 %v3989, %v3985
    %v4186 = vpack.c.b16 %v3990, %v3986
    %v4187 = vpack.c.b16 %v3991, %v3987
    %v4188 = vpack.c.b16 %v3996, %v3992
    %v4189 = vpack.c.b16 %v3997, %v3993
    %v4190 = vpack.c.b16 %v3998, %v3994
    %v4191 = vpack.c.b16 %v3999, %v3995
    %4384 = vmatpush.bf16.msra.mxu0 %v4028
    %4385 = vmatpush.bf16.msra.mxu0 %v4024
    %4386 = vmatpush.bf16.msra.mxu0 %v4020
    %4387 = vmatpush.bf16.msra.mxu0 %v4016
    %4388 = vmatpush.bf16.msra.mxu0 %v4012
    %4389 = vmatpush.bf16.msra.mxu0 %v4008
    %4390 = vmatpush.bf16.msra.mxu0 %v4004
    %4391 = vmatpush.bf16.msra.mxu0 %v4000
    %4392 = vmatmul.bf16.gmra.mxu0 %v3412
    %v4393 = vpop.f32.mrf.mxu0
    %v4394 = vadd.f32 0.0, %v4393
    %v4395 = vpop.f32.mrf.mxu0
    %v4396 = vadd.f32 0.0, %v4395
    %4397 = vdwg.mxu0
    %4398 = vmatpush.bf16.msra.mxu0 %v4060
    %4399 = vmatpush.bf16.msra.mxu0 %v4056
    %4400 = vmatpush.bf16.msra.mxu0 %v4052
    %4401 = vmatpush.bf16.msra.mxu0 %v4048
    %4402 = vmatpush.bf16.msra.mxu0 %v4044
    %4403 = vmatpush.bf16.msra.mxu0 %v4040
    %4404 = vmatpush.bf16.msra.mxu0 %v4036
    %4405 = vmatpush.bf16.msra.mxu0 %v4032
    %4406 = vmatmul.bf16.gmra.mxu0 %v3413
    %v4407 = vpop.f32.mrf.mxu0
    %v4408 = vadd.f32 %v4394, %v4407
    %v4409 = vpop.f32.mrf.mxu0
    %v4410 = vadd.f32 %v4396, %v4409
    %4411 = vdwg.mxu0
    %4412 = vmatpush.bf16.msra.mxu0 %v4092
    %4413 = vmatpush.bf16.msra.mxu0 %v4088
    %4414 = vmatpush.bf16.msra.mxu0 %v4084
    %4415 = vmatpush.bf16.msra.mxu0 %v4080
    %4416 = vmatpush.bf16.msra.mxu0 %v4076
    %4417 = vmatpush.bf16.msra.mxu0 %v4072
    %4418 = vmatpush.bf16.msra.mxu0 %v4068
    %4419 = vmatpush.bf16.msra.mxu0 %v4064
    %4420 = vmatmul.bf16.gmra.mxu0 %v3414
    %v4421 = vpop.f32.mrf.mxu0
    %v4422 = vadd.f32 %v4408, %v4421
    %v4423 = vpop.f32.mrf.mxu0
    %v4424 = vadd.f32 %v4410, %v4423
    %4425 = vdwg.mxu0
    %4426 = vmatpush.bf16.msra.mxu0 %v4124
    %4427 = vmatpush.bf16.msra.mxu0 %v4120
    %4428 = vmatpush.bf16.msra.mxu0 %v4116
    %4429 = vmatpush.bf16.msra.mxu0 %v4112
    %4430 = vmatpush.bf16.msra.mxu0 %v4108
    %4431 = vmatpush.bf16.msra.mxu0 %v4104
    %4432 = vmatpush.bf16.msra.mxu0 %v4100
    %4433 = vmatpush.bf16.msra.mxu0 %v4096
    %4434 = vmatmul.bf16.gmra.mxu0 %v3415
    %v4435 = vpop.f32.mrf.mxu0
    %v4436 = vadd.f32 %v4422, %v4435
    %v4437 = vpop.f32.mrf.mxu0
    %v4438 = vadd.f32 %v4424, %v4437
    %4439 = vdwg.mxu0
    %4440 = vmatpush.bf16.msra.mxu0 %v4156
    %4441 = vmatpush.bf16.msra.mxu0 %v4152
    %4442 = vmatpush.bf16.msra.mxu0 %v4148
    %4443 = vmatpush.bf16.msra.mxu0 %v4144
    %4444 = vmatpush.bf16.msra.mxu0 %v4140
    %4445 = vmatpush.bf16.msra.mxu0 %v4136
    %4446 = vmatpush.bf16.msra.mxu0 %v4132
    %4447 = vmatpush.bf16.msra.mxu0 %v4128
    %4448 = vmatmul.bf16.gmra.mxu0 %v3416
    %v4449 = vpop.f32.mrf.mxu0
    %v4450 = vadd.f32 %v4436, %v4449
    %v4451 = vpop.f32.mrf.mxu0
    %v4452 = vadd.f32 %v4438, %v4451
    %4453 = vdwg.mxu0
    %4454 = vmatpush.bf16.msra.mxu0 %v4188
    %4455 = vmatpush.bf16.msra.mxu0 %v4184
    %4456 = vmatpush.bf16.msra.mxu0 %v4180
    %4457 = vmatpush.bf16.msra.mxu0 %v4176
    %4458 = vmatpush.bf16.msra.mxu0 %v4172
    %4459 = vmatpush.bf16.msra.mxu0 %v4168
    %4460 = vmatpush.bf16.msra.mxu0 %v4164
    %4461 = vmatpush.bf16.msra.mxu0 %v4160
    %4462 = vmatmul.bf16.gmra.mxu0 %v3417
    %v4463 = vpop.f32.mrf.mxu0
    %v4464 = vadd.f32 %v4450, %v4463
    %v4465 = vpop.f32.mrf.mxu0
    %v4466 = vadd.f32 %v4452, %v4465
    %4467 = vdwg.mxu0
    %4468 = vmatpush.bf16.msra.mxu0 %v4029
    %4469 = vmatpush.bf16.msra.mxu0 %v4025
    %4470 = vmatpush.bf16.msra.mxu0 %v4021
    %4471 = vmatpush.bf16.msra.mxu0 %v4017
    %4472 = vmatpush.bf16.msra.mxu0 %v4013
    %4473 = vmatpush.bf16.msra.mxu0 %v4009
    %4474 = vmatpush.bf16.msra.mxu0 %v4005
    %4475 = vmatpush.bf16.msra.mxu0 %v4001
    %4476 = vmatmul.bf16.gmra.mxu0 %v3412
    %v4477 = vpop.f32.mrf.mxu0
    %v4478 = vadd.f32 0.0, %v4477
    %v4479 = vpop.f32.mrf.mxu0
    %v4480 = vadd.f32 0.0, %v4479
    %4481 = vdwg.mxu0
    %4482 = vmatpush.bf16.msra.mxu0 %v4061
    %4483 = vmatpush.bf16.msra.mxu0 %v4057
    %4484 = vmatpush.bf16.msra.mxu0 %v4053
    %4485 = vmatpush.bf16.msra.mxu0 %v4049
    %4486 = vmatpush.bf16.msra.mxu0 %v4045
    %4487 = vmatpush.bf16.msra.mxu0 %v4041
    %4488 = vmatpush.bf16.msra.mxu0 %v4037
    %4489 = vmatpush.bf16.msra.mxu0 %v4033
    %4490 = vmatmul.bf16.gmra.mxu0 %v3413
    %v4491 = vpop.f32.mrf.mxu0
    %v4492 = vadd.f32 %v4478, %v4491
    %v4493 = vpop.f32.mrf.mxu0
    %v4494 = vadd.f32 %v4480, %v4493
    %4495 = vdwg.mxu0
    %4496 = vmatpush.bf16.msra.mxu0 %v4093
    %4497 = vmatpush.bf16.msra.mxu0 %v4089
    %4498 = vmatpush.bf16.msra.mxu0 %v4085
    %4499 = vmatpush.bf16.msra.mxu0 %v4081
    %4500 = vmatpush.bf16.msra.mxu0 %v4077
    %4501 = vmatpush.bf16.msra.mxu0 %v4073
    %4502 = vmatpush.bf16.msra.mxu0 %v4069
    %4503 = vmatpush.bf16.msra.mxu0 %v4065
    %4504 = vmatmul.bf16.gmra.mxu0 %v3414
    %v4505 = vpop.f32.mrf.mxu0
    %v4506 = vadd.f32 %v4492, %v4505
    %v4507 = vpop.f32.mrf.mxu0
    %v4508 = vadd.f32 %v4494, %v4507
    %4509 = vdwg.mxu0
    %4510 = vmatpush.bf16.msra.mxu0 %v4125
    %4511 = vmatpush.bf16.msra.mxu0 %v4121
    %4512 = vmatpush.bf16.msra.mxu0 %v4117
    %4513 = vmatpush.bf16.msra.mxu0 %v4113
    %4514 = vmatpush.bf16.msra.mxu0 %v4109
    %4515 = vmatpush.bf16.msra.mxu0 %v4105
    %4516 = vmatpush.bf16.msra.mxu0 %v4101
    %4517 = vmatpush.bf16.msra.mxu0 %v4097
    %4518 = vmatmul.bf16.gmra.mxu0 %v3415
    %v4519 = vpop.f32.mrf.mxu0
    %v4520 = vadd.f32 %v4506, %v4519
    %v4521 = vpop.f32.mrf.mxu0
    %v4522 = vadd.f32 %v4508, %v4521
    %4523 = vdwg.mxu0
    %4524 = vmatpush.bf16.msra.mxu0 %v4157
    %4525 = vmatpush.bf16.msra.mxu0 %v4153
    %4526 = vmatpush.bf16.msra.mxu0 %v4149
    %4527 = vmatpush.bf16.msra.mxu0 %v4145
    %4528 = vmatpush.bf16.msra.mxu0 %v4141
    %4529 = vmatpush.bf16.msra.mxu0 %v4137
    %4530 = vmatpush.bf16.msra.mxu0 %v4133
    %4531 = vmatpush.bf16.msra.mxu0 %v4129
    %4532 = vmatmul.bf16.gmra.mxu0 %v3416
    %v4533 = vpop.f32.mrf.mxu0
    %v4534 = vadd.f32 %v4520, %v4533
    %v4535 = vpop.f32.mrf.mxu0
    %v4536 = vadd.f32 %v4522, %v4535
    %4537 = vdwg.mxu0
    %4538 = vmatpush.bf16.msra.mxu0 %v4189
    %4539 = vmatpush.bf16.msra.mxu0 %v4185
    %4540 = vmatpush.bf16.msra.mxu0 %v4181
    %4541 = vmatpush.bf16.msra.mxu0 %v4177
    %4542 = vmatpush.bf16.msra.mxu0 %v4173
    %4543 = vmatpush.bf16.msra.mxu0 %v4169
    %4544 = vmatpush.bf16.msra.mxu0 %v4165
    %4545 = vmatpush.bf16.msra.mxu0 %v4161
    %4546 = vmatmul.bf16.gmra.mxu0 %v3417
    %v4547 = vpop.f32.mrf.mxu0
    %v4548 = vadd.f32 %v4534, %v4547
    %v4549 = vpop.f32.mrf.mxu0
    %v4550 = vadd.f32 %v4536, %v4549
    %4551 = vdwg.mxu0
    %4552 = vmatpush.bf16.msra.mxu0 %v4030
    %4553 = vmatpush.bf16.msra.mxu0 %v4026
    %4554 = vmatpush.bf16.msra.mxu0 %v4022
    %4555 = vmatpush.bf16.msra.mxu0 %v4018
    %4556 = vmatpush.bf16.msra.mxu0 %v4014
    %4557 = vmatpush.bf16.msra.mxu0 %v4010
    %4558 = vmatpush.bf16.msra.mxu0 %v4006
    %4559 = vmatpush.bf16.msra.mxu0 %v4002
    %4560 = vmatmul.bf16.gmra.mxu0 %v3412
    %v4561 = vpop.f32.mrf.mxu0
    %v4562 = vadd.f32 0.0, %v4561
    %v4563 = vpop.f32.mrf.mxu0
    %v4564 = vadd.f32 0.0, %v4563
    %4565 = vdwg.mxu0
    %4566 = vmatpush.bf16.msra.mxu0 %v4062
    %4567 = vmatpush.bf16.msra.mxu0 %v4058
    %4568 = vmatpush.bf16.msra.mxu0 %v4054
    %4569 = vmatpush.bf16.msra.mxu0 %v4050
    %4570 = vmatpush.bf16.msra.mxu0 %v4046
    %4571 = vmatpush.bf16.msra.mxu0 %v4042
    %4572 = vmatpush.bf16.msra.mxu0 %v4038
    %4573 = vmatpush.bf16.msra.mxu0 %v4034
    %4574 = vmatmul.bf16.gmra.mxu0 %v3413
    %v4575 = vpop.f32.mrf.mxu0
    %v4576 = vadd.f32 %v4562, %v4575
    %v4577 = vpop.f32.mrf.mxu0
    %v4578 = vadd.f32 %v4564, %v4577
    %4579 = vdwg.mxu0
    %4580 = vmatpush.bf16.msra.mxu0 %v4094
    %4581 = vmatpush.bf16.msra.mxu0 %v4090
    %4582 = vmatpush.bf16.msra.mxu0 %v4086
    %4583 = vmatpush.bf16.msra.mxu0 %v4082
    %4584 = vmatpush.bf16.msra.mxu0 %v4078
    %4585 = vmatpush.bf16.msra.mxu0 %v4074
    %4586 = vmatpush.bf16.msra.mxu0 %v4070
    %4587 = vmatpush.bf16.msra.mxu0 %v4066
    %4588 = vmatmul.bf16.gmra.mxu0 %v3414
    %v4589 = vpop.f32.mrf.mxu0
    %v4590 = vadd.f32 %v4576, %v4589
    %v4591 = vpop.f32.mrf.mxu0
    %v4592 = vadd.f32 %v4578, %v4591
    %4593 = vdwg.mxu0
    %4594 = vmatpush.bf16.msra.mxu0 %v4126
    %4595 = vmatpush.bf16.msra.mxu0 %v4122
    %4596 = vmatpush.bf16.msra.mxu0 %v4118
    %4597 = vmatpush.bf16.msra.mxu0 %v4114
    %4598 = vmatpush.bf16.msra.mxu0 %v4110
    %4599 = vmatpush.bf16.msra.mxu0 %v4106
    %4600 = vmatpush.bf16.msra.mxu0 %v4102
    %4601 = vmatpush.bf16.msra.mxu0 %v4098
    %4602 = vmatmul.bf16.gmra.mxu0 %v3415
    %v4603 = vpop.f32.mrf.mxu0
    %v4604 = vadd.f32 %v4590, %v4603
    %v4605 = vpop.f32.mrf.mxu0
    %v4606 = vadd.f32 %v4592, %v4605
    %4607 = vdwg.mxu0
    %4608 = vmatpush.bf16.msra.mxu0 %v4158
    %4609 = vmatpush.bf16.msra.mxu0 %v4154
    %4610 = vmatpush.bf16.msra.mxu0 %v4150
    %4611 = vmatpush.bf16.msra.mxu0 %v4146
    %4612 = vmatpush.bf16.msra.mxu0 %v4142
    %4613 = vmatpush.bf16.msra.mxu0 %v4138
    %4614 = vmatpush.bf16.msra.mxu0 %v4134
    %4615 = vmatpush.bf16.msra.mxu0 %v4130
    %4616 = vmatmul.bf16.gmra.mxu0 %v3416
    %v4617 = vpop.f32.mrf.mxu0
    %v4618 = vadd.f32 %v4604, %v4617
    %v4619 = vpop.f32.mrf.mxu0
    %v4620 = vadd.f32 %v4606, %v4619
    %4621 = vdwg.mxu0
    %4622 = vmatpush.bf16.msra.mxu0 %v4190
    %4623 = vmatpush.bf16.msra.mxu0 %v4186
    %4624 = vmatpush.bf16.msra.mxu0 %v4182
    %4625 = vmatpush.bf16.msra.mxu0 %v4178
    %4626 = vmatpush.bf16.msra.mxu0 %v4174
    %4627 = vmatpush.bf16.msra.mxu0 %v4170
    %4628 = vmatpush.bf16.msra.mxu0 %v4166
    %4629 = vmatpush.bf16.msra.mxu0 %v4162
    %4630 = vmatmul.bf16.gmra.mxu0 %v3417
    %v4631 = vpop.f32.mrf.mxu0
    %v4632 = vadd.f32 %v4618, %v4631
    %v4633 = vpop.f32.mrf.mxu0
    %v4634 = vadd.f32 %v4620, %v4633
    %4635 = vdwg.mxu0
    %4636 = vmatpush.bf16.msra.mxu0 %v4031
    %4637 = vmatpush.bf16.msra.mxu0 %v4027
    %4638 = vmatpush.bf16.msra.mxu0 %v4023
    %4639 = vmatpush.bf16.msra.mxu0 %v4019
    %4640 = vmatpush.bf16.msra.mxu0 %v4015
    %4641 = vmatpush.bf16.msra.mxu0 %v4011
    %4642 = vmatpush.bf16.msra.mxu0 %v4007
    %4643 = vmatpush.bf16.msra.mxu0 %v4003
    %4644 = vmatmul.bf16.gmra.mxu0 %v3412
    %v4645 = vpop.f32.mrf.mxu0
    %v4646 = vadd.f32 0.0, %v4645
    %v4647 = vpop.f32.mrf.mxu0
    %v4648 = vadd.f32 0.0, %v4647
    %4649 = vdwg.mxu0
    %4650 = vmatpush.bf16.msra.mxu0 %v4063
    %4651 = vmatpush.bf16.msra.mxu0 %v4059
    %4652 = vmatpush.bf16.msra.mxu0 %v4055
    %4653 = vmatpush.bf16.msra.mxu0 %v4051
    %4654 = vmatpush.bf16.msra.mxu0 %v4047
    %4655 = vmatpush.bf16.msra.mxu0 %v4043
    %4656 = vmatpush.bf16.msra.mxu0 %v4039
    %4657 = vmatpush.bf16.msra.mxu0 %v4035
    %4658 = vmatmul.bf16.gmra.mxu0 %v3413
    %v4659 = vpop.f32.mrf.mxu0
    %v4660 = vadd.f32 %v4646, %v4659
    %v4661 = vpop.f32.mrf.mxu0
    %v4662 = vadd.f32 %v4648, %v4661
    %4663 = vdwg.mxu0
    %4664 = vmatpush.bf16.msra.mxu0 %v4095
    %4665 = vmatpush.bf16.msra.mxu0 %v4091
    %4666 = vmatpush.bf16.msra.mxu0 %v4087
    %4667 = vmatpush.bf16.msra.mxu0 %v4083
    %4668 = vmatpush.bf16.msra.mxu0 %v4079
    %4669 = vmatpush.bf16.msra.mxu0 %v4075
    %4670 = vmatpush.bf16.msra.mxu0 %v4071
    %4671 = vmatpush.bf16.msra.mxu0 %v4067
    %4672 = vmatmul.bf16.gmra.mxu0 %v3414
    %v4673 = vpop.f32.mrf.mxu0
    %v4674 = vadd.f32 %v4660, %v4673
    %v4675 = vpop.f32.mrf.mxu0
    %v4676 = vadd.f32 %v4662, %v4675
    %4677 = vdwg.mxu0
    %4678 = vmatpush.bf16.msra.mxu0 %v4127
    %4679 = vmatpush.bf16.msra.mxu0 %v4123
    %4680 = vmatpush.bf16.msra.mxu0 %v4119
    %4681 = vmatpush.bf16.msra.mxu0 %v4115
    %4682 = vmatpush.bf16.msra.mxu0 %v4111
    %4683 = vmatpush.bf16.msra.mxu0 %v4107
    %4684 = vmatpush.bf16.msra.mxu0 %v4103
    %4685 = vmatpush.bf16.msra.mxu0 %v4099
    %4686 = vmatmul.bf16.gmra.mxu0 %v3415
    %v4687 = vpop.f32.mrf.mxu0
    %v4688 = vadd.f32 %v4674, %v4687
    %v4689 = vpop.f32.mrf.mxu0
    %v4690 = vadd.f32 %v4676, %v4689
    %4691 = vdwg.mxu0
    %4692 = vmatpush.bf16.msra.mxu0 %v4159
    %4693 = vmatpush.bf16.msra.mxu0 %v4155
    %4694 = vmatpush.bf16.msra.mxu0 %v4151
    %4695 = vmatpush.bf16.msra.mxu0 %v4147
    %4696 = vmatpush.bf16.msra.mxu0 %v4143
    %4697 = vmatpush.bf16.msra.mxu0 %v4139
    %4698 = vmatpush.bf16.msra.mxu0 %v4135
    %4699 = vmatpush.bf16.msra.mxu0 %v4131
    %4700 = vmatmul.bf16.gmra.mxu0 %v3416
    %v4701 = vpop.f32.mrf.mxu0
    %v4702 = vadd.f32 %v4688, %v4701
    %v4703 = vpop.f32.mrf.mxu0
    %v4704 = vadd.f32 %v4690, %v4703
    %4705 = vdwg.mxu0
    %4706 = vmatpush.bf16.msra.mxu0 %v4191
    %4707 = vmatpush.bf16.msra.mxu0 %v4187
    %4708 = vmatpush.bf16.msra.mxu0 %v4183
    %4709 = vmatpush.bf16.msra.mxu0 %v4179
    %4710 = vmatpush.bf16.msra.mxu0 %v4175
    %4711 = vmatpush.bf16.msra.mxu0 %v4171
    %4712 = vmatpush.bf16.msra.mxu0 %v4167
    %4713 = vmatpush.bf16.msra.mxu0 %v4163
    %4714 = vmatmul.bf16.gmra.mxu0 %v3417
    %v4715 = vpop.f32.mrf.mxu0
    %v4716 = vadd.f32 %v4702, %v4715
    %v4717 = vpop.f32.mrf.mxu0
    %v4718 = vadd.f32 %v4704, %v4717
    %4719 = vdwg.mxu0
    %v4720 = vadd.f32 %v2918, %v4464
    %v4721 = vadd.f32 %v3002, %v4548
    %v4722 = vadd.f32 %v3086, %v4632
    %v4723 = vadd.f32 %v3170, %v4716
    %v4724 = vadd.f32 %v2920, %v4466
    %v4725 = vadd.f32 %v3004, %v4550
    %v4726 = vadd.f32 %v3088, %v4634
    %v4727 = vadd.f32 %v3172, %v4718
    %vm4728 = vsmask.f32 2304
    %vm4729 = vsmask.f32 6416
    %vm4730 = vmor %vm4728, %vm4729
    %v4731 = vrot.slane %v252, 5
    %v4732 = vrot.slane %v255, 6
    %v4733 = vor.u32 %v4731, %v4732
    %v4734 = vrot.slane %v4733, 4
    %v4735 = vshrl.u32 %v47, 16
    %v4737 = vrot.slane %v4735, 5
    %v4738 = vrot.slane %v261, 6
    %v4739 = vor.u32 %v4737, %v4738
    %v4740 = vsel %vm4730, %v4734, %v4739
    %v4741 = vrot.slane %v266, 5
    %v4742 = vrot.slane %v269, 6
    %v4743 = vor.u32 %v4741, %v4742
    %v4744 = vrot.slane %v4743, 4
    %v4745 = vshrl.u32 %v48, 16
    %v4747 = vrot.slane %v4745, 5
    %v4748 = vrot.slane %v275, 6
    %v4749 = vor.u32 %v4747, %v4748
    %v4750 = vsel %vm4730, %v4744, %v4749
    %v4751 = vrot.slane %v280, 5
    %v4752 = vrot.slane %v283, 6
    %v4753 = vor.u32 %v4751, %v4752
    %v4754 = vrot.slane %v4753, 4
    %v4755 = vshrl.u32 %v49, 16
    %v4757 = vrot.slane %v4755, 5
    %v4758 = vrot.slane %v289, 6
    %v4759 = vor.u32 %v4757, %v4758
    %v4760 = vsel %vm4730, %v4754, %v4759
    %v4761 = vrot.slane %v294, 5
    %v4762 = vrot.slane %v297, 6
    %v4763 = vor.u32 %v4761, %v4762
    %v4764 = vrot.slane %v4763, 4
    %v4765 = vshrl.u32 %v53, 16
    %v4767 = vrot.slane %v4765, 5
    %v4768 = vrot.slane %v303, 6
    %v4769 = vor.u32 %v4767, %v4768
    %v4770 = vsel %vm4730, %v4764, %v4769
    %v4771 = vrot.slane %v308, 5
    %v4772 = vrot.slane %v311, 6
    %v4773 = vor.u32 %v4771, %v4772
    %v4774 = vrot.slane %v4773, 4
    %v4775 = vshrl.u32 %v54, 16
    %v4777 = vrot.slane %v4775, 5
    %v4778 = vrot.slane %v317, 6
    %v4779 = vor.u32 %v4777, %v4778
    %v4780 = vsel %vm4730, %v4774, %v4779
    %v4781 = vrot.slane %v322, 5
    %v4782 = vrot.slane %v325, 6
    %v4783 = vor.u32 %v4781, %v4782
    %v4784 = vrot.slane %v4783, 4
    %v4785 = vshrl.u32 %v55, 16
    %v4787 = vrot.slane %v4785, 5
    %v4788 = vrot.slane %v331, 6
    %v4789 = vor.u32 %v4787, %v4788
    %v4790 = vsel %vm4730, %v4784, %v4789
    %s4791 = scalar_lea.vmem [#allocation2], 4608
    %v4792 = vld [vmem:[%s4791] sm:$0xff]
    %v4793 = vld [vmem:[%s4791 + $0x8] sm:$0xff]
    %v4794 = vld [vmem:[%s4791 + $0x10] sm:$0xff]
    %v4795 = vld [vmem:[%s4791 + $0x18] sm:$0xff]
    %v4796 = vld [vmem:[%s4791 + $0x20] sm:$0xff]
    %v4797 = vld [vmem:[%s4791 + $0x28] sm:$0xff]
    %v4798 = vld [vmem:[%s4791 + $0x30] sm:$0xff]
    %v4799 = vld [vmem:[%s4791 + $0x38] sm:$0xff]
    %v4800 = vld [vmem:[%s4791 + $0x40] sm:$0xff]
    %v4801 = vld [vmem:[%s4791 + $0x48] sm:$0xff]
    %v4802 = vld [vmem:[%s4791 + $0x50] sm:$0xff]
    %v4803 = vld [vmem:[%s4791 + $0x58] sm:$0xff]
    %v4804 = vld [vmem:[%s4791 + $0x60] sm:$0xff]
    %v4805 = vld [vmem:[%s4791 + $0x68] sm:$0xff]
    %v4806 = vld [vmem:[%s4791 + $0x70] sm:$0xff]
    %v4807 = vld [vmem:[%s4791 + $0x78] sm:$0xff]
    %v4808 = vld [vmem:[%s4791 + $0x80] sm:$0xff]
    %v4809 = vld [vmem:[%s4791 + $0x88] sm:$0xff]
    %v4810 = vld [vmem:[%s4791 + $0x90] sm:$0xff]
    %v4811 = vld [vmem:[%s4791 + $0x98] sm:$0xff]
    %v4812 = vld [vmem:[%s4791 + $0xa0] sm:$0xff]
    %v4813 = vld [vmem:[%s4791 + $0xa8] sm:$0xff]
    %v4814 = vld [vmem:[%s4791 + $0xb0] sm:$0xff]
    %v4815 = vld [vmem:[%s4791 + $0xb8] sm:$0xff]
    %v4816 = vld [vmem:[%s4791 + $0xc0] sm:$0xff]
    %v4817 = vld [vmem:[%s4791 + $0xc8] sm:$0xff]
    %v4818 = vld [vmem:[%s4791 + $0xd0] sm:$0xff]
    %v4819 = vld [vmem:[%s4791 + $0xd8] sm:$0xff]
    %v4820 = vld [vmem:[%s4791 + $0xe0] sm:$0xff]
    %v4821 = vld [vmem:[%s4791 + $0xe8] sm:$0xff]
    %v4822 = vld [vmem:[%s4791 + $0xf0] sm:$0xff]
    %v4823 = vld [vmem:[%s4791 + $0xf8] sm:$0xff]
    %v4824 = vld [vmem:[%s4791 + $0x100] sm:$0xff]
    %v4825 = vld [vmem:[%s4791 + $0x108] sm:$0xff]
    %v4826 = vld [vmem:[%s4791 + $0x110] sm:$0xff]
    %v4827 = vld [vmem:[%s4791 + $0x118] sm:$0xff]
    %v4828 = vld [vmem:[%s4791 + $0x120] sm:$0xff]
    %v4829 = vld [vmem:[%s4791 + $0x128] sm:$0xff]
    %v4830 = vld [vmem:[%s4791 + $0x130] sm:$0xff]
    %v4831 = vld [vmem:[%s4791 + $0x138] sm:$0xff]
    %v4832 = vld [vmem:[%s4791 + $0x140] sm:$0xff]
    %v4833 = vld [vmem:[%s4791 + $0x148] sm:$0xff]
    %v4834 = vld [vmem:[%s4791 + $0x150] sm:$0xff]
    %v4835 = vld [vmem:[%s4791 + $0x158] sm:$0xff]
    %v4836 = vld [vmem:[%s4791 + $0x160] sm:$0xff]
    %v4837 = vld [vmem:[%s4791 + $0x168] sm:$0xff]
    %v4838 = vld [vmem:[%s4791 + $0x170] sm:$0xff]
    %v4839 = vld [vmem:[%s4791 + $0x178] sm:$0xff]
    %v4840 = vld [vmem:[%s4791 + $0x180] sm:$0xff]
    %v4841 = vld [vmem:[%s4791 + $0x188] sm:$0xff]
    %v4842 = vld [vmem:[%s4791 + $0x190] sm:$0xff]
    %v4843 = vld [vmem:[%s4791 + $0x198] sm:$0xff]
    %v4844 = vld [vmem:[%s4791 + $0x1a0] sm:$0xff]
    %v4845 = vld [vmem:[%s4791 + $0x1a8] sm:$0xff]
    %v4846 = vld [vmem:[%s4791 + $0x1b0] sm:$0xff]
    %v4847 = vld [vmem:[%s4791 + $0x1b8] sm:$0xff]
    %v4848 = vld [vmem:[%s4791 + $0x1c0] sm:$0xff]
    %v4849 = vld [vmem:[%s4791 + $0x1c8] sm:$0xff]
    %v4850 = vld [vmem:[%s4791 + $0x1d0] sm:$0xff]
    %v4851 = vld [vmem:[%s4791 + $0x1d8] sm:$0xff]
    %v4852 = vld [vmem:[%s4791 + $0x1e0] sm:$0xff]
    %v4853 = vld [vmem:[%s4791 + $0x1e8] sm:$0xff]
    %v4854 = vld [vmem:[%s4791 + $0x1f0] sm:$0xff]
    %v4855 = vld [vmem:[%s4791 + $0x1f8] sm:$0xff]
    %v4856 = vld [vmem:[%s4791 + $0x200] sm:$0xff]
    %v4857 = vld [vmem:[%s4791 + $0x208] sm:$0xff]
    %v4858 = vld [vmem:[%s4791 + $0x210] sm:$0xff]
    %v4859 = vld [vmem:[%s4791 + $0x218] sm:$0xff]
    %v4860 = vld [vmem:[%s4791 + $0x220] sm:$0xff]
    %v4861 = vld [vmem:[%s4791 + $0x228] sm:$0xff]
    %v4862 = vld [vmem:[%s4791 + $0x230] sm:$0xff]
    %v4863 = vld [vmem:[%s4791 + $0x238] sm:$0xff]
    %v4864 = vld [vmem:[%s4791 + $0x240] sm:$0xff]
    %v4865 = vld [vmem:[%s4791 + $0x248] sm:$0xff]
    %v4866 = vld [vmem:[%s4791 + $0x250] sm:$0xff]
    %v4867 = vld [vmem:[%s4791 + $0x258] sm:$0xff]
    %v4868 = vld [vmem:[%s4791 + $0x260] sm:$0xff]
    %v4869 = vld [vmem:[%s4791 + $0x268] sm:$0xff]
    %v4870 = vld [vmem:[%s4791 + $0x270] sm:$0xff]
    %v4871 = vld [vmem:[%s4791 + $0x278] sm:$0xff]
    %v4872 = vld [vmem:[%s4791 + $0x280] sm:$0xff]
    %v4873 = vld [vmem:[%s4791 + $0x288] sm:$0xff]
    %v4874 = vld [vmem:[%s4791 + $0x290] sm:$0xff]
    %v4875 = vld [vmem:[%s4791 + $0x298] sm:$0xff]
    %v4876 = vld [vmem:[%s4791 + $0x2a0] sm:$0xff]
    %v4877 = vld [vmem:[%s4791 + $0x2a8] sm:$0xff]
    %v4878 = vld [vmem:[%s4791 + $0x2b0] sm:$0xff]
    %v4879 = vld [vmem:[%s4791 + $0x2b8] sm:$0xff]
    %v4880 = vld [vmem:[%s4791 + $0x2c0] sm:$0xff]
    %v4881 = vld [vmem:[%s4791 + $0x2c8] sm:$0xff]
    %v4882 = vld [vmem:[%s4791 + $0x2d0] sm:$0xff]
    %v4883 = vld [vmem:[%s4791 + $0x2d8] sm:$0xff]
    %v4884 = vld [vmem:[%s4791 + $0x2e0] sm:$0xff]
    %v4885 = vld [vmem:[%s4791 + $0x2e8] sm:$0xff]
    %v4886 = vld [vmem:[%s4791 + $0x2f0] sm:$0xff]
    %v4887 = vld [vmem:[%s4791 + $0x2f8] sm:$0xff]
    %v4888 = vld [vmem:[%s4791 + $0x300] sm:$0xff]
    %v4889 = vld [vmem:[%s4791 + $0x308] sm:$0xff]
    %v4890 = vld [vmem:[%s4791 + $0x310] sm:$0xff]
    %v4891 = vld [vmem:[%s4791 + $0x318] sm:$0xff]
    %v4892 = vld [vmem:[%s4791 + $0x320] sm:$0xff]
    %v4893 = vld [vmem:[%s4791 + $0x328] sm:$0xff]
    %v4894 = vld [vmem:[%s4791 + $0x330] sm:$0xff]
    %v4895 = vld [vmem:[%s4791 + $0x338] sm:$0xff]
    %v4896 = vld [vmem:[%s4791 + $0x340] sm:$0xff]
    %v4897 = vld [vmem:[%s4791 + $0x348] sm:$0xff]
    %v4898 = vld [vmem:[%s4791 + $0x350] sm:$0xff]
    %v4899 = vld [vmem:[%s4791 + $0x358] sm:$0xff]
    %v4900 = vld [vmem:[%s4791 + $0x360] sm:$0xff]
    %v4901 = vld [vmem:[%s4791 + $0x368] sm:$0xff]
    %v4902 = vld [vmem:[%s4791 + $0x370] sm:$0xff]
    %v4903 = vld [vmem:[%s4791 + $0x378] sm:$0xff]
    %v4904 = vld [vmem:[%s4791 + $0x380] sm:$0xff]
    %v4905 = vld [vmem:[%s4791 + $0x388] sm:$0xff]
    %v4906 = vld [vmem:[%s4791 + $0x390] sm:$0xff]
    %v4907 = vld [vmem:[%s4791 + $0x398] sm:$0xff]
    %v4908 = vld [vmem:[%s4791 + $0x3a0] sm:$0xff]
    %v4909 = vld [vmem:[%s4791 + $0x3a8] sm:$0xff]
    %v4910 = vld [vmem:[%s4791 + $0x3b0] sm:$0xff]
    %v4911 = vld [vmem:[%s4791 + $0x3b8] sm:$0xff]
    %v4912 = vld [vmem:[%s4791 + $0x3c0] sm:$0xff]
    %v4913 = vld [vmem:[%s4791 + $0x3c8] sm:$0xff]
    %v4914 = vld [vmem:[%s4791 + $0x3d0] sm:$0xff]
    %v4915 = vld [vmem:[%s4791 + $0x3d8] sm:$0xff]
    %v4916 = vld [vmem:[%s4791 + $0x3e0] sm:$0xff]
    %v4917 = vld [vmem:[%s4791 + $0x3e8] sm:$0xff]
    %v4918 = vld [vmem:[%s4791 + $0x3f0] sm:$0xff]
    %v4919 = vld [vmem:[%s4791 + $0x3f8] sm:$0xff]
    %v4920 = vld [vmem:[%s4791 + $0x400] sm:$0xff]
    %v4921 = vld [vmem:[%s4791 + $0x408] sm:$0xff]
    %v4922 = vld [vmem:[%s4791 + $0x410] sm:$0xff]
    %v4923 = vld [vmem:[%s4791 + $0x418] sm:$0xff]
    %v4924 = vld [vmem:[%s4791 + $0x420] sm:$0xff]
    %v4925 = vld [vmem:[%s4791 + $0x428] sm:$0xff]
    %v4926 = vld [vmem:[%s4791 + $0x430] sm:$0xff]
    %v4927 = vld [vmem:[%s4791 + $0x438] sm:$0xff]
    %v4928 = vld [vmem:[%s4791 + $0x440] sm:$0xff]
    %v4929 = vld [vmem:[%s4791 + $0x448] sm:$0xff]
    %v4930 = vld [vmem:[%s4791 + $0x450] sm:$0xff]
    %v4931 = vld [vmem:[%s4791 + $0x458] sm:$0xff]
    %v4932 = vld [vmem:[%s4791 + $0x460] sm:$0xff]
    %v4933 = vld [vmem:[%s4791 + $0x468] sm:$0xff]
    %v4934 = vld [vmem:[%s4791 + $0x470] sm:$0xff]
    %v4935 = vld [vmem:[%s4791 + $0x478] sm:$0xff]
    %v4936 = vld [vmem:[%s4791 + $0x480] sm:$0xff]
    %v4937 = vld [vmem:[%s4791 + $0x488] sm:$0xff]
    %v4938 = vld [vmem:[%s4791 + $0x490] sm:$0xff]
    %v4939 = vld [vmem:[%s4791 + $0x498] sm:$0xff]
    %v4940 = vld [vmem:[%s4791 + $0x4a0] sm:$0xff]
    %v4941 = vld [vmem:[%s4791 + $0x4a8] sm:$0xff]
    %v4942 = vld [vmem:[%s4791 + $0x4b0] sm:$0xff]
    %v4943 = vld [vmem:[%s4791 + $0x4b8] sm:$0xff]
    %v4944 = vld [vmem:[%s4791 + $0x4c0] sm:$0xff]
    %v4945 = vld [vmem:[%s4791 + $0x4c8] sm:$0xff]
    %v4946 = vld [vmem:[%s4791 + $0x4d0] sm:$0xff]
    %v4947 = vld [vmem:[%s4791 + $0x4d8] sm:$0xff]
    %v4948 = vld [vmem:[%s4791 + $0x4e0] sm:$0xff]
    %v4949 = vld [vmem:[%s4791 + $0x4e8] sm:$0xff]
    %v4950 = vld [vmem:[%s4791 + $0x4f0] sm:$0xff]
    %v4951 = vld [vmem:[%s4791 + $0x4f8] sm:$0xff]
    %v4952 = vld [vmem:[%s4791 + $0x500] sm:$0xff]
    %v4953 = vld [vmem:[%s4791 + $0x508] sm:$0xff]
    %v4954 = vld [vmem:[%s4791 + $0x510] sm:$0xff]
    %v4955 = vld [vmem:[%s4791 + $0x518] sm:$0xff]
    %v4956 = vld [vmem:[%s4791 + $0x520] sm:$0xff]
    %v4957 = vld [vmem:[%s4791 + $0x528] sm:$0xff]
    %v4958 = vld [vmem:[%s4791 + $0x530] sm:$0xff]
    %v4959 = vld [vmem:[%s4791 + $0x538] sm:$0xff]
    %v4960 = vld [vmem:[%s4791 + $0x540] sm:$0xff]
    %v4961 = vld [vmem:[%s4791 + $0x548] sm:$0xff]
    %v4962 = vld [vmem:[%s4791 + $0x550] sm:$0xff]
    %v4963 = vld [vmem:[%s4791 + $0x558] sm:$0xff]
    %v4964 = vld [vmem:[%s4791 + $0x560] sm:$0xff]
    %v4965 = vld [vmem:[%s4791 + $0x568] sm:$0xff]
    %v4966 = vld [vmem:[%s4791 + $0x570] sm:$0xff]
    %v4967 = vld [vmem:[%s4791 + $0x578] sm:$0xff]
    %v4968 = vld [vmem:[%s4791 + $0x580] sm:$0xff]
    %v4969 = vld [vmem:[%s4791 + $0x588] sm:$0xff]
    %v4970 = vld [vmem:[%s4791 + $0x590] sm:$0xff]
    %v4971 = vld [vmem:[%s4791 + $0x598] sm:$0xff]
    %v4972 = vld [vmem:[%s4791 + $0x5a0] sm:$0xff]
    %v4973 = vld [vmem:[%s4791 + $0x5a8] sm:$0xff]
    %v4974 = vld [vmem:[%s4791 + $0x5b0] sm:$0xff]
    %v4975 = vld [vmem:[%s4791 + $0x5b8] sm:$0xff]
    %v4976 = vld [vmem:[%s4791 + $0x5c0] sm:$0xff]
    %v4977 = vld [vmem:[%s4791 + $0x5c8] sm:$0xff]
    %v4978 = vld [vmem:[%s4791 + $0x5d0] sm:$0xff]
    %v4979 = vld [vmem:[%s4791 + $0x5d8] sm:$0xff]
    %v4980 = vld [vmem:[%s4791 + $0x5e0] sm:$0xff]
    %v4981 = vld [vmem:[%s4791 + $0x5e8] sm:$0xff]
    %v4982 = vld [vmem:[%s4791 + $0x5f0] sm:$0xff]
    %v4983 = vld [vmem:[%s4791 + $0x5f8] sm:$0xff]
    %v4984 = vunpack.c.l.b16 %v4740
    %v4985 = vunpack.c.h.b16 %v4740
    %v4986 = vunpack.c.l.b16 %v4750
    %v4987 = vunpack.c.h.b16 %v4750
    %v4988 = vunpack.c.l.b16 %v4760
    %v4989 = vunpack.c.h.b16 %v4760
    %v4990 = vunpack.c.l.b16 %v4770
    %v4991 = vunpack.c.h.b16 %v4770
    %v4992 = vunpack.c.l.b16 %v4780
    %v4993 = vunpack.c.h.b16 %v4780
    %v4994 = vunpack.c.l.b16 %v4790
    %v4995 = vunpack.c.h.b16 %v4790
    %v4996 = vpack.c.b16 %v4990, %v4984
    %v4997 = vpack.c.b16 %v4991, %v4985
    %v4998 = vpack.c.b16 %v4992, %v4986
    %v4999 = vpack.c.b16 %v4993, %v4987
    %v5000 = vpack.c.b16 %v4994, %v4988
    %v5001 = vpack.c.b16 %v4995, %v4989
    %v5200 = vunpack.c.l.b16 %v4792
    %v5201 = vunpack.c.h.b16 %v4792
    %v5202 = vunpack.c.l.b16 %v4793
    %v5203 = vunpack.c.h.b16 %v4793
    %v5204 = vunpack.c.l.b16 %v4794
    %v5205 = vunpack.c.h.b16 %v4794
    %v5206 = vunpack.c.l.b16 %v4795
    %v5207 = vunpack.c.h.b16 %v4795
    %v5208 = vunpack.c.l.b16 %v4796
    %v5209 = vunpack.c.h.b16 %v4796
    %v5210 = vunpack.c.l.b16 %v4797
    %v5211 = vunpack.c.h.b16 %v4797
    %v5212 = vunpack.c.l.b16 %v4798
    %v5213 = vunpack.c.h.b16 %v4798
    %v5214 = vunpack.c.l.b16 %v4799
    %v5215 = vunpack.c.h.b16 %v4799
    %v5216 = vunpack.c.l.b16 %v4800
    %v5217 = vunpack.c.h.b16 %v4800
    %v5218 = vunpack.c.l.b16 %v4801
    %v5219 = vunpack.c.h.b16 %v4801
    %v5220 = vunpack.c.l.b16 %v4802
    %v5221 = vunpack.c.h.b16 %v4802
    %v5222 = vunpack.c.l.b16 %v4803
    %v5223 = vunpack.c.h.b16 %v4803
    %v5224 = vunpack.c.l.b16 %v4804
    %v5225 = vunpack.c.h.b16 %v4804
    %v5226 = vunpack.c.l.b16 %v4805
    %v5227 = vunpack.c.h.b16 %v4805
    %v5228 = vunpack.c.l.b16 %v4806
    %v5229 = vunpack.c.h.b16 %v4806
    %v5230 = vunpack.c.l.b16 %v4807
    %v5231 = vunpack.c.h.b16 %v4807
    %v5232 = vunpack.c.l.b16 %v4808
    %v5233 = vunpack.c.h.b16 %v4808
    %v5234 = vunpack.c.l.b16 %v4809
    %v5235 = vunpack.c.h.b16 %v4809
    %v5236 = vunpack.c.l.b16 %v4810
    %v5237 = vunpack.c.h.b16 %v4810
    %v5238 = vunpack.c.l.b16 %v4811
    %v5239 = vunpack.c.h.b16 %v4811
    %v5240 = vunpack.c.l.b16 %v4812
    %v5241 = vunpack.c.h.b16 %v4812
    %v5242 = vunpack.c.l.b16 %v4813
    %v5243 = vunpack.c.h.b16 %v4813
    %v5244 = vunpack.c.l.b16 %v4814
    %v5245 = vunpack.c.h.b16 %v4814
    %v5246 = vunpack.c.l.b16 %v4815
    %v5247 = vunpack.c.h.b16 %v4815
    %v5248 = vunpack.c.l.b16 %v4816
    %v5249 = vunpack.c.h.b16 %v4816
    %v5250 = vunpack.c.l.b16 %v4817
    %v5251 = vunpack.c.h.b16 %v4817
    %v5252 = vunpack.c.l.b16 %v4818
    %v5253 = vunpack.c.h.b16 %v4818
    %v5254 = vunpack.c.l.b16 %v4819
    %v5255 = vunpack.c.h.b16 %v4819
    %v5256 = vunpack.c.l.b16 %v4820
    %v5257 = vunpack.c.h.b16 %v4820
    %v5258 = vunpack.c.l.b16 %v4821
    %v5259 = vunpack.c.h.b16 %v4821
    %v5260 = vunpack.c.l.b16 %v4822
    %v5261 = vunpack.c.h.b16 %v4822
    %v5262 = vunpack.c.l.b16 %v4823
    %v5263 = vunpack.c.h.b16 %v4823
    %v5264 = vunpack.c.l.b16 %v4824
    %v5265 = vunpack.c.h.b16 %v4824
    %v5266 = vunpack.c.l.b16 %v4825
    %v5267 = vunpack.c.h.b16 %v4825
    %v5268 = vunpack.c.l.b16 %v4826
    %v5269 = vunpack.c.h.b16 %v4826
    %v5270 = vunpack.c.l.b16 %v4827
    %v5271 = vunpack.c.h.b16 %v4827
    %v5272 = vunpack.c.l.b16 %v4828
    %v5273 = vunpack.c.h.b16 %v4828
    %v5274 = vunpack.c.l.b16 %v4829
    %v5275 = vunpack.c.h.b16 %v4829
    %v5276 = vunpack.c.l.b16 %v4830
    %v5277 = vunpack.c.h.b16 %v4830
    %v5278 = vunpack.c.l.b16 %v4831
    %v5279 = vunpack.c.h.b16 %v4831
    %v5280 = vunpack.c.l.b16 %v4832
    %v5281 = vunpack.c.h.b16 %v4832
    %v5282 = vunpack.c.l.b16 %v4833
    %v5283 = vunpack.c.h.b16 %v4833
    %v5284 = vunpack.c.l.b16 %v4834
    %v5285 = vunpack.c.h.b16 %v4834
    %v5286 = vunpack.c.l.b16 %v4835
    %v5287 = vunpack.c.h.b16 %v4835
    %v5288 = vunpack.c.l.b16 %v4836
    %v5289 = vunpack.c.h.b16 %v4836
    %v5290 = vunpack.c.l.b16 %v4837
    %v5291 = vunpack.c.h.b16 %v4837
    %v5292 = vunpack.c.l.b16 %v4838
    %v5293 = vunpack.c.h.b16 %v4838
    %v5294 = vunpack.c.l.b16 %v4839
    %v5295 = vunpack.c.h.b16 %v4839
    %v5296 = vunpack.c.l.b16 %v4840
    %v5297 = vunpack.c.h.b16 %v4840
    %v5298 = vunpack.c.l.b16 %v4841
    %v5299 = vunpack.c.h.b16 %v4841
    %v5300 = vunpack.c.l.b16 %v4842
    %v5301 = vunpack.c.h.b16 %v4842
    %v5302 = vunpack.c.l.b16 %v4843
    %v5303 = vunpack.c.h.b16 %v4843
    %v5304 = vunpack.c.l.b16 %v4844
    %v5305 = vunpack.c.h.b16 %v4844
    %v5306 = vunpack.c.l.b16 %v4845
    %v5307 = vunpack.c.h.b16 %v4845
    %v5308 = vunpack.c.l.b16 %v4846
    %v5309 = vunpack.c.h.b16 %v4846
    %v5310 = vunpack.c.l.b16 %v4847
    %v5311 = vunpack.c.h.b16 %v4847
    %v5312 = vunpack.c.l.b16 %v4848
    %v5313 = vunpack.c.h.b16 %v4848
    %v5314 = vunpack.c.l.b16 %v4849
    %v5315 = vunpack.c.h.b16 %v4849
    %v5316 = vunpack.c.l.b16 %v4850
    %v5317 = vunpack.c.h.b16 %v4850
    %v5318 = vunpack.c.l.b16 %v4851
    %v5319 = vunpack.c.h.b16 %v4851
    %v5320 = vunpack.c.l.b16 %v4852
    %v5321 = vunpack.c.h.b16 %v4852
    %v5322 = vunpack.c.l.b16 %v4853
    %v5323 = vunpack.c.h.b16 %v4853
    %v5324 = vunpack.c.l.b16 %v4854
    %v5325 = vunpack.c.h.b16 %v4854
    %v5326 = vunpack.c.l.b16 %v4855
    %v5327 = vunpack.c.h.b16 %v4855
    %v5328 = vunpack.c.l.b16 %v4856
    %v5329 = vunpack.c.h.b16 %v4856
    %v5330 = vunpack.c.l.b16 %v4857
    %v5331 = vunpack.c.h.b16 %v4857
    %v5332 = vunpack.c.l.b16 %v4858
    %v5333 = vunpack.c.h.b16 %v4858
    %v5334 = vunpack.c.l.b16 %v4859
    %v5335 = vunpack.c.h.b16 %v4859
    %v5336 = vunpack.c.l.b16 %v4860
    %v5337 = vunpack.c.h.b16 %v4860
    %v5338 = vunpack.c.l.b16 %v4861
    %v5339 = vunpack.c.h.b16 %v4861
    %v5340 = vunpack.c.l.b16 %v4862
    %v5341 = vunpack.c.h.b16 %v4862
    %v5342 = vunpack.c.l.b16 %v4863
    %v5343 = vunpack.c.h.b16 %v4863
    %v5344 = vunpack.c.l.b16 %v4864
    %v5345 = vunpack.c.h.b16 %v4864
    %v5346 = vunpack.c.l.b16 %v4865
    %v5347 = vunpack.c.h.b16 %v4865
    %v5348 = vunpack.c.l.b16 %v4866
    %v5349 = vunpack.c.h.b16 %v4866
    %v5350 = vunpack.c.l.b16 %v4867
    %v5351 = vunpack.c.h.b16 %v4867
    %v5352 = vunpack.c.l.b16 %v4868
    %v5353 = vunpack.c.h.b16 %v4868
    %v5354 = vunpack.c.l.b16 %v4869
    %v5355 = vunpack.c.h.b16 %v4869
    %v5356 = vunpack.c.l.b16 %v4870
    %v5357 = vunpack.c.h.b16 %v4870
    %v5358 = vunpack.c.l.b16 %v4871
    %v5359 = vunpack.c.h.b16 %v4871
    %v5360 = vunpack.c.l.b16 %v4872
    %v5361 = vunpack.c.h.b16 %v4872
    %v5362 = vunpack.c.l.b16 %v4873
    %v5363 = vunpack.c.h.b16 %v4873
    %v5364 = vunpack.c.l.b16 %v4874
    %v5365 = vunpack.c.h.b16 %v4874
    %v5366 = vunpack.c.l.b16 %v4875
    %v5367 = vunpack.c.h.b16 %v4875
    %v5368 = vunpack.c.l.b16 %v4876
    %v5369 = vunpack.c.h.b16 %v4876
    %v5370 = vunpack.c.l.b16 %v4877
    %v5371 = vunpack.c.h.b16 %v4877
    %v5372 = vunpack.c.l.b16 %v4878
    %v5373 = vunpack.c.h.b16 %v4878
    %v5374 = vunpack.c.l.b16 %v4879
    %v5375 = vunpack.c.h.b16 %v4879
    %v5376 = vunpack.c.l.b16 %v4880
    %v5377 = vunpack.c.h.b16 %v4880
    %v5378 = vunpack.c.l.b16 %v4881
    %v5379 = vunpack.c.h.b16 %v4881
    %v5380 = vunpack.c.l.b16 %v4882
    %v5381 = vunpack.c.h.b16 %v4882
    %v5382 = vunpack.c.l.b16 %v4883
    %v5383 = vunpack.c.h.b16 %v4883
    %v5384 = vunpack.c.l.b16 %v4884
    %v5385 = vunpack.c.h.b16 %v4884
    %v5386 = vunpack.c.l.b16 %v4885
    %v5387 = vunpack.c.h.b16 %v4885
    %v5388 = vunpack.c.l.b16 %v4886
    %v5389 = vunpack.c.h.b16 %v4886
    %v5390 = vunpack.c.l.b16 %v4887
    %v5391 = vunpack.c.h.b16 %v4887
    %v5392 = vunpack.c.l.b16 %v4888
    %v5393 = vunpack.c.h.b16 %v4888
    %v5394 = vunpack.c.l.b16 %v4889
    %v5395 = vunpack.c.h.b16 %v4889
    %v5396 = vunpack.c.l.b16 %v4890
    %v5397 = vunpack.c.h.b16 %v4890
    %v5398 = vunpack.c.l.b16 %v4891
    %v5399 = vunpack.c.h.b16 %v4891
    %v5400 = vunpack.c.l.b16 %v4892
    %v5401 = vunpack.c.h.b16 %v4892
    %v5402 = vunpack.c.l.b16 %v4893
    %v5403 = vunpack.c.h.b16 %v4893
    %v5404 = vunpack.c.l.b16 %v4894
    %v5405 = vunpack.c.h.b16 %v4894
    %v5406 = vunpack.c.l.b16 %v4895
    %v5407 = vunpack.c.h.b16 %v4895
    %v5408 = vunpack.c.l.b16 %v4896
    %v5409 = vunpack.c.h.b16 %v4896
    %v5410 = vunpack.c.l.b16 %v4897
    %v5411 = vunpack.c.h.b16 %v4897
    %v5412 = vunpack.c.l.b16 %v4898
    %v5413 = vunpack.c.h.b16 %v4898
    %v5414 = vunpack.c.l.b16 %v4899
    %v5415 = vunpack.c.h.b16 %v4899
    %v5416 = vunpack.c.l.b16 %v4900
    %v5417 = vunpack.c.h.b16 %v4900
    %v5418 = vunpack.c.l.b16 %v4901
    %v5419 = vunpack.c.h.b16 %v4901
    %v5420 = vunpack.c.l.b16 %v4902
    %v5421 = vunpack.c.h.b16 %v4902
    %v5422 = vunpack.c.l.b16 %v4903
    %v5423 = vunpack.c.h.b16 %v4903
    %v5424 = vunpack.c.l.b16 %v4904
    %v5425 = vunpack.c.h.b16 %v4904
    %v5426 = vunpack.c.l.b16 %v4905
    %v5427 = vunpack.c.h.b16 %v4905
    %v5428 = vunpack.c.l.b16 %v4906
    %v5429 = vunpack.c.h.b16 %v4906
    %v5430 = vunpack.c.l.b16 %v4907
    %v5431 = vunpack.c.h.b16 %v4907
    %v5432 = vunpack.c.l.b16 %v4908
    %v5433 = vunpack.c.h.b16 %v4908
    %v5434 = vunpack.c.l.b16 %v4909
    %v5435 = vunpack.c.h.b16 %v4909
    %v5436 = vunpack.c.l.b16 %v4910
    %v5437 = vunpack.c.h.b16 %v4910
    %v5438 = vunpack.c.l.b16 %v4911
    %v5439 = vunpack.c.h.b16 %v4911
    %v5440 = vunpack.c.l.b16 %v4912
    %v5441 = vunpack.c.h.b16 %v4912
    %v5442 = vunpack.c.l.b16 %v4913
    %v5443 = vunpack.c.h.b16 %v4913
    %v5444 = vunpack.c.l.b16 %v4914
    %v5445 = vunpack.c.h.b16 %v4914
    %v5446 = vunpack.c.l.b16 %v4915
    %v5447 = vunpack.c.h.b16 %v4915
    %v5448 = vunpack.c.l.b16 %v4916
    %v5449 = vunpack.c.h.b16 %v4916
    %v5450 = vunpack.c.l.b16 %v4917
    %v5451 = vunpack.c.h.b16 %v4917
    %v5452 = vunpack.c.l.b16 %v4918
    %v5453 = vunpack.c.h.b16 %v4918
    %v5454 = vunpack.c.l.b16 %v4919
    %v5455 = vunpack.c.h.b16 %v4919
    %v5456 = vunpack.c.l.b16 %v4920
    %v5457 = vunpack.c.h.b16 %v4920
    %v5458 = vunpack.c.l.b16 %v4921
    %v5459 = vunpack.c.h.b16 %v4921
    %v5460 = vunpack.c.l.b16 %v4922
    %v5461 = vunpack.c.h.b16 %v4922
    %v5462 = vunpack.c.l.b16 %v4923
    %v5463 = vunpack.c.h.b16 %v4923
    %v5464 = vunpack.c.l.b16 %v4924
    %v5465 = vunpack.c.h.b16 %v4924
    %v5466 = vunpack.c.l.b16 %v4925
    %v5467 = vunpack.c.h.b16 %v4925
    %v5468 = vunpack.c.l.b16 %v4926
    %v5469 = vunpack.c.h.b16 %v4926
    %v5470 = vunpack.c.l.b16 %v4927
    %v5471 = vunpack.c.h.b16 %v4927
    %v5472 = vunpack.c.l.b16 %v4928
    %v5473 = vunpack.c.h.b16 %v4928
    %v5474 = vunpack.c.l.b16 %v4929
    %v5475 = vunpack.c.h.b16 %v4929
    %v5476 = vunpack.c.l.b16 %v4930
    %v5477 = vunpack.c.h.b16 %v4930
    %v5478 = vunpack.c.l.b16 %v4931
    %v5479 = vunpack.c.h.b16 %v4931
    %v5480 = vunpack.c.l.b16 %v4932
    %v5481 = vunpack.c.h.b16 %v4932
    %v5482 = vunpack.c.l.b16 %v4933
    %v5483 = vunpack.c.h.b16 %v4933
    %v5484 = vunpack.c.l.b16 %v4934
    %v5485 = vunpack.c.h.b16 %v4934
    %v5486 = vunpack.c.l.b16 %v4935
    %v5487 = vunpack.c.h.b16 %v4935
    %v5488 = vunpack.c.l.b16 %v4936
    %v5489 = vunpack.c.h.b16 %v4936
    %v5490 = vunpack.c.l.b16 %v4937
    %v5491 = vunpack.c.h.b16 %v4937
    %v5492 = vunpack.c.l.b16 %v4938
    %v5493 = vunpack.c.h.b16 %v4938
    %v5494 = vunpack.c.l.b16 %v4939
    %v5495 = vunpack.c.h.b16 %v4939
    %v5496 = vunpack.c.l.b16 %v4940
    %v5497 = vunpack.c.h.b16 %v4940
    %v5498 = vunpack.c.l.b16 %v4941
    %v5499 = vunpack.c.h.b16 %v4941
    %v5500 = vunpack.c.l.b16 %v4942
    %v5501 = vunpack.c.h.b16 %v4942
    %v5502 = vunpack.c.l.b16 %v4943
    %v5503 = vunpack.c.h.b16 %v4943
    %v5504 = vunpack.c.l.b16 %v4944
    %v5505 = vunpack.c.h.b16 %v4944
    %v5506 = vunpack.c.l.b16 %v4945
    %v5507 = vunpack.c.h.b16 %v4945
    %v5508 = vunpack.c.l.b16 %v4946
    %v5509 = vunpack.c.h.b16 %v4946
    %v5510 = vunpack.c.l.b16 %v4947
    %v5511 = vunpack.c.h.b16 %v4947
    %v5512 = vunpack.c.l.b16 %v4948
    %v5513 = vunpack.c.h.b16 %v4948
    %v5514 = vunpack.c.l.b16 %v4949
    %v5515 = vunpack.c.h.b16 %v4949
    %v5516 = vunpack.c.l.b16 %v4950
    %v5517 = vunpack.c.h.b16 %v4950
    %v5518 = vunpack.c.l.b16 %v4951
    %v5519 = vunpack.c.h.b16 %v4951
    %v5520 = vunpack.c.l.b16 %v4952
    %v5521 = vunpack.c.h.b16 %v4952
    %v5522 = vunpack.c.l.b16 %v4953
    %v5523 = vunpack.c.h.b16 %v4953
    %v5524 = vunpack.c.l.b16 %v4954
    %v5525 = vunpack.c.h.b16 %v4954
    %v5526 = vunpack.c.l.b16 %v4955
    %v5527 = vunpack.c.h.b16 %v4955
    %v5528 = vunpack.c.l.b16 %v4956
    %v5529 = vunpack.c.h.b16 %v4956
    %v5530 = vunpack.c.l.b16 %v4957
    %v5531 = vunpack.c.h.b16 %v4957
    %v5532 = vunpack.c.l.b16 %v4958
    %v5533 = vunpack.c.h.b16 %v4958
    %v5534 = vunpack.c.l.b16 %v4959
    %v5535 = vunpack.c.h.b16 %v4959
    %v5536 = vunpack.c.l.b16 %v4960
    %v5537 = vunpack.c.h.b16 %v4960
    %v5538 = vunpack.c.l.b16 %v4961
    %v5539 = vunpack.c.h.b16 %v4961
    %v5540 = vunpack.c.l.b16 %v4962
    %v5541 = vunpack.c.h.b16 %v4962
    %v5542 = vunpack.c.l.b16 %v4963
    %v5543 = vunpack.c.h.b16 %v4963
    %v5544 = vunpack.c.l.b16 %v4964
    %v5545 = vunpack.c.h.b16 %v4964
    %v5546 = vunpack.c.l.b16 %v4965
    %v5547 = vunpack.c.h.b16 %v4965
    %v5548 = vunpack.c.l.b16 %v4966
    %v5549 = vunpack.c.h.b16 %v4966
    %v5550 = vunpack.c.l.b16 %v4967
    %v5551 = vunpack.c.h.b16 %v4967
    %v5552 = vunpack.c.l.b16 %v4968
    %v5553 = vunpack.c.h.b16 %v4968
    %v5554 = vunpack.c.l.b16 %v4969
    %v5555 = vunpack.c.h.b16 %v4969
    %v5556 = vunpack.c.l.b16 %v4970
    %v5557 = vunpack.c.h.b16 %v4970
    %v5558 = vunpack.c.l.b16 %v4971
    %v5559 = vunpack.c.h.b16 %v4971
    %v5560 = vunpack.c.l.b16 %v4972
    %v5561 = vunpack.c.h.b16 %v4972
    %v5562 = vunpack.c.l.b16 %v4973
    %v5563 = vunpack.c.h.b16 %v4973
    %v5564 = vunpack.c.l.b16 %v4974
    %v5565 = vunpack.c.h.b16 %v4974
    %v5566 = vunpack.c.l.b16 %v4975
    %v5567 = vunpack.c.h.b16 %v4975
    %v5568 = vunpack.c.l.b16 %v4976
    %v5569 = vunpack.c.h.b16 %v4976
    %v5570 = vunpack.c.l.b16 %v4977
    %v5571 = vunpack.c.h.b16 %v4977
    %v5572 = vunpack.c.l.b16 %v4978
    %v5573 = vunpack.c.h.b16 %v4978
    %v5574 = vunpack.c.l.b16 %v4979
    %v5575 = vunpack.c.h.b16 %v4979
    %v5576 = vunpack.c.l.b16 %v4980
    %v5577 = vunpack.c.h.b16 %v4980
    %v5578 = vunpack.c.l.b16 %v4981
    %v5579 = vunpack.c.h.b16 %v4981
    %v5580 = vunpack.c.l.b16 %v4982
    %v5581 = vunpack.c.h.b16 %v4982
    %v5582 = vunpack.c.l.b16 %v4983
    %v5583 = vunpack.c.h.b16 %v4983
    %v5584 = vpack.c.b16 %v5204, %v5200
    %v5585 = vpack.c.b16 %v5205, %v5201
    %v5586 = vpack.c.b16 %v5206, %v5202
    %v5587 = vpack.c.b16 %v5207, %v5203
    %v5588 = vpack.c.b16 %v5212, %v5208
    %v5589 = vpack.c.b16 %v5213, %v5209
    %v5590 = vpack.c.b16 %v5214, %v5210
    %v5591 = vpack.c.b16 %v5215, %v5211
    %v5592 = vpack.c.b16 %v5220, %v5216
    %v5593 = vpack.c.b16 %v5221, %v5217
    %v5594 = vpack.c.b16 %v5222, %v5218
    %v5595 = vpack.c.b16 %v5223, %v5219
    %v5596 = vpack.c.b16 %v5228, %v5224
    %v5597 = vpack.c.b16 %v5229, %v5225
    %v5598 = vpack.c.b16 %v5230, %v5226
    %v5599 = vpack.c.b16 %v5231, %v5227
    %v5600 = vpack.c.b16 %v5236, %v5232
    %v5601 = vpack.c.b16 %v5237, %v5233
    %v5602 = vpack.c.b16 %v5238, %v5234
    %v5603 = vpack.c.b16 %v5239, %v5235
    %v5604 = vpack.c.b16 %v5244, %v5240
    %v5605 = vpack.c.b16 %v5245, %v5241
    %v5606 = vpack.c.b16 %v5246, %v5242
    %v5607 = vpack.c.b16 %v5247, %v5243
    %v5608 = vpack.c.b16 %v5252, %v5248
    %v5609 = vpack.c.b16 %v5253, %v5249
    %v5610 = vpack.c.b16 %v5254, %v5250
    %v5611 = vpack.c.b16 %v5255, %v5251
    %v5612 = vpack.c.b16 %v5260, %v5256
    %v5613 = vpack.c.b16 %v5261, %v5257
    %v5614 = vpack.c.b16 %v5262, %v5258
    %v5615 = vpack.c.b16 %v5263, %v5259
    %v5616 = vpack.c.b16 %v5268, %v5264
    %v5617 = vpack.c.b16 %v5269, %v5265
    %v5618 = vpack.c.b16 %v5270, %v5266
    %v5619 = vpack.c.b16 %v5271, %v5267
    %v5620 = vpack.c.b16 %v5276, %v5272
    %v5621 = vpack.c.b16 %v5277, %v5273
    %v5622 = vpack.c.b16 %v5278, %v5274
    %v5623 = vpack.c.b16 %v5279, %v5275
    %v5624 = vpack.c.b16 %v5284, %v5280
    %v5625 = vpack.c.b16 %v5285, %v5281
    %v5626 = vpack.c.b16 %v5286, %v5282
    %v5627 = vpack.c.b16 %v5287, %v5283
    %v5628 = vpack.c.b16 %v5292, %v5288
    %v5629 = vpack.c.b16 %v5293, %v5289
    %v5630 = vpack.c.b16 %v5294, %v5290
    %v5631 = vpack.c.b16 %v5295, %v5291
    %v5632 = vpack.c.b16 %v5300, %v5296
    %v5633 = vpack.c.b16 %v5301, %v5297
    %v5634 = vpack.c.b16 %v5302, %v5298
    %v5635 = vpack.c.b16 %v5303, %v5299
    %v5636 = vpack.c.b16 %v5308, %v5304
    %v5637 = vpack.c.b16 %v5309, %v5305
    %v5638 = vpack.c.b16 %v5310, %v5306
    %v5639 = vpack.c.b16 %v5311, %v5307
    %v5640 = vpack.c.b16 %v5316, %v5312
    %v5641 = vpack.c.b16 %v5317, %v5313
    %v5642 = vpack.c.b16 %v5318, %v5314
    %v5643 = vpack.c.b16 %v5319, %v5315
    %v5644 = vpack.c.b16 %v5324, %v5320
    %v5645 = vpack.c.b16 %v5325, %v5321
    %v5646 = vpack.c.b16 %v5326, %v5322
    %v5647 = vpack.c.b16 %v5327, %v5323
    %v5648 = vpack.c.b16 %v5332, %v5328
    %v5649 = vpack.c.b16 %v5333, %v5329
    %v5650 = vpack.c.b16 %v5334, %v5330
    %v5651 = vpack.c.b16 %v5335, %v5331
    %v5652 = vpack.c.b16 %v5340, %v5336
    %v5653 = vpack.c.b16 %v5341, %v5337
    %v5654 = vpack.c.b16 %v5342, %v5338
    %v5655 = vpack.c.b16 %v5343, %v5339
    %v5656 = vpack.c.b16 %v5348, %v5344
    %v5657 = vpack.c.b16 %v5349, %v5345
    %v5658 = vpack.c.b16 %v5350, %v5346
    %v5659 = vpack.c.b16 %v5351, %v5347
    %v5660 = vpack.c.b16 %v5356, %v5352
    %v5661 = vpack.c.b16 %v5357, %v5353
    %v5662 = vpack.c.b16 %v5358, %v5354
    %v5663 = vpack.c.b16 %v5359, %v5355
    %v5664 = vpack.c.b16 %v5364, %v5360
    %v5665 = vpack.c.b16 %v5365, %v5361
    %v5666 = vpack.c.b16 %v5366, %v5362
    %v5667 = vpack.c.b16 %v5367, %v5363
    %v5668 = vpack.c.b16 %v5372, %v5368
    %v5669 = vpack.c.b16 %v5373, %v5369
    %v5670 = vpack.c.b16 %v5374, %v5370
    %v5671 = vpack.c.b16 %v5375, %v5371
    %v5672 = vpack.c.b16 %v5380, %v5376
    %v5673 = vpack.c.b16 %v5381, %v5377
    %v5674 = vpack.c.b16 %v5382, %v5378
    %v5675 = vpack.c.b16 %v5383, %v5379
    %v5676 = vpack.c.b16 %v5388, %v5384
    %v5677 = vpack.c.b16 %v5389, %v5385
    %v5678 = vpack.c.b16 %v5390, %v5386
    %v5679 = vpack.c.b16 %v5391, %v5387
    %v5680 = vpack.c.b16 %v5396, %v5392
    %v5681 = vpack.c.b16 %v5397, %v5393
    %v5682 = vpack.c.b16 %v5398, %v5394
    %v5683 = vpack.c.b16 %v5399, %v5395
    %v5684 = vpack.c.b16 %v5404, %v5400
    %v5685 = vpack.c.b16 %v5405, %v5401
    %v5686 = vpack.c.b16 %v5406, %v5402
    %v5687 = vpack.c.b16 %v5407, %v5403
    %v5688 = vpack.c.b16 %v5412, %v5408
    %v5689 = vpack.c.b16 %v5413, %v5409
    %v5690 = vpack.c.b16 %v5414, %v5410
    %v5691 = vpack.c.b16 %v5415, %v5411
    %v5692 = vpack.c.b16 %v5420, %v5416
    %v5693 = vpack.c.b16 %v5421, %v5417
    %v5694 = vpack.c.b16 %v5422, %v5418
    %v5695 = vpack.c.b16 %v5423, %v5419
    %v5696 = vpack.c.b16 %v5428, %v5424
    %v5697 = vpack.c.b16 %v5429, %v5425
    %v5698 = vpack.c.b16 %v5430, %v5426
    %v5699 = vpack.c.b16 %v5431, %v5427
    %v5700 = vpack.c.b16 %v5436, %v5432
    %v5701 = vpack.c.b16 %v5437, %v5433
    %v5702 = vpack.c.b16 %v5438, %v5434
    %v5703 = vpack.c.b16 %v5439, %v5435
    %v5704 = vpack.c.b16 %v5444, %v5440
    %v5705 = vpack.c.b16 %v5445, %v5441
    %v5706 = vpack.c.b16 %v5446, %v5442
    %v5707 = vpack.c.b16 %v5447, %v5443
    %v5708 = vpack.c.b16 %v5452, %v5448
    %v5709 = vpack.c.b16 %v5453, %v5449
    %v5710 = vpack.c.b16 %v5454, %v5450
    %v5711 = vpack.c.b16 %v5455, %v5451
    %v5712 = vpack.c.b16 %v5460, %v5456
    %v5713 = vpack.c.b16 %v5461, %v5457
    %v5714 = vpack.c.b16 %v5462, %v5458
    %v5715 = vpack.c.b16 %v5463, %v5459
    %v5716 = vpack.c.b16 %v5468, %v5464
    %v5717 = vpack.c.b16 %v5469, %v5465
    %v5718 = vpack.c.b16 %v5470, %v5466
    %v5719 = vpack.c.b16 %v5471, %v5467
    %v5720 = vpack.c.b16 %v5476, %v5472
    %v5721 = vpack.c.b16 %v5477, %v5473
    %v5722 = vpack.c.b16 %v5478, %v5474
    %v5723 = vpack.c.b16 %v5479, %v5475
    %v5724 = vpack.c.b16 %v5484, %v5480
    %v5725 = vpack.c.b16 %v5485, %v5481
    %v5726 = vpack.c.b16 %v5486, %v5482
    %v5727 = vpack.c.b16 %v5487, %v5483
    %v5728 = vpack.c.b16 %v5492, %v5488
    %v5729 = vpack.c.b16 %v5493, %v5489
    %v5730 = vpack.c.b16 %v5494, %v5490
    %v5731 = vpack.c.b16 %v5495, %v5491
    %v5732 = vpack.c.b16 %v5500, %v5496
    %v5733 = vpack.c.b16 %v5501, %v5497
    %v5734 = vpack.c.b16 %v5502, %v5498
    %v5735 = vpack.c.b16 %v5503, %v5499
    %v5736 = vpack.c.b16 %v5508, %v5504
    %v5737 = vpack.c.b16 %v5509, %v5505
    %v5738 = vpack.c.b16 %v5510, %v5506
    %v5739 = vpack.c.b16 %v5511, %v5507
    %v5740 = vpack.c.b16 %v5516, %v5512
    %v5741 = vpack.c.b16 %v5517, %v5513
    %v5742 = vpack.c.b16 %v5518, %v5514
    %v5743 = vpack.c.b16 %v5519, %v5515
    %v5744 = vpack.c.b16 %v5524, %v5520
    %v5745 = vpack.c.b16 %v5525, %v5521
    %v5746 = vpack.c.b16 %v5526, %v5522
    %v5747 = vpack.c.b16 %v5527, %v5523
    %v5748 = vpack.c.b16 %v5532, %v5528
    %v5749 = vpack.c.b16 %v5533, %v5529
    %v5750 = vpack.c.b16 %v5534, %v5530
    %v5751 = vpack.c.b16 %v5535, %v5531
    %v5752 = vpack.c.b16 %v5540, %v5536
    %v5753 = vpack.c.b16 %v5541, %v5537
    %v5754 = vpack.c.b16 %v5542, %v5538
    %v5755 = vpack.c.b16 %v5543, %v5539
    %v5756 = vpack.c.b16 %v5548, %v5544
    %v5757 = vpack.c.b16 %v5549, %v5545
    %v5758 = vpack.c.b16 %v5550, %v5546
    %v5759 = vpack.c.b16 %v5551, %v5547
    %v5760 = vpack.c.b16 %v5556, %v5552
    %v5761 = vpack.c.b16 %v5557, %v5553
    %v5762 = vpack.c.b16 %v5558, %v5554
    %v5763 = vpack.c.b16 %v5559, %v5555
    %v5764 = vpack.c.b16 %v5564, %v5560
    %v5765 = vpack.c.b16 %v5565, %v5561
    %v5766 = vpack.c.b16 %v5566, %v5562
    %v5767 = vpack.c.b16 %v5567, %v5563
    %v5768 = vpack.c.b16 %v5572, %v5568
    %v5769 = vpack.c.b16 %v5573, %v5569
    %v5770 = vpack.c.b16 %v5574, %v5570
    %v5771 = vpack.c.b16 %v5575, %v5571
    %v5772 = vpack.c.b16 %v5580, %v5576
    %v5773 = vpack.c.b16 %v5581, %v5577
    %v5774 = vpack.c.b16 %v5582, %v5578
    %v5775 = vpack.c.b16 %v5583, %v5579
    %5968 = vmatpush.bf16.msra.mxu0 %v5612
    %5969 = vmatpush.bf16.msra.mxu0 %v5608
    %5970 = vmatpush.bf16.msra.mxu0 %v5604
    %5971 = vmatpush.bf16.msra.mxu0 %v5600
    %5972 = vmatpush.bf16.msra.mxu0 %v5596
    %5973 = vmatpush.bf16.msra.mxu0 %v5592
    %5974 = vmatpush.bf16.msra.mxu0 %v5588
    %5975 = vmatpush.bf16.msra.mxu0 %v5584
    %5976 = vmatmul.bf16.gmra.mxu0 %v4996
    %v5977 = vpop.f32.mrf.mxu0
    %v5978 = vadd.f32 0.0, %v5977
    %v5979 = vpop.f32.mrf.mxu0
    %v5980 = vadd.f32 0.0, %v5979
    %5981 = vdwg.mxu0
    %5982 = vmatpush.bf16.msra.mxu0 %v5644
    %5983 = vmatpush.bf16.msra.mxu0 %v5640
    %5984 = vmatpush.bf16.msra.mxu0 %v5636
    %5985 = vmatpush.bf16.msra.mxu0 %v5632
    %5986 = vmatpush.bf16.msra.mxu0 %v5628
    %5987 = vmatpush.bf16.msra.mxu0 %v5624
    %5988 = vmatpush.bf16.msra.mxu0 %v5620
    %5989 = vmatpush.bf16.msra.mxu0 %v5616
    %5990 = vmatmul.bf16.gmra.mxu0 %v4997
    %v5991 = vpop.f32.mrf.mxu0
    %v5992 = vadd.f32 %v5978, %v5991
    %v5993 = vpop.f32.mrf.mxu0
    %v5994 = vadd.f32 %v5980, %v5993
    %5995 = vdwg.mxu0
    %5996 = vmatpush.bf16.msra.mxu0 %v5676
    %5997 = vmatpush.bf16.msra.mxu0 %v5672
    %5998 = vmatpush.bf16.msra.mxu0 %v5668
    %5999 = vmatpush.bf16.msra.mxu0 %v5664
    %6000 = vmatpush.bf16.msra.mxu0 %v5660
    %6001 = vmatpush.bf16.msra.mxu0 %v5656
    %6002 = vmatpush.bf16.msra.mxu0 %v5652
    %6003 = vmatpush.bf16.msra.mxu0 %v5648
    %6004 = vmatmul.bf16.gmra.mxu0 %v4998
    %v6005 = vpop.f32.mrf.mxu0
    %v6006 = vadd.f32 %v5992, %v6005
    %v6007 = vpop.f32.mrf.mxu0
    %v6008 = vadd.f32 %v5994, %v6007
    %6009 = vdwg.mxu0
    %6010 = vmatpush.bf16.msra.mxu0 %v5708
    %6011 = vmatpush.bf16.msra.mxu0 %v5704
    %6012 = vmatpush.bf16.msra.mxu0 %v5700
    %6013 = vmatpush.bf16.msra.mxu0 %v5696
    %6014 = vmatpush.bf16.msra.mxu0 %v5692
    %6015 = vmatpush.bf16.msra.mxu0 %v5688
    %6016 = vmatpush.bf16.msra.mxu0 %v5684
    %6017 = vmatpush.bf16.msra.mxu0 %v5680
    %6018 = vmatmul.bf16.gmra.mxu0 %v4999
    %v6019 = vpop.f32.mrf.mxu0
    %v6020 = vadd.f32 %v6006, %v6019
    %v6021 = vpop.f32.mrf.mxu0
    %v6022 = vadd.f32 %v6008, %v6021
    %6023 = vdwg.mxu0
    %6024 = vmatpush.bf16.msra.mxu0 %v5740
    %6025 = vmatpush.bf16.msra.mxu0 %v5736
    %6026 = vmatpush.bf16.msra.mxu0 %v5732
    %6027 = vmatpush.bf16.msra.mxu0 %v5728
    %6028 = vmatpush.bf16.msra.mxu0 %v5724
    %6029 = vmatpush.bf16.msra.mxu0 %v5720
    %6030 = vmatpush.bf16.msra.mxu0 %v5716
    %6031 = vmatpush.bf16.msra.mxu0 %v5712
    %6032 = vmatmul.bf16.gmra.mxu0 %v5000
    %v6033 = vpop.f32.mrf.mxu0
    %v6034 = vadd.f32 %v6020, %v6033
    %v6035 = vpop.f32.mrf.mxu0
    %v6036 = vadd.f32 %v6022, %v6035
    %6037 = vdwg.mxu0
    %6038 = vmatpush.bf16.msra.mxu0 %v5772
    %6039 = vmatpush.bf16.msra.mxu0 %v5768
    %6040 = vmatpush.bf16.msra.mxu0 %v5764
    %6041 = vmatpush.bf16.msra.mxu0 %v5760
    %6042 = vmatpush.bf16.msra.mxu0 %v5756
    %6043 = vmatpush.bf16.msra.mxu0 %v5752
    %6044 = vmatpush.bf16.msra.mxu0 %v5748
    %6045 = vmatpush.bf16.msra.mxu0 %v5744
    %6046 = vmatmul.bf16.gmra.mxu0 %v5001
    %v6047 = vpop.f32.mrf.mxu0
    %v6048 = vadd.f32 %v6034, %v6047
    %v6049 = vpop.f32.mrf.mxu0
    %v6050 = vadd.f32 %v6036, %v6049
    %6051 = vdwg.mxu0
    %6052 = vmatpush.bf16.msra.mxu0 %v5613
    %6053 = vmatpush.bf16.msra.mxu0 %v5609
    %6054 = vmatpush.bf16.msra.mxu0 %v5605
    %6055 = vmatpush.bf16.msra.mxu0 %v5601
    %6056 = vmatpush.bf16.msra.mxu0 %v5597
    %6057 = vmatpush.bf16.msra.mxu0 %v5593
    %6058 = vmatpush.bf16.msra.mxu0 %v5589
    %6059 = vmatpush.bf16.msra.mxu0 %v5585
    %6060 = vmatmul.bf16.gmra.mxu0 %v4996
    %v6061 = vpop.f32.mrf.mxu0
    %v6062 = vadd.f32 0.0, %v6061
    %v6063 = vpop.f32.mrf.mxu0
    %v6064 = vadd.f32 0.0, %v6063
    %6065 = vdwg.mxu0
    %6066 = vmatpush.bf16.msra.mxu0 %v5645
    %6067 = vmatpush.bf16.msra.mxu0 %v5641
    %6068 = vmatpush.bf16.msra.mxu0 %v5637
    %6069 = vmatpush.bf16.msra.mxu0 %v5633
    %6070 = vmatpush.bf16.msra.mxu0 %v5629
    %6071 = vmatpush.bf16.msra.mxu0 %v5625
    %6072 = vmatpush.bf16.msra.mxu0 %v5621
    %6073 = vmatpush.bf16.msra.mxu0 %v5617
    %6074 = vmatmul.bf16.gmra.mxu0 %v4997
    %v6075 = vpop.f32.mrf.mxu0
    %v6076 = vadd.f32 %v6062, %v6075
    %v6077 = vpop.f32.mrf.mxu0
    %v6078 = vadd.f32 %v6064, %v6077
    %6079 = vdwg.mxu0
    %6080 = vmatpush.bf16.msra.mxu0 %v5677
    %6081 = vmatpush.bf16.msra.mxu0 %v5673
    %6082 = vmatpush.bf16.msra.mxu0 %v5669
    %6083 = vmatpush.bf16.msra.mxu0 %v5665
    %6084 = vmatpush.bf16.msra.mxu0 %v5661
    %6085 = vmatpush.bf16.msra.mxu0 %v5657
    %6086 = vmatpush.bf16.msra.mxu0 %v5653
    %6087 = vmatpush.bf16.msra.mxu0 %v5649
    %6088 = vmatmul.bf16.gmra.mxu0 %v4998
    %v6089 = vpop.f32.mrf.mxu0
    %v6090 = vadd.f32 %v6076, %v6089
    %v6091 = vpop.f32.mrf.mxu0
    %v6092 = vadd.f32 %v6078, %v6091
    %6093 = vdwg.mxu0
    %6094 = vmatpush.bf16.msra.mxu0 %v5709
    %6095 = vmatpush.bf16.msra.mxu0 %v5705
    %6096 = vmatpush.bf16.msra.mxu0 %v5701
    %6097 = vmatpush.bf16.msra.mxu0 %v5697
    %6098 = vmatpush.bf16.msra.mxu0 %v5693
    %6099 = vmatpush.bf16.msra.mxu0 %v5689
    %6100 = vmatpush.bf16.msra.mxu0 %v5685
    %6101 = vmatpush.bf16.msra.mxu0 %v5681
    %6102 = vmatmul.bf16.gmra.mxu0 %v4999
    %v6103 = vpop.f32.mrf.mxu0
    %v6104 = vadd.f32 %v6090, %v6103
    %v6105 = vpop.f32.mrf.mxu0
    %v6106 = vadd.f32 %v6092, %v6105
    %6107 = vdwg.mxu0
    %6108 = vmatpush.bf16.msra.mxu0 %v5741
    %6109 = vmatpush.bf16.msra.mxu0 %v5737
    %6110 = vmatpush.bf16.msra.mxu0 %v5733
    %6111 = vmatpush.bf16.msra.mxu0 %v5729
    %6112 = vmatpush.bf16.msra.mxu0 %v5725
    %6113 = vmatpush.bf16.msra.mxu0 %v5721
    %6114 = vmatpush.bf16.msra.mxu0 %v5717
    %6115 = vmatpush.bf16.msra.mxu0 %v5713
    %6116 = vmatmul.bf16.gmra.mxu0 %v5000
    %v6117 = vpop.f32.mrf.mxu0
    %v6118 = vadd.f32 %v6104, %v6117
    %v6119 = vpop.f32.mrf.mxu0
    %v6120 = vadd.f32 %v6106, %v6119
    %6121 = vdwg.mxu0
    %6122 = vmatpush.bf16.msra.mxu0 %v5773
    %6123 = vmatpush.bf16.msra.mxu0 %v5769
    %6124 = vmatpush.bf16.msra.mxu0 %v5765
    %6125 = vmatpush.bf16.msra.mxu0 %v5761
    %6126 = vmatpush.bf16.msra.mxu0 %v5757
    %6127 = vmatpush.bf16.msra.mxu0 %v5753
    %6128 = vmatpush.bf16.msra.mxu0 %v5749
    %6129 = vmatpush.bf16.msra.mxu0 %v5745
    %6130 = vmatmul.bf16.gmra.mxu0 %v5001
    %v6131 = vpop.f32.mrf.mxu0
    %v6132 = vadd.f32 %v6118, %v6131
    %v6133 = vpop.f32.mrf.mxu0
    %v6134 = vadd.f32 %v6120, %v6133
    %6135 = vdwg.mxu0
    %6136 = vmatpush.bf16.msra.mxu0 %v5614
    %6137 = vmatpush.bf16.msra.mxu0 %v5610
    %6138 = vmatpush.bf16.msra.mxu0 %v5606
    %6139 = vmatpush.bf16.msra.mxu0 %v5602
    %6140 = vmatpush.bf16.msra.mxu0 %v5598
    %6141 = vmatpush.bf16.msra.mxu0 %v5594
    %6142 = vmatpush.bf16.msra.mxu0 %v5590
    %6143 = vmatpush.bf16.msra.mxu0 %v5586
    %6144 = vmatmul.bf16.gmra.mxu0 %v4996
    %v6145 = vpop.f32.mrf.mxu0
    %v6146 = vadd.f32 0.0, %v6145
    %v6147 = vpop.f32.mrf.mxu0
    %v6148 = vadd.f32 0.0, %v6147
    %6149 = vdwg.mxu0
    %6150 = vmatpush.bf16.msra.mxu0 %v5646
    %6151 = vmatpush.bf16.msra.mxu0 %v5642
    %6152 = vmatpush.bf16.msra.mxu0 %v5638
    %6153 = vmatpush.bf16.msra.mxu0 %v5634
    %6154 = vmatpush.bf16.msra.mxu0 %v5630
    %6155 = vmatpush.bf16.msra.mxu0 %v5626
    %6156 = vmatpush.bf16.msra.mxu0 %v5622
    %6157 = vmatpush.bf16.msra.mxu0 %v5618
    %6158 = vmatmul.bf16.gmra.mxu0 %v4997
    %v6159 = vpop.f32.mrf.mxu0
    %v6160 = vadd.f32 %v6146, %v6159
    %v6161 = vpop.f32.mrf.mxu0
    %v6162 = vadd.f32 %v6148, %v6161
    %6163 = vdwg.mxu0
    %6164 = vmatpush.bf16.msra.mxu0 %v5678
    %6165 = vmatpush.bf16.msra.mxu0 %v5674
    %6166 = vmatpush.bf16.msra.mxu0 %v5670
    %6167 = vmatpush.bf16.msra.mxu0 %v5666
    %6168 = vmatpush.bf16.msra.mxu0 %v5662
    %6169 = vmatpush.bf16.msra.mxu0 %v5658
    %6170 = vmatpush.bf16.msra.mxu0 %v5654
    %6171 = vmatpush.bf16.msra.mxu0 %v5650
    %6172 = vmatmul.bf16.gmra.mxu0 %v4998
    %v6173 = vpop.f32.mrf.mxu0
    %v6174 = vadd.f32 %v6160, %v6173
    %v6175 = vpop.f32.mrf.mxu0
    %v6176 = vadd.f32 %v6162, %v6175
    %6177 = vdwg.mxu0
    %6178 = vmatpush.bf16.msra.mxu0 %v5710
    %6179 = vmatpush.bf16.msra.mxu0 %v5706
    %6180 = vmatpush.bf16.msra.mxu0 %v5702
    %6181 = vmatpush.bf16.msra.mxu0 %v5698
    %6182 = vmatpush.bf16.msra.mxu0 %v5694
    %6183 = vmatpush.bf16.msra.mxu0 %v5690
    %6184 = vmatpush.bf16.msra.mxu0 %v5686
    %6185 = vmatpush.bf16.msra.mxu0 %v5682
    %6186 = vmatmul.bf16.gmra.mxu0 %v4999
    %v6187 = vpop.f32.mrf.mxu0
    %v6188 = vadd.f32 %v6174, %v6187
    %v6189 = vpop.f32.mrf.mxu0
    %v6190 = vadd.f32 %v6176, %v6189
    %6191 = vdwg.mxu0
    %6192 = vmatpush.bf16.msra.mxu0 %v5742
    %6193 = vmatpush.bf16.msra.mxu0 %v5738
    %6194 = vmatpush.bf16.msra.mxu0 %v5734
    %6195 = vmatpush.bf16.msra.mxu0 %v5730
    %6196 = vmatpush.bf16.msra.mxu0 %v5726
    %6197 = vmatpush.bf16.msra.mxu0 %v5722
    %6198 = vmatpush.bf16.msra.mxu0 %v5718
    %6199 = vmatpush.bf16.msra.mxu0 %v5714
    %6200 = vmatmul.bf16.gmra.mxu0 %v5000
    %v6201 = vpop.f32.mrf.mxu0
    %v6202 = vadd.f32 %v6188, %v6201
    %v6203 = vpop.f32.mrf.mxu0
    %v6204 = vadd.f32 %v6190, %v6203
    %6205 = vdwg.mxu0
    %6206 = vmatpush.bf16.msra.mxu0 %v5774
    %6207 = vmatpush.bf16.msra.mxu0 %v5770
    %6208 = vmatpush.bf16.msra.mxu0 %v5766
    %6209 = vmatpush.bf16.msra.mxu0 %v5762
    %6210 = vmatpush.bf16.msra.mxu0 %v5758
    %6211 = vmatpush.bf16.msra.mxu0 %v5754
    %6212 = vmatpush.bf16.msra.mxu0 %v5750
    %6213 = vmatpush.bf16.msra.mxu0 %v5746
    %6214 = vmatmul.bf16.gmra.mxu0 %v5001
    %v6215 = vpop.f32.mrf.mxu0
    %v6216 = vadd.f32 %v6202, %v6215
    %v6217 = vpop.f32.mrf.mxu0
    %v6218 = vadd.f32 %v6204, %v6217
    %6219 = vdwg.mxu0
    %6220 = vmatpush.bf16.msra.mxu0 %v5615
    %6221 = vmatpush.bf16.msra.mxu0 %v5611
    %6222 = vmatpush.bf16.msra.mxu0 %v5607
    %6223 = vmatpush.bf16.msra.mxu0 %v5603
    %6224 = vmatpush.bf16.msra.mxu0 %v5599
    %6225 = vmatpush.bf16.msra.mxu0 %v5595
    %6226 = vmatpush.bf16.msra.mxu0 %v5591
    %6227 = vmatpush.bf16.msra.mxu0 %v5587
    %6228 = vmatmul.bf16.gmra.mxu0 %v4996
    %v6229 = vpop.f32.mrf.mxu0
    %v6230 = vadd.f32 0.0, %v6229
    %v6231 = vpop.f32.mrf.mxu0
    %v6232 = vadd.f32 0.0, %v6231
    %6233 = vdwg.mxu0
    %6234 = vmatpush.bf16.msra.mxu0 %v5647
    %6235 = vmatpush.bf16.msra.mxu0 %v5643
    %6236 = vmatpush.bf16.msra.mxu0 %v5639
    %6237 = vmatpush.bf16.msra.mxu0 %v5635
    %6238 = vmatpush.bf16.msra.mxu0 %v5631
    %6239 = vmatpush.bf16.msra.mxu0 %v5627
    %6240 = vmatpush.bf16.msra.mxu0 %v5623
    %6241 = vmatpush.bf16.msra.mxu0 %v5619
    %6242 = vmatmul.bf16.gmra.mxu0 %v4997
    %v6243 = vpop.f32.mrf.mxu0
    %v6244 = vadd.f32 %v6230, %v6243
    %v6245 = vpop.f32.mrf.mxu0
    %v6246 = vadd.f32 %v6232, %v6245
    %6247 = vdwg.mxu0
    %6248 = vmatpush.bf16.msra.mxu0 %v5679
    %6249 = vmatpush.bf16.msra.mxu0 %v5675
    %6250 = vmatpush.bf16.msra.mxu0 %v5671
    %6251 = vmatpush.bf16.msra.mxu0 %v5667
    %6252 = vmatpush.bf16.msra.mxu0 %v5663
    %6253 = vmatpush.bf16.msra.mxu0 %v5659
    %6254 = vmatpush.bf16.msra.mxu0 %v5655
    %6255 = vmatpush.bf16.msra.mxu0 %v5651
    %6256 = vmatmul.bf16.gmra.mxu0 %v4998
    %v6257 = vpop.f32.mrf.mxu0
    %v6258 = vadd.f32 %v6244, %v6257
    %v6259 = vpop.f32.mrf.mxu0
    %v6260 = vadd.f32 %v6246, %v6259
    %6261 = vdwg.mxu0
    %6262 = vmatpush.bf16.msra.mxu0 %v5711
    %6263 = vmatpush.bf16.msra.mxu0 %v5707
    %6264 = vmatpush.bf16.msra.mxu0 %v5703
    %6265 = vmatpush.bf16.msra.mxu0 %v5699
    %6266 = vmatpush.bf16.msra.mxu0 %v5695
    %6267 = vmatpush.bf16.msra.mxu0 %v5691
    %6268 = vmatpush.bf16.msra.mxu0 %v5687
    %6269 = vmatpush.bf16.msra.mxu0 %v5683
    %6270 = vmatmul.bf16.gmra.mxu0 %v4999
    %v6271 = vpop.f32.mrf.mxu0
    %v6272 = vadd.f32 %v6258, %v6271
    %v6273 = vpop.f32.mrf.mxu0
    %v6274 = vadd.f32 %v6260, %v6273
    %6275 = vdwg.mxu0
    %6276 = vmatpush.bf16.msra.mxu0 %v5743
    %6277 = vmatpush.bf16.msra.mxu0 %v5739
    %6278 = vmatpush.bf16.msra.mxu0 %v5735
    %6279 = vmatpush.bf16.msra.mxu0 %v5731
    %6280 = vmatpush.bf16.msra.mxu0 %v5727
    %6281 = vmatpush.bf16.msra.mxu0 %v5723
    %6282 = vmatpush.bf16.msra.mxu0 %v5719
    %6283 = vmatpush.bf16.msra.mxu0 %v5715
    %6284 = vmatmul.bf16.gmra.mxu0 %v5000
    %v6285 = vpop.f32.mrf.mxu0
    %v6286 = vadd.f32 %v6272, %v6285
    %v6287 = vpop.f32.mrf.mxu0
    %v6288 = vadd.f32 %v6274, %v6287
    %6289 = vdwg.mxu0
    %6290 = vmatpush.bf16.msra.mxu0 %v5775
    %6291 = vmatpush.bf16.msra.mxu0 %v5771
    %6292 = vmatpush.bf16.msra.mxu0 %v5767
    %6293 = vmatpush.bf16.msra.mxu0 %v5763
    %6294 = vmatpush.bf16.msra.mxu0 %v5759
    %6295 = vmatpush.bf16.msra.mxu0 %v5755
    %6296 = vmatpush.bf16.msra.mxu0 %v5751
    %6297 = vmatpush.bf16.msra.mxu0 %v5747
    %6298 = vmatmul.bf16.gmra.mxu0 %v5001
    %v6299 = vpop.f32.mrf.mxu0
    %v6300 = vadd.f32 %v6286, %v6299
    %v6301 = vpop.f32.mrf.mxu0
    %v6302 = vadd.f32 %v6288, %v6301
    %6303 = vdwg.mxu0
    %v6304 = vadd.f32 %v4720, %v6048
    %v6305 = vadd.f32 %v4721, %v6132
    %v6306 = vadd.f32 %v4722, %v6216
    %v6307 = vadd.f32 %v4723, %v6300
    %v6308 = vadd.f32 %v4724, %v6050
    %v6309 = vadd.f32 %v4725, %v6134
    %v6310 = vadd.f32 %v4726, %v6218
    %v6311 = vadd.f32 %v4727, %v6302
    %vm6312 = vcmask 1041408
    %vm6313 = vcmask 1045508
    %vm6314 = vmor %vm6312, %vm6313
    %v6315 = vrot.slane %v44, 6
    %v6316 = vrot.slane %v6315, 4
    %v6317 = vrot.slane %v47, 6
    %v6318 = vsel %vm6314, %v6316, %v6317
    %v6319 = vrot.slane %v45, 6
    %v6320 = vrot.slane %v6319, 4
    %v6321 = vrot.slane %v48, 6
    %v6322 = vsel %vm6314, %v6320, %v6321
    %v6323 = vrot.slane %v46, 6
    %v6324 = vrot.slane %v6323, 4
    %v6325 = vrot.slane %v49, 6
    %v6326 = vsel %vm6314, %v6324, %v6325
    %v6327 = vrot.slane %v50, 6
    %v6328 = vrot.slane %v6327, 4
    %v6329 = vrot.slane %v53, 6
    %v6330 = vsel %vm6314, %v6328, %v6329
    %v6331 = vrot.slane %v51, 6
    %v6332 = vrot.slane %v6331, 4
    %v6333 = vrot.slane %v54, 6
    %v6334 = vsel %vm6314, %v6332, %v6333
    %v6335 = vrot.slane %v52, 6
    %v6336 = vrot.slane %v6335, 4
    %v6337 = vrot.slane %v55, 6
    %v6338 = vsel %vm6314, %v6336, %v6337
    %s6339 = scalar_lea.vmem [#allocation2], 6144
    %v6340 = vld [vmem:[%s6339] sm:$0xff]
    %v6341 = vld [vmem:[%s6339 + $0x8] sm:$0xff]
    %v6342 = vld [vmem:[%s6339 + $0x10] sm:$0xff]
    %v6343 = vld [vmem:[%s6339 + $0x18] sm:$0xff]
    %v6344 = vld [vmem:[%s6339 + $0x20] sm:$0xff]
    %v6345 = vld [vmem:[%s6339 + $0x28] sm:$0xff]
    %v6346 = vld [vmem:[%s6339 + $0x30] sm:$0xff]
    %v6347 = vld [vmem:[%s6339 + $0x38] sm:$0xff]
    %v6348 = vld [vmem:[%s6339 + $0x40] sm:$0xff]
    %v6349 = vld [vmem:[%s6339 + $0x48] sm:$0xff]
    %v6350 = vld [vmem:[%s6339 + $0x50] sm:$0xff]
    %v6351 = vld [vmem:[%s6339 + $0x58] sm:$0xff]
    %v6352 = vld [vmem:[%s6339 + $0x60] sm:$0xff]
    %v6353 = vld [vmem:[%s6339 + $0x68] sm:$0xff]
    %v6354 = vld [vmem:[%s6339 + $0x70] sm:$0xff]
    %v6355 = vld [vmem:[%s6339 + $0x78] sm:$0xff]
    %v6356 = vld [vmem:[%s6339 + $0x80] sm:$0xff]
    %v6357 = vld [vmem:[%s6339 + $0x88] sm:$0xff]
    %v6358 = vld [vmem:[%s6339 + $0x90] sm:$0xff]
    %v6359 = vld [vmem:[%s6339 + $0x98] sm:$0xff]
    %v6360 = vld [vmem:[%s6339 + $0xa0] sm:$0xff]
    %v6361 = vld [vmem:[%s6339 + $0xa8] sm:$0xff]
    %v6362 = vld [vmem:[%s6339 + $0xb0] sm:$0xff]
    %v6363 = vld [vmem:[%s6339 + $0xb8] sm:$0xff]
    %v6364 = vld [vmem:[%s6339 + $0xc0] sm:$0xff]
    %v6365 = vld [vmem:[%s6339 + $0xc8] sm:$0xff]
    %v6366 = vld [vmem:[%s6339 + $0xd0] sm:$0xff]
    %v6367 = vld [vmem:[%s6339 + $0xd8] sm:$0xff]
    %v6368 = vld [vmem:[%s6339 + $0xe0] sm:$0xff]
    %v6369 = vld [vmem:[%s6339 + $0xe8] sm:$0xff]
    %v6370 = vld [vmem:[%s6339 + $0xf0] sm:$0xff]
    %v6371 = vld [vmem:[%s6339 + $0xf8] sm:$0xff]
    %v6372 = vld [vmem:[%s6339 + $0x100] sm:$0xff]
    %v6373 = vld [vmem:[%s6339 + $0x108] sm:$0xff]
    %v6374 = vld [vmem:[%s6339 + $0x110] sm:$0xff]
    %v6375 = vld [vmem:[%s6339 + $0x118] sm:$0xff]
    %v6376 = vld [vmem:[%s6339 + $0x120] sm:$0xff]
    %v6377 = vld [vmem:[%s6339 + $0x128] sm:$0xff]
    %v6378 = vld [vmem:[%s6339 + $0x130] sm:$0xff]
    %v6379 = vld [vmem:[%s6339 + $0x138] sm:$0xff]
    %v6380 = vld [vmem:[%s6339 + $0x140] sm:$0xff]
    %v6381 = vld [vmem:[%s6339 + $0x148] sm:$0xff]
    %v6382 = vld [vmem:[%s6339 + $0x150] sm:$0xff]
    %v6383 = vld [vmem:[%s6339 + $0x158] sm:$0xff]
    %v6384 = vld [vmem:[%s6339 + $0x160] sm:$0xff]
    %v6385 = vld [vmem:[%s6339 + $0x168] sm:$0xff]
    %v6386 = vld [vmem:[%s6339 + $0x170] sm:$0xff]
    %v6387 = vld [vmem:[%s6339 + $0x178] sm:$0xff]
    %v6388 = vld [vmem:[%s6339 + $0x180] sm:$0xff]
    %v6389 = vld [vmem:[%s6339 + $0x188] sm:$0xff]
    %v6390 = vld [vmem:[%s6339 + $0x190] sm:$0xff]
    %v6391 = vld [vmem:[%s6339 + $0x198] sm:$0xff]
    %v6392 = vld [vmem:[%s6339 + $0x1a0] sm:$0xff]
    %v6393 = vld [vmem:[%s6339 + $0x1a8] sm:$0xff]
    %v6394 = vld [vmem:[%s6339 + $0x1b0] sm:$0xff]
    %v6395 = vld [vmem:[%s6339 + $0x1b8] sm:$0xff]
    %v6396 = vld [vmem:[%s6339 + $0x1c0] sm:$0xff]
    %v6397 = vld [vmem:[%s6339 + $0x1c8] sm:$0xff]
    %v6398 = vld [vmem:[%s6339 + $0x1d0] sm:$0xff]
    %v6399 = vld [vmem:[%s6339 + $0x1d8] sm:$0xff]
    %v6400 = vld [vmem:[%s6339 + $0x1e0] sm:$0xff]
    %v6401 = vld [vmem:[%s6339 + $0x1e8] sm:$0xff]
    %v6402 = vld [vmem:[%s6339 + $0x1f0] sm:$0xff]
    %v6403 = vld [vmem:[%s6339 + $0x1f8] sm:$0xff]
    %v6404 = vld [vmem:[%s6339 + $0x200] sm:$0xff]
    %v6405 = vld [vmem:[%s6339 + $0x208] sm:$0xff]
    %v6406 = vld [vmem:[%s6339 + $0x210] sm:$0xff]
    %v6407 = vld [vmem:[%s6339 + $0x218] sm:$0xff]
    %v6408 = vld [vmem:[%s6339 + $0x220] sm:$0xff]
    %v6409 = vld [vmem:[%s6339 + $0x228] sm:$0xff]
    %v6410 = vld [vmem:[%s6339 + $0x230] sm:$0xff]
    %v6411 = vld [vmem:[%s6339 + $0x238] sm:$0xff]
    %v6412 = vld [vmem:[%s6339 + $0x240] sm:$0xff]
    %v6413 = vld [vmem:[%s6339 + $0x248] sm:$0xff]
    %v6414 = vld [vmem:[%s6339 + $0x250] sm:$0xff]
    %v6415 = vld [vmem:[%s6339 + $0x258] sm:$0xff]
    %v6416 = vld [vmem:[%s6339 + $0x260] sm:$0xff]
    %v6417 = vld [vmem:[%s6339 + $0x268] sm:$0xff]
    %v6418 = vld [vmem:[%s6339 + $0x270] sm:$0xff]
    %v6419 = vld [vmem:[%s6339 + $0x278] sm:$0xff]
    %v6420 = vld [vmem:[%s6339 + $0x280] sm:$0xff]
    %v6421 = vld [vmem:[%s6339 + $0x288] sm:$0xff]
    %v6422 = vld [vmem:[%s6339 + $0x290] sm:$0xff]
    %v6423 = vld [vmem:[%s6339 + $0x298] sm:$0xff]
    %v6424 = vld [vmem:[%s6339 + $0x2a0] sm:$0xff]
    %v6425 = vld [vmem:[%s6339 + $0x2a8] sm:$0xff]
    %v6426 = vld [vmem:[%s6339 + $0x2b0] sm:$0xff]
    %v6427 = vld [vmem:[%s6339 + $0x2b8] sm:$0xff]
    %v6428 = vld [vmem:[%s6339 + $0x2c0] sm:$0xff]
    %v6429 = vld [vmem:[%s6339 + $0x2c8] sm:$0xff]
    %v6430 = vld [vmem:[%s6339 + $0x2d0] sm:$0xff]
    %v6431 = vld [vmem:[%s6339 + $0x2d8] sm:$0xff]
    %v6432 = vld [vmem:[%s6339 + $0x2e0] sm:$0xff]
    %v6433 = vld [vmem:[%s6339 + $0x2e8] sm:$0xff]
    %v6434 = vld [vmem:[%s6339 + $0x2f0] sm:$0xff]
    %v6435 = vld [vmem:[%s6339 + $0x2f8] sm:$0xff]
    %v6436 = vld [vmem:[%s6339 + $0x300] sm:$0xff]
    %v6437 = vld [vmem:[%s6339 + $0x308] sm:$0xff]
    %v6438 = vld [vmem:[%s6339 + $0x310] sm:$0xff]
    %v6439 = vld [vmem:[%s6339 + $0x318] sm:$0xff]
    %v6440 = vld [vmem:[%s6339 + $0x320] sm:$0xff]
    %v6441 = vld [vmem:[%s6339 + $0x328] sm:$0xff]
    %v6442 = vld [vmem:[%s6339 + $0x330] sm:$0xff]
    %v6443 = vld [vmem:[%s6339 + $0x338] sm:$0xff]
    %v6444 = vld [vmem:[%s6339 + $0x340] sm:$0xff]
    %v6445 = vld [vmem:[%s6339 + $0x348] sm:$0xff]
    %v6446 = vld [vmem:[%s6339 + $0x350] sm:$0xff]
    %v6447 = vld [vmem:[%s6339 + $0x358] sm:$0xff]
    %v6448 = vld [vmem:[%s6339 + $0x360] sm:$0xff]
    %v6449 = vld [vmem:[%s6339 + $0x368] sm:$0xff]
    %v6450 = vld [vmem:[%s6339 + $0x370] sm:$0xff]
    %v6451 = vld [vmem:[%s6339 + $0x378] sm:$0xff]
    %v6452 = vld [vmem:[%s6339 + $0x380] sm:$0xff]
    %v6453 = vld [vmem:[%s6339 + $0x388] sm:$0xff]
    %v6454 = vld [vmem:[%s6339 + $0x390] sm:$0xff]
    %v6455 = vld [vmem:[%s6339 + $0x398] sm:$0xff]
    %v6456 = vld [vmem:[%s6339 + $0x3a0] sm:$0xff]
    %v6457 = vld [vmem:[%s6339 + $0x3a8] sm:$0xff]
    %v6458 = vld [vmem:[%s6339 + $0x3b0] sm:$0xff]
    %v6459 = vld [vmem:[%s6339 + $0x3b8] sm:$0xff]
    %v6460 = vld [vmem:[%s6339 + $0x3c0] sm:$0xff]
    %v6461 = vld [vmem:[%s6339 + $0x3c8] sm:$0xff]
    %v6462 = vld [vmem:[%s6339 + $0x3d0] sm:$0xff]
    %v6463 = vld [vmem:[%s6339 + $0x3d8] sm:$0xff]
    %v6464 = vld [vmem:[%s6339 + $0x3e0] sm:$0xff]
    %v6465 = vld [vmem:[%s6339 + $0x3e8] sm:$0xff]
    %v6466 = vld [vmem:[%s6339 + $0x3f0] sm:$0xff]
    %v6467 = vld [vmem:[%s6339 + $0x3f8] sm:$0xff]
    %v6468 = vld [vmem:[%s6339 + $0x400] sm:$0xff]
    %v6469 = vld [vmem:[%s6339 + $0x408] sm:$0xff]
    %v6470 = vld [vmem:[%s6339 + $0x410] sm:$0xff]
    %v6471 = vld [vmem:[%s6339 + $0x418] sm:$0xff]
    %v6472 = vld [vmem:[%s6339 + $0x420] sm:$0xff]
    %v6473 = vld [vmem:[%s6339 + $0x428] sm:$0xff]
    %v6474 = vld [vmem:[%s6339 + $0x430] sm:$0xff]
    %v6475 = vld [vmem:[%s6339 + $0x438] sm:$0xff]
    %v6476 = vld [vmem:[%s6339 + $0x440] sm:$0xff]
    %v6477 = vld [vmem:[%s6339 + $0x448] sm:$0xff]
    %v6478 = vld [vmem:[%s6339 + $0x450] sm:$0xff]
    %v6479 = vld [vmem:[%s6339 + $0x458] sm:$0xff]
    %v6480 = vld [vmem:[%s6339 + $0x460] sm:$0xff]
    %v6481 = vld [vmem:[%s6339 + $0x468] sm:$0xff]
    %v6482 = vld [vmem:[%s6339 + $0x470] sm:$0xff]
    %v6483 = vld [vmem:[%s6339 + $0x478] sm:$0xff]
    %v6484 = vld [vmem:[%s6339 + $0x480] sm:$0xff]
    %v6485 = vld [vmem:[%s6339 + $0x488] sm:$0xff]
    %v6486 = vld [vmem:[%s6339 + $0x490] sm:$0xff]
    %v6487 = vld [vmem:[%s6339 + $0x498] sm:$0xff]
    %v6488 = vld [vmem:[%s6339 + $0x4a0] sm:$0xff]
    %v6489 = vld [vmem:[%s6339 + $0x4a8] sm:$0xff]
    %v6490 = vld [vmem:[%s6339 + $0x4b0] sm:$0xff]
    %v6491 = vld [vmem:[%s6339 + $0x4b8] sm:$0xff]
    %v6492 = vld [vmem:[%s6339 + $0x4c0] sm:$0xff]
    %v6493 = vld [vmem:[%s6339 + $0x4c8] sm:$0xff]
    %v6494 = vld [vmem:[%s6339 + $0x4d0] sm:$0xff]
    %v6495 = vld [vmem:[%s6339 + $0x4d8] sm:$0xff]
    %v6496 = vld [vmem:[%s6339 + $0x4e0] sm:$0xff]
    %v6497 = vld [vmem:[%s6339 + $0x4e8] sm:$0xff]
    %v6498 = vld [vmem:[%s6339 + $0x4f0] sm:$0xff]
    %v6499 = vld [vmem:[%s6339 + $0x4f8] sm:$0xff]
    %v6500 = vld [vmem:[%s6339 + $0x500] sm:$0xff]
    %v6501 = vld [vmem:[%s6339 + $0x508] sm:$0xff]
    %v6502 = vld [vmem:[%s6339 + $0x510] sm:$0xff]
    %v6503 = vld [vmem:[%s6339 + $0x518] sm:$0xff]
    %v6504 = vld [vmem:[%s6339 + $0x520] sm:$0xff]
    %v6505 = vld [vmem:[%s6339 + $0x528] sm:$0xff]
    %v6506 = vld [vmem:[%s6339 + $0x530] sm:$0xff]
    %v6507 = vld [vmem:[%s6339 + $0x538] sm:$0xff]
    %v6508 = vld [vmem:[%s6339 + $0x540] sm:$0xff]
    %v6509 = vld [vmem:[%s6339 + $0x548] sm:$0xff]
    %v6510 = vld [vmem:[%s6339 + $0x550] sm:$0xff]
    %v6511 = vld [vmem:[%s6339 + $0x558] sm:$0xff]
    %v6512 = vld [vmem:[%s6339 + $0x560] sm:$0xff]
    %v6513 = vld [vmem:[%s6339 + $0x568] sm:$0xff]
    %v6514 = vld [vmem:[%s6339 + $0x570] sm:$0xff]
    %v6515 = vld [vmem:[%s6339 + $0x578] sm:$0xff]
    %v6516 = vld [vmem:[%s6339 + $0x580] sm:$0xff]
    %v6517 = vld [vmem:[%s6339 + $0x588] sm:$0xff]
    %v6518 = vld [vmem:[%s6339 + $0x590] sm:$0xff]
    %v6519 = vld [vmem:[%s6339 + $0x598] sm:$0xff]
    %v6520 = vld [vmem:[%s6339 + $0x5a0] sm:$0xff]
    %v6521 = vld [vmem:[%s6339 + $0x5a8] sm:$0xff]
    %v6522 = vld [vmem:[%s6339 + $0x5b0] sm:$0xff]
    %v6523 = vld [vmem:[%s6339 + $0x5b8] sm:$0xff]
    %v6524 = vld [vmem:[%s6339 + $0x5c0] sm:$0xff]
    %v6525 = vld [vmem:[%s6339 + $0x5c8] sm:$0xff]
    %v6526 = vld [vmem:[%s6339 + $0x5d0] sm:$0xff]
    %v6527 = vld [vmem:[%s6339 + $0x5d8] sm:$0xff]
    %v6528 = vld [vmem:[%s6339 + $0x5e0] sm:$0xff]
    %v6529 = vld [vmem:[%s6339 + $0x5e8] sm:$0xff]
    %v6530 = vld [vmem:[%s6339 + $0x5f0] sm:$0xff]
    %v6531 = vld [vmem:[%s6339 + $0x5f8] sm:$0xff]
    %v6532 = vunpack.c.l.b16 %v6318
    %v6533 = vunpack.c.h.b16 %v6318
    %v6534 = vunpack.c.l.b16 %v6322
    %v6535 = vunpack.c.h.b16 %v6322
    %v6536 = vunpack.c.l.b16 %v6326
    %v6537 = vunpack.c.h.b16 %v6326
    %v6538 = vunpack.c.l.b16 %v6330
    %v6539 = vunpack.c.h.b16 %v6330
    %v6540 = vunpack.c.l.b16 %v6334
    %v6541 = vunpack.c.h.b16 %v6334
    %v6542 = vunpack.c.l.b16 %v6338
    %v6543 = vunpack.c.h.b16 %v6338
    %v6544 = vpack.c.b16 %v6538, %v6532
    %v6545 = vpack.c.b16 %v6539, %v6533
    %v6546 = vpack.c.b16 %v6540, %v6534
    %v6547 = vpack.c.b16 %v6541, %v6535
    %v6548 = vpack.c.b16 %v6542, %v6536
    %v6549 = vpack.c.b16 %v6543, %v6537
    %v6748 = vunpack.c.l.b16 %v6340
    %v6749 = vunpack.c.h.b16 %v6340
    %v6750 = vunpack.c.l.b16 %v6341
    %v6751 = vunpack.c.h.b16 %v6341
    %v6752 = vunpack.c.l.b16 %v6342
    %v6753 = vunpack.c.h.b16 %v6342
    %v6754 = vunpack.c.l.b16 %v6343
    %v6755 = vunpack.c.h.b16 %v6343
    %v6756 = vunpack.c.l.b16 %v6344
    %v6757 = vunpack.c.h.b16 %v6344
    %v6758 = vunpack.c.l.b16 %v6345
    %v6759 = vunpack.c.h.b16 %v6345
    %v6760 = vunpack.c.l.b16 %v6346
    %v6761 = vunpack.c.h.b16 %v6346
    %v6762 = vunpack.c.l.b16 %v6347
    %v6763 = vunpack.c.h.b16 %v6347
    %v6764 = vunpack.c.l.b16 %v6348
    %v6765 = vunpack.c.h.b16 %v6348
    %v6766 = vunpack.c.l.b16 %v6349
    %v6767 = vunpack.c.h.b16 %v6349
    %v6768 = vunpack.c.l.b16 %v6350
    %v6769 = vunpack.c.h.b16 %v6350
    %v6770 = vunpack.c.l.b16 %v6351
    %v6771 = vunpack.c.h.b16 %v6351
    %v6772 = vunpack.c.l.b16 %v6352
    %v6773 = vunpack.c.h.b16 %v6352
    %v6774 = vunpack.c.l.b16 %v6353
    %v6775 = vunpack.c.h.b16 %v6353
    %v6776 = vunpack.c.l.b16 %v6354
    %v6777 = vunpack.c.h.b16 %v6354
    %v6778 = vunpack.c.l.b16 %v6355
    %v6779 = vunpack.c.h.b16 %v6355
    %v6780 = vunpack.c.l.b16 %v6356
    %v6781 = vunpack.c.h.b16 %v6356
    %v6782 = vunpack.c.l.b16 %v6357
    %v6783 = vunpack.c.h.b16 %v6357
    %v6784 = vunpack.c.l.b16 %v6358
    %v6785 = vunpack.c.h.b16 %v6358
    %v6786 = vunpack.c.l.b16 %v6359
    %v6787 = vunpack.c.h.b16 %v6359
    %v6788 = vunpack.c.l.b16 %v6360
    %v6789 = vunpack.c.h.b16 %v6360
    %v6790 = vunpack.c.l.b16 %v6361
    %v6791 = vunpack.c.h.b16 %v6361
    %v6792 = vunpack.c.l.b16 %v6362
    %v6793 = vunpack.c.h.b16 %v6362
    %v6794 = vunpack.c.l.b16 %v6363
    %v6795 = vunpack.c.h.b16 %v6363
    %v6796 = vunpack.c.l.b16 %v6364
    %v6797 = vunpack.c.h.b16 %v6364
    %v6798 = vunpack.c.l.b16 %v6365
    %v6799 = vunpack.c.h.b16 %v6365
    %v6800 = vunpack.c.l.b16 %v6366
    %v6801 = vunpack.c.h.b16 %v6366
    %v6802 = vunpack.c.l.b16 %v6367
    %v6803 = vunpack.c.h.b16 %v6367
    %v6804 = vunpack.c.l.b16 %v6368
    %v6805 = vunpack.c.h.b16 %v6368
    %v6806 = vunpack.c.l.b16 %v6369
    %v6807 = vunpack.c.h.b16 %v6369
    %v6808 = vunpack.c.l.b16 %v6370
    %v6809 = vunpack.c.h.b16 %v6370
    %v6810 = vunpack.c.l.b16 %v6371
    %v6811 = vunpack.c.h.b16 %v6371
    %v6812 = vunpack.c.l.b16 %v6372
    %v6813 = vunpack.c.h.b16 %v6372
    %v6814 = vunpack.c.l.b16 %v6373
    %v6815 = vunpack.c.h.b16 %v6373
    %v6816 = vunpack.c.l.b16 %v6374
    %v6817 = vunpack.c.h.b16 %v6374
    %v6818 = vunpack.c.l.b16 %v6375
    %v6819 = vunpack.c.h.b16 %v6375
    %v6820 = vunpack.c.l.b16 %v6376
    %v6821 = vunpack.c.h.b16 %v6376
    %v6822 = vunpack.c.l.b16 %v6377
    %v6823 = vunpack.c.h.b16 %v6377
    %v6824 = vunpack.c.l.b16 %v6378
    %v6825 = vunpack.c.h.b16 %v6378
    %v6826 = vunpack.c.l.b16 %v6379
    %v6827 = vunpack.c.h.b16 %v6379
    %v6828 = vunpack.c.l.b16 %v6380
    %v6829 = vunpack.c.h.b16 %v6380
    %v6830 = vunpack.c.l.b16 %v6381
    %v6831 = vunpack.c.h.b16 %v6381
    %v6832 = vunpack.c.l.b16 %v6382
    %v6833 = vunpack.c.h.b16 %v6382
    %v6834 = vunpack.c.l.b16 %v6383
    %v6835 = vunpack.c.h.b16 %v6383
    %v6836 = vunpack.c.l.b16 %v6384
    %v6837 = vunpack.c.h.b16 %v6384
    %v6838 = vunpack.c.l.b16 %v6385
    %v6839 = vunpack.c.h.b16 %v6385
    %v6840 = vunpack.c.l.b16 %v6386
    %v6841 = vunpack.c.h.b16 %v6386
    %v6842 = vunpack.c.l.b16 %v6387
    %v6843 = vunpack.c.h.b16 %v6387
    %v6844 = vunpack.c.l.b16 %v6388
    %v6845 = vunpack.c.h.b16 %v6388
    %v6846 = vunpack.c.l.b16 %v6389
    %v6847 = vunpack.c.h.b16 %v6389
    %v6848 = vunpack.c.l.b16 %v6390
    %v6849 = vunpack.c.h.b16 %v6390
    %v6850 = vunpack.c.l.b16 %v6391
    %v6851 = vunpack.c.h.b16 %v6391
    %v6852 = vunpack.c.l.b16 %v6392
    %v6853 = vunpack.c.h.b16 %v6392
    %v6854 = vunpack.c.l.b16 %v6393
    %v6855 = vunpack.c.h.b16 %v6393
    %v6856 = vunpack.c.l.b16 %v6394
    %v6857 = vunpack.c.h.b16 %v6394
    %v6858 = vunpack.c.l.b16 %v6395
    %v6859 = vunpack.c.h.b16 %v6395
    %v6860 = vunpack.c.l.b16 %v6396
    %v6861 = vunpack.c.h.b16 %v6396
    %v6862 = vunpack.c.l.b16 %v6397
    %v6863 = vunpack.c.h.b16 %v6397
    %v6864 = vunpack.c.l.b16 %v6398
    %v6865 = vunpack.c.h.b16 %v6398
    %v6866 = vunpack.c.l.b16 %v6399
    %v6867 = vunpack.c.h.b16 %v6399
    %v6868 = vunpack.c.l.b16 %v6400
    %v6869 = vunpack.c.h.b16 %v6400
    %v6870 = vunpack.c.l.b16 %v6401
    %v6871 = vunpack.c.h.b16 %v6401
    %v6872 = vunpack.c.l.b16 %v6402
    %v6873 = vunpack.c.h.b16 %v6402
    %v6874 = vunpack.c.l.b16 %v6403
    %v6875 = vunpack.c.h.b16 %v6403
    %v6876 = vunpack.c.l.b16 %v6404
    %v6877 = vunpack.c.h.b16 %v6404
    %v6878 = vunpack.c.l.b16 %v6405
    %v6879 = vunpack.c.h.b16 %v6405
    %v6880 = vunpack.c.l.b16 %v6406
    %v6881 = vunpack.c.h.b16 %v6406
    %v6882 = vunpack.c.l.b16 %v6407
    %v6883 = vunpack.c.h.b16 %v6407
    %v6884 = vunpack.c.l.b16 %v6408
    %v6885 = vunpack.c.h.b16 %v6408
    %v6886 = vunpack.c.l.b16 %v6409
    %v6887 = vunpack.c.h.b16 %v6409
    %v6888 = vunpack.c.l.b16 %v6410
    %v6889 = vunpack.c.h.b16 %v6410
    %v6890 = vunpack.c.l.b16 %v6411
    %v6891 = vunpack.c.h.b16 %v6411
    %v6892 = vunpack.c.l.b16 %v6412
    %v6893 = vunpack.c.h.b16 %v6412
    %v6894 = vunpack.c.l.b16 %v6413
    %v6895 = vunpack.c.h.b16 %v6413
    %v6896 = vunpack.c.l.b16 %v6414
    %v6897 = vunpack.c.h.b16 %v6414
    %v6898 = vunpack.c.l.b16 %v6415
    %v6899 = vunpack.c.h.b16 %v6415
    %v6900 = vunpack.c.l.b16 %v6416
    %v6901 = vunpack.c.h.b16 %v6416
    %v6902 = vunpack.c.l.b16 %v6417
    %v6903 = vunpack.c.h.b16 %v6417
    %v6904 = vunpack.c.l.b16 %v6418
    %v6905 = vunpack.c.h.b16 %v6418
    %v6906 = vunpack.c.l.b16 %v6419
    %v6907 = vunpack.c.h.b16 %v6419
    %v6908 = vunpack.c.l.b16 %v6420
    %v6909 = vunpack.c.h.b16 %v6420
    %v6910 = vunpack.c.l.b16 %v6421
    %v6911 = vunpack.c.h.b16 %v6421
    %v6912 = vunpack.c.l.b16 %v6422
    %v6913 = vunpack.c.h.b16 %v6422
    %v6914 = vunpack.c.l.b16 %v6423
    %v6915 = vunpack.c.h.b16 %v6423
    %v6916 = vunpack.c.l.b16 %v6424
    %v6917 = vunpack.c.h.b16 %v6424
    %v6918 = vunpack.c.l.b16 %v6425
    %v6919 = vunpack.c.h.b16 %v6425
    %v6920 = vunpack.c.l.b16 %v6426
    %v6921 = vunpack.c.h.b16 %v6426
    %v6922 = vunpack.c.l.b16 %v6427
    %v6923 = vunpack.c.h.b16 %v6427
    %v6924 = vunpack.c.l.b16 %v6428
    %v6925 = vunpack.c.h.b16 %v6428
    %v6926 = vunpack.c.l.b16 %v6429
    %v6927 = vunpack.c.h.b16 %v6429
    %v6928 = vunpack.c.l.b16 %v6430
    %v6929 = vunpack.c.h.b16 %v6430
    %v6930 = vunpack.c.l.b16 %v6431
    %v6931 = vunpack.c.h.b16 %v6431
    %v6932 = vunpack.c.l.b16 %v6432
    %v6933 = vunpack.c.h.b16 %v6432
    %v6934 = vunpack.c.l.b16 %v6433
    %v6935 = vunpack.c.h.b16 %v6433
    %v6936 = vunpack.c.l.b16 %v6434
    %v6937 = vunpack.c.h.b16 %v6434
    %v6938 = vunpack.c.l.b16 %v6435
    %v6939 = vunpack.c.h.b16 %v6435
    %v6940 = vunpack.c.l.b16 %v6436
    %v6941 = vunpack.c.h.b16 %v6436
    %v6942 = vunpack.c.l.b16 %v6437
    %v6943 = vunpack.c.h.b16 %v6437
    %v6944 = vunpack.c.l.b16 %v6438
    %v6945 = vunpack.c.h.b16 %v6438
    %v6946 = vunpack.c.l.b16 %v6439
    %v6947 = vunpack.c.h.b16 %v6439
    %v6948 = vunpack.c.l.b16 %v6440
    %v6949 = vunpack.c.h.b16 %v6440
    %v6950 = vunpack.c.l.b16 %v6441
    %v6951 = vunpack.c.h.b16 %v6441
    %v6952 = vunpack.c.l.b16 %v6442
    %v6953 = vunpack.c.h.b16 %v6442
    %v6954 = vunpack.c.l.b16 %v6443
    %v6955 = vunpack.c.h.b16 %v6443
    %v6956 = vunpack.c.l.b16 %v6444
    %v6957 = vunpack.c.h.b16 %v6444
    %v6958 = vunpack.c.l.b16 %v6445
    %v6959 = vunpack.c.h.b16 %v6445
    %v6960 = vunpack.c.l.b16 %v6446
    %v6961 = vunpack.c.h.b16 %v6446
    %v6962 = vunpack.c.l.b16 %v6447
    %v6963 = vunpack.c.h.b16 %v6447
    %v6964 = vunpack.c.l.b16 %v6448
    %v6965 = vunpack.c.h.b16 %v6448
    %v6966 = vunpack.c.l.b16 %v6449
    %v6967 = vunpack.c.h.b16 %v6449
    %v6968 = vunpack.c.l.b16 %v6450
    %v6969 = vunpack.c.h.b16 %v6450
    %v6970 = vunpack.c.l.b16 %v6451
    %v6971 = vunpack.c.h.b16 %v6451
    %v6972 = vunpack.c.l.b16 %v6452
    %v6973 = vunpack.c.h.b16 %v6452
    %v6974 = vunpack.c.l.b16 %v6453
    %v6975 = vunpack.c.h.b16 %v6453
    %v6976 = vunpack.c.l.b16 %v6454
    %v6977 = vunpack.c.h.b16 %v6454
    %v6978 = vunpack.c.l.b16 %v6455
    %v6979 = vunpack.c.h.b16 %v6455
    %v6980 = vunpack.c.l.b16 %v6456
    %v6981 = vunpack.c.h.b16 %v6456
    %v6982 = vunpack.c.l.b16 %v6457
    %v6983 = vunpack.c.h.b16 %v6457
    %v6984 = vunpack.c.l.b16 %v6458
    %v6985 = vunpack.c.h.b16 %v6458
    %v6986 = vunpack.c.l.b16 %v6459
    %v6987 = vunpack.c.h.b16 %v6459
    %v6988 = vunpack.c.l.b16 %v6460
    %v6989 = vunpack.c.h.b16 %v6460
    %v6990 = vunpack.c.l.b16 %v6461
    %v6991 = vunpack.c.h.b16 %v6461
    %v6992 = vunpack.c.l.b16 %v6462
    %v6993 = vunpack.c.h.b16 %v6462
    %v6994 = vunpack.c.l.b16 %v6463
    %v6995 = vunpack.c.h.b16 %v6463
    %v6996 = vunpack.c.l.b16 %v6464
    %v6997 = vunpack.c.h.b16 %v6464
    %v6998 = vunpack.c.l.b16 %v6465
    %v6999 = vunpack.c.h.b16 %v6465
    %v7000 = vunpack.c.l.b16 %v6466
    %v7001 = vunpack.c.h.b16 %v6466
    %v7002 = vunpack.c.l.b16 %v6467
    %v7003 = vunpack.c.h.b16 %v6467
    %v7004 = vunpack.c.l.b16 %v6468
    %v7005 = vunpack.c.h.b16 %v6468
    %v7006 = vunpack.c.l.b16 %v6469
    %v7007 = vunpack.c.h.b16 %v6469
    %v7008 = vunpack.c.l.b16 %v6470
    %v7009 = vunpack.c.h.b16 %v6470
    %v7010 = vunpack.c.l.b16 %v6471
    %v7011 = vunpack.c.h.b16 %v6471
    %v7012 = vunpack.c.l.b16 %v6472
    %v7013 = vunpack.c.h.b16 %v6472
    %v7014 = vunpack.c.l.b16 %v6473
    %v7015 = vunpack.c.h.b16 %v6473
    %v7016 = vunpack.c.l.b16 %v6474
    %v7017 = vunpack.c.h.b16 %v6474
    %v7018 = vunpack.c.l.b16 %v6475
    %v7019 = vunpack.c.h.b16 %v6475
    %v7020 = vunpack.c.l.b16 %v6476
    %v7021 = vunpack.c.h.b16 %v6476
    %v7022 = vunpack.c.l.b16 %v6477
    %v7023 = vunpack.c.h.b16 %v6477
    %v7024 = vunpack.c.l.b16 %v6478
    %v7025 = vunpack.c.h.b16 %v6478
    %v7026 = vunpack.c.l.b16 %v6479
    %v7027 = vunpack.c.h.b16 %v6479
    %v7028 = vunpack.c.l.b16 %v6480
    %v7029 = vunpack.c.h.b16 %v6480
    %v7030 = vunpack.c.l.b16 %v6481
    %v7031 = vunpack.c.h.b16 %v6481
    %v7032 = vunpack.c.l.b16 %v6482
    %v7033 = vunpack.c.h.b16 %v6482
    %v7034 = vunpack.c.l.b16 %v6483
    %v7035 = vunpack.c.h.b16 %v6483
    %v7036 = vunpack.c.l.b16 %v6484
    %v7037 = vunpack.c.h.b16 %v6484
    %v7038 = vunpack.c.l.b16 %v6485
    %v7039 = vunpack.c.h.b16 %v6485
    %v7040 = vunpack.c.l.b16 %v6486
    %v7041 = vunpack.c.h.b16 %v6486
    %v7042 = vunpack.c.l.b16 %v6487
    %v7043 = vunpack.c.h.b16 %v6487
    %v7044 = vunpack.c.l.b16 %v6488
    %v7045 = vunpack.c.h.b16 %v6488
    %v7046 = vunpack.c.l.b16 %v6489
    %v7047 = vunpack.c.h.b16 %v6489
    %v7048 = vunpack.c.l.b16 %v6490
    %v7049 = vunpack.c.h.b16 %v6490
    %v7050 = vunpack.c.l.b16 %v6491
    %v7051 = vunpack.c.h.b16 %v6491
    %v7052 = vunpack.c.l.b16 %v6492
    %v7053 = vunpack.c.h.b16 %v6492
    %v7054 = vunpack.c.l.b16 %v6493
    %v7055 = vunpack.c.h.b16 %v6493
    %v7056 = vunpack.c.l.b16 %v6494
    %v7057 = vunpack.c.h.b16 %v6494
    %v7058 = vunpack.c.l.b16 %v6495
    %v7059 = vunpack.c.h.b16 %v6495
    %v7060 = vunpack.c.l.b16 %v6496
    %v7061 = vunpack.c.h.b16 %v6496
    %v7062 = vunpack.c.l.b16 %v6497
    %v7063 = vunpack.c.h.b16 %v6497
    %v7064 = vunpack.c.l.b16 %v6498
    %v7065 = vunpack.c.h.b16 %v6498
    %v7066 = vunpack.c.l.b16 %v6499
    %v7067 = vunpack.c.h.b16 %v6499
    %v7068 = vunpack.c.l.b16 %v6500
    %v7069 = vunpack.c.h.b16 %v6500
    %v7070 = vunpack.c.l.b16 %v6501
    %v7071 = vunpack.c.h.b16 %v6501
    %v7072 = vunpack.c.l.b16 %v6502
    %v7073 = vunpack.c.h.b16 %v6502
    %v7074 = vunpack.c.l.b16 %v6503
    %v7075 = vunpack.c.h.b16 %v6503
    %v7076 = vunpack.c.l.b16 %v6504
    %v7077 = vunpack.c.h.b16 %v6504
    %v7078 = vunpack.c.l.b16 %v6505
    %v7079 = vunpack.c.h.b16 %v6505
    %v7080 = vunpack.c.l.b16 %v6506
    %v7081 = vunpack.c.h.b16 %v6506
    %v7082 = vunpack.c.l.b16 %v6507
    %v7083 = vunpack.c.h.b16 %v6507
    %v7084 = vunpack.c.l.b16 %v6508
    %v7085 = vunpack.c.h.b16 %v6508
    %v7086 = vunpack.c.l.b16 %v6509
    %v7087 = vunpack.c.h.b16 %v6509
    %v7088 = vunpack.c.l.b16 %v6510
    %v7089 = vunpack.c.h.b16 %v6510
    %v7090 = vunpack.c.l.b16 %v6511
    %v7091 = vunpack.c.h.b16 %v6511
    %v7092 = vunpack.c.l.b16 %v6512
    %v7093 = vunpack.c.h.b16 %v6512
    %v7094 = vunpack.c.l.b16 %v6513
    %v7095 = vunpack.c.h.b16 %v6513
    %v7096 = vunpack.c.l.b16 %v6514
    %v7097 = vunpack.c.h.b16 %v6514
    %v7098 = vunpack.c.l.b16 %v6515
    %v7099 = vunpack.c.h.b16 %v6515
    %v7100 = vunpack.c.l.b16 %v6516
    %v7101 = vunpack.c.h.b16 %v6516
    %v7102 = vunpack.c.l.b16 %v6517
    %v7103 = vunpack.c.h.b16 %v6517
    %v7104 = vunpack.c.l.b16 %v6518
    %v7105 = vunpack.c.h.b16 %v6518
    %v7106 = vunpack.c.l.b16 %v6519
    %v7107 = vunpack.c.h.b16 %v6519
    %v7108 = vunpack.c.l.b16 %v6520
    %v7109 = vunpack.c.h.b16 %v6520
    %v7110 = vunpack.c.l.b16 %v6521
    %v7111 = vunpack.c.h.b16 %v6521
    %v7112 = vunpack.c.l.b16 %v6522
    %v7113 = vunpack.c.h.b16 %v6522
    %v7114 = vunpack.c.l.b16 %v6523
    %v7115 = vunpack.c.h.b16 %v6523
    %v7116 = vunpack.c.l.b16 %v6524
    %v7117 = vunpack.c.h.b16 %v6524
    %v7118 = vunpack.c.l.b16 %v6525
    %v7119 = vunpack.c.h.b16 %v6525
    %v7120 = vunpack.c.l.b16 %v6526
    %v7121 = vunpack.c.h.b16 %v6526
    %v7122 = vunpack.c.l.b16 %v6527
    %v7123 = vunpack.c.h.b16 %v6527
    %v7124 = vunpack.c.l.b16 %v6528
    %v7125 = vunpack.c.h.b16 %v6528
    %v7126 = vunpack.c.l.b16 %v6529
    %v7127 = vunpack.c.h.b16 %v6529
    %v7128 = vunpack.c.l.b16 %v6530
    %v7129 = vunpack.c.h.b16 %v6530
    %v7130 = vunpack.c.l.b16 %v6531
    %v7131 = vunpack.c.h.b16 %v6531
    %v7132 = vpack.c.b16 %v6752, %v6748
    %v7133 = vpack.c.b16 %v6753, %v6749
    %v7134 = vpack.c.b16 %v6754, %v6750
    %v7135 = vpack.c.b16 %v6755, %v6751
    %v7136 = vpack.c.b16 %v6760, %v6756
    %v7137 = vpack.c.b16 %v6761, %v6757
    %v7138 = vpack.c.b16 %v6762, %v6758
    %v7139 = vpack.c.b16 %v6763, %v6759
    %v7140 = vpack.c.b16 %v6768, %v6764
    %v7141 = vpack.c.b16 %v6769, %v6765
    %v7142 = vpack.c.b16 %v6770, %v6766
    %v7143 = vpack.c.b16 %v6771, %v6767
    %v7144 = vpack.c.b16 %v6776, %v6772
    %v7145 = vpack.c.b16 %v6777, %v6773
    %v7146 = vpack.c.b16 %v6778, %v6774
    %v7147 = vpack.c.b16 %v6779, %v6775
    %v7148 = vpack.c.b16 %v6784, %v6780
    %v7149 = vpack.c.b16 %v6785, %v6781
    %v7150 = vpack.c.b16 %v6786, %v6782
    %v7151 = vpack.c.b16 %v6787, %v6783
    %v7152 = vpack.c.b16 %v6792, %v6788
    %v7153 = vpack.c.b16 %v6793, %v6789
    %v7154 = vpack.c.b16 %v6794, %v6790
    %v7155 = vpack.c.b16 %v6795, %v6791
    %v7156 = vpack.c.b16 %v6800, %v6796
    %v7157 = vpack.c.b16 %v6801, %v6797
    %v7158 = vpack.c.b16 %v6802, %v6798
    %v7159 = vpack.c.b16 %v6803, %v6799
    %v7160 = vpack.c.b16 %v6808, %v6804
    %v7161 = vpack.c.b16 %v6809, %v6805
    %v7162 = vpack.c.b16 %v6810, %v6806
    %v7163 = vpack.c.b16 %v6811, %v6807
    %v7164 = vpack.c.b16 %v6816, %v6812
    %v7165 = vpack.c.b16 %v6817, %v6813
    %v7166 = vpack.c.b16 %v6818, %v6814
    %v7167 = vpack.c.b16 %v6819, %v6815
    %v7168 = vpack.c.b16 %v6824, %v6820
    %v7169 = vpack.c.b16 %v6825, %v6821
    %v7170 = vpack.c.b16 %v6826, %v6822
    %v7171 = vpack.c.b16 %v6827, %v6823
    %v7172 = vpack.c.b16 %v6832, %v6828
    %v7173 = vpack.c.b16 %v6833, %v6829
    %v7174 = vpack.c.b16 %v6834, %v6830
    %v7175 = vpack.c.b16 %v6835, %v6831
    %v7176 = vpack.c.b16 %v6840, %v6836
    %v7177 = vpack.c.b16 %v6841, %v6837
    %v7178 = vpack.c.b16 %v6842, %v6838
    %v7179 = vpack.c.b16 %v6843, %v6839
    %v7180 = vpack.c.b16 %v6848, %v6844
    %v7181 = vpack.c.b16 %v6849, %v6845
    %v7182 = vpack.c.b16 %v6850, %v6846
    %v7183 = vpack.c.b16 %v6851, %v6847
    %v7184 = vpack.c.b16 %v6856, %v6852
    %v7185 = vpack.c.b16 %v6857, %v6853
    %v7186 = vpack.c.b16 %v6858, %v6854
    %v7187 = vpack.c.b16 %v6859, %v6855
    %v7188 = vpack.c.b16 %v6864, %v6860
    %v7189 = vpack.c.b16 %v6865, %v6861
    %v7190 = vpack.c.b16 %v6866, %v6862
    %v7191 = vpack.c.b16 %v6867, %v6863
    %v7192 = vpack.c.b16 %v6872, %v6868
    %v7193 = vpack.c.b16 %v6873, %v6869
    %v7194 = vpack.c.b16 %v6874, %v6870
    %v7195 = vpack.c.b16 %v6875, %v6871
    %v7196 = vpack.c.b16 %v6880, %v6876
    %v7197 = vpack.c.b16 %v6881, %v6877
    %v7198 = vpack.c.b16 %v6882, %v6878
    %v7199 = vpack.c.b16 %v6883, %v6879
    %v7200 = vpack.c.b16 %v6888, %v6884
    %v7201 = vpack.c.b16 %v6889, %v6885
    %v7202 = vpack.c.b16 %v6890, %v6886
    %v7203 = vpack.c.b16 %v6891, %v6887
    %v7204 = vpack.c.b16 %v6896, %v6892
    %v7205 = vpack.c.b16 %v6897, %v6893
    %v7206 = vpack.c.b16 %v6898, %v6894
    %v7207 = vpack.c.b16 %v6899, %v6895
    %v7208 = vpack.c.b16 %v6904, %v6900
    %v7209 = vpack.c.b16 %v6905, %v6901
    %v7210 = vpack.c.b16 %v6906, %v6902
    %v7211 = vpack.c.b16 %v6907, %v6903
    %v7212 = vpack.c.b16 %v6912, %v6908
    %v7213 = vpack.c.b16 %v6913, %v6909
    %v7214 = vpack.c.b16 %v6914, %v6910
    %v7215 = vpack.c.b16 %v6915, %v6911
    %v7216 = vpack.c.b16 %v6920, %v6916
    %v7217 = vpack.c.b16 %v6921, %v6917
    %v7218 = vpack.c.b16 %v6922, %v6918
    %v7219 = vpack.c.b16 %v6923, %v6919
    %v7220 = vpack.c.b16 %v6928, %v6924
    %v7221 = vpack.c.b16 %v6929, %v6925
    %v7222 = vpack.c.b16 %v6930, %v6926
    %v7223 = vpack.c.b16 %v6931, %v6927
    %v7224 = vpack.c.b16 %v6936, %v6932
    %v7225 = vpack.c.b16 %v6937, %v6933
    %v7226 = vpack.c.b16 %v6938, %v6934
    %v7227 = vpack.c.b16 %v6939, %v6935
    %v7228 = vpack.c.b16 %v6944, %v6940
    %v7229 = vpack.c.b16 %v6945, %v6941
    %v7230 = vpack.c.b16 %v6946, %v6942
    %v7231 = vpack.c.b16 %v6947, %v6943
    %v7232 = vpack.c.b16 %v6952, %v6948
    %v7233 = vpack.c.b16 %v6953, %v6949
    %v7234 = vpack.c.b16 %v6954, %v6950
    %v7235 = vpack.c.b16 %v6955, %v6951
    %v7236 = vpack.c.b16 %v6960, %v6956
    %v7237 = vpack.c.b16 %v6961, %v6957
    %v7238 = vpack.c.b16 %v6962, %v6958
    %v7239 = vpack.c.b16 %v6963, %v6959
    %v7240 = vpack.c.b16 %v6968, %v6964
    %v7241 = vpack.c.b16 %v6969, %v6965
    %v7242 = vpack.c.b16 %v6970, %v6966
    %v7243 = vpack.c.b16 %v6971, %v6967
    %v7244 = vpack.c.b16 %v6976, %v6972
    %v7245 = vpack.c.b16 %v6977, %v6973
    %v7246 = vpack.c.b16 %v6978, %v6974
    %v7247 = vpack.c.b16 %v6979, %v6975
    %v7248 = vpack.c.b16 %v6984, %v6980
    %v7249 = vpack.c.b16 %v6985, %v6981
    %v7250 = vpack.c.b16 %v6986, %v6982
    %v7251 = vpack.c.b16 %v6987, %v6983
    %v7252 = vpack.c.b16 %v6992, %v6988
    %v7253 = vpack.c.b16 %v6993, %v6989
    %v7254 = vpack.c.b16 %v6994, %v6990
    %v7255 = vpack.c.b16 %v6995, %v6991
    %v7256 = vpack.c.b16 %v7000, %v6996
    %v7257 = vpack.c.b16 %v7001, %v6997
    %v7258 = vpack.c.b16 %v7002, %v6998
    %v7259 = vpack.c.b16 %v7003, %v6999
    %v7260 = vpack.c.b16 %v7008, %v7004
    %v7261 = vpack.c.b16 %v7009, %v7005
    %v7262 = vpack.c.b16 %v7010, %v7006
    %v7263 = vpack.c.b16 %v7011, %v7007
    %v7264 = vpack.c.b16 %v7016, %v7012
    %v7265 = vpack.c.b16 %v7017, %v7013
    %v7266 = vpack.c.b16 %v7018, %v7014
    %v7267 = vpack.c.b16 %v7019, %v7015
    %v7268 = vpack.c.b16 %v7024, %v7020
    %v7269 = vpack.c.b16 %v7025, %v7021
    %v7270 = vpack.c.b16 %v7026, %v7022
    %v7271 = vpack.c.b16 %v7027, %v7023
    %v7272 = vpack.c.b16 %v7032, %v7028
    %v7273 = vpack.c.b16 %v7033, %v7029
    %v7274 = vpack.c.b16 %v7034, %v7030
    %v7275 = vpack.c.b16 %v7035, %v7031
    %v7276 = vpack.c.b16 %v7040, %v7036
    %v7277 = vpack.c.b16 %v7041, %v7037
    %v7278 = vpack.c.b16 %v7042, %v7038
    %v7279 = vpack.c.b16 %v7043, %v7039
    %v7280 = vpack.c.b16 %v7048, %v7044
    %v7281 = vpack.c.b16 %v7049, %v7045
    %v7282 = vpack.c.b16 %v7050, %v7046
    %v7283 = vpack.c.b16 %v7051, %v7047
    %v7284 = vpack.c.b16 %v7056, %v7052
    %v7285 = vpack.c.b16 %v7057, %v7053
    %v7286 = vpack.c.b16 %v7058, %v7054
    %v7287 = vpack.c.b16 %v7059, %v7055
    %v7288 = vpack.c.b16 %v7064, %v7060
    %v7289 = vpack.c.b16 %v7065, %v7061
    %v7290 = vpack.c.b16 %v7066, %v7062
    %v7291 = vpack.c.b16 %v7067, %v7063
    %v7292 = vpack.c.b16 %v7072, %v7068
    %v7293 = vpack.c.b16 %v7073, %v7069
    %v7294 = vpack.c.b16 %v7074, %v7070
    %v7295 = vpack.c.b16 %v7075, %v7071
    %v7296 = vpack.c.b16 %v7080, %v7076
    %v7297 = vpack.c.b16 %v7081, %v7077
    %v7298 = vpack.c.b16 %v7082, %v7078
    %v7299 = vpack.c.b16 %v7083, %v7079
    %v7300 = vpack.c.b16 %v7088, %v7084
    %v7301 = vpack.c.b16 %v7089, %v7085
    %v7302 = vpack.c.b16 %v7090, %v7086
    %v7303 = vpack.c.b16 %v7091, %v7087
    %v7304 = vpack.c.b16 %v7096, %v7092
    %v7305 = vpack.c.b16 %v7097, %v7093
    %v7306 = vpack.c.b16 %v7098, %v7094
    %v7307 = vpack.c.b16 %v7099, %v7095
    %v7308 = vpack.c.b16 %v7104, %v7100
    %v7309 = vpack.c.b16 %v7105, %v7101
    %v7310 = vpack.c.b16 %v7106, %v7102
    %v7311 = vpack.c.b16 %v7107, %v7103
    %v7312 = vpack.c.b16 %v7112, %v7108
    %v7313 = vpack.c.b16 %v7113, %v7109
    %v7314 = vpack.c.b16 %v7114, %v7110
    %v7315 = vpack.c.b16 %v7115, %v7111
    %v7316 = vpack.c.b16 %v7120, %v7116
    %v7317 = vpack.c.b16 %v7121, %v7117
    %v7318 = vpack.c.b16 %v7122, %v7118
    %v7319 = vpack.c.b16 %v7123, %v7119
    %v7320 = vpack.c.b16 %v7128, %v7124
    %v7321 = vpack.c.b16 %v7129, %v7125
    %v7322 = vpack.c.b16 %v7130, %v7126
    %v7323 = vpack.c.b16 %v7131, %v7127
    %7516 = vmatpush.bf16.msra.mxu0 %v7160
    %7517 = vmatpush.bf16.msra.mxu0 %v7156
    %7518 = vmatpush.bf16.msra.mxu0 %v7152
    %7519 = vmatpush.bf16.msra.mxu0 %v7148
    %7520 = vmatpush.bf16.msra.mxu0 %v7144
    %7521 = vmatpush.bf16.msra.mxu0 %v7140
    %7522 = vmatpush.bf16.msra.mxu0 %v7136
    %7523 = vmatpush.bf16.msra.mxu0 %v7132
    %7524 = vmatmul.bf16.gmra.mxu0 %v6544
    %v7525 = vpop.f32.mrf.mxu0
    %v7526 = vadd.f32 0.0, %v7525
    %v7527 = vpop.f32.mrf.mxu0
    %v7528 = vadd.f32 0.0, %v7527
    %7529 = vdwg.mxu0
    %7530 = vmatpush.bf16.msra.mxu0 %v7192
    %7531 = vmatpush.bf16.msra.mxu0 %v7188
    %7532 = vmatpush.bf16.msra.mxu0 %v7184
    %7533 = vmatpush.bf16.msra.mxu0 %v7180
    %7534 = vmatpush.bf16.msra.mxu0 %v7176
    %7535 = vmatpush.bf16.msra.mxu0 %v7172
    %7536 = vmatpush.bf16.msra.mxu0 %v7168
    %7537 = vmatpush.bf16.msra.mxu0 %v7164
    %7538 = vmatmul.bf16.gmra.mxu0 %v6545
    %v7539 = vpop.f32.mrf.mxu0
    %v7540 = vadd.f32 %v7526, %v7539
    %v7541 = vpop.f32.mrf.mxu0
    %v7542 = vadd.f32 %v7528, %v7541
    %7543 = vdwg.mxu0
    %7544 = vmatpush.bf16.msra.mxu0 %v7224
    %7545 = vmatpush.bf16.msra.mxu0 %v7220
    %7546 = vmatpush.bf16.msra.mxu0 %v7216
    %7547 = vmatpush.bf16.msra.mxu0 %v7212
    %7548 = vmatpush.bf16.msra.mxu0 %v7208
    %7549 = vmatpush.bf16.msra.mxu0 %v7204
    %7550 = vmatpush.bf16.msra.mxu0 %v7200
    %7551 = vmatpush.bf16.msra.mxu0 %v7196
    %7552 = vmatmul.bf16.gmra.mxu0 %v6546
    %v7553 = vpop.f32.mrf.mxu0
    %v7554 = vadd.f32 %v7540, %v7553
    %v7555 = vpop.f32.mrf.mxu0
    %v7556 = vadd.f32 %v7542, %v7555
    %7557 = vdwg.mxu0
    %7558 = vmatpush.bf16.msra.mxu0 %v7256
    %7559 = vmatpush.bf16.msra.mxu0 %v7252
    %7560 = vmatpush.bf16.msra.mxu0 %v7248
    %7561 = vmatpush.bf16.msra.mxu0 %v7244
    %7562 = vmatpush.bf16.msra.mxu0 %v7240
    %7563 = vmatpush.bf16.msra.mxu0 %v7236
    %7564 = vmatpush.bf16.msra.mxu0 %v7232
    %7565 = vmatpush.bf16.msra.mxu0 %v7228
    %7566 = vmatmul.bf16.gmra.mxu0 %v6547
    %v7567 = vpop.f32.mrf.mxu0
    %v7568 = vadd.f32 %v7554, %v7567
    %v7569 = vpop.f32.mrf.mxu0
    %v7570 = vadd.f32 %v7556, %v7569
    %7571 = vdwg.mxu0
    %7572 = vmatpush.bf16.msra.mxu0 %v7288
    %7573 = vmatpush.bf16.msra.mxu0 %v7284
    %7574 = vmatpush.bf16.msra.mxu0 %v7280
    %7575 = vmatpush.bf16.msra.mxu0 %v7276
    %7576 = vmatpush.bf16.msra.mxu0 %v7272
    %7577 = vmatpush.bf16.msra.mxu0 %v7268
    %7578 = vmatpush.bf16.msra.mxu0 %v7264
    %7579 = vmatpush.bf16.msra.mxu0 %v7260
    %7580 = vmatmul.bf16.gmra.mxu0 %v6548
    %v7581 = vpop.f32.mrf.mxu0
    %v7582 = vadd.f32 %v7568, %v7581
    %v7583 = vpop.f32.mrf.mxu0
    %v7584 = vadd.f32 %v7570, %v7583
    %7585 = vdwg.mxu0
    %7586 = vmatpush.bf16.msra.mxu0 %v7320
    %7587 = vmatpush.bf16.msra.mxu0 %v7316
    %7588 = vmatpush.bf16.msra.mxu0 %v7312
    %7589 = vmatpush.bf16.msra.mxu0 %v7308
    %7590 = vmatpush.bf16.msra.mxu0 %v7304
    %7591 = vmatpush.bf16.msra.mxu0 %v7300
    %7592 = vmatpush.bf16.msra.mxu0 %v7296
    %7593 = vmatpush.bf16.msra.mxu0 %v7292
    %7594 = vmatmul.bf16.gmra.mxu0 %v6549
    %v7595 = vpop.f32.mrf.mxu0
    %v7596 = vadd.f32 %v7582, %v7595
    %v7597 = vpop.f32.mrf.mxu0
    %v7598 = vadd.f32 %v7584, %v7597
    %7599 = vdwg.mxu0
    %7600 = vmatpush.bf16.msra.mxu0 %v7161
    %7601 = vmatpush.bf16.msra.mxu0 %v7157
    %7602 = vmatpush.bf16.msra.mxu0 %v7153
    %7603 = vmatpush.bf16.msra.mxu0 %v7149
    %7604 = vmatpush.bf16.msra.mxu0 %v7145
    %7605 = vmatpush.bf16.msra.mxu0 %v7141
    %7606 = vmatpush.bf16.msra.mxu0 %v7137
    %7607 = vmatpush.bf16.msra.mxu0 %v7133
    %7608 = vmatmul.bf16.gmra.mxu0 %v6544
    %v7609 = vpop.f32.mrf.mxu0
    %v7610 = vadd.f32 0.0, %v7609
    %v7611 = vpop.f32.mrf.mxu0
    %v7612 = vadd.f32 0.0, %v7611
    %7613 = vdwg.mxu0
    %7614 = vmatpush.bf16.msra.mxu0 %v7193
    %7615 = vmatpush.bf16.msra.mxu0 %v7189
    %7616 = vmatpush.bf16.msra.mxu0 %v7185
    %7617 = vmatpush.bf16.msra.mxu0 %v7181
    %7618 = vmatpush.bf16.msra.mxu0 %v7177
    %7619 = vmatpush.bf16.msra.mxu0 %v7173
    %7620 = vmatpush.bf16.msra.mxu0 %v7169
    %7621 = vmatpush.bf16.msra.mxu0 %v7165
    %7622 = vmatmul.bf16.gmra.mxu0 %v6545
    %v7623 = vpop.f32.mrf.mxu0
    %v7624 = vadd.f32 %v7610, %v7623
    %v7625 = vpop.f32.mrf.mxu0
    %v7626 = vadd.f32 %v7612, %v7625
    %7627 = vdwg.mxu0
    %7628 = vmatpush.bf16.msra.mxu0 %v7225
    %7629 = vmatpush.bf16.msra.mxu0 %v7221
    %7630 = vmatpush.bf16.msra.mxu0 %v7217
    %7631 = vmatpush.bf16.msra.mxu0 %v7213
    %7632 = vmatpush.bf16.msra.mxu0 %v7209
    %7633 = vmatpush.bf16.msra.mxu0 %v7205
    %7634 = vmatpush.bf16.msra.mxu0 %v7201
    %7635 = vmatpush.bf16.msra.mxu0 %v7197
    %7636 = vmatmul.bf16.gmra.mxu0 %v6546
    %v7637 = vpop.f32.mrf.mxu0
    %v7638 = vadd.f32 %v7624, %v7637
    %v7639 = vpop.f32.mrf.mxu0
    %v7640 = vadd.f32 %v7626, %v7639
    %7641 = vdwg.mxu0
    %7642 = vmatpush.bf16.msra.mxu0 %v7257
    %7643 = vmatpush.bf16.msra.mxu0 %v7253
    %7644 = vmatpush.bf16.msra.mxu0 %v7249
    %7645 = vmatpush.bf16.msra.mxu0 %v7245
    %7646 = vmatpush.bf16.msra.mxu0 %v7241
    %7647 = vmatpush.bf16.msra.mxu0 %v7237
    %7648 = vmatpush.bf16.msra.mxu0 %v7233
    %7649 = vmatpush.bf16.msra.mxu0 %v7229
    %7650 = vmatmul.bf16.gmra.mxu0 %v6547
    %v7651 = vpop.f32.mrf.mxu0
    %v7652 = vadd.f32 %v7638, %v7651
    %v7653 = vpop.f32.mrf.mxu0
    %v7654 = vadd.f32 %v7640, %v7653
    %7655 = vdwg.mxu0
    %7656 = vmatpush.bf16.msra.mxu0 %v7289
    %7657 = vmatpush.bf16.msra.mxu0 %v7285
    %7658 = vmatpush.bf16.msra.mxu0 %v7281
    %7659 = vmatpush.bf16.msra.mxu0 %v7277
    %7660 = vmatpush.bf16.msra.mxu0 %v7273
    %7661 = vmatpush.bf16.msra.mxu0 %v7269
    %7662 = vmatpush.bf16.msra.mxu0 %v7265
    %7663 = vmatpush.bf16.msra.mxu0 %v7261
    %7664 = vmatmul.bf16.gmra.mxu0 %v6548
    %v7665 = vpop.f32.mrf.mxu0
    %v7666 = vadd.f32 %v7652, %v7665
    %v7667 = vpop.f32.mrf.mxu0
    %v7668 = vadd.f32 %v7654, %v7667
    %7669 = vdwg.mxu0
    %7670 = vmatpush.bf16.msra.mxu0 %v7321
    %7671 = vmatpush.bf16.msra.mxu0 %v7317
    %7672 = vmatpush.bf16.msra.mxu0 %v7313
    %7673 = vmatpush.bf16.msra.mxu0 %v7309
    %7674 = vmatpush.bf16.msra.mxu0 %v7305
    %7675 = vmatpush.bf16.msra.mxu0 %v7301
    %7676 = vmatpush.bf16.msra.mxu0 %v7297
    %7677 = vmatpush.bf16.msra.mxu0 %v7293
    %7678 = vmatmul.bf16.gmra.mxu0 %v6549
    %v7679 = vpop.f32.mrf.mxu0
    %v7680 = vadd.f32 %v7666, %v7679
    %v7681 = vpop.f32.mrf.mxu0
    %v7682 = vadd.f32 %v7668, %v7681
    %7683 = vdwg.mxu0
    %7684 = vmatpush.bf16.msra.mxu0 %v7162
    %7685 = vmatpush.bf16.msra.mxu0 %v7158
    %7686 = vmatpush.bf16.msra.mxu0 %v7154
    %7687 = vmatpush.bf16.msra.mxu0 %v7150
    %7688 = vmatpush.bf16.msra.mxu0 %v7146
    %7689 = vmatpush.bf16.msra.mxu0 %v7142
    %7690 = vmatpush.bf16.msra.mxu0 %v7138
    %7691 = vmatpush.bf16.msra.mxu0 %v7134
    %7692 = vmatmul.bf16.gmra.mxu0 %v6544
    %v7693 = vpop.f32.mrf.mxu0
    %v7694 = vadd.f32 0.0, %v7693
    %v7695 = vpop.f32.mrf.mxu0
    %v7696 = vadd.f32 0.0, %v7695
    %7697 = vdwg.mxu0
    %7698 = vmatpush.bf16.msra.mxu0 %v7194
    %7699 = vmatpush.bf16.msra.mxu0 %v7190
    %7700 = vmatpush.bf16.msra.mxu0 %v7186
    %7701 = vmatpush.bf16.msra.mxu0 %v7182
    %7702 = vmatpush.bf16.msra.mxu0 %v7178
    %7703 = vmatpush.bf16.msra.mxu0 %v7174
    %7704 = vmatpush.bf16.msra.mxu0 %v7170
    %7705 = vmatpush.bf16.msra.mxu0 %v7166
    %7706 = vmatmul.bf16.gmra.mxu0 %v6545
    %v7707 = vpop.f32.mrf.mxu0
    %v7708 = vadd.f32 %v7694, %v7707
    %v7709 = vpop.f32.mrf.mxu0
    %v7710 = vadd.f32 %v7696, %v7709
    %7711 = vdwg.mxu0
    %7712 = vmatpush.bf16.msra.mxu0 %v7226
    %7713 = vmatpush.bf16.msra.mxu0 %v7222
    %7714 = vmatpush.bf16.msra.mxu0 %v7218
    %7715 = vmatpush.bf16.msra.mxu0 %v7214
    %7716 = vmatpush.bf16.msra.mxu0 %v7210
    %7717 = vmatpush.bf16.msra.mxu0 %v7206
    %7718 = vmatpush.bf16.msra.mxu0 %v7202
    %7719 = vmatpush.bf16.msra.mxu0 %v7198
    %7720 = vmatmul.bf16.gmra.mxu0 %v6546
    %v7721 = vpop.f32.mrf.mxu0
    %v7722 = vadd.f32 %v7708, %v7721
    %v7723 = vpop.f32.mrf.mxu0
    %v7724 = vadd.f32 %v7710, %v7723
    %7725 = vdwg.mxu0
    %7726 = vmatpush.bf16.msra.mxu0 %v7258
    %7727 = vmatpush.bf16.msra.mxu0 %v7254
    %7728 = vmatpush.bf16.msra.mxu0 %v7250
    %7729 = vmatpush.bf16.msra.mxu0 %v7246
    %7730 = vmatpush.bf16.msra.mxu0 %v7242
    %7731 = vmatpush.bf16.msra.mxu0 %v7238
    %7732 = vmatpush.bf16.msra.mxu0 %v7234
    %7733 = vmatpush.bf16.msra.mxu0 %v7230
    %7734 = vmatmul.bf16.gmra.mxu0 %v6547
    %v7735 = vpop.f32.mrf.mxu0
    %v7736 = vadd.f32 %v7722, %v7735
    %v7737 = vpop.f32.mrf.mxu0
    %v7738 = vadd.f32 %v7724, %v7737
    %7739 = vdwg.mxu0
    %7740 = vmatpush.bf16.msra.mxu0 %v7290
    %7741 = vmatpush.bf16.msra.mxu0 %v7286
    %7742 = vmatpush.bf16.msra.mxu0 %v7282
    %7743 = vmatpush.bf16.msra.mxu0 %v7278
    %7744 = vmatpush.bf16.msra.mxu0 %v7274
    %7745 = vmatpush.bf16.msra.mxu0 %v7270
    %7746 = vmatpush.bf16.msra.mxu0 %v7266
    %7747 = vmatpush.bf16.msra.mxu0 %v7262
    %7748 = vmatmul.bf16.gmra.mxu0 %v6548
    %v7749 = vpop.f32.mrf.mxu0
    %v7750 = vadd.f32 %v7736, %v7749
    %v7751 = vpop.f32.mrf.mxu0
    %v7752 = vadd.f32 %v7738, %v7751
    %7753 = vdwg.mxu0
    %7754 = vmatpush.bf16.msra.mxu0 %v7322
    %7755 = vmatpush.bf16.msra.mxu0 %v7318
    %7756 = vmatpush.bf16.msra.mxu0 %v7314
    %7757 = vmatpush.bf16.msra.mxu0 %v7310
    %7758 = vmatpush.bf16.msra.mxu0 %v7306
    %7759 = vmatpush.bf16.msra.mxu0 %v7302
    %7760 = vmatpush.bf16.msra.mxu0 %v7298
    %7761 = vmatpush.bf16.msra.mxu0 %v7294
    %7762 = vmatmul.bf16.gmra.mxu0 %v6549
    %v7763 = vpop.f32.mrf.mxu0
    %v7764 = vadd.f32 %v7750, %v7763
    %v7765 = vpop.f32.mrf.mxu0
    %v7766 = vadd.f32 %v7752, %v7765
    %7767 = vdwg.mxu0
    %7768 = vmatpush.bf16.msra.mxu0 %v7163
    %7769 = vmatpush.bf16.msra.mxu0 %v7159
    %7770 = vmatpush.bf16.msra.mxu0 %v7155
    %7771 = vmatpush.bf16.msra.mxu0 %v7151
    %7772 = vmatpush.bf16.msra.mxu0 %v7147
    %7773 = vmatpush.bf16.msra.mxu0 %v7143
    %7774 = vmatpush.bf16.msra.mxu0 %v7139
    %7775 = vmatpush.bf16.msra.mxu0 %v7135
    %7776 = vmatmul.bf16.gmra.mxu0 %v6544
    %v7777 = vpop.f32.mrf.mxu0
    %v7778 = vadd.f32 0.0, %v7777
    %v7779 = vpop.f32.mrf.mxu0
    %v7780 = vadd.f32 0.0, %v7779
    %7781 = vdwg.mxu0
    %7782 = vmatpush.bf16.msra.mxu0 %v7195
    %7783 = vmatpush.bf16.msra.mxu0 %v7191
    %7784 = vmatpush.bf16.msra.mxu0 %v7187
    %7785 = vmatpush.bf16.msra.mxu0 %v7183
    %7786 = vmatpush.bf16.msra.mxu0 %v7179
    %7787 = vmatpush.bf16.msra.mxu0 %v7175
    %7788 = vmatpush.bf16.msra.mxu0 %v7171
    %7789 = vmatpush.bf16.msra.mxu0 %v7167
    %7790 = vmatmul.bf16.gmra.mxu0 %v6545
    %v7791 = vpop.f32.mrf.mxu0
    %v7792 = vadd.f32 %v7778, %v7791
    %v7793 = vpop.f32.mrf.mxu0
    %v7794 = vadd.f32 %v7780, %v7793
    %7795 = vdwg.mxu0
    %7796 = vmatpush.bf16.msra.mxu0 %v7227
    %7797 = vmatpush.bf16.msra.mxu0 %v7223
    %7798 = vmatpush.bf16.msra.mxu0 %v7219
    %7799 = vmatpush.bf16.msra.mxu0 %v7215
    %7800 = vmatpush.bf16.msra.mxu0 %v7211
    %7801 = vmatpush.bf16.msra.mxu0 %v7207
    %7802 = vmatpush.bf16.msra.mxu0 %v7203
    %7803 = vmatpush.bf16.msra.mxu0 %v7199
    %7804 = vmatmul.bf16.gmra.mxu0 %v6546
    %v7805 = vpop.f32.mrf.mxu0
    %v7806 = vadd.f32 %v7792, %v7805
    %v7807 = vpop.f32.mrf.mxu0
    %v7808 = vadd.f32 %v7794, %v7807
    %7809 = vdwg.mxu0
    %7810 = vmatpush.bf16.msra.mxu0 %v7259
    %7811 = vmatpush.bf16.msra.mxu0 %v7255
    %7812 = vmatpush.bf16.msra.mxu0 %v7251
    %7813 = vmatpush.bf16.msra.mxu0 %v7247
    %7814 = vmatpush.bf16.msra.mxu0 %v7243
    %7815 = vmatpush.bf16.msra.mxu0 %v7239
    %7816 = vmatpush.bf16.msra.mxu0 %v7235
    %7817 = vmatpush.bf16.msra.mxu0 %v7231
    %7818 = vmatmul.bf16.gmra.mxu0 %v6547
    %v7819 = vpop.f32.mrf.mxu0
    %v7820 = vadd.f32 %v7806, %v7819
    %v7821 = vpop.f32.mrf.mxu0
    %v7822 = vadd.f32 %v7808, %v7821
    %7823 = vdwg.mxu0
    %7824 = vmatpush.bf16.msra.mxu0 %v7291
    %7825 = vmatpush.bf16.msra.mxu0 %v7287
    %7826 = vmatpush.bf16.msra.mxu0 %v7283
    %7827 = vmatpush.bf16.msra.mxu0 %v7279
    %7828 = vmatpush.bf16.msra.mxu0 %v7275
    %7829 = vmatpush.bf16.msra.mxu0 %v7271
    %7830 = vmatpush.bf16.msra.mxu0 %v7267
    %7831 = vmatpush.bf16.msra.mxu0 %v7263
    %7832 = vmatmul.bf16.gmra.mxu0 %v6548
    %v7833 = vpop.f32.mrf.mxu0
    %v7834 = vadd.f32 %v7820, %v7833
    %v7835 = vpop.f32.mrf.mxu0
    %v7836 = vadd.f32 %v7822, %v7835
    %7837 = vdwg.mxu0
    %7838 = vmatpush.bf16.msra.mxu0 %v7323
    %7839 = vmatpush.bf16.msra.mxu0 %v7319
    %7840 = vmatpush.bf16.msra.mxu0 %v7315
    %7841 = vmatpush.bf16.msra.mxu0 %v7311
    %7842 = vmatpush.bf16.msra.mxu0 %v7307
    %7843 = vmatpush.bf16.msra.mxu0 %v7303
    %7844 = vmatpush.bf16.msra.mxu0 %v7299
    %7845 = vmatpush.bf16.msra.mxu0 %v7295
    %7846 = vmatmul.bf16.gmra.mxu0 %v6549
    %v7847 = vpop.f32.mrf.mxu0
    %v7848 = vadd.f32 %v7834, %v7847
    %v7849 = vpop.f32.mrf.mxu0
    %v7850 = vadd.f32 %v7836, %v7849
    %7851 = vdwg.mxu0
    %v7852 = vadd.f32 %v6304, %v7596
    %v7853 = vadd.f32 %v6305, %v7680
    %v7854 = vadd.f32 %v6306, %v7764
    %v7855 = vadd.f32 %v6307, %v7848
    %v7856 = vadd.f32 %v6308, %v7598
    %v7857 = vadd.f32 %v6309, %v7682
    %v7858 = vadd.f32 %v6310, %v7766
    %v7859 = vadd.f32 %v6311, %v7850
    %v7860 = vld [vmem:[#allocation4] sm:$0xf]
    %v7862 = vperm.slane %v7860, 0
    %v7863 = vperm.slane %v7860, 1
    %v7864 = vperm.slane %v7860, 2
    %v7865 = vperm.slane %v7860, 3
    %v7870 = vadd.f32 %v7852, %v7862
    %v7871 = vadd.f32 %v7853, %v7863
    %v7872 = vadd.f32 %v7854, %v7864
    %v7873 = vadd.f32 %v7855, %v7865
    %v7874 = vadd.f32 %v7856, %v7862
    %v7875 = vadd.f32 %v7857, %v7863
    %v7876 = vadd.f32 %v7858, %v7864
    %v7877 = vadd.f32 %v7859, %v7865
    %7880 = vrot.lane.b32.xlu0 %v7870, 64
    %v7881 = vpop.permute.xlu0 %7880
    %7882 = vrot.lane.b32.xlu0 %v7874, 64
    %v7883 = vpop.permute.xlu0 %7882
    %v7886 = vmax.f32 %v7870, %v7881
    %v7887 = vmax.f32 %v7874, %v7883
    %7890 = vrot.lane.b32.xlu0 %v7871, 64
    %v7891 = vpop.permute.xlu0 %7890
    %7892 = vrot.lane.b32.xlu0 %v7875, 64
    %v7893 = vpop.permute.xlu0 %7892
    %v7896 = vmax.f32 %v7871, %v7891
    %v7897 = vmax.f32 %v7875, %v7893
    %7900 = vrot.lane.b32.xlu0 %v7872, 64
    %v7901 = vpop.permute.xlu0 %7900
    %7902 = vrot.lane.b32.xlu0 %v7876, 64
    %v7903 = vpop.permute.xlu0 %7902
    %v7906 = vmax.f32 %v7872, %v7901
    %v7907 = vmax.f32 %v7876, %v7903
    %7910 = vrot.lane.b32.xlu0 %v7873, 64
    %v7911 = vpop.permute.xlu0 %7910
    %7912 = vrot.lane.b32.xlu0 %v7877, 64
    %v7913 = vpop.permute.xlu0 %7912
    %v7916 = vmax.f32 %v7873, %v7911
    %v7917 = vmax.f32 %v7877, %v7913
    %7920 = vrot.lane.b32.xlu0 %v7896, 64
    %v7921 = vpop.permute.xlu0 %7920
    %7922 = vrot.lane.b32.xlu0 %v7897, 64
    %v7923 = vpop.permute.xlu0 %7922
    %7928 = vrot.lane.b32.xlu0 %v7916, 64
    %v7929 = vpop.permute.xlu0 %7928
    %7930 = vrot.lane.b32.xlu0 %v7917, 64
    %v7931 = vpop.permute.xlu0 %7930
    %vm7934 = vcmask 523264
    %v7935 = vsel %vm7934, %v7886, %v7921
    %v7936 = vsel %vm7934, %v7887, %v7923
    %v7937 = vsel %vm7934, %v7906, %v7929
    %v7938 = vsel %vm7934, %v7907, %v7931
    %v7943 = vrot.slane %v7937, 6
    %v7944 = vrot.slane %v7938, 6
    %vm7945 = vcmask 1041408
    %v7946 = vsel %vm7945, %v7935, %v7943
    %vm7947 = vcmask 1043458
    %v7948 = vsel %vm7947, %v7935, %v7943
    %v7949 = vrot.slane %v7948, 2
    %vm7950 = vcmask 1045508
    %v7951 = vsel %vm7950, %v7935, %v7943
    %v7952 = vrot.slane %v7951, 4
    %vm7953 = vcmask 1045504
    %v7954 = vsel %vm7953, %v7943, %v7935
    %v7955 = vrot.slane %v7954, 6
    %v7956 = vsel %vm7945, %v7936, %v7944
    %v7957 = vsel %vm7947, %v7936, %v7944
    %v7958 = vrot.slane %v7957, 2
    %v7959 = vsel %vm7950, %v7936, %v7944
    %v7960 = vrot.slane %v7959, 4
    %v7961 = vsel %vm7953, %v7944, %v7936
    %v7962 = vrot.slane %v7961, 6
    %v7971 = vrot.slane %v7946, 7
    %v7972 = vrot.slane %v7971, 2
    %v7973 = vrot.slane %v7949, 7
    %v7974 = vrot.slane %v7973, 2
    %v7975 = vrot.slane %v7952, 7
    %v7976 = vrot.slane %v7975, 2
    %v7977 = vrot.slane %v7955, 7
    %v7978 = vrot.slane %v7977, 2
    %v7979 = vrot.slane %v7956, 7
    %v7980 = vrot.slane %v7979, 2
    %v7981 = vrot.slane %v7958, 7
    %v7982 = vrot.slane %v7981, 2
    %v7983 = vrot.slane %v7960, 7
    %v7984 = vrot.slane %v7983, 2
    %v7985 = vrot.slane %v7962, 7
    %v7986 = vrot.slane %v7985, 2
    %v7995 = vmax.f32 %v7946, %v7972
    %v7996 = vmax.f32 %v7949, %v7974
    %v7997 = vmax.f32 %v7952, %v7976
    %v7998 = vmax.f32 %v7955, %v7978
    %v7999 = vmax.f32 %v7956, %v7980
    %v8000 = vmax.f32 %v7958, %v7982
    %v8001 = vmax.f32 %v7960, %v7984
    %v8002 = vmax.f32 %v7962, %v7986
    %v8003 = vmax.f32 %v7995, 0.0
    %v8004 = vmax.f32 %v7996, 0.0
    %v8005 = vmax.f32 %v7997, 0.0
    %v8006 = vmax.f32 %v7998, 0.0
    %v8007 = vmax.f32 %v7999, 0.0
    %v8008 = vmax.f32 %v8000, 0.0
    %v8009 = vmax.f32 %v8001, 0.0
    %v8010 = vmax.f32 %v8002, 0.0
    %v8013 = vperm.slane %v8003, 0
    %v8014 = vperm.slane %v8003, 2
    %v8015 = vperm.slane %v8007, 0
    %v8016 = vperm.slane %v8007, 2
    %vm8017 = vcmask 1041409
    %v8018 = vsel %vm8017, %v8015, %v8013
    %v8019 = vsel %vm8017, %v8016, %v8014
    %v8024 = vperm.slane %v8004, 0
    %v8025 = vperm.slane %v8004, 2
    %v8026 = vperm.slane %v8008, 0
    %v8027 = vperm.slane %v8008, 2
    %v8028 = vsel %vm8017, %v8026, %v8024
    %v8029 = vsel %vm8017, %v8027, %v8025
    %v8034 = vperm.slane %v8005, 0
    %v8035 = vperm.slane %v8005, 2
    %v8036 = vperm.slane %v8009, 0
    %v8037 = vperm.slane %v8009, 2
    %v8038 = vsel %vm8017, %v8036, %v8034
    %v8039 = vsel %vm8017, %v8037, %v8035
    %v8044 = vperm.slane %v8006, 0
    %v8045 = vperm.slane %v8006, 2
    %v8046 = vperm.slane %v8010, 0
    %v8047 = vperm.slane %v8010, 2
    %v8048 = vsel %vm8017, %v8046, %v8044
    %v8049 = vsel %vm8017, %v8047, %v8045
    %v8052 = vpack.c.bf16 %v8019, %v8018
    %v8053 = vpack.c.bf16 %v8029, %v8028
    %v8054 = vpack.c.bf16 %v8039, %v8038
    %v8055 = vpack.c.bf16 %v8049, %v8048
    %v8060 = vrot.slane %v8052, 3
    %v8061 = vrot.slane %v8053, 6
    %v8062 = vrot.slane %v8053, 1
    %v8063 = vrot.slane %v8054, 4
    %v8064 = vrot.slane %v8054, 7
    %v8065 = vrot.slane %v8055, 2
    %v8066 = vrot.slane %v8055, 5
    %vm8067 = vcmask 1040384
    %v8070 = vsel %vm8067, %v8052, %v8060
    %vm8071 = vcmask 1042434
    %v8074 = vsel %vm8071, %v8061, %v8062
    %v8075 = vsel %vm7945, %v8070, %v8074
    %vm8076 = vcmask 1044484
    %v8079 = vsel %vm8076, %v8063, %v8064
    %vm8080 = vcmask 1046534
    %v8083 = vsel %vm8080, %v8065, %v8066
    %v8084 = vsel %vm7950, %v8079, %v8083
    %vm8085 = vcmask 1043456
    %v8086 = vsel %vm8085, %v8075, %v8084
    %8088 = vst [vmem:[%s3] sm:$0xff] %v8086
    // Predicated region
    $region22: #{cnn_mnist_forward.4} parent=1 // pred_check
      _
    $region23: #{cnn_mnist_forward.4} parent=1 // pred_check_branch
      %8090 = sbr.rel (0) target = $region25
    $region24: #{cnn_mnist_forward.4} parent=1 // pred_region
      _
    $region25: #{cnn_mnist_forward.4} parent=1 // pred_fallthru
      _
    // Predicated region
    $region26: #{cnn_mnist_forward.4} parent=1 // pred_check
      _
    $region27: #{cnn_mnist_forward.4} parent=1 // pred_check_branch
      %8092 = sbr.rel (0) target = $region29
    $region28: #{cnn_mnist_forward.4} parent=1 // pred_region
      _
    $region29: #{cnn_mnist_forward.4} parent=1 // pred_fallthru
      _
    %8093 = vsyncpa [#allocation3], 1
    %8094 = vsyncpa [#allocation5], 1

</llo_original>
